<compile_context>
chip_gen: v5e
topology: v5e:2x2
jax: 0.10.0
libtpu: 0.0.40
codegen_flags: <defaults>
</compile_context>

<pallas_src>
import jax
import jax.numpy as jnp
from jax.experimental import pallas as pl
from jax.experimental.pallas import tpu as pltpu


def projection_head_kernel(x_ref, w1_ref, b1_ref, w2_ref, b2_ref, o_ref):
    # x_ref:  (TB, D_in)  f32    streamed batch tile (cast to bf16 in-kernel)
    # w1_ref: (D_in, H)   bf16   resident weight (torch W1.T layout)
    # b1_ref: (1, H)      f32
    # w2_ref: (H, D_out)  bf16   resident weight (torch W2.T layout)
    # b2_ref: (1, D_out)  f32
    # o_ref:  (TB, D_out) f32 or bf16

    # Layer 1: bf16 MXU matmul with f32 accumulation, then f32 bias + ReLU.
    x_bf = x_ref[...].astype(jnp.bfloat16)
    h = jnp.dot(x_bf, w1_ref[...], preferred_element_type=jnp.float32)
    h = jnp.maximum(h + b1_ref[...], 0.0)

    # Layer 2: bf16 MXU matmul with f32 accumulation, then f32 bias.
    y = jnp.dot(h.astype(jnp.bfloat16), w2_ref[...],
                preferred_element_type=jnp.float32)
    o_ref[...] = (y + b2_ref[...]).astype(o_ref.dtype)


def _pick_block_b(batch, requested):
    """Pick the batch tile size.

    Largest tile that (a) does not exceed `requested`, (b) keeps >= 4 grid
    steps when the batch allows it (>= 2 steps per v7x TensorCore so the
    software pipeline overlaps x/out DMAs with compute), and (c) is a
    multiple of 8 (sublane) -- preferably a multiple of 256 (MXU-friendly).
    """
    if batch <= 8:
        return batch                       # single full-array block is legal
    cap = max(8, min(requested, batch))
    if batch >= 4 * 256:                   # enough rows for 4 MXU-sized steps
        cap = min(cap, pl.cdiv(batch, 4))
    for align in (256, 8):
        blk = (cap // align) * align
        if blk >= align:
            return blk
    return 8


def projection_head(x, w1, b1, w2, b2, *, block_b=1024, out_dtype=jnp.float32):
    """Fused MLP forward: relu(x @ w1 + b1) @ w2 + b2.

    x:  (B, D_in) float32
    w1: (D_in, H),  b1: (H,)      (transposed vs. torch.nn.Linear storage)
    w2: (H, D_out), b2: (D_out,)
    returns (B, D_out) in `out_dtype` (float32 default; bf16 option for the
    HBM-bound v6e/v7x generations).
    """
    B, d_in = x.shape
    h_dim = w1.shape[1]
    d_out = w2.shape[1]

    # Weights/biases are grid-resident: cast them ONCE here, not per grid step.
    # (x is deliberately NOT pre-cast -- the tile cast happens in-kernel.)
    w1_bf = w1.astype(jnp.bfloat16)
    w2_bf = w2.astype(jnp.bfloat16)
    b1_2d = b1.reshape(1, h_dim).astype(jnp.float32)
    b2_2d = b2.reshape(1, d_out).astype(jnp.float32)

    blk = _pick_block_b(B, block_b)
    n_blocks = pl.cdiv(B, blk)

    # True VMEM footprint (worst case: everything double-buffered) + headroom,
    # capped at 32 MiB so the limit is safe even on v7x (64 MiB physical VMEM).
    out_bytes = jnp.dtype(out_dtype).itemsize
    vmem_bytes = (
        2 * blk * d_in * 4                        # streamed x tiles (f32)
        + 2 * blk * d_out * out_bytes             # streamed out tiles
        + 2 * (d_in * h_dim + h_dim * d_out) * 2  # resident weights (bf16)
        + blk * d_in * 2                          # in-kernel bf16 copy of x
        + blk * h_dim * (4 + 2)                   # hidden activation (f32+bf16)
        + 4 * (h_dim + d_out) * 4                 # biases
    )
    vmem_limit = int(min(2 * vmem_bytes + (4 << 20), 32 << 20))

    def build(single_buffer_weights):
        resident_kw = {}
        if single_buffer_weights and hasattr(pl, "Buffered"):
            # Constant index_map => the weights never change across the grid;
            # single-buffering halves their VMEM footprint.
            resident_kw = dict(pipeline_mode=pl.Buffered(1))
        return pl.pallas_call(
            projection_head_kernel,
            out_shape=jax.ShapeDtypeStruct((B, d_out), out_dtype),
            grid_spec=pltpu.PrefetchScalarGridSpec(
                num_scalar_prefetch=0,
                grid=(n_blocks,),
                in_specs=[
                    pl.BlockSpec((blk, d_in), lambda i: (i, 0)),            # x tile
                    pl.BlockSpec((d_in, h_dim), lambda i: (0, 0), **resident_kw),
                    pl.BlockSpec((1, h_dim), lambda i: (0, 0), **resident_kw),
                    pl.BlockSpec((h_dim, d_out), lambda i: (0, 0), **resident_kw),
                    pl.BlockSpec((1, d_out), lambda i: (0, 0), **resident_kw),
                ],
                out_specs=pl.BlockSpec((blk, d_out), lambda i: (i, 0)),
            ),
            compiler_params=pltpu.CompilerParams(
                dimension_semantics=("parallel",),
                vmem_limit_bytes=vmem_limit,
            ),
        )

    args = (x, w1_bf, b1_2d, w2_bf, b2_2d)
    try:
        return build(single_buffer_weights=True)(*args)
    except Exception:
        # pipeline_mode=pl.Buffered(1) not supported by this jax build /
        # lowering path: retry with the default double-buffered residents.
        return build(single_buffer_weights=False)(*args)


def reference_f32(x, w1, b1, w2, b2):
    h = jnp.maximum(x @ w1 + b1, 0.0)
    return h @ w2 + b2


def reference_bf16(x, w1, b1, w2, b2):
    # Mirrors the kernel's numerics: bf16 operands, f32 accumulation, f32 epilogue.
    xb = x.astype(jnp.bfloat16)
    w1b = w1.astype(jnp.bfloat16)
    w2b = w2.astype(jnp.bfloat16)
    h = jnp.maximum(jnp.dot(xb, w1b, preferred_element_type=jnp.float32) + b1, 0.0)
    hb = h.astype(jnp.bfloat16)
    return jnp.dot(hb, w2b, preferred_element_type=jnp.float32) + b2


if __name__ == "__main__":
    # ProjectionHead(input_dim=256, output_dim=128); hidden dim fixed at 512 by
    # the module.  Batch chosen so the auto-picked tile (512 rows) gives a
    # 4-step grid -> 2 software-pipelined steps per v7x TensorCore.
    B, D_IN, HIDDEN, D_OUT = 2048, 256, 512, 128

    key = jax.random.PRNGKey(0)
    kx, kw1, kb1, kw2, kb2 = jax.random.split(key, 5)

    x = jax.random.normal(kx, (B, D_IN), dtype=jnp.float32)

    # Deterministic synthetic parameters (uniform init, like nn.Linear defaults).
    lim1 = 1.0 / (D_IN ** 0.5)
    w1 = jax.random.uniform(kw1, (D_IN, HIDDEN), minval=-lim1, maxval=lim1, dtype=jnp.float32)
    b1 = jax.random.uniform(kb1, (HIDDEN,), minval=-lim1, maxval=lim1, dtype=jnp.float32)
    lim2 = 1.0 / (HIDDEN ** 0.5)
    w2 = jax.random.uniform(kw2, (HIDDEN, D_OUT), minval=-lim2, maxval=lim2, dtype=jnp.float32)
    b2 = jax.random.uniform(kb2, (D_OUT,), minval=-lim2, maxval=lim2, dtype=jnp.float32)

    # Default f32-output path (PyTorch-parity output dtype).
    out = projection_head(x, w1, b1, w2, b2)
    out = jax.block_until_ready(out)
    assert out.shape == (B, D_OUT) and out.dtype == jnp.float32

    # Tight check vs. a reference with identical bf16-operand numerics.
    ref_bf = reference_bf16(x, w1, b1, w2, b2)
    assert jnp.allclose(out, ref_bf, atol=2e-3, rtol=2e-3), "mismatch vs bf16-path reference"

    # Loose check vs. the full-f32 PyTorch-equivalent semantics (bf16 rounding only).
    ref_f32 = reference_f32(x, w1, b1, w2, b2)
    assert jnp.allclose(out, ref_f32, atol=5e-2, rtol=5e-2), "mismatch vs f32 reference"

    # bf16-output path (recommended on the HBM-bound v6e/v7x): same compute,
    # only the final store is bf16.
    out_bf16 = projection_head(x, w1, b1, w2, b2, out_dtype=jnp.bfloat16)
    out_bf16 = jax.block_until_ready(out_bf16)
    assert out_bf16.shape == (B, D_OUT) and out_bf16.dtype == jnp.bfloat16
    assert jnp.allclose(out_bf16.astype(jnp.float32), ref_bf, atol=2e-2, rtol=2e-2), \
        "mismatch vs bf16-path reference (bf16 output)"

    print("KERNEL_OK")
</pallas_src>

<mosaic_0001>
module attributes {stable_mosaic.version = 11 : i64} {
  func.func @projection_head_kernel(%arg0: i32, %arg1: memref<512x256xf32, #tpu.memory_space<vmem>>, %arg2: memref<256x512xbf16, #tpu.memory_space<vmem>>, %arg3: memref<1x512xf32, #tpu.memory_space<vmem>>, %arg4: memref<512x128xbf16, #tpu.memory_space<vmem>>, %arg5: memref<1x128xf32, #tpu.memory_space<vmem>>, %arg6: memref<512x128xf32, #tpu.memory_space<vmem>>) attributes {dimension_semantics = [#tpu.dimension_semantics<parallel>], iteration_bounds = array<i64: 4>, scalar_prefetch = 0 : i64, scratch_operands = 0 : i64, tpu.core_type = #tpu.core_type<tc>, window_params = [{transform_indices = @transform_0, window_bounds = array<i64: 512, 256>}, {pipeline_mode = #tpu.pipeline_mode<synchronous>, transform_indices = @transform_1, window_bounds = array<i64: 256, 512>}, {pipeline_mode = #tpu.pipeline_mode<synchronous>, transform_indices = @transform_2, window_bounds = array<i64: 1, 512>}, {pipeline_mode = #tpu.pipeline_mode<synchronous>, transform_indices = @transform_3, window_bounds = array<i64: 512, 128>}, {pipeline_mode = #tpu.pipeline_mode<synchronous>, transform_indices = @transform_4, window_bounds = array<i64: 1, 128>}, {transform_indices = @transform_5, window_bounds = array<i64: 512, 128>}]} {
    %c0 = arith.constant 0 : index
    %c0_0 = arith.constant 0 : index
    %0 = vector.load %arg1[%c0, %c0_0] : memref<512x256xf32, #tpu.memory_space<vmem>>, vector<512x256xf32>
    %1 = arith.truncf %0 : vector<512x256xf32> to vector<512x256xbf16>
    %c0_1 = arith.constant 0 : index
    %c0_2 = arith.constant 0 : index
    %2 = vector.load %arg2[%c0_1, %c0_2] : memref<256x512xbf16, #tpu.memory_space<vmem>>, vector<256x512xbf16>
    %cst = arith.constant dense<0.000000e+00> : vector<512x512xf32>
    %3 = tpu.matmul %1, %2, %cst {dimension_numbers = #tpu.dot_dimension_numbers<[1], [0], [0], [1], [0, 0, 1, 1], [], []>} : vector<512x256xbf16>, vector<256x512xbf16>, vector<512x512xf32> -> vector<512x512xf32>
    %c0_3 = arith.constant 0 : index
    %c0_4 = arith.constant 0 : index
    %4 = vector.load %arg3[%c0_3, %c0_4] : memref<1x512xf32, #tpu.memory_space<vmem>>, vector<1x512xf32>
    %5 = vector.broadcast %4 : vector<1x512xf32> to vector<512x512xf32>
    %6 = arith.addf %3, %5 : vector<512x512xf32>
    %cst_5 = arith.constant 0.000000e+00 : f32
    %7 = vector.broadcast %cst_5 : f32 to vector<512x512xf32>
    %8 = arith.maximumf %6, %7 : vector<512x512xf32>
    %9 = arith.truncf %8 : vector<512x512xf32> to vector<512x512xbf16>
    %c0_6 = arith.constant 0 : index
    %c0_7 = arith.constant 0 : index
    %10 = vector.load %arg4[%c0_6, %c0_7] : memref<512x128xbf16, #tpu.memory_space<vmem>>, vector<512x128xbf16>
    %cst_8 = arith.constant dense<0.000000e+00> : vector<512x128xf32>
    %11 = tpu.matmul %9, %10, %cst_8 {dimension_numbers = #tpu.dot_dimension_numbers<[1], [0], [0], [1], [0, 0, 1, 1], [], []>} : vector<512x512xbf16>, vector<512x128xbf16>, vector<512x128xf32> -> vector<512x128xf32>
    %c0_9 = arith.constant 0 : index
    %c0_10 = arith.constant 0 : index
    %12 = vector.load %arg5[%c0_9, %c0_10] : memref<1x128xf32, #tpu.memory_space<vmem>>, vector<1x128xf32>
    %13 = vector.broadcast %12 : vector<1x128xf32> to vector<512x128xf32>
    %14 = arith.addf %11, %13 : vector<512x128xf32>
    %c0_11 = arith.constant 0 : index
    %c0_12 = arith.constant 0 : index
    %15 = vector.load %arg6[%c0_11, %c0_12] : memref<512x128xf32, #tpu.memory_space<vmem>>, vector<512x128xf32>
    tpu.vector_store %arg6[%c0_11, %c0_12], %14 {strides = array<i32>} : memref<512x128xf32, #tpu.memory_space<vmem>>, vector<512x128xf32>,
    return
  }
  func.func @transform_0(%arg0: i32) -> (i32, i32) {
    %c0_i32 = arith.constant 0 : i32
    %c0_i32_0 = arith.constant 0 : i32
    return %arg0, %c0_i32 : i32, i32
  }
  func.func @transform_1(%arg0: i32) -> (i32, i32) {
    %c0_i32 = arith.constant 0 : i32
    %c0_i32_0 = arith.constant 0 : i32
    %c0_i32_1 = arith.constant 0 : i32
    return %c0_i32, %c0_i32_0 : i32, i32
  }
  func.func @transform_2(%arg0: i32) -> (i32, i32) {
    %c0_i32 = arith.constant 0 : i32
    %c0_i32_0 = arith.constant 0 : i32
    %c0_i32_1 = arith.constant 0 : i32
    return %c0_i32, %c0_i32_0 : i32, i32
  }
  func.func @transform_3(%arg0: i32) -> (i32, i32) {
    %c0_i32 = arith.constant 0 : i32
    %c0_i32_0 = arith.constant 0 : i32
    %c0_i32_1 = arith.constant 0 : i32
    return %c0_i32, %c0_i32_0 : i32, i32
  }
  func.func @transform_4(%arg0: i32) -> (i32, i32) {
    %c0_i32 = arith.constant 0 : i32
    %c0_i32_0 = arith.constant 0 : i32
    %c0_i32_1 = arith.constant 0 : i32
    return %c0_i32, %c0_i32_0 : i32, i32
  }
  func.func @transform_5(%arg0: i32) -> (i32, i32) {
    %c0_i32 = arith.constant 0 : i32
    %c0_i32_0 = arith.constant 0 : i32
    return %arg0, %c0_i32 : i32, i32
  }
}

module attributes {stable_mosaic.version = 11 : i64} {
  func.func @projection_head_kernel(%arg0: i32, %arg1: memref<512x256xf32, #tpu.memory_space<vmem>>, %arg2: memref<256x512xbf16, #tpu.memory_space<vmem>>, %arg3: memref<1x512xf32, #tpu.memory_space<vmem>>, %arg4: memref<512x128xbf16, #tpu.memory_space<vmem>>, %arg5: memref<1x128xf32, #tpu.memory_space<vmem>>, %arg6: memref<512x128xf32, #tpu.memory_space<vmem>>) attributes {dimension_semantics = [#tpu.dimension_semantics<parallel>], iteration_bounds = array<i64: 4>, scalar_prefetch = 0 : i64, scratch_operands = 0 : i64, tpu.core_type = #tpu.core_type<tc>, window_params = [{transform_indices = @transform_0, window_bounds = array<i64: 512, 256>}, {pipeline_mode = #tpu.pipeline_mode<synchronous>, transform_indices = @transform_1, window_bounds = array<i64: 256, 512>}, {pipeline_mode = #tpu.pipeline_mode<synchronous>, transform_indices = @transform_2, window_bounds = array<i64: 1, 512>}, {pipeline_mode = #tpu.pipeline_mode<synchronous>, transform_indices = @transform_3, window_bounds = array<i64: 512, 128>}, {pipeline_mode = #tpu.pipeline_mode<synchronous>, transform_indices = @transform_4, window_bounds = array<i64: 1, 128>}, {transform_indices = @transform_5, window_bounds = array<i64: 512, 128>}]} {
    %c0 = arith.constant 0 : index
    %c0_0 = arith.constant 0 : index
    %0 = vector.load %arg1[%c0, %c0_0] : memref<512x256xf32, #tpu.memory_space<vmem>>, vector<512x256xf32>
    %1 = arith.truncf %0 : vector<512x256xf32> to vector<512x256xbf16>
    %c0_1 = arith.constant 0 : index
    %c0_2 = arith.constant 0 : index
    %2 = vector.load %arg2[%c0_1, %c0_2] : memref<256x512xbf16, #tpu.memory_space<vmem>>, vector<256x512xbf16>
    %cst = arith.constant dense<0.000000e+00> : vector<512x512xf32>
    %3 = tpu.matmul %1, %2, %cst {dimension_numbers = #tpu.dot_dimension_numbers<[1], [0], [0], [1], [0, 0, 1, 1], [], []>} : vector<512x256xbf16>, vector<256x512xbf16>, vector<512x512xf32> -> vector<512x512xf32>
    %c0_3 = arith.constant 0 : index
    %c0_4 = arith.constant 0 : index
    %4 = vector.load %arg3[%c0_3, %c0_4] : memref<1x512xf32, #tpu.memory_space<vmem>>, vector<1x512xf32>
    %5 = vector.broadcast %4 : vector<1x512xf32> to vector<512x512xf32>
    %6 = arith.addf %3, %5 : vector<512x512xf32>
    %cst_5 = arith.constant 0.000000e+00 : f32
    %7 = vector.broadcast %cst_5 : f32 to vector<512x512xf32>
    %8 = arith.maximumf %6, %7 : vector<512x512xf32>
    %9 = arith.truncf %8 : vector<512x512xf32> to vector<512x512xbf16>
    %c0_6 = arith.constant 0 : index
    %c0_7 = arith.constant 0 : index
    %10 = vector.load %arg4[%c0_6, %c0_7] : memref<512x128xbf16, #tpu.memory_space<vmem>>, vector<512x128xbf16>
    %cst_8 = arith.constant dense<0.000000e+00> : vector<512x128xf32>
    %11 = tpu.matmul %9, %10, %cst_8 {dimension_numbers = #tpu.dot_dimension_numbers<[1], [0], [0], [1], [0, 0, 1, 1], [], []>} : vector<512x512xbf16>, vector<512x128xbf16>, vector<512x128xf32> -> vector<512x128xf32>
    %c0_9 = arith.constant 0 : index
    %c0_10 = arith.constant 0 : index
    %12 = vector.load %arg5[%c0_9, %c0_10] : memref<1x128xf32, #tpu.memory_space<vmem>>, vector<1x128xf32>
    %13 = vector.broadcast %12 : vector<1x128xf32> to vector<512x128xf32>
    %14 = arith.addf %11, %13 : vector<512x128xf32>
    %c0_11 = arith.constant 0 : index
    %c0_12 = arith.constant 0 : index
    %15 = vector.load %arg6[%c0_11, %c0_12] : memref<512x128xf32, #tpu.memory_space<vmem>>, vector<512x128xf32>
    tpu.vector_store %arg6[%c0_11, %c0_12], %14 {strides = array<i32>} : memref<512x128xf32, #tpu.memory_space<vmem>>, vector<512x128xf32>,
    return
  }
  func.func @transform_0(%arg0: i32) -> (i32, i32) {
    %c0_i32 = arith.constant 0 : i32
    %c0_i32_0 = arith.constant 0 : i32
    return %arg0, %c0_i32 : i32, i32
  }
  func.func @transform_1(%arg0: i32) -> (i32, i32) {
    %c0_i32 = arith.constant 0 : i32
    %c0_i32_0 = arith.constant 0 : i32
    %c0_i32_1 = arith.constant 0 : i32
    return %c0_i32, %c0_i32_0 : i32, i32
  }
  func.func @transform_2(%arg0: i32) -> (i32, i32) {
    %c0_i32 = arith.constant 0 : i32
    %c0_i32_0 = arith.constant 0 : i32
    %c0_i32_1 = arith.constant 0 : i32
    return %c0_i32, %c0_i32_0 : i32, i32
  }
  func.func @transform_3(%arg0: i32) -> (i32, i32) {
    %c0_i32 = arith.constant 0 : i32
    %c0_i32_0 = arith.constant 0 : i32
    %c0_i32_1 = arith.constant 0 : i32
    return %c0_i32, %c0_i32_0 : i32, i32
  }
  func.func @transform_4(%arg0: i32) -> (i32, i32) {
    %c0_i32 = arith.constant 0 : i32
    %c0_i32_0 = arith.constant 0 : i32
    %c0_i32_1 = arith.constant 0 : i32
    return %c0_i32, %c0_i32_0 : i32, i32
  }
  func.func @transform_5(%arg0: i32) -> (i32, i32) {
    %c0_i32 = arith.constant 0 : i32
    %c0_i32_0 = arith.constant 0 : i32
    return %arg0, %c0_i32 : i32, i32
  }
}

</mosaic_0001>

<llo_original>
// kernel: tpu_custom_call.1
$region0: #{tpu_custom_call.1}
  #allocation0 [shape = 'u32[]', space=smem, size = 0x4, offset = 0x4, fixed_abs, tag = 'smem constant byte address 0x4 - core index']
  #allocation1 [shape = 'u32[72,128]{1,0:T(1,128)}', space=vmem, size = 0x9000, scoped, tag = 'internal scratch']
  %s0 = inlined_call_operand.hbm [shape: f32[2048,256], index: 0, kind: input, shape index: {}]
  %s1 = inlined_call_operand.hbm [shape: bf16[256,512], index: 1, kind: input, shape index: {}]
  %s2 = inlined_call_operand.hbm [shape: f32[1,512], index: 2, kind: input, shape index: {}]
  %s3 = inlined_call_operand.hbm [shape: bf16[512,128], index: 3, kind: input, shape index: {}]
  %s4 = inlined_call_operand.hbm [shape: f32[1,128], index: 4, kind: input, shape index: {}]
  %s5 = inlined_call_operand.hbm [shape: f32[2048,128], index: 5, kind: output, shape index: {}]
  %s6 = sld [smem:[#allocation0]]
  $region73: #{tpu_custom_call.1} parent=0
    _
  %s8 = ssub.s32 1, %s6
  %s9 = scalar_select 0, %s8, %s6
  $region1: #{tpu_custom_call.1} parent=0
    #allocation2 [shape = 'u8[1048576]{0}', space=vmem, size = 0x100000, scoped, tag = 'input window, operand 0']
    #allocation3 [shape = 's32[2]{0}', space=sflag, size = 0x8, scoped, tag = 'scoped memory for tpu_custom_call.1']
    #allocation4 [shape = 's32[2]{0}', space=sflag, size = 0x8, scoped, tag = 'scoped memory for tpu_custom_call.1']
    #allocation5 [shape = 'u8[262144]{0}', space=vmem, size = 0x40000, scoped, tag = 'input window, operand 1, single buffered']
    #allocation6 [shape = 's32[1]{0}', space=sflag, size = 0x4, scoped, tag = 'scoped memory for tpu_custom_call.1']
    #allocation7 [shape = 'u8[2048]{0}', space=vmem, size = 0x800, scoped, tag = 'input window, operand 2, single buffered']
    #allocation8 [shape = 'u8[131072]{0}', space=vmem, size = 0x20000, scoped, tag = 'input window, operand 3, single buffered']
    #allocation9 [shape = 's32[1]{0}', space=sflag, size = 0x4, scoped, tag = 'scoped memory for tpu_custom_call.1']
    #allocation10 [shape = 'u8[512]{0}', space=vmem, size = 0x400, scoped, tag = 'input window, operand 4, single buffered']
    #allocation11 [shape = 'u8[524288]{0}', space=vmem, size = 0x80000, scoped, tag = 'output window, operand 0']
    %10 = vsyncpa [#allocation3], 0
    %s11 = scalar_lea.sflag [#allocation3], 1
    %12 = vsyncpa %s11, 0
    %13 = vsyncpa [#allocation6], 0
    %14 = vsyncpa [#allocation9], 0
    %15 = vsyncpa [#allocation4], 0
    %s16 = scalar_lea.sflag [#allocation4], 1
    %17 = vsyncpa %s16, 0
    loop: start=0, step=1, limit=6
    $region2: #{tpu_custom_call.1} parent=1 // loop_pre_header
      _
    $region3: #{tpu_custom_call.1} parent=1 // loop_header
      %s19 = sphi 0, %s23
      %p20 = scmp.ge.s32.totalorder %s19, 6
      %s29 = sphi 0, %s31
      %s32 = sphi 0, %s29
      %s33 = sphi 0, %s32
      %s49 = sphi 0, %s33
      %s53 = sphi 0, %s53
      %s55 = sphi 0, %s53
      %s56 = sphi 0, %s55
      %s70 = sphi 0, %s56
      %s74 = sphi 0, %s74
      %s76 = sphi 0, %s74
      %s77 = sphi 0, %s76
      %s91 = sphi 0, %s77
      %s95 = sphi 0, %s95
      %s97 = sphi 0, %s95
      %s98 = sphi 0, %s97
      %s112 = sphi 0, %s98
      %s116 = sphi 0, %s116
      %s118 = sphi 0, %s116
      %s119 = sphi 0, %s118
      %s133 = sphi 0, %s119
      %s139 = sphi 0, %s141
      %s142 = sphi 0, %s139
      %s143 = sphi 0, %s142
      %s159 = sphi 0, %s143
    $region4: #{tpu_custom_call.1} parent=1 // loop_header_branch
      %22 = sbr.rel (%p20) target = $region8
    $region5: #{tpu_custom_call.1} parent=1 // loop_body
      %s24 = ssub.s32 %s19, 1
      %s25 = ssub.s32 %s19, 2
      %s26 = sadd.s32 %s19, 1
      %s27 = ssub.s32 %s19, %s26
      %p28 = scmp.eq.s32.totalorder %s27, 0
      %s30 = sadd.s32 %s29, 1
      %s31 = scalar_select %p28, %s29, %s30
      %p34 = pneg %p28
      %p35 = scmp.eq.s32.totalorder %s19, 3
      %p36 = por %p34, %p35
      %p37 = scmp.ne.s32.totalorder %s29, %s32
      %p38 = scmp.eq.s32.totalorder %s19, 0
      %p39 = por %p37, %p38
      %p40 = scmp.ne.s32.totalorder %s29, %s32
      %p41 = scmp.eq.s32.totalorder %s24, 3
      %p42 = por %p40, %p41
      %p43 = scmp.ne.s32.totalorder %s32, %s33
      %p44 = scmp.eq.s32.totalorder %s24, 0
      %p45 = por %p43, %p44
      %p46 = scmp.ne.s32.totalorder %s32, %s33
      %p47 = scmp.eq.s32.totalorder %s25, 3
      %p48 = por %p46, %p47
      %p50 = scmp.ne.s32.totalorder %s33, %s49
      %p51 = scmp.eq.s32.totalorder %s25, 0
      %p52 = por %p50, %p51
      %s54 = sadd.s32 %s53, 1
      %p57 = scmp.eq.s32.totalorder %s19, 3
      %p58 = scmp.ne.s32.totalorder %s53, %s55
      %p59 = scmp.eq.s32.totalorder %s19, 0
      %p60 = por %p58, %p59
      %p61 = scmp.ne.s32.totalorder %s53, %s55
      %p62 = scmp.eq.s32.totalorder %s24, 3
      %p63 = por %p61, %p62
      %p64 = scmp.ne.s32.totalorder %s55, %s56
      %p65 = scmp.eq.s32.totalorder %s24, 0
      %p66 = por %p64, %p65
      %p67 = scmp.ne.s32.totalorder %s55, %s56
      %p68 = scmp.eq.s32.totalorder %s25, 3
      %p69 = por %p67, %p68
      %p71 = scmp.ne.s32.totalorder %s56, %s70
      %p72 = scmp.eq.s32.totalorder %s25, 0
      %p73 = por %p71, %p72
      %s75 = sadd.s32 %s74, 1
      %p78 = scmp.eq.s32.totalorder %s19, 3
      %p79 = scmp.ne.s32.totalorder %s74, %s76
      %p80 = scmp.eq.s32.totalorder %s19, 0
      %p81 = por %p79, %p80
      %p82 = scmp.ne.s32.totalorder %s74, %s76
      %p83 = scmp.eq.s32.totalorder %s24, 3
      %p84 = por %p82, %p83
      %p85 = scmp.ne.s32.totalorder %s76, %s77
      %p86 = scmp.eq.s32.totalorder %s24, 0
      %p87 = por %p85, %p86
      %p88 = scmp.ne.s32.totalorder %s76, %s77
      %p89 = scmp.eq.s32.totalorder %s25, 3
      %p90 = por %p88, %p89
      %p92 = scmp.ne.s32.totalorder %s77, %s91
      %p93 = scmp.eq.s32.totalorder %s25, 0
      %p94 = por %p92, %p93
      %s96 = sadd.s32 %s95, 1
      %p99 = scmp.eq.s32.totalorder %s19, 3
      %p100 = scmp.ne.s32.totalorder %s95, %s97
      %p101 = scmp.eq.s32.totalorder %s19, 0
      %p102 = por %p100, %p101
      %p103 = scmp.ne.s32.totalorder %s95, %s97
      %p104 = scmp.eq.s32.totalorder %s24, 3
      %p105 = por %p103, %p104
      %p106 = scmp.ne.s32.totalorder %s97, %s98
      %p107 = scmp.eq.s32.totalorder %s24, 0
      %p108 = por %p106, %p107
      %p109 = scmp.ne.s32.totalorder %s97, %s98
      %p110 = scmp.eq.s32.totalorder %s25, 3
      %p111 = por %p109, %p110
      %p113 = scmp.ne.s32.totalorder %s98, %s112
      %p114 = scmp.eq.s32.totalorder %s25, 0
      %p115 = por %p113, %p114
      %s117 = sadd.s32 %s116, 1
      %p120 = scmp.eq.s32.totalorder %s19, 3
      %p121 = scmp.ne.s32.totalorder %s116, %s118
      %p122 = scmp.eq.s32.totalorder %s19, 0
      %p123 = por %p121, %p122
      %p124 = scmp.ne.s32.totalorder %s116, %s118
      %p125 = scmp.eq.s32.totalorder %s24, 3
      %p126 = por %p124, %p125
      %p127 = scmp.ne.s32.totalorder %s118, %s119
      %p128 = scmp.eq.s32.totalorder %s24, 0
      %p129 = por %p127, %p128
      %p130 = scmp.ne.s32.totalorder %s118, %s119
      %p131 = scmp.eq.s32.totalorder %s25, 3
      %p132 = por %p130, %p131
      %p134 = scmp.ne.s32.totalorder %s119, %s133
      %p135 = scmp.eq.s32.totalorder %s25, 0
      %p136 = por %p134, %p135
      %s137 = ssub.s32 %s19, %s26
      %p138 = scmp.eq.s32.totalorder %s137, 0
      %s140 = sadd.s32 %s139, 1
      %s141 = scalar_select %p138, %s139, %s140
      %p144 = pneg %p138
      %p145 = scmp.eq.s32.totalorder %s19, 3
      %p146 = por %p144, %p145
      %p147 = scmp.ne.s32.totalorder %s139, %s142
      %p148 = scmp.eq.s32.totalorder %s19, 0
      %p149 = por %p147, %p148
      %p150 = scmp.ne.s32.totalorder %s139, %s142
      %p151 = scmp.eq.s32.totalorder %s24, 3
      %p152 = por %p150, %p151
      %p153 = scmp.ne.s32.totalorder %s142, %s143
      %p154 = scmp.eq.s32.totalorder %s24, 0
      %p155 = por %p153, %p154
      %p156 = scmp.ne.s32.totalorder %s142, %s143
      %p157 = scmp.eq.s32.totalorder %s25, 3
      %p158 = por %p156, %p157
      %p160 = scmp.ne.s32.totalorder %s143, %s159
      %p161 = scmp.eq.s32.totalorder %s25, 0
      %p162 = por %p160, %p161
      %p163 = scmp.le.s32.totalorder 1, %s19
      %p164 = scmp.lt.s32.totalorder %s19, 5
      %p165 = pnand %p163, %p164
      %p166 = pneg %p165
      // Predicated region
      $region9: #{tpu_custom_call.1} parent=5 // pred_check
        _
      $region10: #{tpu_custom_call.1} parent=5 // pred_check_branch
        %168 = sbr.rel (%p165) target = $region12
      $region11: #{tpu_custom_call.1} parent=5 // pred_region
        %s169 = ssub.s32 %s19, 1
        // Predicated region
        $region13: #{tpu_custom_call.1} parent=11 // pred_check
          %p170 = pneg %p66
        $region14: #{tpu_custom_call.1} parent=11 // pred_check_branch
          %172 = sbr.rel (%p170) target = $region16
        $region15: #{tpu_custom_call.1} parent=11 // pred_region
          %174 = vsyncadd [#allocation6], 0
          %s175 = sshll.u32 %s1, 4
          %s176 = int_to_ptr.hbm [resolvable:$true] %s175
          %s177 = sshll.u32 [#allocation5], 4
          %s178 = int_to_ptr.vmem [resolvable:$true] %s177
          %183 = dma.hbm_to_vmem [thread:$0]  %s176, 8192, %s178, [#allocation6], 256, 256, 16
        $region16: #{tpu_custom_call.1} parent=11 // pred_fallthru
          _
        // Predicated region
        $region17: #{tpu_custom_call.1} parent=11 // pred_check
          %p184 = pneg %p87
        $region18: #{tpu_custom_call.1} parent=11 // pred_check_branch
          %186 = sbr.rel (%p184) target = $region20
        $region19: #{tpu_custom_call.1} parent=11 // pred_region
          %188 = vsyncadd [#allocation6], 0
          %s190 = sshll.u32 %s2, 4
          %s191 = int_to_ptr.hbm [resolvable:$true] %s190
          %s192 = sshll.u32 [#allocation7], 4
          %s193 = int_to_ptr.vmem [resolvable:$true] %s192
          %195 = dma.hbm_to_vmem [thread:$0]  %s191, 64, %s193, [#allocation6]
        $region20: #{tpu_custom_call.1} parent=11 // pred_fallthru
          _
        // Predicated region
        $region21: #{tpu_custom_call.1} parent=11 // pred_check
          %p196 = pneg %p108
        $region22: #{tpu_custom_call.1} parent=11 // pred_check_branch
          %198 = sbr.rel (%p196) target = $region24
        $region23: #{tpu_custom_call.1} parent=11 // pred_region
          %200 = vsyncadd [#allocation9], 0
          %s201 = sshll.u32 %s3, 4
          %s202 = int_to_ptr.hbm [resolvable:$true] %s201
          %s203 = sshll.u32 [#allocation8], 4
          %s204 = int_to_ptr.vmem [resolvable:$true] %s203
          %209 = dma.hbm_to_vmem [thread:$0]  %s202, 4096, %s204, [#allocation9], 64, 64, 4
        $region24: #{tpu_custom_call.1} parent=11 // pred_fallthru
          _
        // Predicated region
        $region25: #{tpu_custom_call.1} parent=11 // pred_check
          %p210 = pneg %p129
        $region26: #{tpu_custom_call.1} parent=11 // pred_check_branch
          %212 = sbr.rel (%p210) target = $region28
        $region27: #{tpu_custom_call.1} parent=11 // pred_region
          %214 = vsyncadd [#allocation9], 0
          %s216 = sshll.u32 %s4, 4
          %s217 = int_to_ptr.hbm [resolvable:$true] %s216
          %s218 = sshll.u32 [#allocation10], 4
          %s219 = int_to_ptr.vmem [resolvable:$true] %s218
          %221 = dma.hbm_to_vmem [thread:$0]  %s217, 16, %s219, [#allocation9]
        $region28: #{tpu_custom_call.1} parent=11 // pred_fallthru
          _
      $region12: #{tpu_custom_call.1} parent=5 // pred_fallthru
        _
      %p222 = scmp.lt.s32.totalorder %s19, 4
      // Predicated region
      $region29: #{tpu_custom_call.1} parent=5 // pred_check
        %p223 = pneg %p222
      $region30: #{tpu_custom_call.1} parent=5 // pred_check_branch
        %225 = sbr.rel (%p223) target = $region32
      $region31: #{tpu_custom_call.1} parent=5 // pred_region
        // Predicated region
        $region33: #{tpu_custom_call.1} parent=31 // pred_check
          %p226 = pneg %p39
        $region34: #{tpu_custom_call.1} parent=31 // pred_check_branch
          %228 = sbr.rel (%p226) target = $region36
        $region35: #{tpu_custom_call.1} parent=31 // pred_region
          %s229 = sand.u32 %s29, 1
          %s230 = scalar_lea.sflag [#allocation3], %s229
          %s231 = sand.u32 %s29, 1
          %s232 = smul.addr %s231, 1024
          %s233 = scalar_lea.vmem [#allocation2], %s232
          %s234 = smul.u32 64, %s19
          %236 = vsyncadd %s230, 0
          %s237 = smul.addr %s234, 2
          %s238 = smul.addr %s237, 8
          %s239 = scalar_lea.hbm %s0, %s238
          %s240 = sshll.u32 %s239, 4
          %s241 = int_to_ptr.hbm [resolvable:$true] %s240
          %s242 = sshll.u32 %s233, 4
          %s243 = int_to_ptr.vmem [resolvable:$true] %s242
          %248 = dma.hbm_to_vmem [thread:$0]  %s241, 16384, %s243, %s230, 256, 256, 16
        $region36: #{tpu_custom_call.1} parent=31 // pred_fallthru
          _
      $region32: #{tpu_custom_call.1} parent=5 // pred_fallthru
        _
      %p249 = scmp.le.s32.totalorder 1, %s19
      %p250 = scmp.lt.s32.totalorder %s19, 5
      %p251 = pnand %p249, %p250
      %p252 = pneg %p251
      // Predicated region
      $region37: #{tpu_custom_call.1} parent=5 // pred_check
        _
      $region38: #{tpu_custom_call.1} parent=5 // pred_check_branch
        %254 = sbr.rel (%p251) target = $region40
      $region39: #{tpu_custom_call.1} parent=5 // pred_region
        %s255 = ssub.s32 %s19, 1
        %s256 = sand.u32 %s32, 1
        %s257 = scalar_lea.sflag [#allocation3], %s256
        %s258 = sand.u32 %s32, 1
        %s259 = smul.addr %s258, 1024
        %s260 = scalar_lea.vmem [#allocation2], %s259
        // Predicated region
        $region41: #{tpu_custom_call.1} parent=39 // pred_check
          %p261 = pneg %p45
        $region42: #{tpu_custom_call.1} parent=39 // pred_check_branch
          %263 = sbr.rel (%p261) target = $region44
        $region43: #{tpu_custom_call.1} parent=39 // pred_region
          %265 = dma.done %s257, 16384
        $region44: #{tpu_custom_call.1} parent=39 // pred_fallthru
          _
        // Predicated region
        $region45: #{tpu_custom_call.1} parent=39 // pred_check
          %p266 = pneg %p66
        $region46: #{tpu_custom_call.1} parent=39 // pred_check_branch
          %268 = sbr.rel (%p266) target = $region48
        $region47: #{tpu_custom_call.1} parent=39 // pred_region
          %270 = dma.done [#allocation6], 8192
        $region48: #{tpu_custom_call.1} parent=39 // pred_fallthru
          _
        // Predicated region
        $region49: #{tpu_custom_call.1} parent=39 // pred_check
          %p271 = pneg %p87
        $region50: #{tpu_custom_call.1} parent=39 // pred_check_branch
          %273 = sbr.rel (%p271) target = $region52
        $region51: #{tpu_custom_call.1} parent=39 // pred_region
          %275 = dma.done [#allocation6], 64
        $region52: #{tpu_custom_call.1} parent=39 // pred_fallthru
          _
        // Predicated region
        $region53: #{tpu_custom_call.1} parent=39 // pred_check
          %p276 = pneg %p108
        $region54: #{tpu_custom_call.1} parent=39 // pred_check_branch
          %278 = sbr.rel (%p276) target = $region56
        $region55: #{tpu_custom_call.1} parent=39 // pred_region
          %280 = dma.done [#allocation9], 4096
        $region56: #{tpu_custom_call.1} parent=39 // pred_fallthru
          _
        // Predicated region
        $region57: #{tpu_custom_call.1} parent=39 // pred_check
          %p281 = pneg %p129
        $region58: #{tpu_custom_call.1} parent=39 // pred_check_branch
          %283 = sbr.rel (%p281) target = $region60
        $region59: #{tpu_custom_call.1} parent=39 // pred_region
          %285 = dma.done [#allocation9], 16
        $region60: #{tpu_custom_call.1} parent=39 // pred_fallthru
          _
        %s286 = sand.u32 %s32, 1
        %s287 = scalar_lea.sflag [#allocation3], %s286
        %s288 = sand.u32 %s32, 1
        %s289 = smul.addr %s288, 1024
        %s290 = scalar_lea.vmem [#allocation2], %s289
        %p291 = pneg %p45
        %p292 = pneg %p42
        %p293 = pneg %p66
        %p294 = pneg %p63
        %p295 = pneg %p87
        %p296 = pneg %p84
        %p297 = pneg %p108
        %p298 = pneg %p105
        %p299 = pneg %p129
        %p300 = pneg %p126
        %p301 = pneg %p155
        %p302 = pneg %p152
        %s303 = sand.u32 %s142, 1
        %s304 = scalar_lea.sflag [#allocation4], %s303
        %s305 = sand.u32 %s142, 1
        %s306 = smul.addr %s305, 512
        %s307 = scalar_lea.vmem [#allocation11], %s306
        %s308 = smul.u32 64, %s24
        %s309 = smul.u32 64, %s24
        %v310 = vld [vmem:[%s260] sm:$0xff]
        %v311 = vld [vmem:[%s260 + $0x8] sm:$0xff]
        %v312 = vld [vmem:[%s260 + $0x10] sm:$0xff]
        %v313 = vld [vmem:[%s260 + $0x18] sm:$0xff]
        %v314 = vld [vmem:[%s260 + $0x20] sm:$0xff]
        %v315 = vld [vmem:[%s260 + $0x28] sm:$0xff]
        %v316 = vld [vmem:[%s260 + $0x30] sm:$0xff]
        %v317 = vld [vmem:[%s260 + $0x38] sm:$0xff]
        %v318 = vld [vmem:[%s260 + $0x40] sm:$0xff]
        %v319 = vld [vmem:[%s260 + $0x48] sm:$0xff]
        %v320 = vld [vmem:[%s260 + $0x50] sm:$0xff]
        %v321 = vld [vmem:[%s260 + $0x58] sm:$0xff]
        %v322 = vld [vmem:[%s260 + $0x60] sm:$0xff]
        %v323 = vld [vmem:[%s260 + $0x68] sm:$0xff]
        %v324 = vld [vmem:[%s260 + $0x70] sm:$0xff]
        %v325 = vld [vmem:[%s260 + $0x78] sm:$0xff]
        %v326 = vld [vmem:[%s260 + $0x80] sm:$0xff]
        %v327 = vld [vmem:[%s260 + $0x88] sm:$0xff]
        %v328 = vld [vmem:[%s260 + $0x90] sm:$0xff]
        %v329 = vld [vmem:[%s260 + $0x98] sm:$0xff]
        %v330 = vld [vmem:[%s260 + $0xa0] sm:$0xff]
        %v331 = vld [vmem:[%s260 + $0xa8] sm:$0xff]
        %v332 = vld [vmem:[%s260 + $0xb0] sm:$0xff]
        %v333 = vld [vmem:[%s260 + $0xb8] sm:$0xff]
        %v334 = vld [vmem:[%s260 + $0xc0] sm:$0xff]
        %v335 = vld [vmem:[%s260 + $0xc8] sm:$0xff]
        %v336 = vld [vmem:[%s260 + $0xd0] sm:$0xff]
        %v337 = vld [vmem:[%s260 + $0xd8] sm:$0xff]
        %v338 = vld [vmem:[%s260 + $0xe0] sm:$0xff]
        %v339 = vld [vmem:[%s260 + $0xe8] sm:$0xff]
        %v340 = vld [vmem:[%s260 + $0xf0] sm:$0xff]
        %v341 = vld [vmem:[%s260 + $0xf8] sm:$0xff]
        %v342 = vld [vmem:[%s260 + $0x100] sm:$0xff]
        %v343 = vld [vmem:[%s260 + $0x108] sm:$0xff]
        %v344 = vld [vmem:[%s260 + $0x110] sm:$0xff]
        %v345 = vld [vmem:[%s260 + $0x118] sm:$0xff]
        %v346 = vld [vmem:[%s260 + $0x120] sm:$0xff]
        %v347 = vld [vmem:[%s260 + $0x128] sm:$0xff]
        %v348 = vld [vmem:[%s260 + $0x130] sm:$0xff]
        %v349 = vld [vmem:[%s260 + $0x138] sm:$0xff]
        %v350 = vld [vmem:[%s260 + $0x140] sm:$0xff]
        %v351 = vld [vmem:[%s260 + $0x148] sm:$0xff]
        %v352 = vld [vmem:[%s260 + $0x150] sm:$0xff]
        %v353 = vld [vmem:[%s260 + $0x158] sm:$0xff]
        %v354 = vld [vmem:[%s260 + $0x160] sm:$0xff]
        %v355 = vld [vmem:[%s260 + $0x168] sm:$0xff]
        %v356 = vld [vmem:[%s260 + $0x170] sm:$0xff]
        %v357 = vld [vmem:[%s260 + $0x178] sm:$0xff]
        %v358 = vld [vmem:[%s260 + $0x180] sm:$0xff]
        %v359 = vld [vmem:[%s260 + $0x188] sm:$0xff]
        %v360 = vld [vmem:[%s260 + $0x190] sm:$0xff]
        %v361 = vld [vmem:[%s260 + $0x198] sm:$0xff]
        %v362 = vld [vmem:[%s260 + $0x1a0] sm:$0xff]
        %v363 = vld [vmem:[%s260 + $0x1a8] sm:$0xff]
        %v364 = vld [vmem:[%s260 + $0x1b0] sm:$0xff]
        %v365 = vld [vmem:[%s260 + $0x1b8] sm:$0xff]
        %v366 = vld [vmem:[%s260 + $0x1c0] sm:$0xff]
        %v367 = vld [vmem:[%s260 + $0x1c8] sm:$0xff]
        %v368 = vld [vmem:[%s260 + $0x1d0] sm:$0xff]
        %v369 = vld [vmem:[%s260 + $0x1d8] sm:$0xff]
        %v370 = vld [vmem:[%s260 + $0x1e0] sm:$0xff]
        %v371 = vld [vmem:[%s260 + $0x1e8] sm:$0xff]
        %v372 = vld [vmem:[%s260 + $0x1f0] sm:$0xff]
        %v373 = vld [vmem:[%s260 + $0x1f8] sm:$0xff]
        %v374 = vld [vmem:[%s260 + $0x200] sm:$0xff]
        %v375 = vld [vmem:[%s260 + $0x208] sm:$0xff]
        %v376 = vld [vmem:[%s260 + $0x210] sm:$0xff]
        %v377 = vld [vmem:[%s260 + $0x218] sm:$0xff]
        %v378 = vld [vmem:[%s260 + $0x220] sm:$0xff]
        %v379 = vld [vmem:[%s260 + $0x228] sm:$0xff]
        %v380 = vld [vmem:[%s260 + $0x230] sm:$0xff]
        %v381 = vld [vmem:[%s260 + $0x238] sm:$0xff]
        %v382 = vld [vmem:[%s260 + $0x240] sm:$0xff]
        %v383 = vld [vmem:[%s260 + $0x248] sm:$0xff]
        %v384 = vld [vmem:[%s260 + $0x250] sm:$0xff]
        %v385 = vld [vmem:[%s260 + $0x258] sm:$0xff]
        %v386 = vld [vmem:[%s260 + $0x260] sm:$0xff]
        %v387 = vld [vmem:[%s260 + $0x268] sm:$0xff]
        %v388 = vld [vmem:[%s260 + $0x270] sm:$0xff]
        %v389 = vld [vmem:[%s260 + $0x278] sm:$0xff]
        %v390 = vld [vmem:[%s260 + $0x280] sm:$0xff]
        %v391 = vld [vmem:[%s260 + $0x288] sm:$0xff]
        %v392 = vld [vmem:[%s260 + $0x290] sm:$0xff]
        %v393 = vld [vmem:[%s260 + $0x298] sm:$0xff]
        %v394 = vld [vmem:[%s260 + $0x2a0] sm:$0xff]
        %v395 = vld [vmem:[%s260 + $0x2a8] sm:$0xff]
        %v396 = vld [vmem:[%s260 + $0x2b0] sm:$0xff]
        %v397 = vld [vmem:[%s260 + $0x2b8] sm:$0xff]
        %v398 = vld [vmem:[%s260 + $0x2c0] sm:$0xff]
        %v399 = vld [vmem:[%s260 + $0x2c8] sm:$0xff]
        %v400 = vld [vmem:[%s260 + $0x2d0] sm:$0xff]
        %v401 = vld [vmem:[%s260 + $0x2d8] sm:$0xff]
        %v402 = vld [vmem:[%s260 + $0x2e0] sm:$0xff]
        %v403 = vld [vmem:[%s260 + $0x2e8] sm:$0xff]
        %v404 = vld [vmem:[%s260 + $0x2f0] sm:$0xff]
        %v405 = vld [vmem:[%s260 + $0x2f8] sm:$0xff]
        %v406 = vld [vmem:[%s260 + $0x300] sm:$0xff]
        %v407 = vld [vmem:[%s260 + $0x308] sm:$0xff]
        %v408 = vld [vmem:[%s260 + $0x310] sm:$0xff]
        %v409 = vld [vmem:[%s260 + $0x318] sm:$0xff]
        %v410 = vld [vmem:[%s260 + $0x320] sm:$0xff]
        %v411 = vld [vmem:[%s260 + $0x328] sm:$0xff]
        %v412 = vld [vmem:[%s260 + $0x330] sm:$0xff]
        %v413 = vld [vmem:[%s260 + $0x338] sm:$0xff]
        %v414 = vld [vmem:[%s260 + $0x340] sm:$0xff]
        %v415 = vld [vmem:[%s260 + $0x348] sm:$0xff]
        %v416 = vld [vmem:[%s260 + $0x350] sm:$0xff]
        %v417 = vld [vmem:[%s260 + $0x358] sm:$0xff]
        %v418 = vld [vmem:[%s260 + $0x360] sm:$0xff]
        %v419 = vld [vmem:[%s260 + $0x368] sm:$0xff]
        %v420 = vld [vmem:[%s260 + $0x370] sm:$0xff]
        %v421 = vld [vmem:[%s260 + $0x378] sm:$0xff]
        %v422 = vld [vmem:[%s260 + $0x380] sm:$0xff]
        %v423 = vld [vmem:[%s260 + $0x388] sm:$0xff]
        %v424 = vld [vmem:[%s260 + $0x390] sm:$0xff]
        %v425 = vld [vmem:[%s260 + $0x398] sm:$0xff]
        %v426 = vld [vmem:[%s260 + $0x3a0] sm:$0xff]
        %v427 = vld [vmem:[%s260 + $0x3a8] sm:$0xff]
        %v428 = vld [vmem:[%s260 + $0x3b0] sm:$0xff]
        %v429 = vld [vmem:[%s260 + $0x3b8] sm:$0xff]
        %v430 = vld [vmem:[%s260 + $0x3c0] sm:$0xff]
        %v431 = vld [vmem:[%s260 + $0x3c8] sm:$0xff]
        %v432 = vld [vmem:[%s260 + $0x3d0] sm:$0xff]
        %v433 = vld [vmem:[%s260 + $0x3d8] sm:$0xff]
        %v434 = vld [vmem:[%s260 + $0x3e0] sm:$0xff]
        %v435 = vld [vmem:[%s260 + $0x3e8] sm:$0xff]
        %v436 = vld [vmem:[%s260 + $0x3f0] sm:$0xff]
        %v437 = vld [vmem:[%s260 + $0x3f8] sm:$0xff]
        %v438 = vpack.c.bf16 %v312, %v310
        %v439 = vpack.c.bf16 %v313, %v311
        %v440 = vpack.c.bf16 %v316, %v314
        %v441 = vpack.c.bf16 %v317, %v315
        %v442 = vpack.c.bf16 %v320, %v318
        %v443 = vpack.c.bf16 %v321, %v319
        %v444 = vpack.c.bf16 %v324, %v322
        %v445 = vpack.c.bf16 %v325, %v323
        %v446 = vpack.c.bf16 %v328, %v326
        %v447 = vpack.c.bf16 %v329, %v327
        %v448 = vpack.c.bf16 %v332, %v330
        %v449 = vpack.c.bf16 %v333, %v331
        %v450 = vpack.c.bf16 %v336, %v334
        %v451 = vpack.c.bf16 %v337, %v335
        %v452 = vpack.c.bf16 %v340, %v338
        %v453 = vpack.c.bf16 %v341, %v339
        %v454 = vpack.c.bf16 %v344, %v342
        %v455 = vpack.c.bf16 %v345, %v343
        %v456 = vpack.c.bf16 %v348, %v346
        %v457 = vpack.c.bf16 %v349, %v347
        %v458 = vpack.c.bf16 %v352, %v350
        %v459 = vpack.c.bf16 %v353, %v351
        %v460 = vpack.c.bf16 %v356, %v354
        %v461 = vpack.c.bf16 %v357, %v355
        %v462 = vpack.c.bf16 %v360, %v358
        %v463 = vpack.c.bf16 %v361, %v359
        %v464 = vpack.c.bf16 %v364, %v362
        %v465 = vpack.c.bf16 %v365, %v363
        %v466 = vpack.c.bf16 %v368, %v366
        %v467 = vpack.c.bf16 %v369, %v367
        %v468 = vpack.c.bf16 %v372, %v370
        %v469 = vpack.c.bf16 %v373, %v371
        %v470 = vpack.c.bf16 %v376, %v374
        %v471 = vpack.c.bf16 %v377, %v375
        %v472 = vpack.c.bf16 %v380, %v378
        %v473 = vpack.c.bf16 %v381, %v379
        %v474 = vpack.c.bf16 %v384, %v382
        %v475 = vpack.c.bf16 %v385, %v383
        %v476 = vpack.c.bf16 %v388, %v386
        %v477 = vpack.c.bf16 %v389, %v387
        %v478 = vpack.c.bf16 %v392, %v390
        %v479 = vpack.c.bf16 %v393, %v391
        %v480 = vpack.c.bf16 %v396, %v394
        %v481 = vpack.c.bf16 %v397, %v395
        %v482 = vpack.c.bf16 %v400, %v398
        %v483 = vpack.c.bf16 %v401, %v399
        %v484 = vpack.c.bf16 %v404, %v402
        %v485 = vpack.c.bf16 %v405, %v403
        %v486 = vpack.c.bf16 %v408, %v406
        %v487 = vpack.c.bf16 %v409, %v407
        %v488 = vpack.c.bf16 %v412, %v410
        %v489 = vpack.c.bf16 %v413, %v411
        %v490 = vpack.c.bf16 %v416, %v414
        %v491 = vpack.c.bf16 %v417, %v415
        %v492 = vpack.c.bf16 %v420, %v418
        %v493 = vpack.c.bf16 %v421, %v419
        %v494 = vpack.c.bf16 %v424, %v422
        %v495 = vpack.c.bf16 %v425, %v423
        %v496 = vpack.c.bf16 %v428, %v426
        %v497 = vpack.c.bf16 %v429, %v427
        %v498 = vpack.c.bf16 %v432, %v430
        %v499 = vpack.c.bf16 %v433, %v431
        %v500 = vpack.c.bf16 %v436, %v434
        %v501 = vpack.c.bf16 %v437, %v435
        %v502 = vld [vmem:[#allocation5] sm:$0xff]
        %v503 = vld [vmem:[#allocation5 + $0x8] sm:$0xff]
        %v504 = vld [vmem:[#allocation5 + $0x10] sm:$0xff]
        %v505 = vld [vmem:[#allocation5 + $0x18] sm:$0xff]
        %v506 = vld [vmem:[#allocation5 + $0x20] sm:$0xff]
        %v507 = vld [vmem:[#allocation5 + $0x28] sm:$0xff]
        %v508 = vld [vmem:[#allocation5 + $0x30] sm:$0xff]
        %v509 = vld [vmem:[#allocation5 + $0x38] sm:$0xff]
        %v510 = vld [vmem:[#allocation5 + $0x40] sm:$0xff]
        %v511 = vld [vmem:[#allocation5 + $0x48] sm:$0xff]
        %v512 = vld [vmem:[#allocation5 + $0x50] sm:$0xff]
        %v513 = vld [vmem:[#allocation5 + $0x58] sm:$0xff]
        %v514 = vld [vmem:[#allocation5 + $0x60] sm:$0xff]
        %v515 = vld [vmem:[#allocation5 + $0x68] sm:$0xff]
        %v516 = vld [vmem:[#allocation5 + $0x70] sm:$0xff]
        %v517 = vld [vmem:[#allocation5 + $0x78] sm:$0xff]
        %v518 = vld [vmem:[#allocation5 + $0x80] sm:$0xff]
        %v519 = vld [vmem:[#allocation5 + $0x88] sm:$0xff]
        %v520 = vld [vmem:[#allocation5 + $0x90] sm:$0xff]
        %v521 = vld [vmem:[#allocation5 + $0x98] sm:$0xff]
        %v522 = vld [vmem:[#allocation5 + $0xa0] sm:$0xff]
        %v523 = vld [vmem:[#allocation5 + $0xa8] sm:$0xff]
        %v524 = vld [vmem:[#allocation5 + $0xb0] sm:$0xff]
        %v525 = vld [vmem:[#allocation5 + $0xb8] sm:$0xff]
        %v526 = vld [vmem:[#allocation5 + $0xc0] sm:$0xff]
        %v527 = vld [vmem:[#allocation5 + $0xc8] sm:$0xff]
        %v528 = vld [vmem:[#allocation5 + $0xd0] sm:$0xff]
        %v529 = vld [vmem:[#allocation5 + $0xd8] sm:$0xff]
        %v530 = vld [vmem:[#allocation5 + $0xe0] sm:$0xff]
        %v531 = vld [vmem:[#allocation5 + $0xe8] sm:$0xff]
        %v532 = vld [vmem:[#allocation5 + $0xf0] sm:$0xff]
        %v533 = vld [vmem:[#allocation5 + $0xf8] sm:$0xff]
        %v534 = vld [vmem:[#allocation5 + $0x100] sm:$0xff]
        %v535 = vld [vmem:[#allocation5 + $0x108] sm:$0xff]
        %v536 = vld [vmem:[#allocation5 + $0x110] sm:$0xff]
        %v537 = vld [vmem:[#allocation5 + $0x118] sm:$0xff]
        %v538 = vld [vmem:[#allocation5 + $0x120] sm:$0xff]
        %v539 = vld [vmem:[#allocation5 + $0x128] sm:$0xff]
        %v540 = vld [vmem:[#allocation5 + $0x130] sm:$0xff]
        %v541 = vld [vmem:[#allocation5 + $0x138] sm:$0xff]
        %v542 = vld [vmem:[#allocation5 + $0x140] sm:$0xff]
        %v543 = vld [vmem:[#allocation5 + $0x148] sm:$0xff]
        %v544 = vld [vmem:[#allocation5 + $0x150] sm:$0xff]
        %v545 = vld [vmem:[#allocation5 + $0x158] sm:$0xff]
        %v546 = vld [vmem:[#allocation5 + $0x160] sm:$0xff]
        %v547 = vld [vmem:[#allocation5 + $0x168] sm:$0xff]
        %v548 = vld [vmem:[#allocation5 + $0x170] sm:$0xff]
        %v549 = vld [vmem:[#allocation5 + $0x178] sm:$0xff]
        %v550 = vld [vmem:[#allocation5 + $0x180] sm:$0xff]
        %v551 = vld [vmem:[#allocation5 + $0x188] sm:$0xff]
        %v552 = vld [vmem:[#allocation5 + $0x190] sm:$0xff]
        %v553 = vld [vmem:[#allocation5 + $0x198] sm:$0xff]
        %v554 = vld [vmem:[#allocation5 + $0x1a0] sm:$0xff]
        %v555 = vld [vmem:[#allocation5 + $0x1a8] sm:$0xff]
        %v556 = vld [vmem:[#allocation5 + $0x1b0] sm:$0xff]
        %v557 = vld [vmem:[#allocation5 + $0x1b8] sm:$0xff]
        %v558 = vld [vmem:[#allocation5 + $0x1c0] sm:$0xff]
        %v559 = vld [vmem:[#allocation5 + $0x1c8] sm:$0xff]
        %v560 = vld [vmem:[#allocation5 + $0x1d0] sm:$0xff]
        %v561 = vld [vmem:[#allocation5 + $0x1d8] sm:$0xff]
        %v562 = vld [vmem:[#allocation5 + $0x1e0] sm:$0xff]
        %v563 = vld [vmem:[#allocation5 + $0x1e8] sm:$0xff]
        %v564 = vld [vmem:[#allocation5 + $0x1f0] sm:$0xff]
        %v565 = vld [vmem:[#allocation5 + $0x1f8] sm:$0xff]
        %v566 = vld [vmem:[#allocation7] sm:$0xf]
        %v568 = vperm.slane %v566, 0
        %v569 = vperm.slane %v566, 1
        %v570 = vperm.slane %v566, 2
        %v571 = vperm.slane %v566, 3
        %v640 = vunpack.c.l.b16 %v502
        %v641 = vunpack.c.h.b16 %v502
        %v642 = vunpack.c.l.b16 %v503
        %v643 = vunpack.c.h.b16 %v503
        %v644 = vunpack.c.l.b16 %v504
        %v645 = vunpack.c.h.b16 %v504
        %v646 = vunpack.c.l.b16 %v505
        %v647 = vunpack.c.h.b16 %v505
        %v648 = vunpack.c.l.b16 %v506
        %v649 = vunpack.c.h.b16 %v506
        %v650 = vunpack.c.l.b16 %v507
        %v651 = vunpack.c.h.b16 %v507
        %v652 = vunpack.c.l.b16 %v508
        %v653 = vunpack.c.h.b16 %v508
        %v654 = vunpack.c.l.b16 %v509
        %v655 = vunpack.c.h.b16 %v509
        %v656 = vunpack.c.l.b16 %v510
        %v657 = vunpack.c.h.b16 %v510
        %v658 = vunpack.c.l.b16 %v511
        %v659 = vunpack.c.h.b16 %v511
        %v660 = vunpack.c.l.b16 %v512
        %v661 = vunpack.c.h.b16 %v512
        %v662 = vunpack.c.l.b16 %v513
        %v663 = vunpack.c.h.b16 %v513
        %v664 = vunpack.c.l.b16 %v514
        %v665 = vunpack.c.h.b16 %v514
        %v666 = vunpack.c.l.b16 %v515
        %v667 = vunpack.c.h.b16 %v515
        %v668 = vunpack.c.l.b16 %v516
        %v669 = vunpack.c.h.b16 %v516
        %v670 = vunpack.c.l.b16 %v517
        %v671 = vunpack.c.h.b16 %v517
        %v672 = vunpack.c.l.b16 %v518
        %v673 = vunpack.c.h.b16 %v518
        %v674 = vunpack.c.l.b16 %v519
        %v675 = vunpack.c.h.b16 %v519
        %v676 = vunpack.c.l.b16 %v520
        %v677 = vunpack.c.h.b16 %v520
        %v678 = vunpack.c.l.b16 %v521
        %v679 = vunpack.c.h.b16 %v521
        %v680 = vunpack.c.l.b16 %v522
        %v681 = vunpack.c.h.b16 %v522
        %v682 = vunpack.c.l.b16 %v523
        %v683 = vunpack.c.h.b16 %v523
        %v684 = vunpack.c.l.b16 %v524
        %v685 = vunpack.c.h.b16 %v524
        %v686 = vunpack.c.l.b16 %v525
        %v687 = vunpack.c.h.b16 %v525
        %v688 = vunpack.c.l.b16 %v526
        %v689 = vunpack.c.h.b16 %v526
        %v690 = vunpack.c.l.b16 %v527
        %v691 = vunpack.c.h.b16 %v527
        %v692 = vunpack.c.l.b16 %v528
        %v693 = vunpack.c.h.b16 %v528
        %v694 = vunpack.c.l.b16 %v529
        %v695 = vunpack.c.h.b16 %v529
        %v696 = vunpack.c.l.b16 %v530
        %v697 = vunpack.c.h.b16 %v530
        %v698 = vunpack.c.l.b16 %v531
        %v699 = vunpack.c.h.b16 %v531
        %v700 = vunpack.c.l.b16 %v532
        %v701 = vunpack.c.h.b16 %v532
        %v702 = vunpack.c.l.b16 %v533
        %v703 = vunpack.c.h.b16 %v533
        %v704 = vunpack.c.l.b16 %v534
        %v705 = vunpack.c.h.b16 %v534
        %v706 = vunpack.c.l.b16 %v535
        %v707 = vunpack.c.h.b16 %v535
        %v708 = vunpack.c.l.b16 %v536
        %v709 = vunpack.c.h.b16 %v536
        %v710 = vunpack.c.l.b16 %v537
        %v711 = vunpack.c.h.b16 %v537
        %v712 = vunpack.c.l.b16 %v538
        %v713 = vunpack.c.h.b16 %v538
        %v714 = vunpack.c.l.b16 %v539
        %v715 = vunpack.c.h.b16 %v539
        %v716 = vunpack.c.l.b16 %v540
        %v717 = vunpack.c.h.b16 %v540
        %v718 = vunpack.c.l.b16 %v541
        %v719 = vunpack.c.h.b16 %v541
        %v720 = vunpack.c.l.b16 %v542
        %v721 = vunpack.c.h.b16 %v542
        %v722 = vunpack.c.l.b16 %v543
        %v723 = vunpack.c.h.b16 %v543
        %v724 = vunpack.c.l.b16 %v544
        %v725 = vunpack.c.h.b16 %v544
        %v726 = vunpack.c.l.b16 %v545
        %v727 = vunpack.c.h.b16 %v545
        %v728 = vunpack.c.l.b16 %v546
        %v729 = vunpack.c.h.b16 %v546
        %v730 = vunpack.c.l.b16 %v547
        %v731 = vunpack.c.h.b16 %v547
        %v732 = vunpack.c.l.b16 %v548
        %v733 = vunpack.c.h.b16 %v548
        %v734 = vunpack.c.l.b16 %v549
        %v735 = vunpack.c.h.b16 %v549
        %v736 = vunpack.c.l.b16 %v550
        %v737 = vunpack.c.h.b16 %v550
        %v738 = vunpack.c.l.b16 %v551
        %v739 = vunpack.c.h.b16 %v551
        %v740 = vunpack.c.l.b16 %v552
        %v741 = vunpack.c.h.b16 %v552
        %v742 = vunpack.c.l.b16 %v553
        %v743 = vunpack.c.h.b16 %v553
        %v744 = vunpack.c.l.b16 %v554
        %v745 = vunpack.c.h.b16 %v554
        %v746 = vunpack.c.l.b16 %v555
        %v747 = vunpack.c.h.b16 %v555
        %v748 = vunpack.c.l.b16 %v556
        %v749 = vunpack.c.h.b16 %v556
        %v750 = vunpack.c.l.b16 %v557
        %v751 = vunpack.c.h.b16 %v557
        %v752 = vunpack.c.l.b16 %v558
        %v753 = vunpack.c.h.b16 %v558
        %v754 = vunpack.c.l.b16 %v559
        %v755 = vunpack.c.h.b16 %v559
        %v756 = vunpack.c.l.b16 %v560
        %v757 = vunpack.c.h.b16 %v560
        %v758 = vunpack.c.l.b16 %v561
        %v759 = vunpack.c.h.b16 %v561
        %v760 = vunpack.c.l.b16 %v562
        %v761 = vunpack.c.h.b16 %v562
        %v762 = vunpack.c.l.b16 %v563
        %v763 = vunpack.c.h.b16 %v563
        %v764 = vunpack.c.l.b16 %v564
        %v765 = vunpack.c.h.b16 %v564
        %v766 = vunpack.c.l.b16 %v565
        %v767 = vunpack.c.h.b16 %v565
        %v768 = vpack.c.b16 %v644, %v640
        %v769 = vpack.c.b16 %v645, %v641
        %v770 = vpack.c.b16 %v646, %v642
        %v771 = vpack.c.b16 %v647, %v643
        %v772 = vpack.c.b16 %v652, %v648
        %v773 = vpack.c.b16 %v653, %v649
        %v774 = vpack.c.b16 %v654, %v650
        %v775 = vpack.c.b16 %v655, %v651
        %v776 = vpack.c.b16 %v660, %v656
        %v777 = vpack.c.b16 %v661, %v657
        %v778 = vpack.c.b16 %v662, %v658
        %v779 = vpack.c.b16 %v663, %v659
        %v780 = vpack.c.b16 %v668, %v664
        %v781 = vpack.c.b16 %v669, %v665
        %v782 = vpack.c.b16 %v670, %v666
        %v783 = vpack.c.b16 %v671, %v667
        %v784 = vpack.c.b16 %v676, %v672
        %v785 = vpack.c.b16 %v677, %v673
        %v786 = vpack.c.b16 %v678, %v674
        %v787 = vpack.c.b16 %v679, %v675
        %v788 = vpack.c.b16 %v684, %v680
        %v789 = vpack.c.b16 %v685, %v681
        %v790 = vpack.c.b16 %v686, %v682
        %v791 = vpack.c.b16 %v687, %v683
        %v792 = vpack.c.b16 %v692, %v688
        %v793 = vpack.c.b16 %v693, %v689
        %v794 = vpack.c.b16 %v694, %v690
        %v795 = vpack.c.b16 %v695, %v691
        %v796 = vpack.c.b16 %v700, %v696
        %v797 = vpack.c.b16 %v701, %v697
        %v798 = vpack.c.b16 %v702, %v698
        %v799 = vpack.c.b16 %v703, %v699
        %v800 = vpack.c.b16 %v708, %v704
        %v801 = vpack.c.b16 %v709, %v705
        %v802 = vpack.c.b16 %v710, %v706
        %v803 = vpack.c.b16 %v711, %v707
        %v804 = vpack.c.b16 %v716, %v712
        %v805 = vpack.c.b16 %v717, %v713
        %v806 = vpack.c.b16 %v718, %v714
        %v807 = vpack.c.b16 %v719, %v715
        %v808 = vpack.c.b16 %v724, %v720
        %v809 = vpack.c.b16 %v725, %v721
        %v810 = vpack.c.b16 %v726, %v722
        %v811 = vpack.c.b16 %v727, %v723
        %v812 = vpack.c.b16 %v732, %v728
        %v813 = vpack.c.b16 %v733, %v729
        %v814 = vpack.c.b16 %v734, %v730
        %v815 = vpack.c.b16 %v735, %v731
        %v816 = vpack.c.b16 %v740, %v736
        %v817 = vpack.c.b16 %v741, %v737
        %v818 = vpack.c.b16 %v742, %v738
        %v819 = vpack.c.b16 %v743, %v739
        %v820 = vpack.c.b16 %v748, %v744
        %v821 = vpack.c.b16 %v749, %v745
        %v822 = vpack.c.b16 %v750, %v746
        %v823 = vpack.c.b16 %v751, %v747
        %v824 = vpack.c.b16 %v756, %v752
        %v825 = vpack.c.b16 %v757, %v753
        %v826 = vpack.c.b16 %v758, %v754
        %v827 = vpack.c.b16 %v759, %v755
        %v828 = vpack.c.b16 %v764, %v760
        %v829 = vpack.c.b16 %v765, %v761
        %v830 = vpack.c.b16 %v766, %v762
        %v831 = vpack.c.b16 %v767, %v763
        %896 = vmatpush.bf16.msra.mxu0 %v796
        %897 = vmatpush.bf16.msra.mxu0 %v792
        %898 = vmatpush.bf16.msra.mxu0 %v788
        %899 = vmatpush.bf16.msra.mxu0 %v784
        %900 = vmatpush.bf16.msra.mxu0 %v780
        %901 = vmatpush.bf16.msra.mxu0 %v776
        %902 = vmatpush.bf16.msra.mxu0 %v772
        %903 = vmatpush.bf16.msra.mxu0 %v768
        %904 = vmatmul.bf16.gmra.mxu0 %v438
        %v905 = vpop.f32.mrf.mxu0
        %v906 = vadd.f32 %v568, %v905
        %v907 = vpop.f32.mrf.mxu0
        %v908 = vadd.f32 %v568, %v907
        %909 = vmatmul.bf16.gmra.mxu0 %v440
        %v910 = vpop.f32.mrf.mxu0
        %v911 = vadd.f32 %v568, %v910
        %v912 = vpop.f32.mrf.mxu0
        %v913 = vadd.f32 %v568, %v912
        %914 = vmatmul.bf16.gmra.mxu0 %v442
        %v915 = vpop.f32.mrf.mxu0
        %v916 = vadd.f32 %v568, %v915
        %v917 = vpop.f32.mrf.mxu0
        %v918 = vadd.f32 %v568, %v917
        %919 = vmatmul.bf16.gmra.mxu0 %v444
        %v920 = vpop.f32.mrf.mxu0
        %v921 = vadd.f32 %v568, %v920
        %v922 = vpop.f32.mrf.mxu0
        %v923 = vadd.f32 %v568, %v922
        %924 = vmatmul.bf16.gmra.mxu0 %v446
        %v925 = vpop.f32.mrf.mxu0
        %v926 = vadd.f32 %v568, %v925
        %v927 = vpop.f32.mrf.mxu0
        %v928 = vadd.f32 %v568, %v927
        %929 = vmatmul.bf16.gmra.mxu0 %v448
        %v930 = vpop.f32.mrf.mxu0
        %v931 = vadd.f32 %v568, %v930
        %v932 = vpop.f32.mrf.mxu0
        %v933 = vadd.f32 %v568, %v932
        %934 = vmatmul.bf16.gmra.mxu0 %v450
        %v935 = vpop.f32.mrf.mxu0
        %v936 = vadd.f32 %v568, %v935
        %v937 = vpop.f32.mrf.mxu0
        %v938 = vadd.f32 %v568, %v937
        %939 = vmatmul.bf16.gmra.mxu0 %v452
        %v940 = vpop.f32.mrf.mxu0
        %v941 = vadd.f32 %v568, %v940
        %v942 = vpop.f32.mrf.mxu0
        %v943 = vadd.f32 %v568, %v942
        %944 = vmatmul.bf16.gmra.mxu0 %v454
        %v945 = vpop.f32.mrf.mxu0
        %v946 = vadd.f32 %v568, %v945
        %v947 = vpop.f32.mrf.mxu0
        %v948 = vadd.f32 %v568, %v947
        %949 = vmatmul.bf16.gmra.mxu0 %v456
        %v950 = vpop.f32.mrf.mxu0
        %v951 = vadd.f32 %v568, %v950
        %v952 = vpop.f32.mrf.mxu0
        %v953 = vadd.f32 %v568, %v952
        %954 = vmatmul.bf16.gmra.mxu0 %v458
        %v955 = vpop.f32.mrf.mxu0
        %v956 = vadd.f32 %v568, %v955
        %v957 = vpop.f32.mrf.mxu0
        %v958 = vadd.f32 %v568, %v957
        %959 = vmatmul.bf16.gmra.mxu0 %v460
        %v960 = vpop.f32.mrf.mxu0
        %v961 = vadd.f32 %v568, %v960
        %v962 = vpop.f32.mrf.mxu0
        %v963 = vadd.f32 %v568, %v962
        %964 = vmatmul.bf16.gmra.mxu0 %v462
        %v965 = vpop.f32.mrf.mxu0
        %v966 = vadd.f32 %v568, %v965
        %v967 = vpop.f32.mrf.mxu0
        %v968 = vadd.f32 %v568, %v967
        %969 = vmatmul.bf16.gmra.mxu0 %v464
        %v970 = vpop.f32.mrf.mxu0
        %v971 = vadd.f32 %v568, %v970
        %v972 = vpop.f32.mrf.mxu0
        %v973 = vadd.f32 %v568, %v972
        %974 = vmatmul.bf16.gmra.mxu0 %v466
        %v975 = vpop.f32.mrf.mxu0
        %v976 = vadd.f32 %v568, %v975
        %v977 = vpop.f32.mrf.mxu0
        %v978 = vadd.f32 %v568, %v977
        %979 = vmatmul.bf16.gmra.mxu0 %v468
        %v980 = vpop.f32.mrf.mxu0
        %v981 = vadd.f32 %v568, %v980
        %v982 = vpop.f32.mrf.mxu0
        %v983 = vadd.f32 %v568, %v982
        %984 = vmatmul.bf16.gmra.mxu0 %v470
        %v985 = vpop.f32.mrf.mxu0
        %v986 = vadd.f32 %v568, %v985
        %v987 = vpop.f32.mrf.mxu0
        %v988 = vadd.f32 %v568, %v987
        %989 = vmatmul.bf16.gmra.mxu0 %v472
        %v990 = vpop.f32.mrf.mxu0
        %v991 = vadd.f32 %v568, %v990
        %v992 = vpop.f32.mrf.mxu0
        %v993 = vadd.f32 %v568, %v992
        %994 = vmatmul.bf16.gmra.mxu0 %v474
        %v995 = vpop.f32.mrf.mxu0
        %v996 = vadd.f32 %v568, %v995
        %v997 = vpop.f32.mrf.mxu0
        %v998 = vadd.f32 %v568, %v997
        %999 = vmatmul.bf16.gmra.mxu0 %v476
        %v1000 = vpop.f32.mrf.mxu0
        %v1001 = vadd.f32 %v568, %v1000
        %v1002 = vpop.f32.mrf.mxu0
        %v1003 = vadd.f32 %v568, %v1002
        %1004 = vmatmul.bf16.gmra.mxu0 %v478
        %v1005 = vpop.f32.mrf.mxu0
        %v1006 = vadd.f32 %v568, %v1005
        %v1007 = vpop.f32.mrf.mxu0
        %v1008 = vadd.f32 %v568, %v1007
        %1009 = vmatmul.bf16.gmra.mxu0 %v480
        %v1010 = vpop.f32.mrf.mxu0
        %v1011 = vadd.f32 %v568, %v1010
        %v1012 = vpop.f32.mrf.mxu0
        %v1013 = vadd.f32 %v568, %v1012
        %1014 = vmatmul.bf16.gmra.mxu0 %v482
        %v1015 = vpop.f32.mrf.mxu0
        %v1016 = vadd.f32 %v568, %v1015
        %v1017 = vpop.f32.mrf.mxu0
        %v1018 = vadd.f32 %v568, %v1017
        %1019 = vmatmul.bf16.gmra.mxu0 %v484
        %v1020 = vpop.f32.mrf.mxu0
        %v1021 = vadd.f32 %v568, %v1020
        %v1022 = vpop.f32.mrf.mxu0
        %v1023 = vadd.f32 %v568, %v1022
        %1024 = vmatmul.bf16.gmra.mxu0 %v486
        %v1025 = vpop.f32.mrf.mxu0
        %v1026 = vadd.f32 %v568, %v1025
        %v1027 = vpop.f32.mrf.mxu0
        %v1028 = vadd.f32 %v568, %v1027
        %1029 = vmatmul.bf16.gmra.mxu0 %v488
        %v1030 = vpop.f32.mrf.mxu0
        %v1031 = vadd.f32 %v568, %v1030
        %v1032 = vpop.f32.mrf.mxu0
        %v1033 = vadd.f32 %v568, %v1032
        %1034 = vmatmul.bf16.gmra.mxu0 %v490
        %v1035 = vpop.f32.mrf.mxu0
        %v1036 = vadd.f32 %v568, %v1035
        %v1037 = vpop.f32.mrf.mxu0
        %v1038 = vadd.f32 %v568, %v1037
        %1039 = vmatmul.bf16.gmra.mxu0 %v492
        %v1040 = vpop.f32.mrf.mxu0
        %v1041 = vadd.f32 %v568, %v1040
        %v1042 = vpop.f32.mrf.mxu0
        %v1043 = vadd.f32 %v568, %v1042
        %1044 = vmatmul.bf16.gmra.mxu0 %v494
        %v1045 = vpop.f32.mrf.mxu0
        %v1046 = vadd.f32 %v568, %v1045
        %v1047 = vpop.f32.mrf.mxu0
        %v1048 = vadd.f32 %v568, %v1047
        %1049 = vmatmul.bf16.gmra.mxu0 %v496
        %v1050 = vpop.f32.mrf.mxu0
        %v1051 = vadd.f32 %v568, %v1050
        %v1052 = vpop.f32.mrf.mxu0
        %v1053 = vadd.f32 %v568, %v1052
        %1054 = vmatmul.bf16.gmra.mxu0 %v498
        %v1055 = vpop.f32.mrf.mxu0
        %v1056 = vadd.f32 %v568, %v1055
        %v1057 = vpop.f32.mrf.mxu0
        %v1058 = vadd.f32 %v568, %v1057
        %1059 = vmatmul.bf16.gmra.mxu0 %v500
        %v1060 = vpop.f32.mrf.mxu0
        %v1061 = vadd.f32 %v568, %v1060
        %v1062 = vpop.f32.mrf.mxu0
        %v1063 = vadd.f32 %v568, %v1062
        %1064 = vdwg.mxu0
        %1065 = vmatpush.bf16.msra.mxu0 %v828
        %1066 = vmatpush.bf16.msra.mxu0 %v824
        %1067 = vmatpush.bf16.msra.mxu0 %v820
        %1068 = vmatpush.bf16.msra.mxu0 %v816
        %1069 = vmatpush.bf16.msra.mxu0 %v812
        %1070 = vmatpush.bf16.msra.mxu0 %v808
        %1071 = vmatpush.bf16.msra.mxu0 %v804
        %1072 = vmatpush.bf16.msra.mxu0 %v800
        %1073 = vmatmul.bf16.gmra.mxu0 %v439
        %v1074 = vpop.f32.mrf.mxu0
        %v1075 = vadd.f32 %v906, %v1074
        %v1076 = vpop.f32.mrf.mxu0
        %v1077 = vadd.f32 %v908, %v1076
        %1078 = vmatmul.bf16.gmra.mxu0 %v441
        %v1079 = vpop.f32.mrf.mxu0
        %v1080 = vadd.f32 %v911, %v1079
        %v1081 = vpop.f32.mrf.mxu0
        %v1082 = vadd.f32 %v913, %v1081
        %1083 = vmatmul.bf16.gmra.mxu0 %v443
        %v1084 = vpop.f32.mrf.mxu0
        %v1085 = vadd.f32 %v916, %v1084
        %v1086 = vpop.f32.mrf.mxu0
        %v1087 = vadd.f32 %v918, %v1086
        %1088 = vmatmul.bf16.gmra.mxu0 %v445
        %v1089 = vpop.f32.mrf.mxu0
        %v1090 = vadd.f32 %v921, %v1089
        %v1091 = vpop.f32.mrf.mxu0
        %v1092 = vadd.f32 %v923, %v1091
        %1093 = vmatmul.bf16.gmra.mxu0 %v447
        %v1094 = vpop.f32.mrf.mxu0
        %v1095 = vadd.f32 %v926, %v1094
        %v1096 = vpop.f32.mrf.mxu0
        %v1097 = vadd.f32 %v928, %v1096
        %1098 = vmatmul.bf16.gmra.mxu0 %v449
        %v1099 = vpop.f32.mrf.mxu0
        %v1100 = vadd.f32 %v931, %v1099
        %v1101 = vpop.f32.mrf.mxu0
        %v1102 = vadd.f32 %v933, %v1101
        %1103 = vmatmul.bf16.gmra.mxu0 %v451
        %v1104 = vpop.f32.mrf.mxu0
        %v1105 = vadd.f32 %v936, %v1104
        %v1106 = vpop.f32.mrf.mxu0
        %v1107 = vadd.f32 %v938, %v1106
        %1108 = vmatmul.bf16.gmra.mxu0 %v453
        %v1109 = vpop.f32.mrf.mxu0
        %v1110 = vadd.f32 %v941, %v1109
        %v1111 = vpop.f32.mrf.mxu0
        %v1112 = vadd.f32 %v943, %v1111
        %1113 = vmatmul.bf16.gmra.mxu0 %v455
        %v1114 = vpop.f32.mrf.mxu0
        %v1115 = vadd.f32 %v946, %v1114
        %v1116 = vpop.f32.mrf.mxu0
        %v1117 = vadd.f32 %v948, %v1116
        %1118 = vmatmul.bf16.gmra.mxu0 %v457
        %v1119 = vpop.f32.mrf.mxu0
        %v1120 = vadd.f32 %v951, %v1119
        %v1121 = vpop.f32.mrf.mxu0
        %v1122 = vadd.f32 %v953, %v1121
        %1123 = vmatmul.bf16.gmra.mxu0 %v459
        %v1124 = vpop.f32.mrf.mxu0
        %v1125 = vadd.f32 %v956, %v1124
        %v1126 = vpop.f32.mrf.mxu0
        %v1127 = vadd.f32 %v958, %v1126
        %1128 = vmatmul.bf16.gmra.mxu0 %v461
        %v1129 = vpop.f32.mrf.mxu0
        %v1130 = vadd.f32 %v961, %v1129
        %v1131 = vpop.f32.mrf.mxu0
        %v1132 = vadd.f32 %v963, %v1131
        %1133 = vmatmul.bf16.gmra.mxu0 %v463
        %v1134 = vpop.f32.mrf.mxu0
        %v1135 = vadd.f32 %v966, %v1134
        %v1136 = vpop.f32.mrf.mxu0
        %v1137 = vadd.f32 %v968, %v1136
        %1138 = vmatmul.bf16.gmra.mxu0 %v465
        %v1139 = vpop.f32.mrf.mxu0
        %v1140 = vadd.f32 %v971, %v1139
        %v1141 = vpop.f32.mrf.mxu0
        %v1142 = vadd.f32 %v973, %v1141
        %1143 = vmatmul.bf16.gmra.mxu0 %v467
        %v1144 = vpop.f32.mrf.mxu0
        %v1145 = vadd.f32 %v976, %v1144
        %v1146 = vpop.f32.mrf.mxu0
        %v1147 = vadd.f32 %v978, %v1146
        %1148 = vmatmul.bf16.gmra.mxu0 %v469
        %v1149 = vpop.f32.mrf.mxu0
        %v1150 = vadd.f32 %v981, %v1149
        %v1151 = vpop.f32.mrf.mxu0
        %v1152 = vadd.f32 %v983, %v1151
        %1153 = vmatmul.bf16.gmra.mxu0 %v471
        %v1154 = vpop.f32.mrf.mxu0
        %v1155 = vadd.f32 %v986, %v1154
        %v1156 = vpop.f32.mrf.mxu0
        %v1157 = vadd.f32 %v988, %v1156
        %1158 = vmatmul.bf16.gmra.mxu0 %v473
        %v1159 = vpop.f32.mrf.mxu0
        %v1160 = vadd.f32 %v991, %v1159
        %v1161 = vpop.f32.mrf.mxu0
        %v1162 = vadd.f32 %v993, %v1161
        %1163 = vmatmul.bf16.gmra.mxu0 %v475
        %v1164 = vpop.f32.mrf.mxu0
        %v1165 = vadd.f32 %v996, %v1164
        %v1166 = vpop.f32.mrf.mxu0
        %v1167 = vadd.f32 %v998, %v1166
        %1168 = vmatmul.bf16.gmra.mxu0 %v477
        %v1169 = vpop.f32.mrf.mxu0
        %v1170 = vadd.f32 %v1001, %v1169
        %v1171 = vpop.f32.mrf.mxu0
        %v1172 = vadd.f32 %v1003, %v1171
        %1173 = vmatmul.bf16.gmra.mxu0 %v479
        %v1174 = vpop.f32.mrf.mxu0
        %v1175 = vadd.f32 %v1006, %v1174
        %v1176 = vpop.f32.mrf.mxu0
        %v1177 = vadd.f32 %v1008, %v1176
        %1178 = vmatmul.bf16.gmra.mxu0 %v481
        %v1179 = vpop.f32.mrf.mxu0
        %v1180 = vadd.f32 %v1011, %v1179
        %v1181 = vpop.f32.mrf.mxu0
        %v1182 = vadd.f32 %v1013, %v1181
        %1183 = vmatmul.bf16.gmra.mxu0 %v483
        %v1184 = vpop.f32.mrf.mxu0
        %v1185 = vadd.f32 %v1016, %v1184
        %v1186 = vpop.f32.mrf.mxu0
        %v1187 = vadd.f32 %v1018, %v1186
        %1188 = vmatmul.bf16.gmra.mxu0 %v485
        %v1189 = vpop.f32.mrf.mxu0
        %v1190 = vadd.f32 %v1021, %v1189
        %v1191 = vpop.f32.mrf.mxu0
        %v1192 = vadd.f32 %v1023, %v1191
        %1193 = vmatmul.bf16.gmra.mxu0 %v487
        %v1194 = vpop.f32.mrf.mxu0
        %v1195 = vadd.f32 %v1026, %v1194
        %v1196 = vpop.f32.mrf.mxu0
        %v1197 = vadd.f32 %v1028, %v1196
        %1198 = vmatmul.bf16.gmra.mxu0 %v489
        %v1199 = vpop.f32.mrf.mxu0
        %v1200 = vadd.f32 %v1031, %v1199
        %v1201 = vpop.f32.mrf.mxu0
        %v1202 = vadd.f32 %v1033, %v1201
        %1203 = vmatmul.bf16.gmra.mxu0 %v491
        %v1204 = vpop.f32.mrf.mxu0
        %v1205 = vadd.f32 %v1036, %v1204
        %v1206 = vpop.f32.mrf.mxu0
        %v1207 = vadd.f32 %v1038, %v1206
        %1208 = vmatmul.bf16.gmra.mxu0 %v493
        %v1209 = vpop.f32.mrf.mxu0
        %v1210 = vadd.f32 %v1041, %v1209
        %v1211 = vpop.f32.mrf.mxu0
        %v1212 = vadd.f32 %v1043, %v1211
        %1213 = vmatmul.bf16.gmra.mxu0 %v495
        %v1214 = vpop.f32.mrf.mxu0
        %v1215 = vadd.f32 %v1046, %v1214
        %v1216 = vpop.f32.mrf.mxu0
        %v1217 = vadd.f32 %v1048, %v1216
        %1218 = vmatmul.bf16.gmra.mxu0 %v497
        %v1219 = vpop.f32.mrf.mxu0
        %v1220 = vadd.f32 %v1051, %v1219
        %v1221 = vpop.f32.mrf.mxu0
        %v1222 = vadd.f32 %v1053, %v1221
        %1223 = vmatmul.bf16.gmra.mxu0 %v499
        %v1224 = vpop.f32.mrf.mxu0
        %v1225 = vadd.f32 %v1056, %v1224
        %v1226 = vpop.f32.mrf.mxu0
        %v1227 = vadd.f32 %v1058, %v1226
        %1228 = vmatmul.bf16.gmra.mxu0 %v501
        %v1229 = vpop.f32.mrf.mxu0
        %v1230 = vadd.f32 %v1061, %v1229
        %v1231 = vpop.f32.mrf.mxu0
        %v1232 = vadd.f32 %v1063, %v1231
        %1233 = vdwg.mxu0
        %1234 = vmatpush.bf16.msra.mxu0 %v797
        %1235 = vmatpush.bf16.msra.mxu0 %v793
        %1236 = vmatpush.bf16.msra.mxu0 %v789
        %1237 = vmatpush.bf16.msra.mxu0 %v785
        %1238 = vmatpush.bf16.msra.mxu0 %v781
        %1239 = vmatpush.bf16.msra.mxu0 %v777
        %1240 = vmatpush.bf16.msra.mxu0 %v773
        %1241 = vmatpush.bf16.msra.mxu0 %v769
        %1242 = vmatmul.bf16.gmra.mxu0 %v438
        %v1243 = vpop.f32.mrf.mxu0
        %v1244 = vadd.f32 %v569, %v1243
        %v1245 = vpop.f32.mrf.mxu0
        %v1246 = vadd.f32 %v569, %v1245
        %1247 = vmatmul.bf16.gmra.mxu0 %v440
        %v1248 = vpop.f32.mrf.mxu0
        %v1249 = vadd.f32 %v569, %v1248
        %v1250 = vpop.f32.mrf.mxu0
        %v1251 = vadd.f32 %v569, %v1250
        %1252 = vmatmul.bf16.gmra.mxu0 %v442
        %v1253 = vpop.f32.mrf.mxu0
        %v1254 = vadd.f32 %v569, %v1253
        %v1255 = vpop.f32.mrf.mxu0
        %v1256 = vadd.f32 %v569, %v1255
        %1257 = vmatmul.bf16.gmra.mxu0 %v444
        %v1258 = vpop.f32.mrf.mxu0
        %v1259 = vadd.f32 %v569, %v1258
        %v1260 = vpop.f32.mrf.mxu0
        %v1261 = vadd.f32 %v569, %v1260
        %1262 = vmatmul.bf16.gmra.mxu0 %v446
        %v1263 = vpop.f32.mrf.mxu0
        %v1264 = vadd.f32 %v569, %v1263
        %v1265 = vpop.f32.mrf.mxu0
        %v1266 = vadd.f32 %v569, %v1265
        %1267 = vmatmul.bf16.gmra.mxu0 %v448
        %v1268 = vpop.f32.mrf.mxu0
        %v1269 = vadd.f32 %v569, %v1268
        %v1270 = vpop.f32.mrf.mxu0
        %v1271 = vadd.f32 %v569, %v1270
        %1272 = vmatmul.bf16.gmra.mxu0 %v450
        %v1273 = vpop.f32.mrf.mxu0
        %v1274 = vadd.f32 %v569, %v1273
        %v1275 = vpop.f32.mrf.mxu0
        %v1276 = vadd.f32 %v569, %v1275
        %1277 = vmatmul.bf16.gmra.mxu0 %v452
        %v1278 = vpop.f32.mrf.mxu0
        %v1279 = vadd.f32 %v569, %v1278
        %v1280 = vpop.f32.mrf.mxu0
        %v1281 = vadd.f32 %v569, %v1280
        %1282 = vmatmul.bf16.gmra.mxu0 %v454
        %v1283 = vpop.f32.mrf.mxu0
        %v1284 = vadd.f32 %v569, %v1283
        %v1285 = vpop.f32.mrf.mxu0
        %v1286 = vadd.f32 %v569, %v1285
        %1287 = vmatmul.bf16.gmra.mxu0 %v456
        %v1288 = vpop.f32.mrf.mxu0
        %v1289 = vadd.f32 %v569, %v1288
        %v1290 = vpop.f32.mrf.mxu0
        %v1291 = vadd.f32 %v569, %v1290
        %1292 = vmatmul.bf16.gmra.mxu0 %v458
        %v1293 = vpop.f32.mrf.mxu0
        %v1294 = vadd.f32 %v569, %v1293
        %v1295 = vpop.f32.mrf.mxu0
        %v1296 = vadd.f32 %v569, %v1295
        %1297 = vmatmul.bf16.gmra.mxu0 %v460
        %v1298 = vpop.f32.mrf.mxu0
        %v1299 = vadd.f32 %v569, %v1298
        %v1300 = vpop.f32.mrf.mxu0
        %v1301 = vadd.f32 %v569, %v1300
        %1302 = vmatmul.bf16.gmra.mxu0 %v462
        %v1303 = vpop.f32.mrf.mxu0
        %v1304 = vadd.f32 %v569, %v1303
        %v1305 = vpop.f32.mrf.mxu0
        %v1306 = vadd.f32 %v569, %v1305
        %1307 = vmatmul.bf16.gmra.mxu0 %v464
        %v1308 = vpop.f32.mrf.mxu0
        %v1309 = vadd.f32 %v569, %v1308
        %v1310 = vpop.f32.mrf.mxu0
        %v1311 = vadd.f32 %v569, %v1310
        %1312 = vmatmul.bf16.gmra.mxu0 %v466
        %v1313 = vpop.f32.mrf.mxu0
        %v1314 = vadd.f32 %v569, %v1313
        %v1315 = vpop.f32.mrf.mxu0
        %v1316 = vadd.f32 %v569, %v1315
        %1317 = vmatmul.bf16.gmra.mxu0 %v468
        %v1318 = vpop.f32.mrf.mxu0
        %v1319 = vadd.f32 %v569, %v1318
        %v1320 = vpop.f32.mrf.mxu0
        %v1321 = vadd.f32 %v569, %v1320
        %1322 = vmatmul.bf16.gmra.mxu0 %v470
        %v1323 = vpop.f32.mrf.mxu0
        %v1324 = vadd.f32 %v569, %v1323
        %v1325 = vpop.f32.mrf.mxu0
        %v1326 = vadd.f32 %v569, %v1325
        %1327 = vmatmul.bf16.gmra.mxu0 %v472
        %v1328 = vpop.f32.mrf.mxu0
        %v1329 = vadd.f32 %v569, %v1328
        %v1330 = vpop.f32.mrf.mxu0
        %v1331 = vadd.f32 %v569, %v1330
        %1332 = vmatmul.bf16.gmra.mxu0 %v474
        %v1333 = vpop.f32.mrf.mxu0
        %v1334 = vadd.f32 %v569, %v1333
        %v1335 = vpop.f32.mrf.mxu0
        %v1336 = vadd.f32 %v569, %v1335
        %1337 = vmatmul.bf16.gmra.mxu0 %v476
        %v1338 = vpop.f32.mrf.mxu0
        %v1339 = vadd.f32 %v569, %v1338
        %v1340 = vpop.f32.mrf.mxu0
        %v1341 = vadd.f32 %v569, %v1340
        %1342 = vmatmul.bf16.gmra.mxu0 %v478
        %v1343 = vpop.f32.mrf.mxu0
        %v1344 = vadd.f32 %v569, %v1343
        %v1345 = vpop.f32.mrf.mxu0
        %v1346 = vadd.f32 %v569, %v1345
        %1347 = vmatmul.bf16.gmra.mxu0 %v480
        %v1348 = vpop.f32.mrf.mxu0
        %v1349 = vadd.f32 %v569, %v1348
        %v1350 = vpop.f32.mrf.mxu0
        %v1351 = vadd.f32 %v569, %v1350
        %1352 = vmatmul.bf16.gmra.mxu0 %v482
        %v1353 = vpop.f32.mrf.mxu0
        %v1354 = vadd.f32 %v569, %v1353
        %v1355 = vpop.f32.mrf.mxu0
        %v1356 = vadd.f32 %v569, %v1355
        %1357 = vmatmul.bf16.gmra.mxu0 %v484
        %v1358 = vpop.f32.mrf.mxu0
        %v1359 = vadd.f32 %v569, %v1358
        %v1360 = vpop.f32.mrf.mxu0
        %v1361 = vadd.f32 %v569, %v1360
        %1362 = vmatmul.bf16.gmra.mxu0 %v486
        %v1363 = vpop.f32.mrf.mxu0
        %v1364 = vadd.f32 %v569, %v1363
        %v1365 = vpop.f32.mrf.mxu0
        %v1366 = vadd.f32 %v569, %v1365
        %1367 = vmatmul.bf16.gmra.mxu0 %v488
        %v1368 = vpop.f32.mrf.mxu0
        %v1369 = vadd.f32 %v569, %v1368
        %v1370 = vpop.f32.mrf.mxu0
        %v1371 = vadd.f32 %v569, %v1370
        %1372 = vmatmul.bf16.gmra.mxu0 %v490
        %v1373 = vpop.f32.mrf.mxu0
        %v1374 = vadd.f32 %v569, %v1373
        %v1375 = vpop.f32.mrf.mxu0
        %v1376 = vadd.f32 %v569, %v1375
        %1377 = vmatmul.bf16.gmra.mxu0 %v492
        %v1378 = vpop.f32.mrf.mxu0
        %v1379 = vadd.f32 %v569, %v1378
        %v1380 = vpop.f32.mrf.mxu0
        %v1381 = vadd.f32 %v569, %v1380
        %1382 = vmatmul.bf16.gmra.mxu0 %v494
        %v1383 = vpop.f32.mrf.mxu0
        %v1384 = vadd.f32 %v569, %v1383
        %v1385 = vpop.f32.mrf.mxu0
        %v1386 = vadd.f32 %v569, %v1385
        %1387 = vmatmul.bf16.gmra.mxu0 %v496
        %v1388 = vpop.f32.mrf.mxu0
        %v1389 = vadd.f32 %v569, %v1388
        %v1390 = vpop.f32.mrf.mxu0
        %v1391 = vadd.f32 %v569, %v1390
        %1392 = vmatmul.bf16.gmra.mxu0 %v498
        %v1393 = vpop.f32.mrf.mxu0
        %v1394 = vadd.f32 %v569, %v1393
        %v1395 = vpop.f32.mrf.mxu0
        %v1396 = vadd.f32 %v569, %v1395
        %1397 = vmatmul.bf16.gmra.mxu0 %v500
        %v1398 = vpop.f32.mrf.mxu0
        %v1399 = vadd.f32 %v569, %v1398
        %v1400 = vpop.f32.mrf.mxu0
        %v1401 = vadd.f32 %v569, %v1400
        %1402 = vdwg.mxu0
        %1403 = vmatpush.bf16.msra.mxu0 %v829
        %1404 = vmatpush.bf16.msra.mxu0 %v825
        %1405 = vmatpush.bf16.msra.mxu0 %v821
        %1406 = vmatpush.bf16.msra.mxu0 %v817
        %1407 = vmatpush.bf16.msra.mxu0 %v813
        %1408 = vmatpush.bf16.msra.mxu0 %v809
        %1409 = vmatpush.bf16.msra.mxu0 %v805
        %1410 = vmatpush.bf16.msra.mxu0 %v801
        %1411 = vmatmul.bf16.gmra.mxu0 %v439
        %v1412 = vpop.f32.mrf.mxu0
        %v1413 = vadd.f32 %v1244, %v1412
        %v1414 = vpop.f32.mrf.mxu0
        %v1415 = vadd.f32 %v1246, %v1414
        %1416 = vmatmul.bf16.gmra.mxu0 %v441
        %v1417 = vpop.f32.mrf.mxu0
        %v1418 = vadd.f32 %v1249, %v1417
        %v1419 = vpop.f32.mrf.mxu0
        %v1420 = vadd.f32 %v1251, %v1419
        %1421 = vmatmul.bf16.gmra.mxu0 %v443
        %v1422 = vpop.f32.mrf.mxu0
        %v1423 = vadd.f32 %v1254, %v1422
        %v1424 = vpop.f32.mrf.mxu0
        %v1425 = vadd.f32 %v1256, %v1424
        %1426 = vmatmul.bf16.gmra.mxu0 %v445
        %v1427 = vpop.f32.mrf.mxu0
        %v1428 = vadd.f32 %v1259, %v1427
        %v1429 = vpop.f32.mrf.mxu0
        %v1430 = vadd.f32 %v1261, %v1429
        %1431 = vmatmul.bf16.gmra.mxu0 %v447
        %v1432 = vpop.f32.mrf.mxu0
        %v1433 = vadd.f32 %v1264, %v1432
        %v1434 = vpop.f32.mrf.mxu0
        %v1435 = vadd.f32 %v1266, %v1434
        %1436 = vmatmul.bf16.gmra.mxu0 %v449
        %v1437 = vpop.f32.mrf.mxu0
        %v1438 = vadd.f32 %v1269, %v1437
        %v1439 = vpop.f32.mrf.mxu0
        %v1440 = vadd.f32 %v1271, %v1439
        %1441 = vmatmul.bf16.gmra.mxu0 %v451
        %v1442 = vpop.f32.mrf.mxu0
        %v1443 = vadd.f32 %v1274, %v1442
        %v1444 = vpop.f32.mrf.mxu0
        %v1445 = vadd.f32 %v1276, %v1444
        %1446 = vmatmul.bf16.gmra.mxu0 %v453
        %v1447 = vpop.f32.mrf.mxu0
        %v1448 = vadd.f32 %v1279, %v1447
        %v1449 = vpop.f32.mrf.mxu0
        %v1450 = vadd.f32 %v1281, %v1449
        %1451 = vmatmul.bf16.gmra.mxu0 %v455
        %v1452 = vpop.f32.mrf.mxu0
        %v1453 = vadd.f32 %v1284, %v1452
        %v1454 = vpop.f32.mrf.mxu0
        %v1455 = vadd.f32 %v1286, %v1454
        %1456 = vmatmul.bf16.gmra.mxu0 %v457
        %v1457 = vpop.f32.mrf.mxu0
        %v1458 = vadd.f32 %v1289, %v1457
        %v1459 = vpop.f32.mrf.mxu0
        %v1460 = vadd.f32 %v1291, %v1459
        %1461 = vmatmul.bf16.gmra.mxu0 %v459
        %v1462 = vpop.f32.mrf.mxu0
        %v1463 = vadd.f32 %v1294, %v1462
        %v1464 = vpop.f32.mrf.mxu0
        %v1465 = vadd.f32 %v1296, %v1464
        %1466 = vmatmul.bf16.gmra.mxu0 %v461
        %v1467 = vpop.f32.mrf.mxu0
        %v1468 = vadd.f32 %v1299, %v1467
        %v1469 = vpop.f32.mrf.mxu0
        %v1470 = vadd.f32 %v1301, %v1469
        %1471 = vmatmul.bf16.gmra.mxu0 %v463
        %v1472 = vpop.f32.mrf.mxu0
        %v1473 = vadd.f32 %v1304, %v1472
        %v1474 = vpop.f32.mrf.mxu0
        %v1475 = vadd.f32 %v1306, %v1474
        %1476 = vmatmul.bf16.gmra.mxu0 %v465
        %v1477 = vpop.f32.mrf.mxu0
        %v1478 = vadd.f32 %v1309, %v1477
        %v1479 = vpop.f32.mrf.mxu0
        %v1480 = vadd.f32 %v1311, %v1479
        %1481 = vmatmul.bf16.gmra.mxu0 %v467
        %v1482 = vpop.f32.mrf.mxu0
        %v1483 = vadd.f32 %v1314, %v1482
        %v1484 = vpop.f32.mrf.mxu0
        %v1485 = vadd.f32 %v1316, %v1484
        %1486 = vmatmul.bf16.gmra.mxu0 %v469
        %v1487 = vpop.f32.mrf.mxu0
        %v1488 = vadd.f32 %v1319, %v1487
        %v1489 = vpop.f32.mrf.mxu0
        %v1490 = vadd.f32 %v1321, %v1489
        %1491 = vmatmul.bf16.gmra.mxu0 %v471
        %v1492 = vpop.f32.mrf.mxu0
        %v1493 = vadd.f32 %v1324, %v1492
        %v1494 = vpop.f32.mrf.mxu0
        %v1495 = vadd.f32 %v1326, %v1494
        %1496 = vmatmul.bf16.gmra.mxu0 %v473
        %v1497 = vpop.f32.mrf.mxu0
        %v1498 = vadd.f32 %v1329, %v1497
        %v1499 = vpop.f32.mrf.mxu0
        %v1500 = vadd.f32 %v1331, %v1499
        %1501 = vmatmul.bf16.gmra.mxu0 %v475
        %v1502 = vpop.f32.mrf.mxu0
        %v1503 = vadd.f32 %v1334, %v1502
        %v1504 = vpop.f32.mrf.mxu0
        %v1505 = vadd.f32 %v1336, %v1504
        %1506 = vmatmul.bf16.gmra.mxu0 %v477
        %v1507 = vpop.f32.mrf.mxu0
        %v1508 = vadd.f32 %v1339, %v1507
        %v1509 = vpop.f32.mrf.mxu0
        %v1510 = vadd.f32 %v1341, %v1509
        %1511 = vmatmul.bf16.gmra.mxu0 %v479
        %v1512 = vpop.f32.mrf.mxu0
        %v1513 = vadd.f32 %v1344, %v1512
        %v1514 = vpop.f32.mrf.mxu0
        %v1515 = vadd.f32 %v1346, %v1514
        %1516 = vmatmul.bf16.gmra.mxu0 %v481
        %v1517 = vpop.f32.mrf.mxu0
        %v1518 = vadd.f32 %v1349, %v1517
        %v1519 = vpop.f32.mrf.mxu0
        %v1520 = vadd.f32 %v1351, %v1519
        %1521 = vmatmul.bf16.gmra.mxu0 %v483
        %v1522 = vpop.f32.mrf.mxu0
        %v1523 = vadd.f32 %v1354, %v1522
        %v1524 = vpop.f32.mrf.mxu0
        %v1525 = vadd.f32 %v1356, %v1524
        %1526 = vmatmul.bf16.gmra.mxu0 %v485
        %v1527 = vpop.f32.mrf.mxu0
        %v1528 = vadd.f32 %v1359, %v1527
        %v1529 = vpop.f32.mrf.mxu0
        %v1530 = vadd.f32 %v1361, %v1529
        %1531 = vmatmul.bf16.gmra.mxu0 %v487
        %v1532 = vpop.f32.mrf.mxu0
        %v1533 = vadd.f32 %v1364, %v1532
        %v1534 = vpop.f32.mrf.mxu0
        %v1535 = vadd.f32 %v1366, %v1534
        %1536 = vmatmul.bf16.gmra.mxu0 %v489
        %v1537 = vpop.f32.mrf.mxu0
        %v1538 = vadd.f32 %v1369, %v1537
        %v1539 = vpop.f32.mrf.mxu0
        %v1540 = vadd.f32 %v1371, %v1539
        %1541 = vmatmul.bf16.gmra.mxu0 %v491
        %v1542 = vpop.f32.mrf.mxu0
        %v1543 = vadd.f32 %v1374, %v1542
        %v1544 = vpop.f32.mrf.mxu0
        %v1545 = vadd.f32 %v1376, %v1544
        %1546 = vmatmul.bf16.gmra.mxu0 %v493
        %v1547 = vpop.f32.mrf.mxu0
        %v1548 = vadd.f32 %v1379, %v1547
        %v1549 = vpop.f32.mrf.mxu0
        %v1550 = vadd.f32 %v1381, %v1549
        %1551 = vmatmul.bf16.gmra.mxu0 %v495
        %v1552 = vpop.f32.mrf.mxu0
        %v1553 = vadd.f32 %v1384, %v1552
        %v1554 = vpop.f32.mrf.mxu0
        %v1555 = vadd.f32 %v1386, %v1554
        %1556 = vmatmul.bf16.gmra.mxu0 %v497
        %v1557 = vpop.f32.mrf.mxu0
        %v1558 = vadd.f32 %v1389, %v1557
        %v1559 = vpop.f32.mrf.mxu0
        %v1560 = vadd.f32 %v1391, %v1559
        %1561 = vmatmul.bf16.gmra.mxu0 %v499
        %v1562 = vpop.f32.mrf.mxu0
        %v1563 = vadd.f32 %v1394, %v1562
        %v1564 = vpop.f32.mrf.mxu0
        %v1565 = vadd.f32 %v1396, %v1564
        %1566 = vmatmul.bf16.gmra.mxu0 %v501
        %v1567 = vpop.f32.mrf.mxu0
        %v1568 = vadd.f32 %v1399, %v1567
        %v1569 = vpop.f32.mrf.mxu0
        %v1570 = vadd.f32 %v1401, %v1569
        %1571 = vdwg.mxu0
        %1572 = vmatpush.bf16.msra.mxu0 %v798
        %1573 = vmatpush.bf16.msra.mxu0 %v794
        %1574 = vmatpush.bf16.msra.mxu0 %v790
        %1575 = vmatpush.bf16.msra.mxu0 %v786
        %1576 = vmatpush.bf16.msra.mxu0 %v782
        %1577 = vmatpush.bf16.msra.mxu0 %v778
        %1578 = vmatpush.bf16.msra.mxu0 %v774
        %1579 = vmatpush.bf16.msra.mxu0 %v770
        %1580 = vmatmul.bf16.gmra.mxu0 %v438
        %v1581 = vpop.f32.mrf.mxu0
        %v1582 = vadd.f32 %v570, %v1581
        %v1583 = vpop.f32.mrf.mxu0
        %v1584 = vadd.f32 %v570, %v1583
        %1585 = vmatmul.bf16.gmra.mxu0 %v440
        %v1586 = vpop.f32.mrf.mxu0
        %v1587 = vadd.f32 %v570, %v1586
        %v1588 = vpop.f32.mrf.mxu0
        %v1589 = vadd.f32 %v570, %v1588
        %1590 = vmatmul.bf16.gmra.mxu0 %v442
        %v1591 = vpop.f32.mrf.mxu0
        %v1592 = vadd.f32 %v570, %v1591
        %v1593 = vpop.f32.mrf.mxu0
        %v1594 = vadd.f32 %v570, %v1593
        %1595 = vmatmul.bf16.gmra.mxu0 %v444
        %v1596 = vpop.f32.mrf.mxu0
        %v1597 = vadd.f32 %v570, %v1596
        %v1598 = vpop.f32.mrf.mxu0
        %v1599 = vadd.f32 %v570, %v1598
        %1600 = vmatmul.bf16.gmra.mxu0 %v446
        %v1601 = vpop.f32.mrf.mxu0
        %v1602 = vadd.f32 %v570, %v1601
        %v1603 = vpop.f32.mrf.mxu0
        %v1604 = vadd.f32 %v570, %v1603
        %1605 = vmatmul.bf16.gmra.mxu0 %v448
        %v1606 = vpop.f32.mrf.mxu0
        %v1607 = vadd.f32 %v570, %v1606
        %v1608 = vpop.f32.mrf.mxu0
        %v1609 = vadd.f32 %v570, %v1608
        %1610 = vmatmul.bf16.gmra.mxu0 %v450
        %v1611 = vpop.f32.mrf.mxu0
        %v1612 = vadd.f32 %v570, %v1611
        %v1613 = vpop.f32.mrf.mxu0
        %v1614 = vadd.f32 %v570, %v1613
        %1615 = vmatmul.bf16.gmra.mxu0 %v452
        %v1616 = vpop.f32.mrf.mxu0
        %v1617 = vadd.f32 %v570, %v1616
        %v1618 = vpop.f32.mrf.mxu0
        %v1619 = vadd.f32 %v570, %v1618
        %1620 = vmatmul.bf16.gmra.mxu0 %v454
        %v1621 = vpop.f32.mrf.mxu0
        %v1622 = vadd.f32 %v570, %v1621
        %v1623 = vpop.f32.mrf.mxu0
        %v1624 = vadd.f32 %v570, %v1623
        %1625 = vmatmul.bf16.gmra.mxu0 %v456
        %v1626 = vpop.f32.mrf.mxu0
        %v1627 = vadd.f32 %v570, %v1626
        %v1628 = vpop.f32.mrf.mxu0
        %v1629 = vadd.f32 %v570, %v1628
        %1630 = vmatmul.bf16.gmra.mxu0 %v458
        %v1631 = vpop.f32.mrf.mxu0
        %v1632 = vadd.f32 %v570, %v1631
        %v1633 = vpop.f32.mrf.mxu0
        %v1634 = vadd.f32 %v570, %v1633
        %1635 = vmatmul.bf16.gmra.mxu0 %v460
        %v1636 = vpop.f32.mrf.mxu0
        %v1637 = vadd.f32 %v570, %v1636
        %v1638 = vpop.f32.mrf.mxu0
        %v1639 = vadd.f32 %v570, %v1638
        %1640 = vmatmul.bf16.gmra.mxu0 %v462
        %v1641 = vpop.f32.mrf.mxu0
        %v1642 = vadd.f32 %v570, %v1641
        %v1643 = vpop.f32.mrf.mxu0
        %v1644 = vadd.f32 %v570, %v1643
        %1645 = vmatmul.bf16.gmra.mxu0 %v464
        %v1646 = vpop.f32.mrf.mxu0
        %v1647 = vadd.f32 %v570, %v1646
        %v1648 = vpop.f32.mrf.mxu0
        %v1649 = vadd.f32 %v570, %v1648
        %1650 = vmatmul.bf16.gmra.mxu0 %v466
        %v1651 = vpop.f32.mrf.mxu0
        %v1652 = vadd.f32 %v570, %v1651
        %v1653 = vpop.f32.mrf.mxu0
        %v1654 = vadd.f32 %v570, %v1653
        %1655 = vmatmul.bf16.gmra.mxu0 %v468
        %v1656 = vpop.f32.mrf.mxu0
        %v1657 = vadd.f32 %v570, %v1656
        %v1658 = vpop.f32.mrf.mxu0
        %v1659 = vadd.f32 %v570, %v1658
        %1660 = vmatmul.bf16.gmra.mxu0 %v470
        %v1661 = vpop.f32.mrf.mxu0
        %v1662 = vadd.f32 %v570, %v1661
        %v1663 = vpop.f32.mrf.mxu0
        %v1664 = vadd.f32 %v570, %v1663
        %1665 = vmatmul.bf16.gmra.mxu0 %v472
        %v1666 = vpop.f32.mrf.mxu0
        %v1667 = vadd.f32 %v570, %v1666
        %v1668 = vpop.f32.mrf.mxu0
        %v1669 = vadd.f32 %v570, %v1668
        %1670 = vmatmul.bf16.gmra.mxu0 %v474
        %v1671 = vpop.f32.mrf.mxu0
        %v1672 = vadd.f32 %v570, %v1671
        %v1673 = vpop.f32.mrf.mxu0
        %v1674 = vadd.f32 %v570, %v1673
        %1675 = vmatmul.bf16.gmra.mxu0 %v476
        %v1676 = vpop.f32.mrf.mxu0
        %v1677 = vadd.f32 %v570, %v1676
        %v1678 = vpop.f32.mrf.mxu0
        %v1679 = vadd.f32 %v570, %v1678
        %1680 = vmatmul.bf16.gmra.mxu0 %v478
        %v1681 = vpop.f32.mrf.mxu0
        %v1682 = vadd.f32 %v570, %v1681
        %v1683 = vpop.f32.mrf.mxu0
        %v1684 = vadd.f32 %v570, %v1683
        %1685 = vmatmul.bf16.gmra.mxu0 %v480
        %v1686 = vpop.f32.mrf.mxu0
        %v1687 = vadd.f32 %v570, %v1686
        %v1688 = vpop.f32.mrf.mxu0
        %v1689 = vadd.f32 %v570, %v1688
        %1690 = vmatmul.bf16.gmra.mxu0 %v482
        %v1691 = vpop.f32.mrf.mxu0
        %v1692 = vadd.f32 %v570, %v1691
        %v1693 = vpop.f32.mrf.mxu0
        %v1694 = vadd.f32 %v570, %v1693
        %1695 = vmatmul.bf16.gmra.mxu0 %v484
        %v1696 = vpop.f32.mrf.mxu0
        %v1697 = vadd.f32 %v570, %v1696
        %v1698 = vpop.f32.mrf.mxu0
        %v1699 = vadd.f32 %v570, %v1698
        %1700 = vmatmul.bf16.gmra.mxu0 %v486
        %v1701 = vpop.f32.mrf.mxu0
        %v1702 = vadd.f32 %v570, %v1701
        %v1703 = vpop.f32.mrf.mxu0
        %v1704 = vadd.f32 %v570, %v1703
        %1705 = vmatmul.bf16.gmra.mxu0 %v488
        %v1706 = vpop.f32.mrf.mxu0
        %v1707 = vadd.f32 %v570, %v1706
        %v1708 = vpop.f32.mrf.mxu0
        %v1709 = vadd.f32 %v570, %v1708
        %1710 = vmatmul.bf16.gmra.mxu0 %v490
        %v1711 = vpop.f32.mrf.mxu0
        %v1712 = vadd.f32 %v570, %v1711
        %v1713 = vpop.f32.mrf.mxu0
        %v1714 = vadd.f32 %v570, %v1713
        %1715 = vmatmul.bf16.gmra.mxu0 %v492
        %v1716 = vpop.f32.mrf.mxu0
        %v1717 = vadd.f32 %v570, %v1716
        %v1718 = vpop.f32.mrf.mxu0
        %v1719 = vadd.f32 %v570, %v1718
        %1720 = vmatmul.bf16.gmra.mxu0 %v494
        %v1721 = vpop.f32.mrf.mxu0
        %v1722 = vadd.f32 %v570, %v1721
        %v1723 = vpop.f32.mrf.mxu0
        %v1724 = vadd.f32 %v570, %v1723
        %1725 = vmatmul.bf16.gmra.mxu0 %v496
        %v1726 = vpop.f32.mrf.mxu0
        %v1727 = vadd.f32 %v570, %v1726
        %v1728 = vpop.f32.mrf.mxu0
        %v1729 = vadd.f32 %v570, %v1728
        %1730 = vmatmul.bf16.gmra.mxu0 %v498
        %v1731 = vpop.f32.mrf.mxu0
        %v1732 = vadd.f32 %v570, %v1731
        %v1733 = vpop.f32.mrf.mxu0
        %v1734 = vadd.f32 %v570, %v1733
        %1735 = vmatmul.bf16.gmra.mxu0 %v500
        %v1736 = vpop.f32.mrf.mxu0
        %v1737 = vadd.f32 %v570, %v1736
        %v1738 = vpop.f32.mrf.mxu0
        %v1739 = vadd.f32 %v570, %v1738
        %1740 = vdwg.mxu0
        %1741 = vmatpush.bf16.msra.mxu0 %v830
        %1742 = vmatpush.bf16.msra.mxu0 %v826
        %1743 = vmatpush.bf16.msra.mxu0 %v822
        %1744 = vmatpush.bf16.msra.mxu0 %v818
        %1745 = vmatpush.bf16.msra.mxu0 %v814
        %1746 = vmatpush.bf16.msra.mxu0 %v810
        %1747 = vmatpush.bf16.msra.mxu0 %v806
        %1748 = vmatpush.bf16.msra.mxu0 %v802
        %1749 = vmatmul.bf16.gmra.mxu0 %v439
        %v1750 = vpop.f32.mrf.mxu0
        %v1751 = vadd.f32 %v1582, %v1750
        %v1752 = vpop.f32.mrf.mxu0
        %v1753 = vadd.f32 %v1584, %v1752
        %1754 = vmatmul.bf16.gmra.mxu0 %v441
        %v1755 = vpop.f32.mrf.mxu0
        %v1756 = vadd.f32 %v1587, %v1755
        %v1757 = vpop.f32.mrf.mxu0
        %v1758 = vadd.f32 %v1589, %v1757
        %1759 = vmatmul.bf16.gmra.mxu0 %v443
        %v1760 = vpop.f32.mrf.mxu0
        %v1761 = vadd.f32 %v1592, %v1760
        %v1762 = vpop.f32.mrf.mxu0
        %v1763 = vadd.f32 %v1594, %v1762
        %1764 = vmatmul.bf16.gmra.mxu0 %v445
        %v1765 = vpop.f32.mrf.mxu0
        %v1766 = vadd.f32 %v1597, %v1765
        %v1767 = vpop.f32.mrf.mxu0
        %v1768 = vadd.f32 %v1599, %v1767
        %1769 = vmatmul.bf16.gmra.mxu0 %v447
        %v1770 = vpop.f32.mrf.mxu0
        %v1771 = vadd.f32 %v1602, %v1770
        %v1772 = vpop.f32.mrf.mxu0
        %v1773 = vadd.f32 %v1604, %v1772
        %1774 = vmatmul.bf16.gmra.mxu0 %v449
        %v1775 = vpop.f32.mrf.mxu0
        %v1776 = vadd.f32 %v1607, %v1775
        %v1777 = vpop.f32.mrf.mxu0
        %v1778 = vadd.f32 %v1609, %v1777
        %1779 = vmatmul.bf16.gmra.mxu0 %v451
        %v1780 = vpop.f32.mrf.mxu0
        %v1781 = vadd.f32 %v1612, %v1780
        %v1782 = vpop.f32.mrf.mxu0
        %v1783 = vadd.f32 %v1614, %v1782
        %1784 = vmatmul.bf16.gmra.mxu0 %v453
        %v1785 = vpop.f32.mrf.mxu0
        %v1786 = vadd.f32 %v1617, %v1785
        %v1787 = vpop.f32.mrf.mxu0
        %v1788 = vadd.f32 %v1619, %v1787
        %1789 = vmatmul.bf16.gmra.mxu0 %v455
        %v1790 = vpop.f32.mrf.mxu0
        %v1791 = vadd.f32 %v1622, %v1790
        %v1792 = vpop.f32.mrf.mxu0
        %v1793 = vadd.f32 %v1624, %v1792
        %1794 = vmatmul.bf16.gmra.mxu0 %v457
        %v1795 = vpop.f32.mrf.mxu0
        %v1796 = vadd.f32 %v1627, %v1795
        %v1797 = vpop.f32.mrf.mxu0
        %v1798 = vadd.f32 %v1629, %v1797
        %1799 = vmatmul.bf16.gmra.mxu0 %v459
        %v1800 = vpop.f32.mrf.mxu0
        %v1801 = vadd.f32 %v1632, %v1800
        %v1802 = vpop.f32.mrf.mxu0
        %v1803 = vadd.f32 %v1634, %v1802
        %1804 = vmatmul.bf16.gmra.mxu0 %v461
        %v1805 = vpop.f32.mrf.mxu0
        %v1806 = vadd.f32 %v1637, %v1805
        %v1807 = vpop.f32.mrf.mxu0
        %v1808 = vadd.f32 %v1639, %v1807
        %1809 = vmatmul.bf16.gmra.mxu0 %v463
        %v1810 = vpop.f32.mrf.mxu0
        %v1811 = vadd.f32 %v1642, %v1810
        %v1812 = vpop.f32.mrf.mxu0
        %v1813 = vadd.f32 %v1644, %v1812
        %1814 = vmatmul.bf16.gmra.mxu0 %v465
        %v1815 = vpop.f32.mrf.mxu0
        %v1816 = vadd.f32 %v1647, %v1815
        %v1817 = vpop.f32.mrf.mxu0
        %v1818 = vadd.f32 %v1649, %v1817
        %1819 = vmatmul.bf16.gmra.mxu0 %v467
        %v1820 = vpop.f32.mrf.mxu0
        %v1821 = vadd.f32 %v1652, %v1820
        %v1822 = vpop.f32.mrf.mxu0
        %v1823 = vadd.f32 %v1654, %v1822
        %1824 = vmatmul.bf16.gmra.mxu0 %v469
        %v1825 = vpop.f32.mrf.mxu0
        %v1826 = vadd.f32 %v1657, %v1825
        %v1827 = vpop.f32.mrf.mxu0
        %v1828 = vadd.f32 %v1659, %v1827
        %1829 = vmatmul.bf16.gmra.mxu0 %v471
        %v1830 = vpop.f32.mrf.mxu0
        %v1831 = vadd.f32 %v1662, %v1830
        %v1832 = vpop.f32.mrf.mxu0
        %v1833 = vadd.f32 %v1664, %v1832
        %1834 = vmatmul.bf16.gmra.mxu0 %v473
        %v1835 = vpop.f32.mrf.mxu0
        %v1836 = vadd.f32 %v1667, %v1835
        %v1837 = vpop.f32.mrf.mxu0
        %v1838 = vadd.f32 %v1669, %v1837
        %1839 = vmatmul.bf16.gmra.mxu0 %v475
        %v1840 = vpop.f32.mrf.mxu0
        %v1841 = vadd.f32 %v1672, %v1840
        %v1842 = vpop.f32.mrf.mxu0
        %v1843 = vadd.f32 %v1674, %v1842
        %1844 = vmatmul.bf16.gmra.mxu0 %v477
        %v1845 = vpop.f32.mrf.mxu0
        %v1846 = vadd.f32 %v1677, %v1845
        %v1847 = vpop.f32.mrf.mxu0
        %v1848 = vadd.f32 %v1679, %v1847
        %1849 = vmatmul.bf16.gmra.mxu0 %v479
        %v1850 = vpop.f32.mrf.mxu0
        %v1851 = vadd.f32 %v1682, %v1850
        %v1852 = vpop.f32.mrf.mxu0
        %v1853 = vadd.f32 %v1684, %v1852
        %1854 = vmatmul.bf16.gmra.mxu0 %v481
        %v1855 = vpop.f32.mrf.mxu0
        %v1856 = vadd.f32 %v1687, %v1855
        %v1857 = vpop.f32.mrf.mxu0
        %v1858 = vadd.f32 %v1689, %v1857
        %1859 = vmatmul.bf16.gmra.mxu0 %v483
        %v1860 = vpop.f32.mrf.mxu0
        %v1861 = vadd.f32 %v1692, %v1860
        %v1862 = vpop.f32.mrf.mxu0
        %v1863 = vadd.f32 %v1694, %v1862
        %1864 = vmatmul.bf16.gmra.mxu0 %v485
        %v1865 = vpop.f32.mrf.mxu0
        %v1866 = vadd.f32 %v1697, %v1865
        %v1867 = vpop.f32.mrf.mxu0
        %v1868 = vadd.f32 %v1699, %v1867
        %1869 = vmatmul.bf16.gmra.mxu0 %v487
        %v1870 = vpop.f32.mrf.mxu0
        %v1871 = vadd.f32 %v1702, %v1870
        %v1872 = vpop.f32.mrf.mxu0
        %v1873 = vadd.f32 %v1704, %v1872
        %1874 = vmatmul.bf16.gmra.mxu0 %v489
        %v1875 = vpop.f32.mrf.mxu0
        %v1876 = vadd.f32 %v1707, %v1875
        %v1877 = vpop.f32.mrf.mxu0
        %v1878 = vadd.f32 %v1709, %v1877
        %1879 = vmatmul.bf16.gmra.mxu0 %v491
        %v1880 = vpop.f32.mrf.mxu0
        %v1881 = vadd.f32 %v1712, %v1880
        %v1882 = vpop.f32.mrf.mxu0
        %v1883 = vadd.f32 %v1714, %v1882
        %1884 = vmatmul.bf16.gmra.mxu0 %v493
        %v1885 = vpop.f32.mrf.mxu0
        %v1886 = vadd.f32 %v1717, %v1885
        %v1887 = vpop.f32.mrf.mxu0
        %v1888 = vadd.f32 %v1719, %v1887
        %1889 = vmatmul.bf16.gmra.mxu0 %v495
        %v1890 = vpop.f32.mrf.mxu0
        %v1891 = vadd.f32 %v1722, %v1890
        %v1892 = vpop.f32.mrf.mxu0
        %v1893 = vadd.f32 %v1724, %v1892
        %1894 = vmatmul.bf16.gmra.mxu0 %v497
        %v1895 = vpop.f32.mrf.mxu0
        %v1896 = vadd.f32 %v1727, %v1895
        %v1897 = vpop.f32.mrf.mxu0
        %v1898 = vadd.f32 %v1729, %v1897
        %1899 = vmatmul.bf16.gmra.mxu0 %v499
        %v1900 = vpop.f32.mrf.mxu0
        %v1901 = vadd.f32 %v1732, %v1900
        %v1902 = vpop.f32.mrf.mxu0
        %v1903 = vadd.f32 %v1734, %v1902
        %1904 = vmatmul.bf16.gmra.mxu0 %v501
        %v1905 = vpop.f32.mrf.mxu0
        %v1906 = vadd.f32 %v1737, %v1905
        %v1907 = vpop.f32.mrf.mxu0
        %v1908 = vadd.f32 %v1739, %v1907
        %1909 = vdwg.mxu0
        %1910 = vmatpush.bf16.msra.mxu0 %v799
        %1911 = vmatpush.bf16.msra.mxu0 %v795
        %1912 = vmatpush.bf16.msra.mxu0 %v791
        %1913 = vmatpush.bf16.msra.mxu0 %v787
        %1914 = vmatpush.bf16.msra.mxu0 %v783
        %1915 = vmatpush.bf16.msra.mxu0 %v779
        %1916 = vmatpush.bf16.msra.mxu0 %v775
        %1917 = vmatpush.bf16.msra.mxu0 %v771
        %1918 = vmatmul.bf16.gmra.mxu0 %v438
        %v1919 = vpop.f32.mrf.mxu0
        %v1920 = vadd.f32 %v571, %v1919
        %v1921 = vpop.f32.mrf.mxu0
        %v1922 = vadd.f32 %v571, %v1921
        %1923 = vmatmul.bf16.gmra.mxu0 %v440
        %v1924 = vpop.f32.mrf.mxu0
        %v1925 = vadd.f32 %v571, %v1924
        %v1926 = vpop.f32.mrf.mxu0
        %v1927 = vadd.f32 %v571, %v1926
        %1928 = vmatmul.bf16.gmra.mxu0 %v442
        %v1929 = vpop.f32.mrf.mxu0
        %v1930 = vadd.f32 %v571, %v1929
        %v1931 = vpop.f32.mrf.mxu0
        %v1932 = vadd.f32 %v571, %v1931
        %1933 = vmatmul.bf16.gmra.mxu0 %v444
        %v1934 = vpop.f32.mrf.mxu0
        %v1935 = vadd.f32 %v571, %v1934
        %v1936 = vpop.f32.mrf.mxu0
        %v1937 = vadd.f32 %v571, %v1936
        %1938 = vmatmul.bf16.gmra.mxu0 %v446
        %v1939 = vpop.f32.mrf.mxu0
        %v1940 = vadd.f32 %v571, %v1939
        %v1941 = vpop.f32.mrf.mxu0
        %v1942 = vadd.f32 %v571, %v1941
        %1943 = vmatmul.bf16.gmra.mxu0 %v448
        %v1944 = vpop.f32.mrf.mxu0
        %v1945 = vadd.f32 %v571, %v1944
        %v1946 = vpop.f32.mrf.mxu0
        %v1947 = vadd.f32 %v571, %v1946
        %1948 = vmatmul.bf16.gmra.mxu0 %v450
        %v1949 = vpop.f32.mrf.mxu0
        %v1950 = vadd.f32 %v571, %v1949
        %v1951 = vpop.f32.mrf.mxu0
        %v1952 = vadd.f32 %v571, %v1951
        %1953 = vmatmul.bf16.gmra.mxu0 %v452
        %v1954 = vpop.f32.mrf.mxu0
        %v1955 = vadd.f32 %v571, %v1954
        %v1956 = vpop.f32.mrf.mxu0
        %v1957 = vadd.f32 %v571, %v1956
        %1958 = vmatmul.bf16.gmra.mxu0 %v454
        %v1959 = vpop.f32.mrf.mxu0
        %v1960 = vadd.f32 %v571, %v1959
        %v1961 = vpop.f32.mrf.mxu0
        %v1962 = vadd.f32 %v571, %v1961
        %1963 = vmatmul.bf16.gmra.mxu0 %v456
        %v1964 = vpop.f32.mrf.mxu0
        %v1965 = vadd.f32 %v571, %v1964
        %v1966 = vpop.f32.mrf.mxu0
        %v1967 = vadd.f32 %v571, %v1966
        %1968 = vmatmul.bf16.gmra.mxu0 %v458
        %v1969 = vpop.f32.mrf.mxu0
        %v1970 = vadd.f32 %v571, %v1969
        %v1971 = vpop.f32.mrf.mxu0
        %v1972 = vadd.f32 %v571, %v1971
        %1973 = vmatmul.bf16.gmra.mxu0 %v460
        %v1974 = vpop.f32.mrf.mxu0
        %v1975 = vadd.f32 %v571, %v1974
        %v1976 = vpop.f32.mrf.mxu0
        %v1977 = vadd.f32 %v571, %v1976
        %1978 = vmatmul.bf16.gmra.mxu0 %v462
        %v1979 = vpop.f32.mrf.mxu0
        %v1980 = vadd.f32 %v571, %v1979
        %v1981 = vpop.f32.mrf.mxu0
        %v1982 = vadd.f32 %v571, %v1981
        %1983 = vmatmul.bf16.gmra.mxu0 %v464
        %v1984 = vpop.f32.mrf.mxu0
        %v1985 = vadd.f32 %v571, %v1984
        %v1986 = vpop.f32.mrf.mxu0
        %v1987 = vadd.f32 %v571, %v1986
        %1988 = vmatmul.bf16.gmra.mxu0 %v466
        %v1989 = vpop.f32.mrf.mxu0
        %v1990 = vadd.f32 %v571, %v1989
        %v1991 = vpop.f32.mrf.mxu0
        %v1992 = vadd.f32 %v571, %v1991
        %1993 = vmatmul.bf16.gmra.mxu0 %v468
        %v1994 = vpop.f32.mrf.mxu0
        %v1995 = vadd.f32 %v571, %v1994
        %v1996 = vpop.f32.mrf.mxu0
        %v1997 = vadd.f32 %v571, %v1996
        %1998 = vmatmul.bf16.gmra.mxu0 %v470
        %v1999 = vpop.f32.mrf.mxu0
        %v2000 = vadd.f32 %v571, %v1999
        %v2001 = vpop.f32.mrf.mxu0
        %v2002 = vadd.f32 %v571, %v2001
        %2003 = vmatmul.bf16.gmra.mxu0 %v472
        %v2004 = vpop.f32.mrf.mxu0
        %v2005 = vadd.f32 %v571, %v2004
        %v2006 = vpop.f32.mrf.mxu0
        %v2007 = vadd.f32 %v571, %v2006
        %2008 = vmatmul.bf16.gmra.mxu0 %v474
        %v2009 = vpop.f32.mrf.mxu0
        %v2010 = vadd.f32 %v571, %v2009
        %v2011 = vpop.f32.mrf.mxu0
        %v2012 = vadd.f32 %v571, %v2011
        %2013 = vmatmul.bf16.gmra.mxu0 %v476
        %v2014 = vpop.f32.mrf.mxu0
        %v2015 = vadd.f32 %v571, %v2014
        %v2016 = vpop.f32.mrf.mxu0
        %v2017 = vadd.f32 %v571, %v2016
        %2018 = vmatmul.bf16.gmra.mxu0 %v478
        %v2019 = vpop.f32.mrf.mxu0
        %v2020 = vadd.f32 %v571, %v2019
        %v2021 = vpop.f32.mrf.mxu0
        %v2022 = vadd.f32 %v571, %v2021
        %2023 = vmatmul.bf16.gmra.mxu0 %v480
        %v2024 = vpop.f32.mrf.mxu0
        %v2025 = vadd.f32 %v571, %v2024
        %v2026 = vpop.f32.mrf.mxu0
        %v2027 = vadd.f32 %v571, %v2026
        %2028 = vmatmul.bf16.gmra.mxu0 %v482
        %v2029 = vpop.f32.mrf.mxu0
        %v2030 = vadd.f32 %v571, %v2029
        %v2031 = vpop.f32.mrf.mxu0
        %v2032 = vadd.f32 %v571, %v2031
        %2033 = vmatmul.bf16.gmra.mxu0 %v484
        %v2034 = vpop.f32.mrf.mxu0
        %v2035 = vadd.f32 %v571, %v2034
        %v2036 = vpop.f32.mrf.mxu0
        %v2037 = vadd.f32 %v571, %v2036
        %2038 = vmatmul.bf16.gmra.mxu0 %v486
        %v2039 = vpop.f32.mrf.mxu0
        %v2040 = vadd.f32 %v571, %v2039
        %v2041 = vpop.f32.mrf.mxu0
        %v2042 = vadd.f32 %v571, %v2041
        %2043 = vmatmul.bf16.gmra.mxu0 %v488
        %v2044 = vpop.f32.mrf.mxu0
        %v2045 = vadd.f32 %v571, %v2044
        %v2046 = vpop.f32.mrf.mxu0
        %v2047 = vadd.f32 %v571, %v2046
        %2048 = vmatmul.bf16.gmra.mxu0 %v490
        %v2049 = vpop.f32.mrf.mxu0
        %v2050 = vadd.f32 %v571, %v2049
        %v2051 = vpop.f32.mrf.mxu0
        %v2052 = vadd.f32 %v571, %v2051
        %2053 = vmatmul.bf16.gmra.mxu0 %v492
        %v2054 = vpop.f32.mrf.mxu0
        %v2055 = vadd.f32 %v571, %v2054
        %v2056 = vpop.f32.mrf.mxu0
        %v2057 = vadd.f32 %v571, %v2056
        %2058 = vmatmul.bf16.gmra.mxu0 %v494
        %v2059 = vpop.f32.mrf.mxu0
        %v2060 = vadd.f32 %v571, %v2059
        %v2061 = vpop.f32.mrf.mxu0
        %v2062 = vadd.f32 %v571, %v2061
        %2063 = vmatmul.bf16.gmra.mxu0 %v496
        %v2064 = vpop.f32.mrf.mxu0
        %v2065 = vadd.f32 %v571, %v2064
        %v2066 = vpop.f32.mrf.mxu0
        %v2067 = vadd.f32 %v571, %v2066
        %2068 = vmatmul.bf16.gmra.mxu0 %v498
        %v2069 = vpop.f32.mrf.mxu0
        %v2070 = vadd.f32 %v571, %v2069
        %v2071 = vpop.f32.mrf.mxu0
        %v2072 = vadd.f32 %v571, %v2071
        %2073 = vmatmul.bf16.gmra.mxu0 %v500
        %v2074 = vpop.f32.mrf.mxu0
        %v2075 = vadd.f32 %v571, %v2074
        %v2076 = vpop.f32.mrf.mxu0
        %v2077 = vadd.f32 %v571, %v2076
        %2078 = vdwg.mxu0
        %2079 = vmatpush.bf16.msra.mxu0 %v831
        %2080 = vmatpush.bf16.msra.mxu0 %v827
        %2081 = vmatpush.bf16.msra.mxu0 %v823
        %2082 = vmatpush.bf16.msra.mxu0 %v819
        %2083 = vmatpush.bf16.msra.mxu0 %v815
        %2084 = vmatpush.bf16.msra.mxu0 %v811
        %2085 = vmatpush.bf16.msra.mxu0 %v807
        %2086 = vmatpush.bf16.msra.mxu0 %v803
        %2087 = vmatmul.bf16.gmra.mxu0 %v439
        %v2088 = vpop.f32.mrf.mxu0
        %v2089 = vadd.f32 %v1920, %v2088
        %v2090 = vpop.f32.mrf.mxu0
        %v2091 = vadd.f32 %v1922, %v2090
        %2092 = vmatmul.bf16.gmra.mxu0 %v441
        %v2093 = vpop.f32.mrf.mxu0
        %v2094 = vadd.f32 %v1925, %v2093
        %v2095 = vpop.f32.mrf.mxu0
        %v2096 = vadd.f32 %v1927, %v2095
        %2097 = vmatmul.bf16.gmra.mxu0 %v443
        %v2098 = vpop.f32.mrf.mxu0
        %v2099 = vadd.f32 %v1930, %v2098
        %v2100 = vpop.f32.mrf.mxu0
        %v2101 = vadd.f32 %v1932, %v2100
        %2102 = vmatmul.bf16.gmra.mxu0 %v445
        %v2103 = vpop.f32.mrf.mxu0
        %v2104 = vadd.f32 %v1935, %v2103
        %v2105 = vpop.f32.mrf.mxu0
        %v2106 = vadd.f32 %v1937, %v2105
        %2107 = vmatmul.bf16.gmra.mxu0 %v447
        %v2108 = vpop.f32.mrf.mxu0
        %v2109 = vadd.f32 %v1940, %v2108
        %v2110 = vpop.f32.mrf.mxu0
        %v2111 = vadd.f32 %v1942, %v2110
        %2112 = vmatmul.bf16.gmra.mxu0 %v449
        %v2113 = vpop.f32.mrf.mxu0
        %v2114 = vadd.f32 %v1945, %v2113
        %v2115 = vpop.f32.mrf.mxu0
        %v2116 = vadd.f32 %v1947, %v2115
        %2117 = vmatmul.bf16.gmra.mxu0 %v451
        %v2118 = vpop.f32.mrf.mxu0
        %v2119 = vadd.f32 %v1950, %v2118
        %v2120 = vpop.f32.mrf.mxu0
        %v2121 = vadd.f32 %v1952, %v2120
        %2122 = vmatmul.bf16.gmra.mxu0 %v453
        %v2123 = vpop.f32.mrf.mxu0
        %v2124 = vadd.f32 %v1955, %v2123
        %v2125 = vpop.f32.mrf.mxu0
        %v2126 = vadd.f32 %v1957, %v2125
        %2127 = vmatmul.bf16.gmra.mxu0 %v455
        %v2128 = vpop.f32.mrf.mxu0
        %v2129 = vadd.f32 %v1960, %v2128
        %v2130 = vpop.f32.mrf.mxu0
        %v2131 = vadd.f32 %v1962, %v2130
        %2132 = vmatmul.bf16.gmra.mxu0 %v457
        %v2133 = vpop.f32.mrf.mxu0
        %v2134 = vadd.f32 %v1965, %v2133
        %v2135 = vpop.f32.mrf.mxu0
        %v2136 = vadd.f32 %v1967, %v2135
        %2137 = vmatmul.bf16.gmra.mxu0 %v459
        %v2138 = vpop.f32.mrf.mxu0
        %v2139 = vadd.f32 %v1970, %v2138
        %v2140 = vpop.f32.mrf.mxu0
        %v2141 = vadd.f32 %v1972, %v2140
        %2142 = vmatmul.bf16.gmra.mxu0 %v461
        %v2143 = vpop.f32.mrf.mxu0
        %v2144 = vadd.f32 %v1975, %v2143
        %v2145 = vpop.f32.mrf.mxu0
        %v2146 = vadd.f32 %v1977, %v2145
        %2147 = vmatmul.bf16.gmra.mxu0 %v463
        %v2148 = vpop.f32.mrf.mxu0
        %v2149 = vadd.f32 %v1980, %v2148
        %v2150 = vpop.f32.mrf.mxu0
        %v2151 = vadd.f32 %v1982, %v2150
        %2152 = vmatmul.bf16.gmra.mxu0 %v465
        %v2153 = vpop.f32.mrf.mxu0
        %v2154 = vadd.f32 %v1985, %v2153
        %v2155 = vpop.f32.mrf.mxu0
        %v2156 = vadd.f32 %v1987, %v2155
        %2157 = vmatmul.bf16.gmra.mxu0 %v467
        %v2158 = vpop.f32.mrf.mxu0
        %v2159 = vadd.f32 %v1990, %v2158
        %v2160 = vpop.f32.mrf.mxu0
        %v2161 = vadd.f32 %v1992, %v2160
        %2162 = vmatmul.bf16.gmra.mxu0 %v469
        %v2163 = vpop.f32.mrf.mxu0
        %v2164 = vadd.f32 %v1995, %v2163
        %v2165 = vpop.f32.mrf.mxu0
        %v2166 = vadd.f32 %v1997, %v2165
        %2167 = vmatmul.bf16.gmra.mxu0 %v471
        %v2168 = vpop.f32.mrf.mxu0
        %v2169 = vadd.f32 %v2000, %v2168
        %v2170 = vpop.f32.mrf.mxu0
        %v2171 = vadd.f32 %v2002, %v2170
        %2172 = vmatmul.bf16.gmra.mxu0 %v473
        %v2173 = vpop.f32.mrf.mxu0
        %v2174 = vadd.f32 %v2005, %v2173
        %v2175 = vpop.f32.mrf.mxu0
        %v2176 = vadd.f32 %v2007, %v2175
        %2177 = vmatmul.bf16.gmra.mxu0 %v475
        %v2178 = vpop.f32.mrf.mxu0
        %v2179 = vadd.f32 %v2010, %v2178
        %v2180 = vpop.f32.mrf.mxu0
        %v2181 = vadd.f32 %v2012, %v2180
        %2182 = vmatmul.bf16.gmra.mxu0 %v477
        %v2183 = vpop.f32.mrf.mxu0
        %v2184 = vadd.f32 %v2015, %v2183
        %v2185 = vpop.f32.mrf.mxu0
        %v2186 = vadd.f32 %v2017, %v2185
        %2187 = vmatmul.bf16.gmra.mxu0 %v479
        %v2188 = vpop.f32.mrf.mxu0
        %v2189 = vadd.f32 %v2020, %v2188
        %v2190 = vpop.f32.mrf.mxu0
        %v2191 = vadd.f32 %v2022, %v2190
        %2192 = vmatmul.bf16.gmra.mxu0 %v481
        %v2193 = vpop.f32.mrf.mxu0
        %v2194 = vadd.f32 %v2025, %v2193
        %v2195 = vpop.f32.mrf.mxu0
        %v2196 = vadd.f32 %v2027, %v2195
        %2197 = vmatmul.bf16.gmra.mxu0 %v483
        %v2198 = vpop.f32.mrf.mxu0
        %v2199 = vadd.f32 %v2030, %v2198
        %v2200 = vpop.f32.mrf.mxu0
        %v2201 = vadd.f32 %v2032, %v2200
        %2202 = vmatmul.bf16.gmra.mxu0 %v485
        %v2203 = vpop.f32.mrf.mxu0
        %v2204 = vadd.f32 %v2035, %v2203
        %v2205 = vpop.f32.mrf.mxu0
        %v2206 = vadd.f32 %v2037, %v2205
        %2207 = vmatmul.bf16.gmra.mxu0 %v487
        %v2208 = vpop.f32.mrf.mxu0
        %v2209 = vadd.f32 %v2040, %v2208
        %v2210 = vpop.f32.mrf.mxu0
        %v2211 = vadd.f32 %v2042, %v2210
        %2212 = vmatmul.bf16.gmra.mxu0 %v489
        %v2213 = vpop.f32.mrf.mxu0
        %v2214 = vadd.f32 %v2045, %v2213
        %v2215 = vpop.f32.mrf.mxu0
        %v2216 = vadd.f32 %v2047, %v2215
        %2217 = vmatmul.bf16.gmra.mxu0 %v491
        %v2218 = vpop.f32.mrf.mxu0
        %v2219 = vadd.f32 %v2050, %v2218
        %v2220 = vpop.f32.mrf.mxu0
        %v2221 = vadd.f32 %v2052, %v2220
        %2222 = vmatmul.bf16.gmra.mxu0 %v493
        %v2223 = vpop.f32.mrf.mxu0
        %v2224 = vadd.f32 %v2055, %v2223
        %v2225 = vpop.f32.mrf.mxu0
        %v2226 = vadd.f32 %v2057, %v2225
        %2227 = vmatmul.bf16.gmra.mxu0 %v495
        %v2228 = vpop.f32.mrf.mxu0
        %v2229 = vadd.f32 %v2060, %v2228
        %v2230 = vpop.f32.mrf.mxu0
        %v2231 = vadd.f32 %v2062, %v2230
        %2232 = vmatmul.bf16.gmra.mxu0 %v497
        %v2233 = vpop.f32.mrf.mxu0
        %v2234 = vadd.f32 %v2065, %v2233
        %v2235 = vpop.f32.mrf.mxu0
        %v2236 = vadd.f32 %v2067, %v2235
        %2237 = vmatmul.bf16.gmra.mxu0 %v499
        %v2238 = vpop.f32.mrf.mxu0
        %v2239 = vadd.f32 %v2070, %v2238
        %v2240 = vpop.f32.mrf.mxu0
        %v2241 = vadd.f32 %v2072, %v2240
        %2242 = vmatmul.bf16.gmra.mxu0 %v501
        %v2243 = vpop.f32.mrf.mxu0
        %v2244 = vadd.f32 %v2075, %v2243
        %v2245 = vpop.f32.mrf.mxu0
        %v2246 = vadd.f32 %v2077, %v2245
        %2247 = vdwg.mxu0
        %v2248 = vmax.f32 %v1075, 0.0
        %v2249 = vmax.f32 %v1413, 0.0
        %v2250 = vmax.f32 %v1751, 0.0
        %v2251 = vmax.f32 %v2089, 0.0
        %v2252 = vmax.f32 %v1077, 0.0
        %v2253 = vmax.f32 %v1415, 0.0
        %v2254 = vmax.f32 %v1753, 0.0
        %v2255 = vmax.f32 %v2091, 0.0
        %v2256 = vmax.f32 %v1080, 0.0
        %v2257 = vmax.f32 %v1418, 0.0
        %v2258 = vmax.f32 %v1756, 0.0
        %v2259 = vmax.f32 %v2094, 0.0
        %v2260 = vmax.f32 %v1082, 0.0
        %v2261 = vmax.f32 %v1420, 0.0
        %v2262 = vmax.f32 %v1758, 0.0
        %v2263 = vmax.f32 %v2096, 0.0
        %v2264 = vmax.f32 %v1085, 0.0
        %v2265 = vmax.f32 %v1423, 0.0
        %v2266 = vmax.f32 %v1761, 0.0
        %v2267 = vmax.f32 %v2099, 0.0
        %v2268 = vmax.f32 %v1087, 0.0
        %v2269 = vmax.f32 %v1425, 0.0
        %v2270 = vmax.f32 %v1763, 0.0
        %v2271 = vmax.f32 %v2101, 0.0
        %v2272 = vmax.f32 %v1090, 0.0
        %v2273 = vmax.f32 %v1428, 0.0
        %v2274 = vmax.f32 %v1766, 0.0
        %v2275 = vmax.f32 %v2104, 0.0
        %v2276 = vmax.f32 %v1092, 0.0
        %v2277 = vmax.f32 %v1430, 0.0
        %v2278 = vmax.f32 %v1768, 0.0
        %v2279 = vmax.f32 %v2106, 0.0
        %v2280 = vmax.f32 %v1095, 0.0
        %v2281 = vmax.f32 %v1433, 0.0
        %v2282 = vmax.f32 %v1771, 0.0
        %v2283 = vmax.f32 %v2109, 0.0
        %v2284 = vmax.f32 %v1097, 0.0
        %v2285 = vmax.f32 %v1435, 0.0
        %v2286 = vmax.f32 %v1773, 0.0
        %v2287 = vmax.f32 %v2111, 0.0
        %v2288 = vmax.f32 %v1100, 0.0
        %v2289 = vmax.f32 %v1438, 0.0
        %v2290 = vmax.f32 %v1776, 0.0
        %v2291 = vmax.f32 %v2114, 0.0
        %v2292 = vmax.f32 %v1102, 0.0
        %v2293 = vmax.f32 %v1440, 0.0
        %v2294 = vmax.f32 %v1778, 0.0
        %v2295 = vmax.f32 %v2116, 0.0
        %v2296 = vmax.f32 %v1105, 0.0
        %v2297 = vmax.f32 %v1443, 0.0
        %v2298 = vmax.f32 %v1781, 0.0
        %v2299 = vmax.f32 %v2119, 0.0
        %v2300 = vmax.f32 %v1107, 0.0
        %v2301 = vmax.f32 %v1445, 0.0
        %v2302 = vmax.f32 %v1783, 0.0
        %v2303 = vmax.f32 %v2121, 0.0
        %v2304 = vmax.f32 %v1110, 0.0
        %v2305 = vmax.f32 %v1448, 0.0
        %v2306 = vmax.f32 %v1786, 0.0
        %v2307 = vmax.f32 %v2124, 0.0
        %v2308 = vmax.f32 %v1112, 0.0
        %v2309 = vmax.f32 %v1450, 0.0
        %v2310 = vmax.f32 %v1788, 0.0
        %v2311 = vmax.f32 %v2126, 0.0
        %v2312 = vmax.f32 %v1115, 0.0
        %v2313 = vmax.f32 %v1453, 0.0
        %v2314 = vmax.f32 %v1791, 0.0
        %v2315 = vmax.f32 %v2129, 0.0
        %v2316 = vmax.f32 %v1117, 0.0
        %v2317 = vmax.f32 %v1455, 0.0
        %v2318 = vmax.f32 %v1793, 0.0
        %v2319 = vmax.f32 %v2131, 0.0
        %v2320 = vmax.f32 %v1120, 0.0
        %v2321 = vmax.f32 %v1458, 0.0
        %v2322 = vmax.f32 %v1796, 0.0
        %v2323 = vmax.f32 %v2134, 0.0
        %v2324 = vmax.f32 %v1122, 0.0
        %v2325 = vmax.f32 %v1460, 0.0
        %v2326 = vmax.f32 %v1798, 0.0
        %v2327 = vmax.f32 %v2136, 0.0
        %v2328 = vmax.f32 %v1125, 0.0
        %v2329 = vmax.f32 %v1463, 0.0
        %v2330 = vmax.f32 %v1801, 0.0
        %v2331 = vmax.f32 %v2139, 0.0
        %v2332 = vmax.f32 %v1127, 0.0
        %v2333 = vmax.f32 %v1465, 0.0
        %v2334 = vmax.f32 %v1803, 0.0
        %v2335 = vmax.f32 %v2141, 0.0
        %v2336 = vmax.f32 %v1130, 0.0
        %v2337 = vmax.f32 %v1468, 0.0
        %v2338 = vmax.f32 %v1806, 0.0
        %v2339 = vmax.f32 %v2144, 0.0
        %v2340 = vmax.f32 %v1132, 0.0
        %v2341 = vmax.f32 %v1470, 0.0
        %v2342 = vmax.f32 %v1808, 0.0
        %v2343 = vmax.f32 %v2146, 0.0
        %v2344 = vmax.f32 %v1135, 0.0
        %v2345 = vmax.f32 %v1473, 0.0
        %v2346 = vmax.f32 %v1811, 0.0
        %v2347 = vmax.f32 %v2149, 0.0
        %v2348 = vmax.f32 %v1137, 0.0
        %v2349 = vmax.f32 %v1475, 0.0
        %v2350 = vmax.f32 %v1813, 0.0
        %v2351 = vmax.f32 %v2151, 0.0
        %v2352 = vmax.f32 %v1140, 0.0
        %v2353 = vmax.f32 %v1478, 0.0
        %v2354 = vmax.f32 %v1816, 0.0
        %v2355 = vmax.f32 %v2154, 0.0
        %v2356 = vmax.f32 %v1142, 0.0
        %v2357 = vmax.f32 %v1480, 0.0
        %v2358 = vmax.f32 %v1818, 0.0
        %v2359 = vmax.f32 %v2156, 0.0
        %v2360 = vmax.f32 %v1145, 0.0
        %v2361 = vmax.f32 %v1483, 0.0
        %v2362 = vmax.f32 %v1821, 0.0
        %v2363 = vmax.f32 %v2159, 0.0
        %v2364 = vmax.f32 %v1147, 0.0
        %v2365 = vmax.f32 %v1485, 0.0
        %v2366 = vmax.f32 %v1823, 0.0
        %v2367 = vmax.f32 %v2161, 0.0
        %v2368 = vmax.f32 %v1150, 0.0
        %v2369 = vmax.f32 %v1488, 0.0
        %v2370 = vmax.f32 %v1826, 0.0
        %v2371 = vmax.f32 %v2164, 0.0
        %v2372 = vmax.f32 %v1152, 0.0
        %v2373 = vmax.f32 %v1490, 0.0
        %v2374 = vmax.f32 %v1828, 0.0
        %v2375 = vmax.f32 %v2166, 0.0
        %v2376 = vmax.f32 %v1155, 0.0
        %v2377 = vmax.f32 %v1493, 0.0
        %v2378 = vmax.f32 %v1831, 0.0
        %v2379 = vmax.f32 %v2169, 0.0
        %v2380 = vmax.f32 %v1157, 0.0
        %v2381 = vmax.f32 %v1495, 0.0
        %v2382 = vmax.f32 %v1833, 0.0
        %v2383 = vmax.f32 %v2171, 0.0
        %v2384 = vmax.f32 %v1160, 0.0
        %v2385 = vmax.f32 %v1498, 0.0
        %v2386 = vmax.f32 %v1836, 0.0
        %v2387 = vmax.f32 %v2174, 0.0
        %v2388 = vmax.f32 %v1162, 0.0
        %v2389 = vmax.f32 %v1500, 0.0
        %v2390 = vmax.f32 %v1838, 0.0
        %v2391 = vmax.f32 %v2176, 0.0
        %v2392 = vmax.f32 %v1165, 0.0
        %v2393 = vmax.f32 %v1503, 0.0
        %v2394 = vmax.f32 %v1841, 0.0
        %v2395 = vmax.f32 %v2179, 0.0
        %v2396 = vmax.f32 %v1167, 0.0
        %v2397 = vmax.f32 %v1505, 0.0
        %v2398 = vmax.f32 %v1843, 0.0
        %v2399 = vmax.f32 %v2181, 0.0
        %v2400 = vmax.f32 %v1170, 0.0
        %v2401 = vmax.f32 %v1508, 0.0
        %v2402 = vmax.f32 %v1846, 0.0
        %v2403 = vmax.f32 %v2184, 0.0
        %v2404 = vmax.f32 %v1172, 0.0
        %v2405 = vmax.f32 %v1510, 0.0
        %v2406 = vmax.f32 %v1848, 0.0
        %v2407 = vmax.f32 %v2186, 0.0
        %v2408 = vmax.f32 %v1175, 0.0
        %v2409 = vmax.f32 %v1513, 0.0
        %v2410 = vmax.f32 %v1851, 0.0
        %v2411 = vmax.f32 %v2189, 0.0
        %v2412 = vmax.f32 %v1177, 0.0
        %v2413 = vmax.f32 %v1515, 0.0
        %v2414 = vmax.f32 %v1853, 0.0
        %v2415 = vmax.f32 %v2191, 0.0
        %v2416 = vmax.f32 %v1180, 0.0
        %v2417 = vmax.f32 %v1518, 0.0
        %v2418 = vmax.f32 %v1856, 0.0
        %v2419 = vmax.f32 %v2194, 0.0
        %v2420 = vmax.f32 %v1182, 0.0
        %v2421 = vmax.f32 %v1520, 0.0
        %v2422 = vmax.f32 %v1858, 0.0
        %v2423 = vmax.f32 %v2196, 0.0
        %v2424 = vmax.f32 %v1185, 0.0
        %v2425 = vmax.f32 %v1523, 0.0
        %v2426 = vmax.f32 %v1861, 0.0
        %v2427 = vmax.f32 %v2199, 0.0
        %v2428 = vmax.f32 %v1187, 0.0
        %v2429 = vmax.f32 %v1525, 0.0
        %v2430 = vmax.f32 %v1863, 0.0
        %v2431 = vmax.f32 %v2201, 0.0
        %v2432 = vmax.f32 %v1190, 0.0
        %v2433 = vmax.f32 %v1528, 0.0
        %v2434 = vmax.f32 %v1866, 0.0
        %v2435 = vmax.f32 %v2204, 0.0
        %v2436 = vmax.f32 %v1192, 0.0
        %v2437 = vmax.f32 %v1530, 0.0
        %v2438 = vmax.f32 %v1868, 0.0
        %v2439 = vmax.f32 %v2206, 0.0
        %v2440 = vmax.f32 %v1195, 0.0
        %v2441 = vmax.f32 %v1533, 0.0
        %v2442 = vmax.f32 %v1871, 0.0
        %v2443 = vmax.f32 %v2209, 0.0
        %v2444 = vmax.f32 %v1197, 0.0
        %v2445 = vmax.f32 %v1535, 0.0
        %v2446 = vmax.f32 %v1873, 0.0
        %v2447 = vmax.f32 %v2211, 0.0
        %v2448 = vmax.f32 %v1200, 0.0
        %v2449 = vmax.f32 %v1538, 0.0
        %v2450 = vmax.f32 %v1876, 0.0
        %v2451 = vmax.f32 %v2214, 0.0
        %v2452 = vmax.f32 %v1202, 0.0
        %v2453 = vmax.f32 %v1540, 0.0
        %v2454 = vmax.f32 %v1878, 0.0
        %v2455 = vmax.f32 %v2216, 0.0
        %v2456 = vmax.f32 %v1205, 0.0
        %v2457 = vmax.f32 %v1543, 0.0
        %v2458 = vmax.f32 %v1881, 0.0
        %v2459 = vmax.f32 %v2219, 0.0
        %v2460 = vmax.f32 %v1207, 0.0
        %v2461 = vmax.f32 %v1545, 0.0
        %v2462 = vmax.f32 %v1883, 0.0
        %v2463 = vmax.f32 %v2221, 0.0
        %v2464 = vmax.f32 %v1210, 0.0
        %v2465 = vmax.f32 %v1548, 0.0
        %v2466 = vmax.f32 %v1886, 0.0
        %v2467 = vmax.f32 %v2224, 0.0
        %v2468 = vmax.f32 %v1212, 0.0
        %v2469 = vmax.f32 %v1550, 0.0
        %v2470 = vmax.f32 %v1888, 0.0
        %v2471 = vmax.f32 %v2226, 0.0
        %v2472 = vmax.f32 %v1215, 0.0
        %v2473 = vmax.f32 %v1553, 0.0
        %v2474 = vmax.f32 %v1891, 0.0
        %v2475 = vmax.f32 %v2229, 0.0
        %v2476 = vmax.f32 %v1217, 0.0
        %v2477 = vmax.f32 %v1555, 0.0
        %v2478 = vmax.f32 %v1893, 0.0
        %v2479 = vmax.f32 %v2231, 0.0
        %v2480 = vmax.f32 %v1220, 0.0
        %v2481 = vmax.f32 %v1558, 0.0
        %v2482 = vmax.f32 %v1896, 0.0
        %v2483 = vmax.f32 %v2234, 0.0
        %v2484 = vmax.f32 %v1222, 0.0
        %v2485 = vmax.f32 %v1560, 0.0
        %v2486 = vmax.f32 %v1898, 0.0
        %v2487 = vmax.f32 %v2236, 0.0
        %v2488 = vmax.f32 %v1225, 0.0
        %v2489 = vmax.f32 %v1563, 0.0
        %v2490 = vmax.f32 %v1901, 0.0
        %v2491 = vmax.f32 %v2239, 0.0
        %v2492 = vmax.f32 %v1227, 0.0
        %v2493 = vmax.f32 %v1565, 0.0
        %v2494 = vmax.f32 %v1903, 0.0
        %v2495 = vmax.f32 %v2241, 0.0
        %v2496 = vmax.f32 %v1230, 0.0
        %v2497 = vmax.f32 %v1568, 0.0
        %v2498 = vmax.f32 %v1906, 0.0
        %v2499 = vmax.f32 %v2244, 0.0
        %v2500 = vmax.f32 %v1232, 0.0
        %v2501 = vmax.f32 %v1570, 0.0
        %v2502 = vmax.f32 %v1908, 0.0
        %v2503 = vmax.f32 %v2246, 0.0
        %v2504 = vpack.c.bf16 %v2252, %v2248
        %v2505 = vpack.c.bf16 %v2253, %v2249
        %v2506 = vpack.c.bf16 %v2254, %v2250
        %v2507 = vpack.c.bf16 %v2255, %v2251
        %v2508 = vpack.c.bf16 %v2260, %v2256
        %v2509 = vpack.c.bf16 %v2261, %v2257
        %v2510 = vpack.c.bf16 %v2262, %v2258
        %v2511 = vpack.c.bf16 %v2263, %v2259
        %v2512 = vpack.c.bf16 %v2268, %v2264
        %v2513 = vpack.c.bf16 %v2269, %v2265
        %v2514 = vpack.c.bf16 %v2270, %v2266
        %v2515 = vpack.c.bf16 %v2271, %v2267
        %v2516 = vpack.c.bf16 %v2276, %v2272
        %v2517 = vpack.c.bf16 %v2277, %v2273
        %v2518 = vpack.c.bf16 %v2278, %v2274
        %v2519 = vpack.c.bf16 %v2279, %v2275
        %v2520 = vpack.c.bf16 %v2284, %v2280
        %v2521 = vpack.c.bf16 %v2285, %v2281
        %v2522 = vpack.c.bf16 %v2286, %v2282
        %v2523 = vpack.c.bf16 %v2287, %v2283
        %v2524 = vpack.c.bf16 %v2292, %v2288
        %v2525 = vpack.c.bf16 %v2293, %v2289
        %v2526 = vpack.c.bf16 %v2294, %v2290
        %v2527 = vpack.c.bf16 %v2295, %v2291
        %v2528 = vpack.c.bf16 %v2300, %v2296
        %v2529 = vpack.c.bf16 %v2301, %v2297
        %v2530 = vpack.c.bf16 %v2302, %v2298
        %v2531 = vpack.c.bf16 %v2303, %v2299
        %v2532 = vpack.c.bf16 %v2308, %v2304
        %v2533 = vpack.c.bf16 %v2309, %v2305
        %v2534 = vpack.c.bf16 %v2310, %v2306
        %v2535 = vpack.c.bf16 %v2311, %v2307
        %v2536 = vpack.c.bf16 %v2316, %v2312
        %v2537 = vpack.c.bf16 %v2317, %v2313
        %v2538 = vpack.c.bf16 %v2318, %v2314
        %v2539 = vpack.c.bf16 %v2319, %v2315
        %v2540 = vpack.c.bf16 %v2324, %v2320
        %v2541 = vpack.c.bf16 %v2325, %v2321
        %v2542 = vpack.c.bf16 %v2326, %v2322
        %v2543 = vpack.c.bf16 %v2327, %v2323
        %v2544 = vpack.c.bf16 %v2332, %v2328
        %v2545 = vpack.c.bf16 %v2333, %v2329
        %v2546 = vpack.c.bf16 %v2334, %v2330
        %v2547 = vpack.c.bf16 %v2335, %v2331
        %v2548 = vpack.c.bf16 %v2340, %v2336
        %v2549 = vpack.c.bf16 %v2341, %v2337
        %v2550 = vpack.c.bf16 %v2342, %v2338
        %v2551 = vpack.c.bf16 %v2343, %v2339
        %v2552 = vpack.c.bf16 %v2348, %v2344
        %v2553 = vpack.c.bf16 %v2349, %v2345
        %v2554 = vpack.c.bf16 %v2350, %v2346
        %v2555 = vpack.c.bf16 %v2351, %v2347
        %v2556 = vpack.c.bf16 %v2356, %v2352
        %v2557 = vpack.c.bf16 %v2357, %v2353
        %v2558 = vpack.c.bf16 %v2358, %v2354
        %v2559 = vpack.c.bf16 %v2359, %v2355
        %v2560 = vpack.c.bf16 %v2364, %v2360
        %v2561 = vpack.c.bf16 %v2365, %v2361
        %v2562 = vpack.c.bf16 %v2366, %v2362
        %v2563 = vpack.c.bf16 %v2367, %v2363
        %v2564 = vpack.c.bf16 %v2372, %v2368
        %v2565 = vpack.c.bf16 %v2373, %v2369
        %v2566 = vpack.c.bf16 %v2374, %v2370
        %v2567 = vpack.c.bf16 %v2375, %v2371
        %v2568 = vpack.c.bf16 %v2380, %v2376
        %v2569 = vpack.c.bf16 %v2381, %v2377
        %v2570 = vpack.c.bf16 %v2382, %v2378
        %v2571 = vpack.c.bf16 %v2383, %v2379
        %v2572 = vpack.c.bf16 %v2388, %v2384
        %v2573 = vpack.c.bf16 %v2389, %v2385
        %v2574 = vpack.c.bf16 %v2390, %v2386
        %v2575 = vpack.c.bf16 %v2391, %v2387
        %v2576 = vpack.c.bf16 %v2396, %v2392
        %v2577 = vpack.c.bf16 %v2397, %v2393
        %v2578 = vpack.c.bf16 %v2398, %v2394
        %v2579 = vpack.c.bf16 %v2399, %v2395
        %v2580 = vpack.c.bf16 %v2404, %v2400
        %v2581 = vpack.c.bf16 %v2405, %v2401
        %v2582 = vpack.c.bf16 %v2406, %v2402
        %v2583 = vpack.c.bf16 %v2407, %v2403
        %v2584 = vpack.c.bf16 %v2412, %v2408
        %v2585 = vpack.c.bf16 %v2413, %v2409
        %v2586 = vpack.c.bf16 %v2414, %v2410
        %v2587 = vpack.c.bf16 %v2415, %v2411
        %v2588 = vpack.c.bf16 %v2420, %v2416
        %v2589 = vpack.c.bf16 %v2421, %v2417
        %v2590 = vpack.c.bf16 %v2422, %v2418
        %v2591 = vpack.c.bf16 %v2423, %v2419
        %v2592 = vpack.c.bf16 %v2428, %v2424
        %v2593 = vpack.c.bf16 %v2429, %v2425
        %v2594 = vpack.c.bf16 %v2430, %v2426
        %v2595 = vpack.c.bf16 %v2431, %v2427
        %v2596 = vpack.c.bf16 %v2436, %v2432
        %v2597 = vpack.c.bf16 %v2437, %v2433
        %v2598 = vpack.c.bf16 %v2438, %v2434
        %v2599 = vpack.c.bf16 %v2439, %v2435
        %v2600 = vpack.c.bf16 %v2444, %v2440
        %v2601 = vpack.c.bf16 %v2445, %v2441
        %v2602 = vpack.c.bf16 %v2446, %v2442
        %v2603 = vpack.c.bf16 %v2447, %v2443
        %v2604 = vpack.c.bf16 %v2452, %v2448
        %v2605 = vpack.c.bf16 %v2453, %v2449
        %v2606 = vpack.c.bf16 %v2454, %v2450
        %v2607 = vpack.c.bf16 %v2455, %v2451
        %v2608 = vpack.c.bf16 %v2460, %v2456
        %v2609 = vpack.c.bf16 %v2461, %v2457
        %v2610 = vpack.c.bf16 %v2462, %v2458
        %v2611 = vpack.c.bf16 %v2463, %v2459
        %v2612 = vpack.c.bf16 %v2468, %v2464
        %v2613 = vpack.c.bf16 %v2469, %v2465
        %v2614 = vpack.c.bf16 %v2470, %v2466
        %v2615 = vpack.c.bf16 %v2471, %v2467
        %v2616 = vpack.c.bf16 %v2476, %v2472
        %v2617 = vpack.c.bf16 %v2477, %v2473
        %v2618 = vpack.c.bf16 %v2478, %v2474
        %v2619 = vpack.c.bf16 %v2479, %v2475
        %v2620 = vpack.c.bf16 %v2484, %v2480
        %v2621 = vpack.c.bf16 %v2485, %v2481
        %v2622 = vpack.c.bf16 %v2486, %v2482
        %v2623 = vpack.c.bf16 %v2487, %v2483
        %v2624 = vpack.c.bf16 %v2492, %v2488
        %v2625 = vpack.c.bf16 %v2493, %v2489
        %v2626 = vpack.c.bf16 %v2494, %v2490
        %v2627 = vpack.c.bf16 %v2495, %v2491
        %v2628 = vpack.c.bf16 %v2500, %v2496
        %v2629 = vpack.c.bf16 %v2501, %v2497
        %v2630 = vpack.c.bf16 %v2502, %v2498
        %v2631 = vpack.c.bf16 %v2503, %v2499
        %v2632 = vld [vmem:[#allocation8] sm:$0xf]
        %v2633 = vld [vmem:[#allocation8 + $0x4] sm:$0xf]
        %v2634 = vld [vmem:[#allocation8 + $0x8] sm:$0xf]
        %v2635 = vld [vmem:[#allocation8 + $0xc] sm:$0xf]
        %v2636 = vld [vmem:[#allocation8 + $0x10] sm:$0xf]
        %v2637 = vld [vmem:[#allocation8 + $0x14] sm:$0xf]
        %v2638 = vld [vmem:[#allocation8 + $0x18] sm:$0xf]
        %v2639 = vld [vmem:[#allocation8 + $0x1c] sm:$0xf]
        %v2640 = vld [vmem:[#allocation8 + $0x20] sm:$0xf]
        %v2641 = vld [vmem:[#allocation8 + $0x24] sm:$0xf]
        %v2642 = vld [vmem:[#allocation8 + $0x28] sm:$0xf]
        %v2643 = vld [vmem:[#allocation8 + $0x2c] sm:$0xf]
        %v2644 = vld [vmem:[#allocation8 + $0x30] sm:$0xf]
        %v2645 = vld [vmem:[#allocation8 + $0x34] sm:$0xf]
        %v2646 = vld [vmem:[#allocation8 + $0x38] sm:$0xf]
        %v2647 = vld [vmem:[#allocation8 + $0x3c] sm:$0xf]
        %v2648 = vld [vmem:[#allocation8 + $0x40] sm:$0xf]
        %v2649 = vld [vmem:[#allocation8 + $0x44] sm:$0xf]
        %v2650 = vld [vmem:[#allocation8 + $0x48] sm:$0xf]
        %v2651 = vld [vmem:[#allocation8 + $0x4c] sm:$0xf]
        %v2652 = vld [vmem:[#allocation8 + $0x50] sm:$0xf]
        %v2653 = vld [vmem:[#allocation8 + $0x54] sm:$0xf]
        %v2654 = vld [vmem:[#allocation8 + $0x58] sm:$0xf]
        %v2655 = vld [vmem:[#allocation8 + $0x5c] sm:$0xf]
        %v2656 = vld [vmem:[#allocation8 + $0x60] sm:$0xf]
        %v2657 = vld [vmem:[#allocation8 + $0x64] sm:$0xf]
        %v2658 = vld [vmem:[#allocation8 + $0x68] sm:$0xf]
        %v2659 = vld [vmem:[#allocation8 + $0x6c] sm:$0xf]
        %v2660 = vld [vmem:[#allocation8 + $0x70] sm:$0xf]
        %v2661 = vld [vmem:[#allocation8 + $0x74] sm:$0xf]
        %v2662 = vld [vmem:[#allocation8 + $0x78] sm:$0xf]
        %v2663 = vld [vmem:[#allocation8 + $0x7c] sm:$0xf]
        %v2664 = vld [vmem:[#allocation8 + $0x80] sm:$0xf]
        %v2665 = vld [vmem:[#allocation8 + $0x84] sm:$0xf]
        %v2666 = vld [vmem:[#allocation8 + $0x88] sm:$0xf]
        %v2667 = vld [vmem:[#allocation8 + $0x8c] sm:$0xf]
        %v2668 = vld [vmem:[#allocation8 + $0x90] sm:$0xf]
        %v2669 = vld [vmem:[#allocation8 + $0x94] sm:$0xf]
        %v2670 = vld [vmem:[#allocation8 + $0x98] sm:$0xf]
        %v2671 = vld [vmem:[#allocation8 + $0x9c] sm:$0xf]
        %v2672 = vld [vmem:[#allocation8 + $0xa0] sm:$0xf]
        %v2673 = vld [vmem:[#allocation8 + $0xa4] sm:$0xf]
        %v2674 = vld [vmem:[#allocation8 + $0xa8] sm:$0xf]
        %v2675 = vld [vmem:[#allocation8 + $0xac] sm:$0xf]
        %v2676 = vld [vmem:[#allocation8 + $0xb0] sm:$0xf]
        %v2677 = vld [vmem:[#allocation8 + $0xb4] sm:$0xf]
        %v2678 = vld [vmem:[#allocation8 + $0xb8] sm:$0xf]
        %v2679 = vld [vmem:[#allocation8 + $0xbc] sm:$0xf]
        %v2680 = vld [vmem:[#allocation8 + $0xc0] sm:$0xf]
        %v2681 = vld [vmem:[#allocation8 + $0xc4] sm:$0xf]
        %v2682 = vld [vmem:[#allocation8 + $0xc8] sm:$0xf]
        %v2683 = vld [vmem:[#allocation8 + $0xcc] sm:$0xf]
        %v2684 = vld [vmem:[#allocation8 + $0xd0] sm:$0xf]
        %v2685 = vld [vmem:[#allocation8 + $0xd4] sm:$0xf]
        %v2686 = vld [vmem:[#allocation8 + $0xd8] sm:$0xf]
        %v2687 = vld [vmem:[#allocation8 + $0xdc] sm:$0xf]
        %v2688 = vld [vmem:[#allocation8 + $0xe0] sm:$0xf]
        %v2689 = vld [vmem:[#allocation8 + $0xe4] sm:$0xf]
        %v2690 = vld [vmem:[#allocation8 + $0xe8] sm:$0xf]
        %v2691 = vld [vmem:[#allocation8 + $0xec] sm:$0xf]
        %v2692 = vld [vmem:[#allocation8 + $0xf0] sm:$0xf]
        %v2693 = vld [vmem:[#allocation8 + $0xf4] sm:$0xf]
        %v2694 = vld [vmem:[#allocation8 + $0xf8] sm:$0xf]
        %v2695 = vld [vmem:[#allocation8 + $0xfc] sm:$0xf]
        %v2696 = vld [vmem:[#allocation10] sm:$0x1]
        %v2698 = vperm.slane %v2696, 0
        %v2764 = vunpack.c.l.b16 %v2632
        %v2765 = vunpack.c.l.b16 %v2633
        %v2766 = vunpack.c.l.b16 %v2634
        %v2767 = vunpack.c.l.b16 %v2635
        %v2768 = vunpack.c.l.b16 %v2636
        %v2769 = vunpack.c.l.b16 %v2637
        %v2770 = vunpack.c.l.b16 %v2638
        %v2771 = vunpack.c.l.b16 %v2639
        %v2772 = vunpack.c.l.b16 %v2640
        %v2773 = vunpack.c.l.b16 %v2641
        %v2774 = vunpack.c.l.b16 %v2642
        %v2775 = vunpack.c.l.b16 %v2643
        %v2776 = vunpack.c.l.b16 %v2644
        %v2777 = vunpack.c.l.b16 %v2645
        %v2778 = vunpack.c.l.b16 %v2646
        %v2779 = vunpack.c.l.b16 %v2647
        %v2780 = vunpack.c.l.b16 %v2648
        %v2781 = vunpack.c.l.b16 %v2649
        %v2782 = vunpack.c.l.b16 %v2650
        %v2783 = vunpack.c.l.b16 %v2651
        %v2784 = vunpack.c.l.b16 %v2652
        %v2785 = vunpack.c.l.b16 %v2653
        %v2786 = vunpack.c.l.b16 %v2654
        %v2787 = vunpack.c.l.b16 %v2655
        %v2788 = vunpack.c.l.b16 %v2656
        %v2789 = vunpack.c.l.b16 %v2657
        %v2790 = vunpack.c.l.b16 %v2658
        %v2791 = vunpack.c.l.b16 %v2659
        %v2792 = vunpack.c.l.b16 %v2660
        %v2793 = vunpack.c.l.b16 %v2661
        %v2794 = vunpack.c.l.b16 %v2662
        %v2795 = vunpack.c.l.b16 %v2663
        %v2796 = vunpack.c.l.b16 %v2664
        %v2797 = vunpack.c.l.b16 %v2665
        %v2798 = vunpack.c.l.b16 %v2666
        %v2799 = vunpack.c.l.b16 %v2667
        %v2800 = vunpack.c.l.b16 %v2668
        %v2801 = vunpack.c.l.b16 %v2669
        %v2802 = vunpack.c.l.b16 %v2670
        %v2803 = vunpack.c.l.b16 %v2671
        %v2804 = vunpack.c.l.b16 %v2672
        %v2805 = vunpack.c.l.b16 %v2673
        %v2806 = vunpack.c.l.b16 %v2674
        %v2807 = vunpack.c.l.b16 %v2675
        %v2808 = vunpack.c.l.b16 %v2676
        %v2809 = vunpack.c.l.b16 %v2677
        %v2810 = vunpack.c.l.b16 %v2678
        %v2811 = vunpack.c.l.b16 %v2679
        %v2812 = vunpack.c.l.b16 %v2680
        %v2813 = vunpack.c.l.b16 %v2681
        %v2814 = vunpack.c.l.b16 %v2682
        %v2815 = vunpack.c.l.b16 %v2683
        %v2816 = vunpack.c.l.b16 %v2684
        %v2817 = vunpack.c.l.b16 %v2685
        %v2818 = vunpack.c.l.b16 %v2686
        %v2819 = vunpack.c.l.b16 %v2687
        %v2820 = vunpack.c.l.b16 %v2688
        %v2821 = vunpack.c.l.b16 %v2689
        %v2822 = vunpack.c.l.b16 %v2690
        %v2823 = vunpack.c.l.b16 %v2691
        %v2824 = vunpack.c.l.b16 %v2692
        %v2825 = vunpack.c.l.b16 %v2693
        %v2826 = vunpack.c.l.b16 %v2694
        %v2827 = vunpack.c.l.b16 %v2695
        %v2828 = vpack.c.b16 %v2765, %v2764
        %v2829 = vpack.c.b16 %v2767, %v2766
        %v2830 = vpack.c.b16 %v2769, %v2768
        %v2831 = vpack.c.b16 %v2771, %v2770
        %v2832 = vpack.c.b16 %v2773, %v2772
        %v2833 = vpack.c.b16 %v2775, %v2774
        %v2834 = vpack.c.b16 %v2777, %v2776
        %v2835 = vpack.c.b16 %v2779, %v2778
        %v2836 = vpack.c.b16 %v2781, %v2780
        %v2837 = vpack.c.b16 %v2783, %v2782
        %v2838 = vpack.c.b16 %v2785, %v2784
        %v2839 = vpack.c.b16 %v2787, %v2786
        %v2840 = vpack.c.b16 %v2789, %v2788
        %v2841 = vpack.c.b16 %v2791, %v2790
        %v2842 = vpack.c.b16 %v2793, %v2792
        %v2843 = vpack.c.b16 %v2795, %v2794
        %v2844 = vpack.c.b16 %v2797, %v2796
        %v2845 = vpack.c.b16 %v2799, %v2798
        %v2846 = vpack.c.b16 %v2801, %v2800
        %v2847 = vpack.c.b16 %v2803, %v2802
        %v2848 = vpack.c.b16 %v2805, %v2804
        %v2849 = vpack.c.b16 %v2807, %v2806
        %v2850 = vpack.c.b16 %v2809, %v2808
        %v2851 = vpack.c.b16 %v2811, %v2810
        %v2852 = vpack.c.b16 %v2813, %v2812
        %v2853 = vpack.c.b16 %v2815, %v2814
        %v2854 = vpack.c.b16 %v2817, %v2816
        %v2855 = vpack.c.b16 %v2819, %v2818
        %v2856 = vpack.c.b16 %v2821, %v2820
        %v2857 = vpack.c.b16 %v2823, %v2822
        %v2858 = vpack.c.b16 %v2825, %v2824
        %v2859 = vpack.c.b16 %v2827, %v2826
        %2892 = vmatpush.bf16.msra.mxu0 %v2835
        %2893 = vmatpush.bf16.msra.mxu0 %v2834
        %2894 = vmatpush.bf16.msra.mxu0 %v2833
        %2895 = vmatpush.bf16.msra.mxu0 %v2832
        %2896 = vmatpush.bf16.msra.mxu0 %v2831
        %2897 = vmatpush.bf16.msra.mxu0 %v2830
        %2898 = vmatpush.bf16.msra.mxu0 %v2829
        %2899 = vmatpush.bf16.msra.mxu0 %v2828
        %2900 = vmatmul.bf16.gmra.mxu0 %v2504
        %v2901 = vpop.f32.mrf.mxu0
        %v2902 = vadd.f32 %v2698, %v2901
        %v2903 = vpop.f32.mrf.mxu0
        %v2904 = vadd.f32 %v2698, %v2903
        %2905 = vmatmul.bf16.gmra.mxu0 %v2508
        %v2906 = vpop.f32.mrf.mxu0
        %v2907 = vadd.f32 %v2698, %v2906
        %v2908 = vpop.f32.mrf.mxu0
        %v2909 = vadd.f32 %v2698, %v2908
        %2910 = vmatmul.bf16.gmra.mxu0 %v2512
        %v2911 = vpop.f32.mrf.mxu0
        %v2912 = vadd.f32 %v2698, %v2911
        %v2913 = vpop.f32.mrf.mxu0
        %v2914 = vadd.f32 %v2698, %v2913
        %2915 = vmatmul.bf16.gmra.mxu0 %v2516
        %v2916 = vpop.f32.mrf.mxu0
        %v2917 = vadd.f32 %v2698, %v2916
        %v2918 = vpop.f32.mrf.mxu0
        %v2919 = vadd.f32 %v2698, %v2918
        %2920 = vmatmul.bf16.gmra.mxu0 %v2520
        %v2921 = vpop.f32.mrf.mxu0
        %v2922 = vadd.f32 %v2698, %v2921
        %v2923 = vpop.f32.mrf.mxu0
        %v2924 = vadd.f32 %v2698, %v2923
        %2925 = vmatmul.bf16.gmra.mxu0 %v2524
        %v2926 = vpop.f32.mrf.mxu0
        %v2927 = vadd.f32 %v2698, %v2926
        %v2928 = vpop.f32.mrf.mxu0
        %v2929 = vadd.f32 %v2698, %v2928
        %2930 = vmatmul.bf16.gmra.mxu0 %v2528
        %v2931 = vpop.f32.mrf.mxu0
        %v2932 = vadd.f32 %v2698, %v2931
        %v2933 = vpop.f32.mrf.mxu0
        %v2934 = vadd.f32 %v2698, %v2933
        %2935 = vmatmul.bf16.gmra.mxu0 %v2532
        %v2936 = vpop.f32.mrf.mxu0
        %v2937 = vadd.f32 %v2698, %v2936
        %v2938 = vpop.f32.mrf.mxu0
        %v2939 = vadd.f32 %v2698, %v2938
        %2940 = vmatmul.bf16.gmra.mxu0 %v2536
        %v2941 = vpop.f32.mrf.mxu0
        %v2942 = vadd.f32 %v2698, %v2941
        %v2943 = vpop.f32.mrf.mxu0
        %v2944 = vadd.f32 %v2698, %v2943
        %2945 = vmatmul.bf16.gmra.mxu0 %v2540
        %v2946 = vpop.f32.mrf.mxu0
        %v2947 = vadd.f32 %v2698, %v2946
        %v2948 = vpop.f32.mrf.mxu0
        %v2949 = vadd.f32 %v2698, %v2948
        %2950 = vmatmul.bf16.gmra.mxu0 %v2544
        %v2951 = vpop.f32.mrf.mxu0
        %v2952 = vadd.f32 %v2698, %v2951
        %v2953 = vpop.f32.mrf.mxu0
        %v2954 = vadd.f32 %v2698, %v2953
        %2955 = vmatmul.bf16.gmra.mxu0 %v2548
        %v2956 = vpop.f32.mrf.mxu0
        %v2957 = vadd.f32 %v2698, %v2956
        %v2958 = vpop.f32.mrf.mxu0
        %v2959 = vadd.f32 %v2698, %v2958
        %2960 = vmatmul.bf16.gmra.mxu0 %v2552
        %v2961 = vpop.f32.mrf.mxu0
        %v2962 = vadd.f32 %v2698, %v2961
        %v2963 = vpop.f32.mrf.mxu0
        %v2964 = vadd.f32 %v2698, %v2963
        %2965 = vmatmul.bf16.gmra.mxu0 %v2556
        %v2966 = vpop.f32.mrf.mxu0
        %v2967 = vadd.f32 %v2698, %v2966
        %v2968 = vpop.f32.mrf.mxu0
        %v2969 = vadd.f32 %v2698, %v2968
        %2970 = vmatmul.bf16.gmra.mxu0 %v2560
        %v2971 = vpop.f32.mrf.mxu0
        %v2972 = vadd.f32 %v2698, %v2971
        %v2973 = vpop.f32.mrf.mxu0
        %v2974 = vadd.f32 %v2698, %v2973
        %2975 = vmatmul.bf16.gmra.mxu0 %v2564
        %v2976 = vpop.f32.mrf.mxu0
        %v2977 = vadd.f32 %v2698, %v2976
        %v2978 = vpop.f32.mrf.mxu0
        %v2979 = vadd.f32 %v2698, %v2978
        %2980 = vmatmul.bf16.gmra.mxu0 %v2568
        %v2981 = vpop.f32.mrf.mxu0
        %v2982 = vadd.f32 %v2698, %v2981
        %v2983 = vpop.f32.mrf.mxu0
        %v2984 = vadd.f32 %v2698, %v2983
        %2985 = vmatmul.bf16.gmra.mxu0 %v2572
        %v2986 = vpop.f32.mrf.mxu0
        %v2987 = vadd.f32 %v2698, %v2986
        %v2988 = vpop.f32.mrf.mxu0
        %v2989 = vadd.f32 %v2698, %v2988
        %2990 = vmatmul.bf16.gmra.mxu0 %v2576
        %v2991 = vpop.f32.mrf.mxu0
        %v2992 = vadd.f32 %v2698, %v2991
        %v2993 = vpop.f32.mrf.mxu0
        %v2994 = vadd.f32 %v2698, %v2993
        %2995 = vmatmul.bf16.gmra.mxu0 %v2580
        %v2996 = vpop.f32.mrf.mxu0
        %v2997 = vadd.f32 %v2698, %v2996
        %v2998 = vpop.f32.mrf.mxu0
        %v2999 = vadd.f32 %v2698, %v2998
        %3000 = vmatmul.bf16.gmra.mxu0 %v2584
        %v3001 = vpop.f32.mrf.mxu0
        %v3002 = vadd.f32 %v2698, %v3001
        %v3003 = vpop.f32.mrf.mxu0
        %v3004 = vadd.f32 %v2698, %v3003
        %3005 = vmatmul.bf16.gmra.mxu0 %v2588
        %v3006 = vpop.f32.mrf.mxu0
        %v3007 = vadd.f32 %v2698, %v3006
        %v3008 = vpop.f32.mrf.mxu0
        %v3009 = vadd.f32 %v2698, %v3008
        %3010 = vmatmul.bf16.gmra.mxu0 %v2592
        %v3011 = vpop.f32.mrf.mxu0
        %v3012 = vadd.f32 %v2698, %v3011
        %v3013 = vpop.f32.mrf.mxu0
        %v3014 = vadd.f32 %v2698, %v3013
        %3015 = vmatmul.bf16.gmra.mxu0 %v2596
        %v3016 = vpop.f32.mrf.mxu0
        %v3017 = vadd.f32 %v2698, %v3016
        %v3018 = vpop.f32.mrf.mxu0
        %v3019 = vadd.f32 %v2698, %v3018
        %3020 = vmatmul.bf16.gmra.mxu0 %v2600
        %v3021 = vpop.f32.mrf.mxu0
        %v3022 = vadd.f32 %v2698, %v3021
        %v3023 = vpop.f32.mrf.mxu0
        %v3024 = vadd.f32 %v2698, %v3023
        %3025 = vmatmul.bf16.gmra.mxu0 %v2604
        %v3026 = vpop.f32.mrf.mxu0
        %v3027 = vadd.f32 %v2698, %v3026
        %v3028 = vpop.f32.mrf.mxu0
        %v3029 = vadd.f32 %v2698, %v3028
        %3030 = vmatmul.bf16.gmra.mxu0 %v2608
        %v3031 = vpop.f32.mrf.mxu0
        %v3032 = vadd.f32 %v2698, %v3031
        %v3033 = vpop.f32.mrf.mxu0
        %v3034 = vadd.f32 %v2698, %v3033
        %3035 = vmatmul.bf16.gmra.mxu0 %v2612
        %v3036 = vpop.f32.mrf.mxu0
        %v3037 = vadd.f32 %v2698, %v3036
        %v3038 = vpop.f32.mrf.mxu0
        %v3039 = vadd.f32 %v2698, %v3038
        %3040 = vmatmul.bf16.gmra.mxu0 %v2616
        %v3041 = vpop.f32.mrf.mxu0
        %v3042 = vadd.f32 %v2698, %v3041
        %v3043 = vpop.f32.mrf.mxu0
        %v3044 = vadd.f32 %v2698, %v3043
        %3045 = vmatmul.bf16.gmra.mxu0 %v2620
        %v3046 = vpop.f32.mrf.mxu0
        %v3047 = vadd.f32 %v2698, %v3046
        %v3048 = vpop.f32.mrf.mxu0
        %v3049 = vadd.f32 %v2698, %v3048
        %3050 = vmatmul.bf16.gmra.mxu0 %v2624
        %v3051 = vpop.f32.mrf.mxu0
        %v3052 = vadd.f32 %v2698, %v3051
        %v3053 = vpop.f32.mrf.mxu0
        %v3054 = vadd.f32 %v2698, %v3053
        %3055 = vmatmul.bf16.gmra.mxu0 %v2628
        %v3056 = vpop.f32.mrf.mxu0
        %v3057 = vadd.f32 %v2698, %v3056
        %v3058 = vpop.f32.mrf.mxu0
        %v3059 = vadd.f32 %v2698, %v3058
        %3060 = vdwg.mxu0
        %3061 = vmatpush.bf16.msra.mxu0 %v2843
        %3062 = vmatpush.bf16.msra.mxu0 %v2842
        %3063 = vmatpush.bf16.msra.mxu0 %v2841
        %3064 = vmatpush.bf16.msra.mxu0 %v2840
        %3065 = vmatpush.bf16.msra.mxu0 %v2839
        %3066 = vmatpush.bf16.msra.mxu0 %v2838
        %3067 = vmatpush.bf16.msra.mxu0 %v2837
        %3068 = vmatpush.bf16.msra.mxu0 %v2836
        %3069 = vmatmul.bf16.gmra.mxu0 %v2505
        %v3070 = vpop.f32.mrf.mxu0
        %v3071 = vadd.f32 %v2902, %v3070
        %v3072 = vpop.f32.mrf.mxu0
        %v3073 = vadd.f32 %v2904, %v3072
        %3074 = vmatmul.bf16.gmra.mxu0 %v2509
        %v3075 = vpop.f32.mrf.mxu0
        %v3076 = vadd.f32 %v2907, %v3075
        %v3077 = vpop.f32.mrf.mxu0
        %v3078 = vadd.f32 %v2909, %v3077
        %3079 = vmatmul.bf16.gmra.mxu0 %v2513
        %v3080 = vpop.f32.mrf.mxu0
        %v3081 = vadd.f32 %v2912, %v3080
        %v3082 = vpop.f32.mrf.mxu0
        %v3083 = vadd.f32 %v2914, %v3082
        %3084 = vmatmul.bf16.gmra.mxu0 %v2517
        %v3085 = vpop.f32.mrf.mxu0
        %v3086 = vadd.f32 %v2917, %v3085
        %v3087 = vpop.f32.mrf.mxu0
        %v3088 = vadd.f32 %v2919, %v3087
        %3089 = vmatmul.bf16.gmra.mxu0 %v2521
        %v3090 = vpop.f32.mrf.mxu0
        %v3091 = vadd.f32 %v2922, %v3090
        %v3092 = vpop.f32.mrf.mxu0
        %v3093 = vadd.f32 %v2924, %v3092
        %3094 = vmatmul.bf16.gmra.mxu0 %v2525
        %v3095 = vpop.f32.mrf.mxu0
        %v3096 = vadd.f32 %v2927, %v3095
        %v3097 = vpop.f32.mrf.mxu0
        %v3098 = vadd.f32 %v2929, %v3097
        %3099 = vmatmul.bf16.gmra.mxu0 %v2529
        %v3100 = vpop.f32.mrf.mxu0
        %v3101 = vadd.f32 %v2932, %v3100
        %v3102 = vpop.f32.mrf.mxu0
        %v3103 = vadd.f32 %v2934, %v3102
        %3104 = vmatmul.bf16.gmra.mxu0 %v2533
        %v3105 = vpop.f32.mrf.mxu0
        %v3106 = vadd.f32 %v2937, %v3105
        %v3107 = vpop.f32.mrf.mxu0
        %v3108 = vadd.f32 %v2939, %v3107
        %3109 = vmatmul.bf16.gmra.mxu0 %v2537
        %v3110 = vpop.f32.mrf.mxu0
        %v3111 = vadd.f32 %v2942, %v3110
        %v3112 = vpop.f32.mrf.mxu0
        %v3113 = vadd.f32 %v2944, %v3112
        %3114 = vmatmul.bf16.gmra.mxu0 %v2541
        %v3115 = vpop.f32.mrf.mxu0
        %v3116 = vadd.f32 %v2947, %v3115
        %v3117 = vpop.f32.mrf.mxu0
        %v3118 = vadd.f32 %v2949, %v3117
        %3119 = vmatmul.bf16.gmra.mxu0 %v2545
        %v3120 = vpop.f32.mrf.mxu0
        %v3121 = vadd.f32 %v2952, %v3120
        %v3122 = vpop.f32.mrf.mxu0
        %v3123 = vadd.f32 %v2954, %v3122
        %3124 = vmatmul.bf16.gmra.mxu0 %v2549
        %v3125 = vpop.f32.mrf.mxu0
        %v3126 = vadd.f32 %v2957, %v3125
        %v3127 = vpop.f32.mrf.mxu0
        %v3128 = vadd.f32 %v2959, %v3127
        %3129 = vmatmul.bf16.gmra.mxu0 %v2553
        %v3130 = vpop.f32.mrf.mxu0
        %v3131 = vadd.f32 %v2962, %v3130
        %v3132 = vpop.f32.mrf.mxu0
        %v3133 = vadd.f32 %v2964, %v3132
        %3134 = vmatmul.bf16.gmra.mxu0 %v2557
        %v3135 = vpop.f32.mrf.mxu0
        %v3136 = vadd.f32 %v2967, %v3135
        %v3137 = vpop.f32.mrf.mxu0
        %v3138 = vadd.f32 %v2969, %v3137
        %3139 = vmatmul.bf16.gmra.mxu0 %v2561
        %v3140 = vpop.f32.mrf.mxu0
        %v3141 = vadd.f32 %v2972, %v3140
        %v3142 = vpop.f32.mrf.mxu0
        %v3143 = vadd.f32 %v2974, %v3142
        %3144 = vmatmul.bf16.gmra.mxu0 %v2565
        %v3145 = vpop.f32.mrf.mxu0
        %v3146 = vadd.f32 %v2977, %v3145
        %v3147 = vpop.f32.mrf.mxu0
        %v3148 = vadd.f32 %v2979, %v3147
        %3149 = vmatmul.bf16.gmra.mxu0 %v2569
        %v3150 = vpop.f32.mrf.mxu0
        %v3151 = vadd.f32 %v2982, %v3150
        %v3152 = vpop.f32.mrf.mxu0
        %v3153 = vadd.f32 %v2984, %v3152
        %3154 = vmatmul.bf16.gmra.mxu0 %v2573
        %v3155 = vpop.f32.mrf.mxu0
        %v3156 = vadd.f32 %v2987, %v3155
        %v3157 = vpop.f32.mrf.mxu0
        %v3158 = vadd.f32 %v2989, %v3157
        %3159 = vmatmul.bf16.gmra.mxu0 %v2577
        %v3160 = vpop.f32.mrf.mxu0
        %v3161 = vadd.f32 %v2992, %v3160
        %v3162 = vpop.f32.mrf.mxu0
        %v3163 = vadd.f32 %v2994, %v3162
        %3164 = vmatmul.bf16.gmra.mxu0 %v2581
        %v3165 = vpop.f32.mrf.mxu0
        %v3166 = vadd.f32 %v2997, %v3165
        %v3167 = vpop.f32.mrf.mxu0
        %v3168 = vadd.f32 %v2999, %v3167
        %3169 = vmatmul.bf16.gmra.mxu0 %v2585
        %v3170 = vpop.f32.mrf.mxu0
        %v3171 = vadd.f32 %v3002, %v3170
        %v3172 = vpop.f32.mrf.mxu0
        %v3173 = vadd.f32 %v3004, %v3172
        %3174 = vmatmul.bf16.gmra.mxu0 %v2589
        %v3175 = vpop.f32.mrf.mxu0
        %v3176 = vadd.f32 %v3007, %v3175
        %v3177 = vpop.f32.mrf.mxu0
        %v3178 = vadd.f32 %v3009, %v3177
        %3179 = vmatmul.bf16.gmra.mxu0 %v2593
        %v3180 = vpop.f32.mrf.mxu0
        %v3181 = vadd.f32 %v3012, %v3180
        %v3182 = vpop.f32.mrf.mxu0
        %v3183 = vadd.f32 %v3014, %v3182
        %3184 = vmatmul.bf16.gmra.mxu0 %v2597
        %v3185 = vpop.f32.mrf.mxu0
        %v3186 = vadd.f32 %v3017, %v3185
        %v3187 = vpop.f32.mrf.mxu0
        %v3188 = vadd.f32 %v3019, %v3187
        %3189 = vmatmul.bf16.gmra.mxu0 %v2601
        %v3190 = vpop.f32.mrf.mxu0
        %v3191 = vadd.f32 %v3022, %v3190
        %v3192 = vpop.f32.mrf.mxu0
        %v3193 = vadd.f32 %v3024, %v3192
        %3194 = vmatmul.bf16.gmra.mxu0 %v2605
        %v3195 = vpop.f32.mrf.mxu0
        %v3196 = vadd.f32 %v3027, %v3195
        %v3197 = vpop.f32.mrf.mxu0
        %v3198 = vadd.f32 %v3029, %v3197
        %3199 = vmatmul.bf16.gmra.mxu0 %v2609
        %v3200 = vpop.f32.mrf.mxu0
        %v3201 = vadd.f32 %v3032, %v3200
        %v3202 = vpop.f32.mrf.mxu0
        %v3203 = vadd.f32 %v3034, %v3202
        %3204 = vmatmul.bf16.gmra.mxu0 %v2613
        %v3205 = vpop.f32.mrf.mxu0
        %v3206 = vadd.f32 %v3037, %v3205
        %v3207 = vpop.f32.mrf.mxu0
        %v3208 = vadd.f32 %v3039, %v3207
        %3209 = vmatmul.bf16.gmra.mxu0 %v2617
        %v3210 = vpop.f32.mrf.mxu0
        %v3211 = vadd.f32 %v3042, %v3210
        %v3212 = vpop.f32.mrf.mxu0
        %v3213 = vadd.f32 %v3044, %v3212
        %3214 = vmatmul.bf16.gmra.mxu0 %v2621
        %v3215 = vpop.f32.mrf.mxu0
        %v3216 = vadd.f32 %v3047, %v3215
        %v3217 = vpop.f32.mrf.mxu0
        %v3218 = vadd.f32 %v3049, %v3217
        %3219 = vmatmul.bf16.gmra.mxu0 %v2625
        %v3220 = vpop.f32.mrf.mxu0
        %v3221 = vadd.f32 %v3052, %v3220
        %v3222 = vpop.f32.mrf.mxu0
        %v3223 = vadd.f32 %v3054, %v3222
        %3224 = vmatmul.bf16.gmra.mxu0 %v2629
        %v3225 = vpop.f32.mrf.mxu0
        %v3226 = vadd.f32 %v3057, %v3225
        %v3227 = vpop.f32.mrf.mxu0
        %v3228 = vadd.f32 %v3059, %v3227
        %3229 = vdwg.mxu0
        %3230 = vmatpush.bf16.msra.mxu0 %v2851
        %3231 = vmatpush.bf16.msra.mxu0 %v2850
        %3232 = vmatpush.bf16.msra.mxu0 %v2849
        %3233 = vmatpush.bf16.msra.mxu0 %v2848
        %3234 = vmatpush.bf16.msra.mxu0 %v2847
        %3235 = vmatpush.bf16.msra.mxu0 %v2846
        %3236 = vmatpush.bf16.msra.mxu0 %v2845
        %3237 = vmatpush.bf16.msra.mxu0 %v2844
        %3238 = vmatmul.bf16.gmra.mxu0 %v2506
        %v3239 = vpop.f32.mrf.mxu0
        %v3240 = vadd.f32 %v3071, %v3239
        %v3241 = vpop.f32.mrf.mxu0
        %v3242 = vadd.f32 %v3073, %v3241
        %3243 = vmatmul.bf16.gmra.mxu0 %v2510
        %v3244 = vpop.f32.mrf.mxu0
        %v3245 = vadd.f32 %v3076, %v3244
        %v3246 = vpop.f32.mrf.mxu0
        %v3247 = vadd.f32 %v3078, %v3246
        %3248 = vmatmul.bf16.gmra.mxu0 %v2514
        %v3249 = vpop.f32.mrf.mxu0
        %v3250 = vadd.f32 %v3081, %v3249
        %v3251 = vpop.f32.mrf.mxu0
        %v3252 = vadd.f32 %v3083, %v3251
        %3253 = vmatmul.bf16.gmra.mxu0 %v2518
        %v3254 = vpop.f32.mrf.mxu0
        %v3255 = vadd.f32 %v3086, %v3254
        %v3256 = vpop.f32.mrf.mxu0
        %v3257 = vadd.f32 %v3088, %v3256
        %3258 = vmatmul.bf16.gmra.mxu0 %v2522
        %v3259 = vpop.f32.mrf.mxu0
        %v3260 = vadd.f32 %v3091, %v3259
        %v3261 = vpop.f32.mrf.mxu0
        %v3262 = vadd.f32 %v3093, %v3261
        %3263 = vmatmul.bf16.gmra.mxu0 %v2526
        %v3264 = vpop.f32.mrf.mxu0
        %v3265 = vadd.f32 %v3096, %v3264
        %v3266 = vpop.f32.mrf.mxu0
        %v3267 = vadd.f32 %v3098, %v3266
        %3268 = vmatmul.bf16.gmra.mxu0 %v2530
        %v3269 = vpop.f32.mrf.mxu0
        %v3270 = vadd.f32 %v3101, %v3269
        %v3271 = vpop.f32.mrf.mxu0
        %v3272 = vadd.f32 %v3103, %v3271
        %3273 = vmatmul.bf16.gmra.mxu0 %v2534
        %v3274 = vpop.f32.mrf.mxu0
        %v3275 = vadd.f32 %v3106, %v3274
        %v3276 = vpop.f32.mrf.mxu0
        %v3277 = vadd.f32 %v3108, %v3276
        %3278 = vmatmul.bf16.gmra.mxu0 %v2538
        %v3279 = vpop.f32.mrf.mxu0
        %v3280 = vadd.f32 %v3111, %v3279
        %v3281 = vpop.f32.mrf.mxu0
        %v3282 = vadd.f32 %v3113, %v3281
        %3283 = vmatmul.bf16.gmra.mxu0 %v2542
        %v3284 = vpop.f32.mrf.mxu0
        %v3285 = vadd.f32 %v3116, %v3284
        %v3286 = vpop.f32.mrf.mxu0
        %v3287 = vadd.f32 %v3118, %v3286
        %3288 = vmatmul.bf16.gmra.mxu0 %v2546
        %v3289 = vpop.f32.mrf.mxu0
        %v3290 = vadd.f32 %v3121, %v3289
        %v3291 = vpop.f32.mrf.mxu0
        %v3292 = vadd.f32 %v3123, %v3291
        %3293 = vmatmul.bf16.gmra.mxu0 %v2550
        %v3294 = vpop.f32.mrf.mxu0
        %v3295 = vadd.f32 %v3126, %v3294
        %v3296 = vpop.f32.mrf.mxu0
        %v3297 = vadd.f32 %v3128, %v3296
        %3298 = vmatmul.bf16.gmra.mxu0 %v2554
        %v3299 = vpop.f32.mrf.mxu0
        %v3300 = vadd.f32 %v3131, %v3299
        %v3301 = vpop.f32.mrf.mxu0
        %v3302 = vadd.f32 %v3133, %v3301
        %3303 = vmatmul.bf16.gmra.mxu0 %v2558
        %v3304 = vpop.f32.mrf.mxu0
        %v3305 = vadd.f32 %v3136, %v3304
        %v3306 = vpop.f32.mrf.mxu0
        %v3307 = vadd.f32 %v3138, %v3306
        %3308 = vmatmul.bf16.gmra.mxu0 %v2562
        %v3309 = vpop.f32.mrf.mxu0
        %v3310 = vadd.f32 %v3141, %v3309
        %v3311 = vpop.f32.mrf.mxu0
        %v3312 = vadd.f32 %v3143, %v3311
        %3313 = vmatmul.bf16.gmra.mxu0 %v2566
        %v3314 = vpop.f32.mrf.mxu0
        %v3315 = vadd.f32 %v3146, %v3314
        %v3316 = vpop.f32.mrf.mxu0
        %v3317 = vadd.f32 %v3148, %v3316
        %3318 = vmatmul.bf16.gmra.mxu0 %v2570
        %v3319 = vpop.f32.mrf.mxu0
        %v3320 = vadd.f32 %v3151, %v3319
        %v3321 = vpop.f32.mrf.mxu0
        %v3322 = vadd.f32 %v3153, %v3321
        %3323 = vmatmul.bf16.gmra.mxu0 %v2574
        %v3324 = vpop.f32.mrf.mxu0
        %v3325 = vadd.f32 %v3156, %v3324
        %v3326 = vpop.f32.mrf.mxu0
        %v3327 = vadd.f32 %v3158, %v3326
        %3328 = vmatmul.bf16.gmra.mxu0 %v2578
        %v3329 = vpop.f32.mrf.mxu0
        %v3330 = vadd.f32 %v3161, %v3329
        %v3331 = vpop.f32.mrf.mxu0
        %v3332 = vadd.f32 %v3163, %v3331
        %3333 = vmatmul.bf16.gmra.mxu0 %v2582
        %v3334 = vpop.f32.mrf.mxu0
        %v3335 = vadd.f32 %v3166, %v3334
        %v3336 = vpop.f32.mrf.mxu0
        %v3337 = vadd.f32 %v3168, %v3336
        %3338 = vmatmul.bf16.gmra.mxu0 %v2586
        %v3339 = vpop.f32.mrf.mxu0
        %v3340 = vadd.f32 %v3171, %v3339
        %v3341 = vpop.f32.mrf.mxu0
        %v3342 = vadd.f32 %v3173, %v3341
        %3343 = vmatmul.bf16.gmra.mxu0 %v2590
        %v3344 = vpop.f32.mrf.mxu0
        %v3345 = vadd.f32 %v3176, %v3344
        %v3346 = vpop.f32.mrf.mxu0
        %v3347 = vadd.f32 %v3178, %v3346
        %3348 = vmatmul.bf16.gmra.mxu0 %v2594
        %v3349 = vpop.f32.mrf.mxu0
        %v3350 = vadd.f32 %v3181, %v3349
        %v3351 = vpop.f32.mrf.mxu0
        %v3352 = vadd.f32 %v3183, %v3351
        %3353 = vmatmul.bf16.gmra.mxu0 %v2598
        %v3354 = vpop.f32.mrf.mxu0
        %v3355 = vadd.f32 %v3186, %v3354
        %v3356 = vpop.f32.mrf.mxu0
        %v3357 = vadd.f32 %v3188, %v3356
        %3358 = vmatmul.bf16.gmra.mxu0 %v2602
        %v3359 = vpop.f32.mrf.mxu0
        %v3360 = vadd.f32 %v3191, %v3359
        %v3361 = vpop.f32.mrf.mxu0
        %v3362 = vadd.f32 %v3193, %v3361
        %3363 = vmatmul.bf16.gmra.mxu0 %v2606
        %v3364 = vpop.f32.mrf.mxu0
        %v3365 = vadd.f32 %v3196, %v3364
        %v3366 = vpop.f32.mrf.mxu0
        %v3367 = vadd.f32 %v3198, %v3366
        %3368 = vmatmul.bf16.gmra.mxu0 %v2610
        %v3369 = vpop.f32.mrf.mxu0
        %v3370 = vadd.f32 %v3201, %v3369
        %v3371 = vpop.f32.mrf.mxu0
        %v3372 = vadd.f32 %v3203, %v3371
        %3373 = vmatmul.bf16.gmra.mxu0 %v2614
        %v3374 = vpop.f32.mrf.mxu0
        %v3375 = vadd.f32 %v3206, %v3374
        %v3376 = vpop.f32.mrf.mxu0
        %v3377 = vadd.f32 %v3208, %v3376
        %3378 = vmatmul.bf16.gmra.mxu0 %v2618
        %v3379 = vpop.f32.mrf.mxu0
        %v3380 = vadd.f32 %v3211, %v3379
        %v3381 = vpop.f32.mrf.mxu0
        %v3382 = vadd.f32 %v3213, %v3381
        %3383 = vmatmul.bf16.gmra.mxu0 %v2622
        %v3384 = vpop.f32.mrf.mxu0
        %v3385 = vadd.f32 %v3216, %v3384
        %v3386 = vpop.f32.mrf.mxu0
        %v3387 = vadd.f32 %v3218, %v3386
        %3388 = vmatmul.bf16.gmra.mxu0 %v2626
        %v3389 = vpop.f32.mrf.mxu0
        %v3390 = vadd.f32 %v3221, %v3389
        %v3391 = vpop.f32.mrf.mxu0
        %v3392 = vadd.f32 %v3223, %v3391
        %3393 = vmatmul.bf16.gmra.mxu0 %v2630
        %v3394 = vpop.f32.mrf.mxu0
        %v3395 = vadd.f32 %v3226, %v3394
        %v3396 = vpop.f32.mrf.mxu0
        %v3397 = vadd.f32 %v3228, %v3396
        %3398 = vdwg.mxu0
        %3399 = vmatpush.bf16.msra.mxu0 %v2859
        %3400 = vmatpush.bf16.msra.mxu0 %v2858
        %3401 = vmatpush.bf16.msra.mxu0 %v2857
        %3402 = vmatpush.bf16.msra.mxu0 %v2856
        %3403 = vmatpush.bf16.msra.mxu0 %v2855
        %3404 = vmatpush.bf16.msra.mxu0 %v2854
        %3405 = vmatpush.bf16.msra.mxu0 %v2853
        %3406 = vmatpush.bf16.msra.mxu0 %v2852
        %3407 = vmatmul.bf16.gmra.mxu0 %v2507
        %v3408 = vpop.f32.mrf.mxu0
        %v3409 = vadd.f32 %v3240, %v3408
        %v3410 = vpop.f32.mrf.mxu0
        %v3411 = vadd.f32 %v3242, %v3410
        %3412 = vmatmul.bf16.gmra.mxu0 %v2511
        %v3413 = vpop.f32.mrf.mxu0
        %v3414 = vadd.f32 %v3245, %v3413
        %v3415 = vpop.f32.mrf.mxu0
        %v3416 = vadd.f32 %v3247, %v3415
        %3417 = vmatmul.bf16.gmra.mxu0 %v2515
        %v3418 = vpop.f32.mrf.mxu0
        %v3419 = vadd.f32 %v3250, %v3418
        %v3420 = vpop.f32.mrf.mxu0
        %v3421 = vadd.f32 %v3252, %v3420
        %3422 = vmatmul.bf16.gmra.mxu0 %v2519
        %v3423 = vpop.f32.mrf.mxu0
        %v3424 = vadd.f32 %v3255, %v3423
        %v3425 = vpop.f32.mrf.mxu0
        %v3426 = vadd.f32 %v3257, %v3425
        %3427 = vmatmul.bf16.gmra.mxu0 %v2523
        %v3428 = vpop.f32.mrf.mxu0
        %v3429 = vadd.f32 %v3260, %v3428
        %v3430 = vpop.f32.mrf.mxu0
        %v3431 = vadd.f32 %v3262, %v3430
        %3432 = vmatmul.bf16.gmra.mxu0 %v2527
        %v3433 = vpop.f32.mrf.mxu0
        %v3434 = vadd.f32 %v3265, %v3433
        %v3435 = vpop.f32.mrf.mxu0
        %v3436 = vadd.f32 %v3267, %v3435
        %3437 = vmatmul.bf16.gmra.mxu0 %v2531
        %v3438 = vpop.f32.mrf.mxu0
        %v3439 = vadd.f32 %v3270, %v3438
        %v3440 = vpop.f32.mrf.mxu0
        %v3441 = vadd.f32 %v3272, %v3440
        %3442 = vmatmul.bf16.gmra.mxu0 %v2535
        %v3443 = vpop.f32.mrf.mxu0
        %v3444 = vadd.f32 %v3275, %v3443
        %v3445 = vpop.f32.mrf.mxu0
        %v3446 = vadd.f32 %v3277, %v3445
        %3447 = vmatmul.bf16.gmra.mxu0 %v2539
        %v3448 = vpop.f32.mrf.mxu0
        %v3449 = vadd.f32 %v3280, %v3448
        %v3450 = vpop.f32.mrf.mxu0
        %v3451 = vadd.f32 %v3282, %v3450
        %3452 = vmatmul.bf16.gmra.mxu0 %v2543
        %v3453 = vpop.f32.mrf.mxu0
        %v3454 = vadd.f32 %v3285, %v3453
        %v3455 = vpop.f32.mrf.mxu0
        %v3456 = vadd.f32 %v3287, %v3455
        %3457 = vmatmul.bf16.gmra.mxu0 %v2547
        %v3458 = vpop.f32.mrf.mxu0
        %v3459 = vadd.f32 %v3290, %v3458
        %v3460 = vpop.f32.mrf.mxu0
        %v3461 = vadd.f32 %v3292, %v3460
        %3462 = vmatmul.bf16.gmra.mxu0 %v2551
        %v3463 = vpop.f32.mrf.mxu0
        %v3464 = vadd.f32 %v3295, %v3463
        %v3465 = vpop.f32.mrf.mxu0
        %v3466 = vadd.f32 %v3297, %v3465
        %3467 = vmatmul.bf16.gmra.mxu0 %v2555
        %v3468 = vpop.f32.mrf.mxu0
        %v3469 = vadd.f32 %v3300, %v3468
        %v3470 = vpop.f32.mrf.mxu0
        %v3471 = vadd.f32 %v3302, %v3470
        %3472 = vmatmul.bf16.gmra.mxu0 %v2559
        %v3473 = vpop.f32.mrf.mxu0
        %v3474 = vadd.f32 %v3305, %v3473
        %v3475 = vpop.f32.mrf.mxu0
        %v3476 = vadd.f32 %v3307, %v3475
        %3477 = vmatmul.bf16.gmra.mxu0 %v2563
        %v3478 = vpop.f32.mrf.mxu0
        %v3479 = vadd.f32 %v3310, %v3478
        %v3480 = vpop.f32.mrf.mxu0
        %v3481 = vadd.f32 %v3312, %v3480
        %3482 = vmatmul.bf16.gmra.mxu0 %v2567
        %v3483 = vpop.f32.mrf.mxu0
        %v3484 = vadd.f32 %v3315, %v3483
        %v3485 = vpop.f32.mrf.mxu0
        %v3486 = vadd.f32 %v3317, %v3485
        %3487 = vmatmul.bf16.gmra.mxu0 %v2571
        %v3488 = vpop.f32.mrf.mxu0
        %v3489 = vadd.f32 %v3320, %v3488
        %v3490 = vpop.f32.mrf.mxu0
        %v3491 = vadd.f32 %v3322, %v3490
        %3492 = vmatmul.bf16.gmra.mxu0 %v2575
        %v3493 = vpop.f32.mrf.mxu0
        %v3494 = vadd.f32 %v3325, %v3493
        %v3495 = vpop.f32.mrf.mxu0
        %v3496 = vadd.f32 %v3327, %v3495
        %3497 = vmatmul.bf16.gmra.mxu0 %v2579
        %v3498 = vpop.f32.mrf.mxu0
        %v3499 = vadd.f32 %v3330, %v3498
        %v3500 = vpop.f32.mrf.mxu0
        %v3501 = vadd.f32 %v3332, %v3500
        %3502 = vmatmul.bf16.gmra.mxu0 %v2583
        %v3503 = vpop.f32.mrf.mxu0
        %v3504 = vadd.f32 %v3335, %v3503
        %v3505 = vpop.f32.mrf.mxu0
        %v3506 = vadd.f32 %v3337, %v3505
        %3507 = vmatmul.bf16.gmra.mxu0 %v2587
        %v3508 = vpop.f32.mrf.mxu0
        %v3509 = vadd.f32 %v3340, %v3508
        %v3510 = vpop.f32.mrf.mxu0
        %v3511 = vadd.f32 %v3342, %v3510
        %3512 = vmatmul.bf16.gmra.mxu0 %v2591
        %v3513 = vpop.f32.mrf.mxu0
        %v3514 = vadd.f32 %v3345, %v3513
        %v3515 = vpop.f32.mrf.mxu0
        %v3516 = vadd.f32 %v3347, %v3515
        %3517 = vmatmul.bf16.gmra.mxu0 %v2595
        %v3518 = vpop.f32.mrf.mxu0
        %v3519 = vadd.f32 %v3350, %v3518
        %v3520 = vpop.f32.mrf.mxu0
        %v3521 = vadd.f32 %v3352, %v3520
        %3522 = vmatmul.bf16.gmra.mxu0 %v2599
        %v3523 = vpop.f32.mrf.mxu0
        %v3524 = vadd.f32 %v3355, %v3523
        %v3525 = vpop.f32.mrf.mxu0
        %v3526 = vadd.f32 %v3357, %v3525
        %3527 = vmatmul.bf16.gmra.mxu0 %v2603
        %v3528 = vpop.f32.mrf.mxu0
        %v3529 = vadd.f32 %v3360, %v3528
        %v3530 = vpop.f32.mrf.mxu0
        %v3531 = vadd.f32 %v3362, %v3530
        %3532 = vmatmul.bf16.gmra.mxu0 %v2607
        %v3533 = vpop.f32.mrf.mxu0
        %v3534 = vadd.f32 %v3365, %v3533
        %v3535 = vpop.f32.mrf.mxu0
        %v3536 = vadd.f32 %v3367, %v3535
        %3537 = vmatmul.bf16.gmra.mxu0 %v2611
        %v3538 = vpop.f32.mrf.mxu0
        %v3539 = vadd.f32 %v3370, %v3538
        %v3540 = vpop.f32.mrf.mxu0
        %v3541 = vadd.f32 %v3372, %v3540
        %3542 = vmatmul.bf16.gmra.mxu0 %v2615
        %v3543 = vpop.f32.mrf.mxu0
        %v3544 = vadd.f32 %v3375, %v3543
        %v3545 = vpop.f32.mrf.mxu0
        %v3546 = vadd.f32 %v3377, %v3545
        %3547 = vmatmul.bf16.gmra.mxu0 %v2619
        %v3548 = vpop.f32.mrf.mxu0
        %v3549 = vadd.f32 %v3380, %v3548
        %v3550 = vpop.f32.mrf.mxu0
        %v3551 = vadd.f32 %v3382, %v3550
        %3552 = vmatmul.bf16.gmra.mxu0 %v2623
        %v3553 = vpop.f32.mrf.mxu0
        %v3554 = vadd.f32 %v3385, %v3553
        %v3555 = vpop.f32.mrf.mxu0
        %v3556 = vadd.f32 %v3387, %v3555
        %3557 = vmatmul.bf16.gmra.mxu0 %v2627
        %v3558 = vpop.f32.mrf.mxu0
        %v3559 = vadd.f32 %v3390, %v3558
        %v3560 = vpop.f32.mrf.mxu0
        %v3561 = vadd.f32 %v3392, %v3560
        %3562 = vmatmul.bf16.gmra.mxu0 %v2631
        %v3563 = vpop.f32.mrf.mxu0
        %v3564 = vadd.f32 %v3395, %v3563
        %v3565 = vpop.f32.mrf.mxu0
        %v3566 = vadd.f32 %v3397, %v3565
        %3567 = vdwg.mxu0
        %3568 = vst [vmem:[%s307] sm:$0xff] %v3409
        %3569 = vst [vmem:[%s307 + $0x8] sm:$0xff] %v3411
        %3570 = vst [vmem:[%s307 + $0x10] sm:$0xff] %v3414
        %3571 = vst [vmem:[%s307 + $0x18] sm:$0xff] %v3416
        %3572 = vst [vmem:[%s307 + $0x20] sm:$0xff] %v3419
        %3573 = vst [vmem:[%s307 + $0x28] sm:$0xff] %v3421
        %3574 = vst [vmem:[%s307 + $0x30] sm:$0xff] %v3424
        %3575 = vst [vmem:[%s307 + $0x38] sm:$0xff] %v3426
        %3576 = vst [vmem:[%s307 + $0x40] sm:$0xff] %v3429
        %3577 = vst [vmem:[%s307 + $0x48] sm:$0xff] %v3431
        %3578 = vst [vmem:[%s307 + $0x50] sm:$0xff] %v3434
        %3579 = vst [vmem:[%s307 + $0x58] sm:$0xff] %v3436
        %3580 = vst [vmem:[%s307 + $0x60] sm:$0xff] %v3439
        %3581 = vst [vmem:[%s307 + $0x68] sm:$0xff] %v3441
        %3582 = vst [vmem:[%s307 + $0x70] sm:$0xff] %v3444
        %3583 = vst [vmem:[%s307 + $0x78] sm:$0xff] %v3446
        %3584 = vst [vmem:[%s307 + $0x80] sm:$0xff] %v3449
        %3585 = vst [vmem:[%s307 + $0x88] sm:$0xff] %v3451
        %3586 = vst [vmem:[%s307 + $0x90] sm:$0xff] %v3454
        %3587 = vst [vmem:[%s307 + $0x98] sm:$0xff] %v3456
        %3588 = vst [vmem:[%s307 + $0xa0] sm:$0xff] %v3459
        %3589 = vst [vmem:[%s307 + $0xa8] sm:$0xff] %v3461
        %3590 = vst [vmem:[%s307 + $0xb0] sm:$0xff] %v3464
        %3591 = vst [vmem:[%s307 + $0xb8] sm:$0xff] %v3466
        %3592 = vst [vmem:[%s307 + $0xc0] sm:$0xff] %v3469
        %3593 = vst [vmem:[%s307 + $0xc8] sm:$0xff] %v3471
        %3594 = vst [vmem:[%s307 + $0xd0] sm:$0xff] %v3474
        %3595 = vst [vmem:[%s307 + $0xd8] sm:$0xff] %v3476
        %3596 = vst [vmem:[%s307 + $0xe0] sm:$0xff] %v3479
        %3597 = vst [vmem:[%s307 + $0xe8] sm:$0xff] %v3481
        %3598 = vst [vmem:[%s307 + $0xf0] sm:$0xff] %v3484
        %3599 = vst [vmem:[%s307 + $0xf8] sm:$0xff] %v3486
        %3600 = vst [vmem:[%s307 + $0x100] sm:$0xff] %v3489
        %3601 = vst [vmem:[%s307 + $0x108] sm:$0xff] %v3491
        %3602 = vst [vmem:[%s307 + $0x110] sm:$0xff] %v3494
        %3603 = vst [vmem:[%s307 + $0x118] sm:$0xff] %v3496
        %3604 = vst [vmem:[%s307 + $0x120] sm:$0xff] %v3499
        %3605 = vst [vmem:[%s307 + $0x128] sm:$0xff] %v3501
        %3606 = vst [vmem:[%s307 + $0x130] sm:$0xff] %v3504
        %3607 = vst [vmem:[%s307 + $0x138] sm:$0xff] %v3506
        %3608 = vst [vmem:[%s307 + $0x140] sm:$0xff] %v3509
        %3609 = vst [vmem:[%s307 + $0x148] sm:$0xff] %v3511
        %3610 = vst [vmem:[%s307 + $0x150] sm:$0xff] %v3514
        %3611 = vst [vmem:[%s307 + $0x158] sm:$0xff] %v3516
        %3612 = vst [vmem:[%s307 + $0x160] sm:$0xff] %v3519
        %3613 = vst [vmem:[%s307 + $0x168] sm:$0xff] %v3521
        %3614 = vst [vmem:[%s307 + $0x170] sm:$0xff] %v3524
        %3615 = vst [vmem:[%s307 + $0x178] sm:$0xff] %v3526
        %3616 = vst [vmem:[%s307 + $0x180] sm:$0xff] %v3529
        %3617 = vst [vmem:[%s307 + $0x188] sm:$0xff] %v3531
        %3618 = vst [vmem:[%s307 + $0x190] sm:$0xff] %v3534
        %3619 = vst [vmem:[%s307 + $0x198] sm:$0xff] %v3536
        %3620 = vst [vmem:[%s307 + $0x1a0] sm:$0xff] %v3539
        %3621 = vst [vmem:[%s307 + $0x1a8] sm:$0xff] %v3541
        %3622 = vst [vmem:[%s307 + $0x1b0] sm:$0xff] %v3544
        %3623 = vst [vmem:[%s307 + $0x1b8] sm:$0xff] %v3546
        %3624 = vst [vmem:[%s307 + $0x1c0] sm:$0xff] %v3549
        %3625 = vst [vmem:[%s307 + $0x1c8] sm:$0xff] %v3551
        %3626 = vst [vmem:[%s307 + $0x1d0] sm:$0xff] %v3554
        %3627 = vst [vmem:[%s307 + $0x1d8] sm:$0xff] %v3556
        %3628 = vst [vmem:[%s307 + $0x1e0] sm:$0xff] %v3559
        %3629 = vst [vmem:[%s307 + $0x1e8] sm:$0xff] %v3561
        %3630 = vst [vmem:[%s307 + $0x1f0] sm:$0xff] %v3564
        %3631 = vst [vmem:[%s307 + $0x1f8] sm:$0xff] %v3566
        %s3632 = sand.u32 %s142, 1
        %s3633 = scalar_lea.sflag [#allocation4], %s3632
        %s3634 = sand.u32 %s142, 1
        %s3635 = smul.addr %s3634, 512
        %s3636 = scalar_lea.vmem [#allocation11], %s3635
        // Predicated region
        $region61: #{tpu_custom_call.1} parent=39 // pred_check
          %p3637 = pneg %p152
        $region62: #{tpu_custom_call.1} parent=39 // pred_check_branch
          %3639 = sbr.rel (%p3637) target = $region64
        $region63: #{tpu_custom_call.1} parent=39 // pred_region
          %s3640 = smul.u32 64, %s24
          %3642 = vsyncadd %s3633, 0
          %s3643 = smul.addr %s3640, 8
          %s3644 = scalar_lea.hbm %s5, %s3643
          %s3645 = sshll.u32 %s3636, 4
          %s3646 = int_to_ptr.vmem [resolvable:$true] %s3645
          %s3647 = sshll.u32 %s3644, 4
          %s3648 = int_to_ptr.hbm [resolvable:$true] %s3647
          %3653 = dma.vmem_to_hbm [thread:$0]  %s3646, 8192, %s3648, %s3633, 128, 128, 8
        $region64: #{tpu_custom_call.1} parent=39 // pred_fallthru
          _
      $region40: #{tpu_custom_call.1} parent=5 // pred_fallthru
        _
      %p3654 = scmp.le.s32.totalorder 2, %s19
      // Predicated region
      $region65: #{tpu_custom_call.1} parent=5 // pred_check
        %p3655 = pneg %p3654
      $region66: #{tpu_custom_call.1} parent=5 // pred_check_branch
        %3657 = sbr.rel (%p3655) target = $region68
      $region67: #{tpu_custom_call.1} parent=5 // pred_region
        %s3658 = ssub.s32 %s19, 2
        // Predicated region
        $region69: #{tpu_custom_call.1} parent=67 // pred_check
          %p3659 = pneg %p158
        $region70: #{tpu_custom_call.1} parent=67 // pred_check_branch
          %3661 = sbr.rel (%p3659) target = $region72
        $region71: #{tpu_custom_call.1} parent=67 // pred_region
          %s3662 = sand.u32 %s143, 1
          %s3663 = scalar_lea.sflag [#allocation4], %s3662
          %s3664 = sand.u32 %s143, 1
          %s3665 = smul.addr %s3664, 512
          %s3666 = scalar_lea.vmem [#allocation11], %s3665
          %3668 = dma.done %s3663, 8192
        $region72: #{tpu_custom_call.1} parent=67 // pred_fallthru
          _
      $region68: #{tpu_custom_call.1} parent=5 // pred_fallthru
        _
    $region6: #{tpu_custom_call.1} parent=1 // loop_footer
      %s23 = sadd.s32 1, %s19
    $region7: #{tpu_custom_call.1} parent=1 // loop_footer_branch
      %18 = sbr.rel target = $region3
    $region8: #{tpu_custom_call.1} parent=1 // loop_exit
      _
    %3669 = vsyncpa [#allocation3], 1
    %s3670 = scalar_lea.sflag [#allocation3], 1
    %3671 = vsyncpa %s3670, 1
    %3672 = vsyncpa [#allocation6], 1
    %3673 = vsyncpa [#allocation9], 1
    %3674 = vsyncpa [#allocation4], 1
    %s3675 = scalar_lea.sflag [#allocation4], 1
    %3676 = vsyncpa %s3675, 1

// kernel: tpu_custom_call.1
$region0: #{tpu_custom_call.1}
  #allocation0 [shape = 'u32[]', space=smem, size = 0x4, offset = 0x4, fixed_abs, tag = 'smem constant byte address 0x4 - core index']
  #allocation1 [shape = 'u32[72,128]{1,0:T(1,128)}', space=vmem, size = 0x9000, scoped, tag = 'internal scratch']
  %s0 = inlined_call_operand.hbm [shape: f32[2048,256], index: 0, kind: input, shape index: {}]
  %s1 = inlined_call_operand.hbm [shape: bf16[256,512], index: 1, kind: input, shape index: {}]
  %s2 = inlined_call_operand.hbm [shape: f32[1,512], index: 2, kind: input, shape index: {}]
  %s3 = inlined_call_operand.hbm [shape: bf16[512,128], index: 3, kind: input, shape index: {}]
  %s4 = inlined_call_operand.hbm [shape: f32[1,128], index: 4, kind: input, shape index: {}]
  %s5 = inlined_call_operand.hbm [shape: f32[2048,128], index: 5, kind: output, shape index: {}]
  %s6 = sld [smem:[#allocation0]]
  $region73: #{tpu_custom_call.1} parent=0
    _
  %s8 = ssub.s32 1, %s6
  %s9 = scalar_select 0, %s8, %s6
  $region1: #{tpu_custom_call.1} parent=0
    #allocation2 [shape = 'u8[1048576]{0}', space=vmem, size = 0x100000, scoped, tag = 'input window, operand 0']
    #allocation3 [shape = 's32[2]{0}', space=sflag, size = 0x8, scoped, tag = 'scoped memory for tpu_custom_call.1']
    #allocation4 [shape = 's32[2]{0}', space=sflag, size = 0x8, scoped, tag = 'scoped memory for tpu_custom_call.1']
    #allocation5 [shape = 'u8[262144]{0}', space=vmem, size = 0x40000, scoped, tag = 'input window, operand 1, single buffered']
    #allocation6 [shape = 's32[1]{0}', space=sflag, size = 0x4, scoped, tag = 'scoped memory for tpu_custom_call.1']
    #allocation7 [shape = 'u8[2048]{0}', space=vmem, size = 0x800, scoped, tag = 'input window, operand 2, single buffered']
    #allocation8 [shape = 'u8[131072]{0}', space=vmem, size = 0x20000, scoped, tag = 'input window, operand 3, single buffered']
    #allocation9 [shape = 's32[1]{0}', space=sflag, size = 0x4, scoped, tag = 'scoped memory for tpu_custom_call.1']
    #allocation10 [shape = 'u8[512]{0}', space=vmem, size = 0x400, scoped, tag = 'input window, operand 4, single buffered']
    #allocation11 [shape = 'u8[524288]{0}', space=vmem, size = 0x80000, scoped, tag = 'output window, operand 0']
    %10 = vsyncpa [#allocation3], 0
    %s11 = scalar_lea.sflag [#allocation3], 1
    %12 = vsyncpa %s11, 0
    %13 = vsyncpa [#allocation6], 0
    %14 = vsyncpa [#allocation9], 0
    %15 = vsyncpa [#allocation4], 0
    %s16 = scalar_lea.sflag [#allocation4], 1
    %17 = vsyncpa %s16, 0
    loop: start=0, step=1, limit=6
    $region2: #{tpu_custom_call.1} parent=1 // loop_pre_header
      _
    $region3: #{tpu_custom_call.1} parent=1 // loop_header
      %s19 = sphi 0, %s23
      %p20 = scmp.ge.s32.totalorder %s19, 6
      %s29 = sphi 0, %s31
      %s32 = sphi 0, %s29
      %s33 = sphi 0, %s32
      %s49 = sphi 0, %s33
      %s53 = sphi 0, %s53
      %s55 = sphi 0, %s53
      %s56 = sphi 0, %s55
      %s70 = sphi 0, %s56
      %s74 = sphi 0, %s74
      %s76 = sphi 0, %s74
      %s77 = sphi 0, %s76
      %s91 = sphi 0, %s77
      %s95 = sphi 0, %s95
      %s97 = sphi 0, %s95
      %s98 = sphi 0, %s97
      %s112 = sphi 0, %s98
      %s116 = sphi 0, %s116
      %s118 = sphi 0, %s116
      %s119 = sphi 0, %s118
      %s133 = sphi 0, %s119
      %s139 = sphi 0, %s141
      %s142 = sphi 0, %s139
      %s143 = sphi 0, %s142
      %s159 = sphi 0, %s143
    $region4: #{tpu_custom_call.1} parent=1 // loop_header_branch
      %22 = sbr.rel (%p20) target = $region8
    $region5: #{tpu_custom_call.1} parent=1 // loop_body
      %s24 = ssub.s32 %s19, 1
      %s25 = ssub.s32 %s19, 2
      %s26 = sadd.s32 %s19, 1
      %s27 = ssub.s32 %s19, %s26
      %p28 = scmp.eq.s32.totalorder %s27, 0
      %s30 = sadd.s32 %s29, 1
      %s31 = scalar_select %p28, %s29, %s30
      %p34 = pneg %p28
      %p35 = scmp.eq.s32.totalorder %s19, 3
      %p36 = por %p34, %p35
      %p37 = scmp.ne.s32.totalorder %s29, %s32
      %p38 = scmp.eq.s32.totalorder %s19, 0
      %p39 = por %p37, %p38
      %p40 = scmp.ne.s32.totalorder %s29, %s32
      %p41 = scmp.eq.s32.totalorder %s24, 3
      %p42 = por %p40, %p41
      %p43 = scmp.ne.s32.totalorder %s32, %s33
      %p44 = scmp.eq.s32.totalorder %s24, 0
      %p45 = por %p43, %p44
      %p46 = scmp.ne.s32.totalorder %s32, %s33
      %p47 = scmp.eq.s32.totalorder %s25, 3
      %p48 = por %p46, %p47
      %p50 = scmp.ne.s32.totalorder %s33, %s49
      %p51 = scmp.eq.s32.totalorder %s25, 0
      %p52 = por %p50, %p51
      %s54 = sadd.s32 %s53, 1
      %p57 = scmp.eq.s32.totalorder %s19, 3
      %p58 = scmp.ne.s32.totalorder %s53, %s55
      %p59 = scmp.eq.s32.totalorder %s19, 0
      %p60 = por %p58, %p59
      %p61 = scmp.ne.s32.totalorder %s53, %s55
      %p62 = scmp.eq.s32.totalorder %s24, 3
      %p63 = por %p61, %p62
      %p64 = scmp.ne.s32.totalorder %s55, %s56
      %p65 = scmp.eq.s32.totalorder %s24, 0
      %p66 = por %p64, %p65
      %p67 = scmp.ne.s32.totalorder %s55, %s56
      %p68 = scmp.eq.s32.totalorder %s25, 3
      %p69 = por %p67, %p68
      %p71 = scmp.ne.s32.totalorder %s56, %s70
      %p72 = scmp.eq.s32.totalorder %s25, 0
      %p73 = por %p71, %p72
      %s75 = sadd.s32 %s74, 1
      %p78 = scmp.eq.s32.totalorder %s19, 3
      %p79 = scmp.ne.s32.totalorder %s74, %s76
      %p80 = scmp.eq.s32.totalorder %s19, 0
      %p81 = por %p79, %p80
      %p82 = scmp.ne.s32.totalorder %s74, %s76
      %p83 = scmp.eq.s32.totalorder %s24, 3
      %p84 = por %p82, %p83
      %p85 = scmp.ne.s32.totalorder %s76, %s77
      %p86 = scmp.eq.s32.totalorder %s24, 0
      %p87 = por %p85, %p86
      %p88 = scmp.ne.s32.totalorder %s76, %s77
      %p89 = scmp.eq.s32.totalorder %s25, 3
      %p90 = por %p88, %p89
      %p92 = scmp.ne.s32.totalorder %s77, %s91
      %p93 = scmp.eq.s32.totalorder %s25, 0
      %p94 = por %p92, %p93
      %s96 = sadd.s32 %s95, 1
      %p99 = scmp.eq.s32.totalorder %s19, 3
      %p100 = scmp.ne.s32.totalorder %s95, %s97
      %p101 = scmp.eq.s32.totalorder %s19, 0
      %p102 = por %p100, %p101
      %p103 = scmp.ne.s32.totalorder %s95, %s97
      %p104 = scmp.eq.s32.totalorder %s24, 3
      %p105 = por %p103, %p104
      %p106 = scmp.ne.s32.totalorder %s97, %s98
      %p107 = scmp.eq.s32.totalorder %s24, 0
      %p108 = por %p106, %p107
      %p109 = scmp.ne.s32.totalorder %s97, %s98
      %p110 = scmp.eq.s32.totalorder %s25, 3
      %p111 = por %p109, %p110
      %p113 = scmp.ne.s32.totalorder %s98, %s112
      %p114 = scmp.eq.s32.totalorder %s25, 0
      %p115 = por %p113, %p114
      %s117 = sadd.s32 %s116, 1
      %p120 = scmp.eq.s32.totalorder %s19, 3
      %p121 = scmp.ne.s32.totalorder %s116, %s118
      %p122 = scmp.eq.s32.totalorder %s19, 0
      %p123 = por %p121, %p122
      %p124 = scmp.ne.s32.totalorder %s116, %s118
      %p125 = scmp.eq.s32.totalorder %s24, 3
      %p126 = por %p124, %p125
      %p127 = scmp.ne.s32.totalorder %s118, %s119
      %p128 = scmp.eq.s32.totalorder %s24, 0
      %p129 = por %p127, %p128
      %p130 = scmp.ne.s32.totalorder %s118, %s119
      %p131 = scmp.eq.s32.totalorder %s25, 3
      %p132 = por %p130, %p131
      %p134 = scmp.ne.s32.totalorder %s119, %s133
      %p135 = scmp.eq.s32.totalorder %s25, 0
      %p136 = por %p134, %p135
      %s137 = ssub.s32 %s19, %s26
      %p138 = scmp.eq.s32.totalorder %s137, 0
      %s140 = sadd.s32 %s139, 1
      %s141 = scalar_select %p138, %s139, %s140
      %p144 = pneg %p138
      %p145 = scmp.eq.s32.totalorder %s19, 3
      %p146 = por %p144, %p145
      %p147 = scmp.ne.s32.totalorder %s139, %s142
      %p148 = scmp.eq.s32.totalorder %s19, 0
      %p149 = por %p147, %p148
      %p150 = scmp.ne.s32.totalorder %s139, %s142
      %p151 = scmp.eq.s32.totalorder %s24, 3
      %p152 = por %p150, %p151
      %p153 = scmp.ne.s32.totalorder %s142, %s143
      %p154 = scmp.eq.s32.totalorder %s24, 0
      %p155 = por %p153, %p154
      %p156 = scmp.ne.s32.totalorder %s142, %s143
      %p157 = scmp.eq.s32.totalorder %s25, 3
      %p158 = por %p156, %p157
      %p160 = scmp.ne.s32.totalorder %s143, %s159
      %p161 = scmp.eq.s32.totalorder %s25, 0
      %p162 = por %p160, %p161
      %p163 = scmp.le.s32.totalorder 1, %s19
      %p164 = scmp.lt.s32.totalorder %s19, 5
      %p165 = pnand %p163, %p164
      %p166 = pneg %p165
      // Predicated region
      $region9: #{tpu_custom_call.1} parent=5 // pred_check
        _
      $region10: #{tpu_custom_call.1} parent=5 // pred_check_branch
        %168 = sbr.rel (%p165) target = $region12
      $region11: #{tpu_custom_call.1} parent=5 // pred_region
        %s169 = ssub.s32 %s19, 1
        // Predicated region
        $region13: #{tpu_custom_call.1} parent=11 // pred_check
          %p170 = pneg %p66
        $region14: #{tpu_custom_call.1} parent=11 // pred_check_branch
          %172 = sbr.rel (%p170) target = $region16
        $region15: #{tpu_custom_call.1} parent=11 // pred_region
          %174 = vsyncadd [#allocation6], 0
          %s175 = sshll.u32 %s1, 4
          %s176 = int_to_ptr.hbm [resolvable:$true] %s175
          %s177 = sshll.u32 [#allocation5], 4
          %s178 = int_to_ptr.vmem [resolvable:$true] %s177
          %183 = dma.hbm_to_vmem [thread:$0]  %s176, 8192, %s178, [#allocation6], 256, 256, 16
        $region16: #{tpu_custom_call.1} parent=11 // pred_fallthru
          _
        // Predicated region
        $region17: #{tpu_custom_call.1} parent=11 // pred_check
          %p184 = pneg %p87
        $region18: #{tpu_custom_call.1} parent=11 // pred_check_branch
          %186 = sbr.rel (%p184) target = $region20
        $region19: #{tpu_custom_call.1} parent=11 // pred_region
          %188 = vsyncadd [#allocation6], 0
          %s190 = sshll.u32 %s2, 4
          %s191 = int_to_ptr.hbm [resolvable:$true] %s190
          %s192 = sshll.u32 [#allocation7], 4
          %s193 = int_to_ptr.vmem [resolvable:$true] %s192
          %195 = dma.hbm_to_vmem [thread:$0]  %s191, 64, %s193, [#allocation6]
        $region20: #{tpu_custom_call.1} parent=11 // pred_fallthru
          _
        // Predicated region
        $region21: #{tpu_custom_call.1} parent=11 // pred_check
          %p196 = pneg %p108
        $region22: #{tpu_custom_call.1} parent=11 // pred_check_branch
          %198 = sbr.rel (%p196) target = $region24
        $region23: #{tpu_custom_call.1} parent=11 // pred_region
          %200 = vsyncadd [#allocation9], 0
          %s201 = sshll.u32 %s3, 4
          %s202 = int_to_ptr.hbm [resolvable:$true] %s201
          %s203 = sshll.u32 [#allocation8], 4
          %s204 = int_to_ptr.vmem [resolvable:$true] %s203
          %209 = dma.hbm_to_vmem [thread:$0]  %s202, 4096, %s204, [#allocation9], 64, 64, 4
        $region24: #{tpu_custom_call.1} parent=11 // pred_fallthru
          _
        // Predicated region
        $region25: #{tpu_custom_call.1} parent=11 // pred_check
          %p210 = pneg %p129
        $region26: #{tpu_custom_call.1} parent=11 // pred_check_branch
          %212 = sbr.rel (%p210) target = $region28
        $region27: #{tpu_custom_call.1} parent=11 // pred_region
          %214 = vsyncadd [#allocation9], 0
          %s216 = sshll.u32 %s4, 4
          %s217 = int_to_ptr.hbm [resolvable:$true] %s216
          %s218 = sshll.u32 [#allocation10], 4
          %s219 = int_to_ptr.vmem [resolvable:$true] %s218
          %221 = dma.hbm_to_vmem [thread:$0]  %s217, 16, %s219, [#allocation9]
        $region28: #{tpu_custom_call.1} parent=11 // pred_fallthru
          _
      $region12: #{tpu_custom_call.1} parent=5 // pred_fallthru
        _
      %p222 = scmp.lt.s32.totalorder %s19, 4
      // Predicated region
      $region29: #{tpu_custom_call.1} parent=5 // pred_check
        %p223 = pneg %p222
      $region30: #{tpu_custom_call.1} parent=5 // pred_check_branch
        %225 = sbr.rel (%p223) target = $region32
      $region31: #{tpu_custom_call.1} parent=5 // pred_region
        // Predicated region
        $region33: #{tpu_custom_call.1} parent=31 // pred_check
          %p226 = pneg %p39
        $region34: #{tpu_custom_call.1} parent=31 // pred_check_branch
          %228 = sbr.rel (%p226) target = $region36
        $region35: #{tpu_custom_call.1} parent=31 // pred_region
          %s229 = sand.u32 %s29, 1
          %s230 = scalar_lea.sflag [#allocation3], %s229
          %s231 = sand.u32 %s29, 1
          %s232 = smul.addr %s231, 1024
          %s233 = scalar_lea.vmem [#allocation2], %s232
          %s234 = smul.u32 64, %s19
          %236 = vsyncadd %s230, 0
          %s237 = smul.addr %s234, 2
          %s238 = smul.addr %s237, 8
          %s239 = scalar_lea.hbm %s0, %s238
          %s240 = sshll.u32 %s239, 4
          %s241 = int_to_ptr.hbm [resolvable:$true] %s240
          %s242 = sshll.u32 %s233, 4
          %s243 = int_to_ptr.vmem [resolvable:$true] %s242
          %248 = dma.hbm_to_vmem [thread:$0]  %s241, 16384, %s243, %s230, 256, 256, 16
        $region36: #{tpu_custom_call.1} parent=31 // pred_fallthru
          _
      $region32: #{tpu_custom_call.1} parent=5 // pred_fallthru
        _
      %p249 = scmp.le.s32.totalorder 1, %s19
      %p250 = scmp.lt.s32.totalorder %s19, 5
      %p251 = pnand %p249, %p250
      %p252 = pneg %p251
      // Predicated region
      $region37: #{tpu_custom_call.1} parent=5 // pred_check
        _
      $region38: #{tpu_custom_call.1} parent=5 // pred_check_branch
        %254 = sbr.rel (%p251) target = $region40
      $region39: #{tpu_custom_call.1} parent=5 // pred_region
        %s255 = ssub.s32 %s19, 1
        %s256 = sand.u32 %s32, 1
        %s257 = scalar_lea.sflag [#allocation3], %s256
        %s258 = sand.u32 %s32, 1
        %s259 = smul.addr %s258, 1024
        %s260 = scalar_lea.vmem [#allocation2], %s259
        // Predicated region
        $region41: #{tpu_custom_call.1} parent=39 // pred_check
          %p261 = pneg %p45
        $region42: #{tpu_custom_call.1} parent=39 // pred_check_branch
          %263 = sbr.rel (%p261) target = $region44
        $region43: #{tpu_custom_call.1} parent=39 // pred_region
          %265 = dma.done %s257, 16384
        $region44: #{tpu_custom_call.1} parent=39 // pred_fallthru
          _
        // Predicated region
        $region45: #{tpu_custom_call.1} parent=39 // pred_check
          %p266 = pneg %p66
        $region46: #{tpu_custom_call.1} parent=39 // pred_check_branch
          %268 = sbr.rel (%p266) target = $region48
        $region47: #{tpu_custom_call.1} parent=39 // pred_region
          %270 = dma.done [#allocation6], 8192
        $region48: #{tpu_custom_call.1} parent=39 // pred_fallthru
          _
        // Predicated region
        $region49: #{tpu_custom_call.1} parent=39 // pred_check
          %p271 = pneg %p87
        $region50: #{tpu_custom_call.1} parent=39 // pred_check_branch
          %273 = sbr.rel (%p271) target = $region52
        $region51: #{tpu_custom_call.1} parent=39 // pred_region
          %275 = dma.done [#allocation6], 64
        $region52: #{tpu_custom_call.1} parent=39 // pred_fallthru
          _
        // Predicated region
        $region53: #{tpu_custom_call.1} parent=39 // pred_check
          %p276 = pneg %p108
        $region54: #{tpu_custom_call.1} parent=39 // pred_check_branch
          %278 = sbr.rel (%p276) target = $region56
        $region55: #{tpu_custom_call.1} parent=39 // pred_region
          %280 = dma.done [#allocation9], 4096
        $region56: #{tpu_custom_call.1} parent=39 // pred_fallthru
          _
        // Predicated region
        $region57: #{tpu_custom_call.1} parent=39 // pred_check
          %p281 = pneg %p129
        $region58: #{tpu_custom_call.1} parent=39 // pred_check_branch
          %283 = sbr.rel (%p281) target = $region60
        $region59: #{tpu_custom_call.1} parent=39 // pred_region
          %285 = dma.done [#allocation9], 16
        $region60: #{tpu_custom_call.1} parent=39 // pred_fallthru
          _
        %s286 = sand.u32 %s32, 1
        %s287 = scalar_lea.sflag [#allocation3], %s286
        %s288 = sand.u32 %s32, 1
        %s289 = smul.addr %s288, 1024
        %s290 = scalar_lea.vmem [#allocation2], %s289
        %p291 = pneg %p45
        %p292 = pneg %p42
        %p293 = pneg %p66
        %p294 = pneg %p63
        %p295 = pneg %p87
        %p296 = pneg %p84
        %p297 = pneg %p108
        %p298 = pneg %p105
        %p299 = pneg %p129
        %p300 = pneg %p126
        %p301 = pneg %p155
        %p302 = pneg %p152
        %s303 = sand.u32 %s142, 1
        %s304 = scalar_lea.sflag [#allocation4], %s303
        %s305 = sand.u32 %s142, 1
        %s306 = smul.addr %s305, 512
        %s307 = scalar_lea.vmem [#allocation11], %s306
        %s308 = smul.u32 64, %s24
        %s309 = smul.u32 64, %s24
        %v310 = vld [vmem:[%s260] sm:$0xff]
        %v311 = vld [vmem:[%s260 + $0x8] sm:$0xff]
        %v312 = vld [vmem:[%s260 + $0x10] sm:$0xff]
        %v313 = vld [vmem:[%s260 + $0x18] sm:$0xff]
        %v314 = vld [vmem:[%s260 + $0x20] sm:$0xff]
        %v315 = vld [vmem:[%s260 + $0x28] sm:$0xff]
        %v316 = vld [vmem:[%s260 + $0x30] sm:$0xff]
        %v317 = vld [vmem:[%s260 + $0x38] sm:$0xff]
        %v318 = vld [vmem:[%s260 + $0x40] sm:$0xff]
        %v319 = vld [vmem:[%s260 + $0x48] sm:$0xff]
        %v320 = vld [vmem:[%s260 + $0x50] sm:$0xff]
        %v321 = vld [vmem:[%s260 + $0x58] sm:$0xff]
        %v322 = vld [vmem:[%s260 + $0x60] sm:$0xff]
        %v323 = vld [vmem:[%s260 + $0x68] sm:$0xff]
        %v324 = vld [vmem:[%s260 + $0x70] sm:$0xff]
        %v325 = vld [vmem:[%s260 + $0x78] sm:$0xff]
        %v326 = vld [vmem:[%s260 + $0x80] sm:$0xff]
        %v327 = vld [vmem:[%s260 + $0x88] sm:$0xff]
        %v328 = vld [vmem:[%s260 + $0x90] sm:$0xff]
        %v329 = vld [vmem:[%s260 + $0x98] sm:$0xff]
        %v330 = vld [vmem:[%s260 + $0xa0] sm:$0xff]
        %v331 = vld [vmem:[%s260 + $0xa8] sm:$0xff]
        %v332 = vld [vmem:[%s260 + $0xb0] sm:$0xff]
        %v333 = vld [vmem:[%s260 + $0xb8] sm:$0xff]
        %v334 = vld [vmem:[%s260 + $0xc0] sm:$0xff]
        %v335 = vld [vmem:[%s260 + $0xc8] sm:$0xff]
        %v336 = vld [vmem:[%s260 + $0xd0] sm:$0xff]
        %v337 = vld [vmem:[%s260 + $0xd8] sm:$0xff]
        %v338 = vld [vmem:[%s260 + $0xe0] sm:$0xff]
        %v339 = vld [vmem:[%s260 + $0xe8] sm:$0xff]
        %v340 = vld [vmem:[%s260 + $0xf0] sm:$0xff]
        %v341 = vld [vmem:[%s260 + $0xf8] sm:$0xff]
        %v342 = vld [vmem:[%s260 + $0x100] sm:$0xff]
        %v343 = vld [vmem:[%s260 + $0x108] sm:$0xff]
        %v344 = vld [vmem:[%s260 + $0x110] sm:$0xff]
        %v345 = vld [vmem:[%s260 + $0x118] sm:$0xff]
        %v346 = vld [vmem:[%s260 + $0x120] sm:$0xff]
        %v347 = vld [vmem:[%s260 + $0x128] sm:$0xff]
        %v348 = vld [vmem:[%s260 + $0x130] sm:$0xff]
        %v349 = vld [vmem:[%s260 + $0x138] sm:$0xff]
        %v350 = vld [vmem:[%s260 + $0x140] sm:$0xff]
        %v351 = vld [vmem:[%s260 + $0x148] sm:$0xff]
        %v352 = vld [vmem:[%s260 + $0x150] sm:$0xff]
        %v353 = vld [vmem:[%s260 + $0x158] sm:$0xff]
        %v354 = vld [vmem:[%s260 + $0x160] sm:$0xff]
        %v355 = vld [vmem:[%s260 + $0x168] sm:$0xff]
        %v356 = vld [vmem:[%s260 + $0x170] sm:$0xff]
        %v357 = vld [vmem:[%s260 + $0x178] sm:$0xff]
        %v358 = vld [vmem:[%s260 + $0x180] sm:$0xff]
        %v359 = vld [vmem:[%s260 + $0x188] sm:$0xff]
        %v360 = vld [vmem:[%s260 + $0x190] sm:$0xff]
        %v361 = vld [vmem:[%s260 + $0x198] sm:$0xff]
        %v362 = vld [vmem:[%s260 + $0x1a0] sm:$0xff]
        %v363 = vld [vmem:[%s260 + $0x1a8] sm:$0xff]
        %v364 = vld [vmem:[%s260 + $0x1b0] sm:$0xff]
        %v365 = vld [vmem:[%s260 + $0x1b8] sm:$0xff]
        %v366 = vld [vmem:[%s260 + $0x1c0] sm:$0xff]
        %v367 = vld [vmem:[%s260 + $0x1c8] sm:$0xff]
        %v368 = vld [vmem:[%s260 + $0x1d0] sm:$0xff]
        %v369 = vld [vmem:[%s260 + $0x1d8] sm:$0xff]
        %v370 = vld [vmem:[%s260 + $0x1e0] sm:$0xff]
        %v371 = vld [vmem:[%s260 + $0x1e8] sm:$0xff]
        %v372 = vld [vmem:[%s260 + $0x1f0] sm:$0xff]
        %v373 = vld [vmem:[%s260 + $0x1f8] sm:$0xff]
        %v374 = vld [vmem:[%s260 + $0x200] sm:$0xff]
        %v375 = vld [vmem:[%s260 + $0x208] sm:$0xff]
        %v376 = vld [vmem:[%s260 + $0x210] sm:$0xff]
        %v377 = vld [vmem:[%s260 + $0x218] sm:$0xff]
        %v378 = vld [vmem:[%s260 + $0x220] sm:$0xff]
        %v379 = vld [vmem:[%s260 + $0x228] sm:$0xff]
        %v380 = vld [vmem:[%s260 + $0x230] sm:$0xff]
        %v381 = vld [vmem:[%s260 + $0x238] sm:$0xff]
        %v382 = vld [vmem:[%s260 + $0x240] sm:$0xff]
        %v383 = vld [vmem:[%s260 + $0x248] sm:$0xff]
        %v384 = vld [vmem:[%s260 + $0x250] sm:$0xff]
        %v385 = vld [vmem:[%s260 + $0x258] sm:$0xff]
        %v386 = vld [vmem:[%s260 + $0x260] sm:$0xff]
        %v387 = vld [vmem:[%s260 + $0x268] sm:$0xff]
        %v388 = vld [vmem:[%s260 + $0x270] sm:$0xff]
        %v389 = vld [vmem:[%s260 + $0x278] sm:$0xff]
        %v390 = vld [vmem:[%s260 + $0x280] sm:$0xff]
        %v391 = vld [vmem:[%s260 + $0x288] sm:$0xff]
        %v392 = vld [vmem:[%s260 + $0x290] sm:$0xff]
        %v393 = vld [vmem:[%s260 + $0x298] sm:$0xff]
        %v394 = vld [vmem:[%s260 + $0x2a0] sm:$0xff]
        %v395 = vld [vmem:[%s260 + $0x2a8] sm:$0xff]
        %v396 = vld [vmem:[%s260 + $0x2b0] sm:$0xff]
        %v397 = vld [vmem:[%s260 + $0x2b8] sm:$0xff]
        %v398 = vld [vmem:[%s260 + $0x2c0] sm:$0xff]
        %v399 = vld [vmem:[%s260 + $0x2c8] sm:$0xff]
        %v400 = vld [vmem:[%s260 + $0x2d0] sm:$0xff]
        %v401 = vld [vmem:[%s260 + $0x2d8] sm:$0xff]
        %v402 = vld [vmem:[%s260 + $0x2e0] sm:$0xff]
        %v403 = vld [vmem:[%s260 + $0x2e8] sm:$0xff]
        %v404 = vld [vmem:[%s260 + $0x2f0] sm:$0xff]
        %v405 = vld [vmem:[%s260 + $0x2f8] sm:$0xff]
        %v406 = vld [vmem:[%s260 + $0x300] sm:$0xff]
        %v407 = vld [vmem:[%s260 + $0x308] sm:$0xff]
        %v408 = vld [vmem:[%s260 + $0x310] sm:$0xff]
        %v409 = vld [vmem:[%s260 + $0x318] sm:$0xff]
        %v410 = vld [vmem:[%s260 + $0x320] sm:$0xff]
        %v411 = vld [vmem:[%s260 + $0x328] sm:$0xff]
        %v412 = vld [vmem:[%s260 + $0x330] sm:$0xff]
        %v413 = vld [vmem:[%s260 + $0x338] sm:$0xff]
        %v414 = vld [vmem:[%s260 + $0x340] sm:$0xff]
        %v415 = vld [vmem:[%s260 + $0x348] sm:$0xff]
        %v416 = vld [vmem:[%s260 + $0x350] sm:$0xff]
        %v417 = vld [vmem:[%s260 + $0x358] sm:$0xff]
        %v418 = vld [vmem:[%s260 + $0x360] sm:$0xff]
        %v419 = vld [vmem:[%s260 + $0x368] sm:$0xff]
        %v420 = vld [vmem:[%s260 + $0x370] sm:$0xff]
        %v421 = vld [vmem:[%s260 + $0x378] sm:$0xff]
        %v422 = vld [vmem:[%s260 + $0x380] sm:$0xff]
        %v423 = vld [vmem:[%s260 + $0x388] sm:$0xff]
        %v424 = vld [vmem:[%s260 + $0x390] sm:$0xff]
        %v425 = vld [vmem:[%s260 + $0x398] sm:$0xff]
        %v426 = vld [vmem:[%s260 + $0x3a0] sm:$0xff]
        %v427 = vld [vmem:[%s260 + $0x3a8] sm:$0xff]
        %v428 = vld [vmem:[%s260 + $0x3b0] sm:$0xff]
        %v429 = vld [vmem:[%s260 + $0x3b8] sm:$0xff]
        %v430 = vld [vmem:[%s260 + $0x3c0] sm:$0xff]
        %v431 = vld [vmem:[%s260 + $0x3c8] sm:$0xff]
        %v432 = vld [vmem:[%s260 + $0x3d0] sm:$0xff]
        %v433 = vld [vmem:[%s260 + $0x3d8] sm:$0xff]
        %v434 = vld [vmem:[%s260 + $0x3e0] sm:$0xff]
        %v435 = vld [vmem:[%s260 + $0x3e8] sm:$0xff]
        %v436 = vld [vmem:[%s260 + $0x3f0] sm:$0xff]
        %v437 = vld [vmem:[%s260 + $0x3f8] sm:$0xff]
        %v438 = vpack.c.bf16 %v312, %v310
        %v439 = vpack.c.bf16 %v313, %v311
        %v440 = vpack.c.bf16 %v316, %v314
        %v441 = vpack.c.bf16 %v317, %v315
        %v442 = vpack.c.bf16 %v320, %v318
        %v443 = vpack.c.bf16 %v321, %v319
        %v444 = vpack.c.bf16 %v324, %v322
        %v445 = vpack.c.bf16 %v325, %v323
        %v446 = vpack.c.bf16 %v328, %v326
        %v447 = vpack.c.bf16 %v329, %v327
        %v448 = vpack.c.bf16 %v332, %v330
        %v449 = vpack.c.bf16 %v333, %v331
        %v450 = vpack.c.bf16 %v336, %v334
        %v451 = vpack.c.bf16 %v337, %v335
        %v452 = vpack.c.bf16 %v340, %v338
        %v453 = vpack.c.bf16 %v341, %v339
        %v454 = vpack.c.bf16 %v344, %v342
        %v455 = vpack.c.bf16 %v345, %v343
        %v456 = vpack.c.bf16 %v348, %v346
        %v457 = vpack.c.bf16 %v349, %v347
        %v458 = vpack.c.bf16 %v352, %v350
        %v459 = vpack.c.bf16 %v353, %v351
        %v460 = vpack.c.bf16 %v356, %v354
        %v461 = vpack.c.bf16 %v357, %v355
        %v462 = vpack.c.bf16 %v360, %v358
        %v463 = vpack.c.bf16 %v361, %v359
        %v464 = vpack.c.bf16 %v364, %v362
        %v465 = vpack.c.bf16 %v365, %v363
        %v466 = vpack.c.bf16 %v368, %v366
        %v467 = vpack.c.bf16 %v369, %v367
        %v468 = vpack.c.bf16 %v372, %v370
        %v469 = vpack.c.bf16 %v373, %v371
        %v470 = vpack.c.bf16 %v376, %v374
        %v471 = vpack.c.bf16 %v377, %v375
        %v472 = vpack.c.bf16 %v380, %v378
        %v473 = vpack.c.bf16 %v381, %v379
        %v474 = vpack.c.bf16 %v384, %v382
        %v475 = vpack.c.bf16 %v385, %v383
        %v476 = vpack.c.bf16 %v388, %v386
        %v477 = vpack.c.bf16 %v389, %v387
        %v478 = vpack.c.bf16 %v392, %v390
        %v479 = vpack.c.bf16 %v393, %v391
        %v480 = vpack.c.bf16 %v396, %v394
        %v481 = vpack.c.bf16 %v397, %v395
        %v482 = vpack.c.bf16 %v400, %v398
        %v483 = vpack.c.bf16 %v401, %v399
        %v484 = vpack.c.bf16 %v404, %v402
        %v485 = vpack.c.bf16 %v405, %v403
        %v486 = vpack.c.bf16 %v408, %v406
        %v487 = vpack.c.bf16 %v409, %v407
        %v488 = vpack.c.bf16 %v412, %v410
        %v489 = vpack.c.bf16 %v413, %v411
        %v490 = vpack.c.bf16 %v416, %v414
        %v491 = vpack.c.bf16 %v417, %v415
        %v492 = vpack.c.bf16 %v420, %v418
        %v493 = vpack.c.bf16 %v421, %v419
        %v494 = vpack.c.bf16 %v424, %v422
        %v495 = vpack.c.bf16 %v425, %v423
        %v496 = vpack.c.bf16 %v428, %v426
        %v497 = vpack.c.bf16 %v429, %v427
        %v498 = vpack.c.bf16 %v432, %v430
        %v499 = vpack.c.bf16 %v433, %v431
        %v500 = vpack.c.bf16 %v436, %v434
        %v501 = vpack.c.bf16 %v437, %v435
        %v502 = vld [vmem:[#allocation5] sm:$0xff]
        %v503 = vld [vmem:[#allocation5 + $0x8] sm:$0xff]
        %v504 = vld [vmem:[#allocation5 + $0x10] sm:$0xff]
        %v505 = vld [vmem:[#allocation5 + $0x18] sm:$0xff]
        %v506 = vld [vmem:[#allocation5 + $0x20] sm:$0xff]
        %v507 = vld [vmem:[#allocation5 + $0x28] sm:$0xff]
        %v508 = vld [vmem:[#allocation5 + $0x30] sm:$0xff]
        %v509 = vld [vmem:[#allocation5 + $0x38] sm:$0xff]
        %v510 = vld [vmem:[#allocation5 + $0x40] sm:$0xff]
        %v511 = vld [vmem:[#allocation5 + $0x48] sm:$0xff]
        %v512 = vld [vmem:[#allocation5 + $0x50] sm:$0xff]
        %v513 = vld [vmem:[#allocation5 + $0x58] sm:$0xff]
        %v514 = vld [vmem:[#allocation5 + $0x60] sm:$0xff]
        %v515 = vld [vmem:[#allocation5 + $0x68] sm:$0xff]
        %v516 = vld [vmem:[#allocation5 + $0x70] sm:$0xff]
        %v517 = vld [vmem:[#allocation5 + $0x78] sm:$0xff]
        %v518 = vld [vmem:[#allocation5 + $0x80] sm:$0xff]
        %v519 = vld [vmem:[#allocation5 + $0x88] sm:$0xff]
        %v520 = vld [vmem:[#allocation5 + $0x90] sm:$0xff]
        %v521 = vld [vmem:[#allocation5 + $0x98] sm:$0xff]
        %v522 = vld [vmem:[#allocation5 + $0xa0] sm:$0xff]
        %v523 = vld [vmem:[#allocation5 + $0xa8] sm:$0xff]
        %v524 = vld [vmem:[#allocation5 + $0xb0] sm:$0xff]
        %v525 = vld [vmem:[#allocation5 + $0xb8] sm:$0xff]
        %v526 = vld [vmem:[#allocation5 + $0xc0] sm:$0xff]
        %v527 = vld [vmem:[#allocation5 + $0xc8] sm:$0xff]
        %v528 = vld [vmem:[#allocation5 + $0xd0] sm:$0xff]
        %v529 = vld [vmem:[#allocation5 + $0xd8] sm:$0xff]
        %v530 = vld [vmem:[#allocation5 + $0xe0] sm:$0xff]
        %v531 = vld [vmem:[#allocation5 + $0xe8] sm:$0xff]
        %v532 = vld [vmem:[#allocation5 + $0xf0] sm:$0xff]
        %v533 = vld [vmem:[#allocation5 + $0xf8] sm:$0xff]
        %v534 = vld [vmem:[#allocation5 + $0x100] sm:$0xff]
        %v535 = vld [vmem:[#allocation5 + $0x108] sm:$0xff]
        %v536 = vld [vmem:[#allocation5 + $0x110] sm:$0xff]
        %v537 = vld [vmem:[#allocation5 + $0x118] sm:$0xff]
        %v538 = vld [vmem:[#allocation5 + $0x120] sm:$0xff]
        %v539 = vld [vmem:[#allocation5 + $0x128] sm:$0xff]
        %v540 = vld [vmem:[#allocation5 + $0x130] sm:$0xff]
        %v541 = vld [vmem:[#allocation5 + $0x138] sm:$0xff]
        %v542 = vld [vmem:[#allocation5 + $0x140] sm:$0xff]
        %v543 = vld [vmem:[#allocation5 + $0x148] sm:$0xff]
        %v544 = vld [vmem:[#allocation5 + $0x150] sm:$0xff]
        %v545 = vld [vmem:[#allocation5 + $0x158] sm:$0xff]
        %v546 = vld [vmem:[#allocation5 + $0x160] sm:$0xff]
        %v547 = vld [vmem:[#allocation5 + $0x168] sm:$0xff]
        %v548 = vld [vmem:[#allocation5 + $0x170] sm:$0xff]
        %v549 = vld [vmem:[#allocation5 + $0x178] sm:$0xff]
        %v550 = vld [vmem:[#allocation5 + $0x180] sm:$0xff]
        %v551 = vld [vmem:[#allocation5 + $0x188] sm:$0xff]
        %v552 = vld [vmem:[#allocation5 + $0x190] sm:$0xff]
        %v553 = vld [vmem:[#allocation5 + $0x198] sm:$0xff]
        %v554 = vld [vmem:[#allocation5 + $0x1a0] sm:$0xff]
        %v555 = vld [vmem:[#allocation5 + $0x1a8] sm:$0xff]
        %v556 = vld [vmem:[#allocation5 + $0x1b0] sm:$0xff]
        %v557 = vld [vmem:[#allocation5 + $0x1b8] sm:$0xff]
        %v558 = vld [vmem:[#allocation5 + $0x1c0] sm:$0xff]
        %v559 = vld [vmem:[#allocation5 + $0x1c8] sm:$0xff]
        %v560 = vld [vmem:[#allocation5 + $0x1d0] sm:$0xff]
        %v561 = vld [vmem:[#allocation5 + $0x1d8] sm:$0xff]
        %v562 = vld [vmem:[#allocation5 + $0x1e0] sm:$0xff]
        %v563 = vld [vmem:[#allocation5 + $0x1e8] sm:$0xff]
        %v564 = vld [vmem:[#allocation5 + $0x1f0] sm:$0xff]
        %v565 = vld [vmem:[#allocation5 + $0x1f8] sm:$0xff]
        %v566 = vld [vmem:[#allocation7] sm:$0xf]
        %v568 = vperm.slane %v566, 0
        %v569 = vperm.slane %v566, 1
        %v570 = vperm.slane %v566, 2
        %v571 = vperm.slane %v566, 3
        %v640 = vunpack.c.l.b16 %v502
        %v641 = vunpack.c.h.b16 %v502
        %v642 = vunpack.c.l.b16 %v503
        %v643 = vunpack.c.h.b16 %v503
        %v644 = vunpack.c.l.b16 %v504
        %v645 = vunpack.c.h.b16 %v504
        %v646 = vunpack.c.l.b16 %v505
        %v647 = vunpack.c.h.b16 %v505
        %v648 = vunpack.c.l.b16 %v506
        %v649 = vunpack.c.h.b16 %v506
        %v650 = vunpack.c.l.b16 %v507
        %v651 = vunpack.c.h.b16 %v507
        %v652 = vunpack.c.l.b16 %v508
        %v653 = vunpack.c.h.b16 %v508
        %v654 = vunpack.c.l.b16 %v509
        %v655 = vunpack.c.h.b16 %v509
        %v656 = vunpack.c.l.b16 %v510
        %v657 = vunpack.c.h.b16 %v510
        %v658 = vunpack.c.l.b16 %v511
        %v659 = vunpack.c.h.b16 %v511
        %v660 = vunpack.c.l.b16 %v512
        %v661 = vunpack.c.h.b16 %v512
        %v662 = vunpack.c.l.b16 %v513
        %v663 = vunpack.c.h.b16 %v513
        %v664 = vunpack.c.l.b16 %v514
        %v665 = vunpack.c.h.b16 %v514
        %v666 = vunpack.c.l.b16 %v515
        %v667 = vunpack.c.h.b16 %v515
        %v668 = vunpack.c.l.b16 %v516
        %v669 = vunpack.c.h.b16 %v516
        %v670 = vunpack.c.l.b16 %v517
        %v671 = vunpack.c.h.b16 %v517
        %v672 = vunpack.c.l.b16 %v518
        %v673 = vunpack.c.h.b16 %v518
        %v674 = vunpack.c.l.b16 %v519
        %v675 = vunpack.c.h.b16 %v519
        %v676 = vunpack.c.l.b16 %v520
        %v677 = vunpack.c.h.b16 %v520
        %v678 = vunpack.c.l.b16 %v521
        %v679 = vunpack.c.h.b16 %v521
        %v680 = vunpack.c.l.b16 %v522
        %v681 = vunpack.c.h.b16 %v522
        %v682 = vunpack.c.l.b16 %v523
        %v683 = vunpack.c.h.b16 %v523
        %v684 = vunpack.c.l.b16 %v524
        %v685 = vunpack.c.h.b16 %v524
        %v686 = vunpack.c.l.b16 %v525
        %v687 = vunpack.c.h.b16 %v525
        %v688 = vunpack.c.l.b16 %v526
        %v689 = vunpack.c.h.b16 %v526
        %v690 = vunpack.c.l.b16 %v527
        %v691 = vunpack.c.h.b16 %v527
        %v692 = vunpack.c.l.b16 %v528
        %v693 = vunpack.c.h.b16 %v528
        %v694 = vunpack.c.l.b16 %v529
        %v695 = vunpack.c.h.b16 %v529
        %v696 = vunpack.c.l.b16 %v530
        %v697 = vunpack.c.h.b16 %v530
        %v698 = vunpack.c.l.b16 %v531
        %v699 = vunpack.c.h.b16 %v531
        %v700 = vunpack.c.l.b16 %v532
        %v701 = vunpack.c.h.b16 %v532
        %v702 = vunpack.c.l.b16 %v533
        %v703 = vunpack.c.h.b16 %v533
        %v704 = vunpack.c.l.b16 %v534
        %v705 = vunpack.c.h.b16 %v534
        %v706 = vunpack.c.l.b16 %v535
        %v707 = vunpack.c.h.b16 %v535
        %v708 = vunpack.c.l.b16 %v536
        %v709 = vunpack.c.h.b16 %v536
        %v710 = vunpack.c.l.b16 %v537
        %v711 = vunpack.c.h.b16 %v537
        %v712 = vunpack.c.l.b16 %v538
        %v713 = vunpack.c.h.b16 %v538
        %v714 = vunpack.c.l.b16 %v539
        %v715 = vunpack.c.h.b16 %v539
        %v716 = vunpack.c.l.b16 %v540
        %v717 = vunpack.c.h.b16 %v540
        %v718 = vunpack.c.l.b16 %v541
        %v719 = vunpack.c.h.b16 %v541
        %v720 = vunpack.c.l.b16 %v542
        %v721 = vunpack.c.h.b16 %v542
        %v722 = vunpack.c.l.b16 %v543
        %v723 = vunpack.c.h.b16 %v543
        %v724 = vunpack.c.l.b16 %v544
        %v725 = vunpack.c.h.b16 %v544
        %v726 = vunpack.c.l.b16 %v545
        %v727 = vunpack.c.h.b16 %v545
        %v728 = vunpack.c.l.b16 %v546
        %v729 = vunpack.c.h.b16 %v546
        %v730 = vunpack.c.l.b16 %v547
        %v731 = vunpack.c.h.b16 %v547
        %v732 = vunpack.c.l.b16 %v548
        %v733 = vunpack.c.h.b16 %v548
        %v734 = vunpack.c.l.b16 %v549
        %v735 = vunpack.c.h.b16 %v549
        %v736 = vunpack.c.l.b16 %v550
        %v737 = vunpack.c.h.b16 %v550
        %v738 = vunpack.c.l.b16 %v551
        %v739 = vunpack.c.h.b16 %v551
        %v740 = vunpack.c.l.b16 %v552
        %v741 = vunpack.c.h.b16 %v552
        %v742 = vunpack.c.l.b16 %v553
        %v743 = vunpack.c.h.b16 %v553
        %v744 = vunpack.c.l.b16 %v554
        %v745 = vunpack.c.h.b16 %v554
        %v746 = vunpack.c.l.b16 %v555
        %v747 = vunpack.c.h.b16 %v555
        %v748 = vunpack.c.l.b16 %v556
        %v749 = vunpack.c.h.b16 %v556
        %v750 = vunpack.c.l.b16 %v557
        %v751 = vunpack.c.h.b16 %v557
        %v752 = vunpack.c.l.b16 %v558
        %v753 = vunpack.c.h.b16 %v558
        %v754 = vunpack.c.l.b16 %v559
        %v755 = vunpack.c.h.b16 %v559
        %v756 = vunpack.c.l.b16 %v560
        %v757 = vunpack.c.h.b16 %v560
        %v758 = vunpack.c.l.b16 %v561
        %v759 = vunpack.c.h.b16 %v561
        %v760 = vunpack.c.l.b16 %v562
        %v761 = vunpack.c.h.b16 %v562
        %v762 = vunpack.c.l.b16 %v563
        %v763 = vunpack.c.h.b16 %v563
        %v764 = vunpack.c.l.b16 %v564
        %v765 = vunpack.c.h.b16 %v564
        %v766 = vunpack.c.l.b16 %v565
        %v767 = vunpack.c.h.b16 %v565
        %v768 = vpack.c.b16 %v644, %v640
        %v769 = vpack.c.b16 %v645, %v641
        %v770 = vpack.c.b16 %v646, %v642
        %v771 = vpack.c.b16 %v647, %v643
        %v772 = vpack.c.b16 %v652, %v648
        %v773 = vpack.c.b16 %v653, %v649
        %v774 = vpack.c.b16 %v654, %v650
        %v775 = vpack.c.b16 %v655, %v651
        %v776 = vpack.c.b16 %v660, %v656
        %v777 = vpack.c.b16 %v661, %v657
        %v778 = vpack.c.b16 %v662, %v658
        %v779 = vpack.c.b16 %v663, %v659
        %v780 = vpack.c.b16 %v668, %v664
        %v781 = vpack.c.b16 %v669, %v665
        %v782 = vpack.c.b16 %v670, %v666
        %v783 = vpack.c.b16 %v671, %v667
        %v784 = vpack.c.b16 %v676, %v672
        %v785 = vpack.c.b16 %v677, %v673
        %v786 = vpack.c.b16 %v678, %v674
        %v787 = vpack.c.b16 %v679, %v675
        %v788 = vpack.c.b16 %v684, %v680
        %v789 = vpack.c.b16 %v685, %v681
        %v790 = vpack.c.b16 %v686, %v682
        %v791 = vpack.c.b16 %v687, %v683
        %v792 = vpack.c.b16 %v692, %v688
        %v793 = vpack.c.b16 %v693, %v689
        %v794 = vpack.c.b16 %v694, %v690
        %v795 = vpack.c.b16 %v695, %v691
        %v796 = vpack.c.b16 %v700, %v696
        %v797 = vpack.c.b16 %v701, %v697
        %v798 = vpack.c.b16 %v702, %v698
        %v799 = vpack.c.b16 %v703, %v699
        %v800 = vpack.c.b16 %v708, %v704
        %v801 = vpack.c.b16 %v709, %v705
        %v802 = vpack.c.b16 %v710, %v706
        %v803 = vpack.c.b16 %v711, %v707
        %v804 = vpack.c.b16 %v716, %v712
        %v805 = vpack.c.b16 %v717, %v713
        %v806 = vpack.c.b16 %v718, %v714
        %v807 = vpack.c.b16 %v719, %v715
        %v808 = vpack.c.b16 %v724, %v720
        %v809 = vpack.c.b16 %v725, %v721
        %v810 = vpack.c.b16 %v726, %v722
        %v811 = vpack.c.b16 %v727, %v723
        %v812 = vpack.c.b16 %v732, %v728
        %v813 = vpack.c.b16 %v733, %v729
        %v814 = vpack.c.b16 %v734, %v730
        %v815 = vpack.c.b16 %v735, %v731
        %v816 = vpack.c.b16 %v740, %v736
        %v817 = vpack.c.b16 %v741, %v737
        %v818 = vpack.c.b16 %v742, %v738
        %v819 = vpack.c.b16 %v743, %v739
        %v820 = vpack.c.b16 %v748, %v744
        %v821 = vpack.c.b16 %v749, %v745
        %v822 = vpack.c.b16 %v750, %v746
        %v823 = vpack.c.b16 %v751, %v747
        %v824 = vpack.c.b16 %v756, %v752
        %v825 = vpack.c.b16 %v757, %v753
        %v826 = vpack.c.b16 %v758, %v754
        %v827 = vpack.c.b16 %v759, %v755
        %v828 = vpack.c.b16 %v764, %v760
        %v829 = vpack.c.b16 %v765, %v761
        %v830 = vpack.c.b16 %v766, %v762
        %v831 = vpack.c.b16 %v767, %v763
        %896 = vmatpush.bf16.msra.mxu0 %v796
        %897 = vmatpush.bf16.msra.mxu0 %v792
        %898 = vmatpush.bf16.msra.mxu0 %v788
        %899 = vmatpush.bf16.msra.mxu0 %v784
        %900 = vmatpush.bf16.msra.mxu0 %v780
        %901 = vmatpush.bf16.msra.mxu0 %v776
        %902 = vmatpush.bf16.msra.mxu0 %v772
        %903 = vmatpush.bf16.msra.mxu0 %v768
        %904 = vmatmul.bf16.gmra.mxu0 %v438
        %v905 = vpop.f32.mrf.mxu0
        %v906 = vadd.f32 %v568, %v905
        %v907 = vpop.f32.mrf.mxu0
        %v908 = vadd.f32 %v568, %v907
        %909 = vmatmul.bf16.gmra.mxu0 %v440
        %v910 = vpop.f32.mrf.mxu0
        %v911 = vadd.f32 %v568, %v910
        %v912 = vpop.f32.mrf.mxu0
        %v913 = vadd.f32 %v568, %v912
        %914 = vmatmul.bf16.gmra.mxu0 %v442
        %v915 = vpop.f32.mrf.mxu0
        %v916 = vadd.f32 %v568, %v915
        %v917 = vpop.f32.mrf.mxu0
        %v918 = vadd.f32 %v568, %v917
        %919 = vmatmul.bf16.gmra.mxu0 %v444
        %v920 = vpop.f32.mrf.mxu0
        %v921 = vadd.f32 %v568, %v920
        %v922 = vpop.f32.mrf.mxu0
        %v923 = vadd.f32 %v568, %v922
        %924 = vmatmul.bf16.gmra.mxu0 %v446
        %v925 = vpop.f32.mrf.mxu0
        %v926 = vadd.f32 %v568, %v925
        %v927 = vpop.f32.mrf.mxu0
        %v928 = vadd.f32 %v568, %v927
        %929 = vmatmul.bf16.gmra.mxu0 %v448
        %v930 = vpop.f32.mrf.mxu0
        %v931 = vadd.f32 %v568, %v930
        %v932 = vpop.f32.mrf.mxu0
        %v933 = vadd.f32 %v568, %v932
        %934 = vmatmul.bf16.gmra.mxu0 %v450
        %v935 = vpop.f32.mrf.mxu0
        %v936 = vadd.f32 %v568, %v935
        %v937 = vpop.f32.mrf.mxu0
        %v938 = vadd.f32 %v568, %v937
        %939 = vmatmul.bf16.gmra.mxu0 %v452
        %v940 = vpop.f32.mrf.mxu0
        %v941 = vadd.f32 %v568, %v940
        %v942 = vpop.f32.mrf.mxu0
        %v943 = vadd.f32 %v568, %v942
        %944 = vmatmul.bf16.gmra.mxu0 %v454
        %v945 = vpop.f32.mrf.mxu0
        %v946 = vadd.f32 %v568, %v945
        %v947 = vpop.f32.mrf.mxu0
        %v948 = vadd.f32 %v568, %v947
        %949 = vmatmul.bf16.gmra.mxu0 %v456
        %v950 = vpop.f32.mrf.mxu0
        %v951 = vadd.f32 %v568, %v950
        %v952 = vpop.f32.mrf.mxu0
        %v953 = vadd.f32 %v568, %v952
        %954 = vmatmul.bf16.gmra.mxu0 %v458
        %v955 = vpop.f32.mrf.mxu0
        %v956 = vadd.f32 %v568, %v955
        %v957 = vpop.f32.mrf.mxu0
        %v958 = vadd.f32 %v568, %v957
        %959 = vmatmul.bf16.gmra.mxu0 %v460
        %v960 = vpop.f32.mrf.mxu0
        %v961 = vadd.f32 %v568, %v960
        %v962 = vpop.f32.mrf.mxu0
        %v963 = vadd.f32 %v568, %v962
        %964 = vmatmul.bf16.gmra.mxu0 %v462
        %v965 = vpop.f32.mrf.mxu0
        %v966 = vadd.f32 %v568, %v965
        %v967 = vpop.f32.mrf.mxu0
        %v968 = vadd.f32 %v568, %v967
        %969 = vmatmul.bf16.gmra.mxu0 %v464
        %v970 = vpop.f32.mrf.mxu0
        %v971 = vadd.f32 %v568, %v970
        %v972 = vpop.f32.mrf.mxu0
        %v973 = vadd.f32 %v568, %v972
        %974 = vmatmul.bf16.gmra.mxu0 %v466
        %v975 = vpop.f32.mrf.mxu0
        %v976 = vadd.f32 %v568, %v975
        %v977 = vpop.f32.mrf.mxu0
        %v978 = vadd.f32 %v568, %v977
        %979 = vmatmul.bf16.gmra.mxu0 %v468
        %v980 = vpop.f32.mrf.mxu0
        %v981 = vadd.f32 %v568, %v980
        %v982 = vpop.f32.mrf.mxu0
        %v983 = vadd.f32 %v568, %v982
        %984 = vmatmul.bf16.gmra.mxu0 %v470
        %v985 = vpop.f32.mrf.mxu0
        %v986 = vadd.f32 %v568, %v985
        %v987 = vpop.f32.mrf.mxu0
        %v988 = vadd.f32 %v568, %v987
        %989 = vmatmul.bf16.gmra.mxu0 %v472
        %v990 = vpop.f32.mrf.mxu0
        %v991 = vadd.f32 %v568, %v990
        %v992 = vpop.f32.mrf.mxu0
        %v993 = vadd.f32 %v568, %v992
        %994 = vmatmul.bf16.gmra.mxu0 %v474
        %v995 = vpop.f32.mrf.mxu0
        %v996 = vadd.f32 %v568, %v995
        %v997 = vpop.f32.mrf.mxu0
        %v998 = vadd.f32 %v568, %v997
        %999 = vmatmul.bf16.gmra.mxu0 %v476
        %v1000 = vpop.f32.mrf.mxu0
        %v1001 = vadd.f32 %v568, %v1000
        %v1002 = vpop.f32.mrf.mxu0
        %v1003 = vadd.f32 %v568, %v1002
        %1004 = vmatmul.bf16.gmra.mxu0 %v478
        %v1005 = vpop.f32.mrf.mxu0
        %v1006 = vadd.f32 %v568, %v1005
        %v1007 = vpop.f32.mrf.mxu0
        %v1008 = vadd.f32 %v568, %v1007
        %1009 = vmatmul.bf16.gmra.mxu0 %v480
        %v1010 = vpop.f32.mrf.mxu0
        %v1011 = vadd.f32 %v568, %v1010
        %v1012 = vpop.f32.mrf.mxu0
        %v1013 = vadd.f32 %v568, %v1012
        %1014 = vmatmul.bf16.gmra.mxu0 %v482
        %v1015 = vpop.f32.mrf.mxu0
        %v1016 = vadd.f32 %v568, %v1015
        %v1017 = vpop.f32.mrf.mxu0
        %v1018 = vadd.f32 %v568, %v1017
        %1019 = vmatmul.bf16.gmra.mxu0 %v484
        %v1020 = vpop.f32.mrf.mxu0
        %v1021 = vadd.f32 %v568, %v1020
        %v1022 = vpop.f32.mrf.mxu0
        %v1023 = vadd.f32 %v568, %v1022
        %1024 = vmatmul.bf16.gmra.mxu0 %v486
        %v1025 = vpop.f32.mrf.mxu0
        %v1026 = vadd.f32 %v568, %v1025
        %v1027 = vpop.f32.mrf.mxu0
        %v1028 = vadd.f32 %v568, %v1027
        %1029 = vmatmul.bf16.gmra.mxu0 %v488
        %v1030 = vpop.f32.mrf.mxu0
        %v1031 = vadd.f32 %v568, %v1030
        %v1032 = vpop.f32.mrf.mxu0
        %v1033 = vadd.f32 %v568, %v1032
        %1034 = vmatmul.bf16.gmra.mxu0 %v490
        %v1035 = vpop.f32.mrf.mxu0
        %v1036 = vadd.f32 %v568, %v1035
        %v1037 = vpop.f32.mrf.mxu0
        %v1038 = vadd.f32 %v568, %v1037
        %1039 = vmatmul.bf16.gmra.mxu0 %v492
        %v1040 = vpop.f32.mrf.mxu0
        %v1041 = vadd.f32 %v568, %v1040
        %v1042 = vpop.f32.mrf.mxu0
        %v1043 = vadd.f32 %v568, %v1042
        %1044 = vmatmul.bf16.gmra.mxu0 %v494
        %v1045 = vpop.f32.mrf.mxu0
        %v1046 = vadd.f32 %v568, %v1045
        %v1047 = vpop.f32.mrf.mxu0
        %v1048 = vadd.f32 %v568, %v1047
        %1049 = vmatmul.bf16.gmra.mxu0 %v496
        %v1050 = vpop.f32.mrf.mxu0
        %v1051 = vadd.f32 %v568, %v1050
        %v1052 = vpop.f32.mrf.mxu0
        %v1053 = vadd.f32 %v568, %v1052
        %1054 = vmatmul.bf16.gmra.mxu0 %v498
        %v1055 = vpop.f32.mrf.mxu0
        %v1056 = vadd.f32 %v568, %v1055
        %v1057 = vpop.f32.mrf.mxu0
        %v1058 = vadd.f32 %v568, %v1057
        %1059 = vmatmul.bf16.gmra.mxu0 %v500
        %v1060 = vpop.f32.mrf.mxu0
        %v1061 = vadd.f32 %v568, %v1060
        %v1062 = vpop.f32.mrf.mxu0
        %v1063 = vadd.f32 %v568, %v1062
        %1064 = vdwg.mxu0
        %1065 = vmatpush.bf16.msra.mxu0 %v828
        %1066 = vmatpush.bf16.msra.mxu0 %v824
        %1067 = vmatpush.bf16.msra.mxu0 %v820
        %1068 = vmatpush.bf16.msra.mxu0 %v816
        %1069 = vmatpush.bf16.msra.mxu0 %v812
        %1070 = vmatpush.bf16.msra.mxu0 %v808
        %1071 = vmatpush.bf16.msra.mxu0 %v804
        %1072 = vmatpush.bf16.msra.mxu0 %v800
        %1073 = vmatmul.bf16.gmra.mxu0 %v439
        %v1074 = vpop.f32.mrf.mxu0
        %v1075 = vadd.f32 %v906, %v1074
        %v1076 = vpop.f32.mrf.mxu0
        %v1077 = vadd.f32 %v908, %v1076
        %1078 = vmatmul.bf16.gmra.mxu0 %v441
        %v1079 = vpop.f32.mrf.mxu0
        %v1080 = vadd.f32 %v911, %v1079
        %v1081 = vpop.f32.mrf.mxu0
        %v1082 = vadd.f32 %v913, %v1081
        %1083 = vmatmul.bf16.gmra.mxu0 %v443
        %v1084 = vpop.f32.mrf.mxu0
        %v1085 = vadd.f32 %v916, %v1084
        %v1086 = vpop.f32.mrf.mxu0
        %v1087 = vadd.f32 %v918, %v1086
        %1088 = vmatmul.bf16.gmra.mxu0 %v445
        %v1089 = vpop.f32.mrf.mxu0
        %v1090 = vadd.f32 %v921, %v1089
        %v1091 = vpop.f32.mrf.mxu0
        %v1092 = vadd.f32 %v923, %v1091
        %1093 = vmatmul.bf16.gmra.mxu0 %v447
        %v1094 = vpop.f32.mrf.mxu0
        %v1095 = vadd.f32 %v926, %v1094
        %v1096 = vpop.f32.mrf.mxu0
        %v1097 = vadd.f32 %v928, %v1096
        %1098 = vmatmul.bf16.gmra.mxu0 %v449
        %v1099 = vpop.f32.mrf.mxu0
        %v1100 = vadd.f32 %v931, %v1099
        %v1101 = vpop.f32.mrf.mxu0
        %v1102 = vadd.f32 %v933, %v1101
        %1103 = vmatmul.bf16.gmra.mxu0 %v451
        %v1104 = vpop.f32.mrf.mxu0
        %v1105 = vadd.f32 %v936, %v1104
        %v1106 = vpop.f32.mrf.mxu0
        %v1107 = vadd.f32 %v938, %v1106
        %1108 = vmatmul.bf16.gmra.mxu0 %v453
        %v1109 = vpop.f32.mrf.mxu0
        %v1110 = vadd.f32 %v941, %v1109
        %v1111 = vpop.f32.mrf.mxu0
        %v1112 = vadd.f32 %v943, %v1111
        %1113 = vmatmul.bf16.gmra.mxu0 %v455
        %v1114 = vpop.f32.mrf.mxu0
        %v1115 = vadd.f32 %v946, %v1114
        %v1116 = vpop.f32.mrf.mxu0
        %v1117 = vadd.f32 %v948, %v1116
        %1118 = vmatmul.bf16.gmra.mxu0 %v457
        %v1119 = vpop.f32.mrf.mxu0
        %v1120 = vadd.f32 %v951, %v1119
        %v1121 = vpop.f32.mrf.mxu0
        %v1122 = vadd.f32 %v953, %v1121
        %1123 = vmatmul.bf16.gmra.mxu0 %v459
        %v1124 = vpop.f32.mrf.mxu0
        %v1125 = vadd.f32 %v956, %v1124
        %v1126 = vpop.f32.mrf.mxu0
        %v1127 = vadd.f32 %v958, %v1126
        %1128 = vmatmul.bf16.gmra.mxu0 %v461
        %v1129 = vpop.f32.mrf.mxu0
        %v1130 = vadd.f32 %v961, %v1129
        %v1131 = vpop.f32.mrf.mxu0
        %v1132 = vadd.f32 %v963, %v1131
        %1133 = vmatmul.bf16.gmra.mxu0 %v463
        %v1134 = vpop.f32.mrf.mxu0
        %v1135 = vadd.f32 %v966, %v1134
        %v1136 = vpop.f32.mrf.mxu0
        %v1137 = vadd.f32 %v968, %v1136
        %1138 = vmatmul.bf16.gmra.mxu0 %v465
        %v1139 = vpop.f32.mrf.mxu0
        %v1140 = vadd.f32 %v971, %v1139
        %v1141 = vpop.f32.mrf.mxu0
        %v1142 = vadd.f32 %v973, %v1141
        %1143 = vmatmul.bf16.gmra.mxu0 %v467
        %v1144 = vpop.f32.mrf.mxu0
        %v1145 = vadd.f32 %v976, %v1144
        %v1146 = vpop.f32.mrf.mxu0
        %v1147 = vadd.f32 %v978, %v1146
        %1148 = vmatmul.bf16.gmra.mxu0 %v469
        %v1149 = vpop.f32.mrf.mxu0
        %v1150 = vadd.f32 %v981, %v1149
        %v1151 = vpop.f32.mrf.mxu0
        %v1152 = vadd.f32 %v983, %v1151
        %1153 = vmatmul.bf16.gmra.mxu0 %v471
        %v1154 = vpop.f32.mrf.mxu0
        %v1155 = vadd.f32 %v986, %v1154
        %v1156 = vpop.f32.mrf.mxu0
        %v1157 = vadd.f32 %v988, %v1156
        %1158 = vmatmul.bf16.gmra.mxu0 %v473
        %v1159 = vpop.f32.mrf.mxu0
        %v1160 = vadd.f32 %v991, %v1159
        %v1161 = vpop.f32.mrf.mxu0
        %v1162 = vadd.f32 %v993, %v1161
        %1163 = vmatmul.bf16.gmra.mxu0 %v475
        %v1164 = vpop.f32.mrf.mxu0
        %v1165 = vadd.f32 %v996, %v1164
        %v1166 = vpop.f32.mrf.mxu0
        %v1167 = vadd.f32 %v998, %v1166
        %1168 = vmatmul.bf16.gmra.mxu0 %v477
        %v1169 = vpop.f32.mrf.mxu0
        %v1170 = vadd.f32 %v1001, %v1169
        %v1171 = vpop.f32.mrf.mxu0
        %v1172 = vadd.f32 %v1003, %v1171
        %1173 = vmatmul.bf16.gmra.mxu0 %v479
        %v1174 = vpop.f32.mrf.mxu0
        %v1175 = vadd.f32 %v1006, %v1174
        %v1176 = vpop.f32.mrf.mxu0
        %v1177 = vadd.f32 %v1008, %v1176
        %1178 = vmatmul.bf16.gmra.mxu0 %v481
        %v1179 = vpop.f32.mrf.mxu0
        %v1180 = vadd.f32 %v1011, %v1179
        %v1181 = vpop.f32.mrf.mxu0
        %v1182 = vadd.f32 %v1013, %v1181
        %1183 = vmatmul.bf16.gmra.mxu0 %v483
        %v1184 = vpop.f32.mrf.mxu0
        %v1185 = vadd.f32 %v1016, %v1184
        %v1186 = vpop.f32.mrf.mxu0
        %v1187 = vadd.f32 %v1018, %v1186
        %1188 = vmatmul.bf16.gmra.mxu0 %v485
        %v1189 = vpop.f32.mrf.mxu0
        %v1190 = vadd.f32 %v1021, %v1189
        %v1191 = vpop.f32.mrf.mxu0
        %v1192 = vadd.f32 %v1023, %v1191
        %1193 = vmatmul.bf16.gmra.mxu0 %v487
        %v1194 = vpop.f32.mrf.mxu0
        %v1195 = vadd.f32 %v1026, %v1194
        %v1196 = vpop.f32.mrf.mxu0
        %v1197 = vadd.f32 %v1028, %v1196
        %1198 = vmatmul.bf16.gmra.mxu0 %v489
        %v1199 = vpop.f32.mrf.mxu0
        %v1200 = vadd.f32 %v1031, %v1199
        %v1201 = vpop.f32.mrf.mxu0
        %v1202 = vadd.f32 %v1033, %v1201
        %1203 = vmatmul.bf16.gmra.mxu0 %v491
        %v1204 = vpop.f32.mrf.mxu0
        %v1205 = vadd.f32 %v1036, %v1204
        %v1206 = vpop.f32.mrf.mxu0
        %v1207 = vadd.f32 %v1038, %v1206
        %1208 = vmatmul.bf16.gmra.mxu0 %v493
        %v1209 = vpop.f32.mrf.mxu0
        %v1210 = vadd.f32 %v1041, %v1209
        %v1211 = vpop.f32.mrf.mxu0
        %v1212 = vadd.f32 %v1043, %v1211
        %1213 = vmatmul.bf16.gmra.mxu0 %v495
        %v1214 = vpop.f32.mrf.mxu0
        %v1215 = vadd.f32 %v1046, %v1214
        %v1216 = vpop.f32.mrf.mxu0
        %v1217 = vadd.f32 %v1048, %v1216
        %1218 = vmatmul.bf16.gmra.mxu0 %v497
        %v1219 = vpop.f32.mrf.mxu0
        %v1220 = vadd.f32 %v1051, %v1219
        %v1221 = vpop.f32.mrf.mxu0
        %v1222 = vadd.f32 %v1053, %v1221
        %1223 = vmatmul.bf16.gmra.mxu0 %v499
        %v1224 = vpop.f32.mrf.mxu0
        %v1225 = vadd.f32 %v1056, %v1224
        %v1226 = vpop.f32.mrf.mxu0
        %v1227 = vadd.f32 %v1058, %v1226
        %1228 = vmatmul.bf16.gmra.mxu0 %v501
        %v1229 = vpop.f32.mrf.mxu0
        %v1230 = vadd.f32 %v1061, %v1229
        %v1231 = vpop.f32.mrf.mxu0
        %v1232 = vadd.f32 %v1063, %v1231
        %1233 = vdwg.mxu0
        %1234 = vmatpush.bf16.msra.mxu0 %v797
        %1235 = vmatpush.bf16.msra.mxu0 %v793
        %1236 = vmatpush.bf16.msra.mxu0 %v789
        %1237 = vmatpush.bf16.msra.mxu0 %v785
        %1238 = vmatpush.bf16.msra.mxu0 %v781
        %1239 = vmatpush.bf16.msra.mxu0 %v777
        %1240 = vmatpush.bf16.msra.mxu0 %v773
        %1241 = vmatpush.bf16.msra.mxu0 %v769
        %1242 = vmatmul.bf16.gmra.mxu0 %v438
        %v1243 = vpop.f32.mrf.mxu0
        %v1244 = vadd.f32 %v569, %v1243
        %v1245 = vpop.f32.mrf.mxu0
        %v1246 = vadd.f32 %v569, %v1245
        %1247 = vmatmul.bf16.gmra.mxu0 %v440
        %v1248 = vpop.f32.mrf.mxu0
        %v1249 = vadd.f32 %v569, %v1248
        %v1250 = vpop.f32.mrf.mxu0
        %v1251 = vadd.f32 %v569, %v1250
        %1252 = vmatmul.bf16.gmra.mxu0 %v442
        %v1253 = vpop.f32.mrf.mxu0
        %v1254 = vadd.f32 %v569, %v1253
        %v1255 = vpop.f32.mrf.mxu0
        %v1256 = vadd.f32 %v569, %v1255
        %1257 = vmatmul.bf16.gmra.mxu0 %v444
        %v1258 = vpop.f32.mrf.mxu0
        %v1259 = vadd.f32 %v569, %v1258
        %v1260 = vpop.f32.mrf.mxu0
        %v1261 = vadd.f32 %v569, %v1260
        %1262 = vmatmul.bf16.gmra.mxu0 %v446
        %v1263 = vpop.f32.mrf.mxu0
        %v1264 = vadd.f32 %v569, %v1263
        %v1265 = vpop.f32.mrf.mxu0
        %v1266 = vadd.f32 %v569, %v1265
        %1267 = vmatmul.bf16.gmra.mxu0 %v448
        %v1268 = vpop.f32.mrf.mxu0
        %v1269 = vadd.f32 %v569, %v1268
        %v1270 = vpop.f32.mrf.mxu0
        %v1271 = vadd.f32 %v569, %v1270
        %1272 = vmatmul.bf16.gmra.mxu0 %v450
        %v1273 = vpop.f32.mrf.mxu0
        %v1274 = vadd.f32 %v569, %v1273
        %v1275 = vpop.f32.mrf.mxu0
        %v1276 = vadd.f32 %v569, %v1275
        %1277 = vmatmul.bf16.gmra.mxu0 %v452
        %v1278 = vpop.f32.mrf.mxu0
        %v1279 = vadd.f32 %v569, %v1278
        %v1280 = vpop.f32.mrf.mxu0
        %v1281 = vadd.f32 %v569, %v1280
        %1282 = vmatmul.bf16.gmra.mxu0 %v454
        %v1283 = vpop.f32.mrf.mxu0
        %v1284 = vadd.f32 %v569, %v1283
        %v1285 = vpop.f32.mrf.mxu0
        %v1286 = vadd.f32 %v569, %v1285
        %1287 = vmatmul.bf16.gmra.mxu0 %v456
        %v1288 = vpop.f32.mrf.mxu0
        %v1289 = vadd.f32 %v569, %v1288
        %v1290 = vpop.f32.mrf.mxu0
        %v1291 = vadd.f32 %v569, %v1290
        %1292 = vmatmul.bf16.gmra.mxu0 %v458
        %v1293 = vpop.f32.mrf.mxu0
        %v1294 = vadd.f32 %v569, %v1293
        %v1295 = vpop.f32.mrf.mxu0
        %v1296 = vadd.f32 %v569, %v1295
        %1297 = vmatmul.bf16.gmra.mxu0 %v460
        %v1298 = vpop.f32.mrf.mxu0
        %v1299 = vadd.f32 %v569, %v1298
        %v1300 = vpop.f32.mrf.mxu0
        %v1301 = vadd.f32 %v569, %v1300
        %1302 = vmatmul.bf16.gmra.mxu0 %v462
        %v1303 = vpop.f32.mrf.mxu0
        %v1304 = vadd.f32 %v569, %v1303
        %v1305 = vpop.f32.mrf.mxu0
        %v1306 = vadd.f32 %v569, %v1305
        %1307 = vmatmul.bf16.gmra.mxu0 %v464
        %v1308 = vpop.f32.mrf.mxu0
        %v1309 = vadd.f32 %v569, %v1308
        %v1310 = vpop.f32.mrf.mxu0
        %v1311 = vadd.f32 %v569, %v1310
        %1312 = vmatmul.bf16.gmra.mxu0 %v466
        %v1313 = vpop.f32.mrf.mxu0
        %v1314 = vadd.f32 %v569, %v1313
        %v1315 = vpop.f32.mrf.mxu0
        %v1316 = vadd.f32 %v569, %v1315
        %1317 = vmatmul.bf16.gmra.mxu0 %v468
        %v1318 = vpop.f32.mrf.mxu0
        %v1319 = vadd.f32 %v569, %v1318
        %v1320 = vpop.f32.mrf.mxu0
        %v1321 = vadd.f32 %v569, %v1320
        %1322 = vmatmul.bf16.gmra.mxu0 %v470
        %v1323 = vpop.f32.mrf.mxu0
        %v1324 = vadd.f32 %v569, %v1323
        %v1325 = vpop.f32.mrf.mxu0
        %v1326 = vadd.f32 %v569, %v1325
        %1327 = vmatmul.bf16.gmra.mxu0 %v472
        %v1328 = vpop.f32.mrf.mxu0
        %v1329 = vadd.f32 %v569, %v1328
        %v1330 = vpop.f32.mrf.mxu0
        %v1331 = vadd.f32 %v569, %v1330
        %1332 = vmatmul.bf16.gmra.mxu0 %v474
        %v1333 = vpop.f32.mrf.mxu0
        %v1334 = vadd.f32 %v569, %v1333
        %v1335 = vpop.f32.mrf.mxu0
        %v1336 = vadd.f32 %v569, %v1335
        %1337 = vmatmul.bf16.gmra.mxu0 %v476
        %v1338 = vpop.f32.mrf.mxu0
        %v1339 = vadd.f32 %v569, %v1338
        %v1340 = vpop.f32.mrf.mxu0
        %v1341 = vadd.f32 %v569, %v1340
        %1342 = vmatmul.bf16.gmra.mxu0 %v478
        %v1343 = vpop.f32.mrf.mxu0
        %v1344 = vadd.f32 %v569, %v1343
        %v1345 = vpop.f32.mrf.mxu0
        %v1346 = vadd.f32 %v569, %v1345
        %1347 = vmatmul.bf16.gmra.mxu0 %v480
        %v1348 = vpop.f32.mrf.mxu0
        %v1349 = vadd.f32 %v569, %v1348
        %v1350 = vpop.f32.mrf.mxu0
        %v1351 = vadd.f32 %v569, %v1350
        %1352 = vmatmul.bf16.gmra.mxu0 %v482
        %v1353 = vpop.f32.mrf.mxu0
        %v1354 = vadd.f32 %v569, %v1353
        %v1355 = vpop.f32.mrf.mxu0
        %v1356 = vadd.f32 %v569, %v1355
        %1357 = vmatmul.bf16.gmra.mxu0 %v484
        %v1358 = vpop.f32.mrf.mxu0
        %v1359 = vadd.f32 %v569, %v1358
        %v1360 = vpop.f32.mrf.mxu0
        %v1361 = vadd.f32 %v569, %v1360
        %1362 = vmatmul.bf16.gmra.mxu0 %v486
        %v1363 = vpop.f32.mrf.mxu0
        %v1364 = vadd.f32 %v569, %v1363
        %v1365 = vpop.f32.mrf.mxu0
        %v1366 = vadd.f32 %v569, %v1365
        %1367 = vmatmul.bf16.gmra.mxu0 %v488
        %v1368 = vpop.f32.mrf.mxu0
        %v1369 = vadd.f32 %v569, %v1368
        %v1370 = vpop.f32.mrf.mxu0
        %v1371 = vadd.f32 %v569, %v1370
        %1372 = vmatmul.bf16.gmra.mxu0 %v490
        %v1373 = vpop.f32.mrf.mxu0
        %v1374 = vadd.f32 %v569, %v1373
        %v1375 = vpop.f32.mrf.mxu0
        %v1376 = vadd.f32 %v569, %v1375
        %1377 = vmatmul.bf16.gmra.mxu0 %v492
        %v1378 = vpop.f32.mrf.mxu0
        %v1379 = vadd.f32 %v569, %v1378
        %v1380 = vpop.f32.mrf.mxu0
        %v1381 = vadd.f32 %v569, %v1380
        %1382 = vmatmul.bf16.gmra.mxu0 %v494
        %v1383 = vpop.f32.mrf.mxu0
        %v1384 = vadd.f32 %v569, %v1383
        %v1385 = vpop.f32.mrf.mxu0
        %v1386 = vadd.f32 %v569, %v1385
        %1387 = vmatmul.bf16.gmra.mxu0 %v496
        %v1388 = vpop.f32.mrf.mxu0
        %v1389 = vadd.f32 %v569, %v1388
        %v1390 = vpop.f32.mrf.mxu0
        %v1391 = vadd.f32 %v569, %v1390
        %1392 = vmatmul.bf16.gmra.mxu0 %v498
        %v1393 = vpop.f32.mrf.mxu0
        %v1394 = vadd.f32 %v569, %v1393
        %v1395 = vpop.f32.mrf.mxu0
        %v1396 = vadd.f32 %v569, %v1395
        %1397 = vmatmul.bf16.gmra.mxu0 %v500
        %v1398 = vpop.f32.mrf.mxu0
        %v1399 = vadd.f32 %v569, %v1398
        %v1400 = vpop.f32.mrf.mxu0
        %v1401 = vadd.f32 %v569, %v1400
        %1402 = vdwg.mxu0
        %1403 = vmatpush.bf16.msra.mxu0 %v829
        %1404 = vmatpush.bf16.msra.mxu0 %v825
        %1405 = vmatpush.bf16.msra.mxu0 %v821
        %1406 = vmatpush.bf16.msra.mxu0 %v817
        %1407 = vmatpush.bf16.msra.mxu0 %v813
        %1408 = vmatpush.bf16.msra.mxu0 %v809
        %1409 = vmatpush.bf16.msra.mxu0 %v805
        %1410 = vmatpush.bf16.msra.mxu0 %v801
        %1411 = vmatmul.bf16.gmra.mxu0 %v439
        %v1412 = vpop.f32.mrf.mxu0
        %v1413 = vadd.f32 %v1244, %v1412
        %v1414 = vpop.f32.mrf.mxu0
        %v1415 = vadd.f32 %v1246, %v1414
        %1416 = vmatmul.bf16.gmra.mxu0 %v441
        %v1417 = vpop.f32.mrf.mxu0
        %v1418 = vadd.f32 %v1249, %v1417
        %v1419 = vpop.f32.mrf.mxu0
        %v1420 = vadd.f32 %v1251, %v1419
        %1421 = vmatmul.bf16.gmra.mxu0 %v443
        %v1422 = vpop.f32.mrf.mxu0
        %v1423 = vadd.f32 %v1254, %v1422
        %v1424 = vpop.f32.mrf.mxu0
        %v1425 = vadd.f32 %v1256, %v1424
        %1426 = vmatmul.bf16.gmra.mxu0 %v445
        %v1427 = vpop.f32.mrf.mxu0
        %v1428 = vadd.f32 %v1259, %v1427
        %v1429 = vpop.f32.mrf.mxu0
        %v1430 = vadd.f32 %v1261, %v1429
        %1431 = vmatmul.bf16.gmra.mxu0 %v447
        %v1432 = vpop.f32.mrf.mxu0
        %v1433 = vadd.f32 %v1264, %v1432
        %v1434 = vpop.f32.mrf.mxu0
        %v1435 = vadd.f32 %v1266, %v1434
        %1436 = vmatmul.bf16.gmra.mxu0 %v449
        %v1437 = vpop.f32.mrf.mxu0
        %v1438 = vadd.f32 %v1269, %v1437
        %v1439 = vpop.f32.mrf.mxu0
        %v1440 = vadd.f32 %v1271, %v1439
        %1441 = vmatmul.bf16.gmra.mxu0 %v451
        %v1442 = vpop.f32.mrf.mxu0
        %v1443 = vadd.f32 %v1274, %v1442
        %v1444 = vpop.f32.mrf.mxu0
        %v1445 = vadd.f32 %v1276, %v1444
        %1446 = vmatmul.bf16.gmra.mxu0 %v453
        %v1447 = vpop.f32.mrf.mxu0
        %v1448 = vadd.f32 %v1279, %v1447
        %v1449 = vpop.f32.mrf.mxu0
        %v1450 = vadd.f32 %v1281, %v1449
        %1451 = vmatmul.bf16.gmra.mxu0 %v455
        %v1452 = vpop.f32.mrf.mxu0
        %v1453 = vadd.f32 %v1284, %v1452
        %v1454 = vpop.f32.mrf.mxu0
        %v1455 = vadd.f32 %v1286, %v1454
        %1456 = vmatmul.bf16.gmra.mxu0 %v457
        %v1457 = vpop.f32.mrf.mxu0
        %v1458 = vadd.f32 %v1289, %v1457
        %v1459 = vpop.f32.mrf.mxu0
        %v1460 = vadd.f32 %v1291, %v1459
        %1461 = vmatmul.bf16.gmra.mxu0 %v459
        %v1462 = vpop.f32.mrf.mxu0
        %v1463 = vadd.f32 %v1294, %v1462
        %v1464 = vpop.f32.mrf.mxu0
        %v1465 = vadd.f32 %v1296, %v1464
        %1466 = vmatmul.bf16.gmra.mxu0 %v461
        %v1467 = vpop.f32.mrf.mxu0
        %v1468 = vadd.f32 %v1299, %v1467
        %v1469 = vpop.f32.mrf.mxu0
        %v1470 = vadd.f32 %v1301, %v1469
        %1471 = vmatmul.bf16.gmra.mxu0 %v463
        %v1472 = vpop.f32.mrf.mxu0
        %v1473 = vadd.f32 %v1304, %v1472
        %v1474 = vpop.f32.mrf.mxu0
        %v1475 = vadd.f32 %v1306, %v1474
        %1476 = vmatmul.bf16.gmra.mxu0 %v465
        %v1477 = vpop.f32.mrf.mxu0
        %v1478 = vadd.f32 %v1309, %v1477
        %v1479 = vpop.f32.mrf.mxu0
        %v1480 = vadd.f32 %v1311, %v1479
        %1481 = vmatmul.bf16.gmra.mxu0 %v467
        %v1482 = vpop.f32.mrf.mxu0
        %v1483 = vadd.f32 %v1314, %v1482
        %v1484 = vpop.f32.mrf.mxu0
        %v1485 = vadd.f32 %v1316, %v1484
        %1486 = vmatmul.bf16.gmra.mxu0 %v469
        %v1487 = vpop.f32.mrf.mxu0
        %v1488 = vadd.f32 %v1319, %v1487
        %v1489 = vpop.f32.mrf.mxu0
        %v1490 = vadd.f32 %v1321, %v1489
        %1491 = vmatmul.bf16.gmra.mxu0 %v471
        %v1492 = vpop.f32.mrf.mxu0
        %v1493 = vadd.f32 %v1324, %v1492
        %v1494 = vpop.f32.mrf.mxu0
        %v1495 = vadd.f32 %v1326, %v1494
        %1496 = vmatmul.bf16.gmra.mxu0 %v473
        %v1497 = vpop.f32.mrf.mxu0
        %v1498 = vadd.f32 %v1329, %v1497
        %v1499 = vpop.f32.mrf.mxu0
        %v1500 = vadd.f32 %v1331, %v1499
        %1501 = vmatmul.bf16.gmra.mxu0 %v475
        %v1502 = vpop.f32.mrf.mxu0
        %v1503 = vadd.f32 %v1334, %v1502
        %v1504 = vpop.f32.mrf.mxu0
        %v1505 = vadd.f32 %v1336, %v1504
        %1506 = vmatmul.bf16.gmra.mxu0 %v477
        %v1507 = vpop.f32.mrf.mxu0
        %v1508 = vadd.f32 %v1339, %v1507
        %v1509 = vpop.f32.mrf.mxu0
        %v1510 = vadd.f32 %v1341, %v1509
        %1511 = vmatmul.bf16.gmra.mxu0 %v479
        %v1512 = vpop.f32.mrf.mxu0
        %v1513 = vadd.f32 %v1344, %v1512
        %v1514 = vpop.f32.mrf.mxu0
        %v1515 = vadd.f32 %v1346, %v1514
        %1516 = vmatmul.bf16.gmra.mxu0 %v481
        %v1517 = vpop.f32.mrf.mxu0
        %v1518 = vadd.f32 %v1349, %v1517
        %v1519 = vpop.f32.mrf.mxu0
        %v1520 = vadd.f32 %v1351, %v1519
        %1521 = vmatmul.bf16.gmra.mxu0 %v483
        %v1522 = vpop.f32.mrf.mxu0
        %v1523 = vadd.f32 %v1354, %v1522
        %v1524 = vpop.f32.mrf.mxu0
        %v1525 = vadd.f32 %v1356, %v1524
        %1526 = vmatmul.bf16.gmra.mxu0 %v485
        %v1527 = vpop.f32.mrf.mxu0
        %v1528 = vadd.f32 %v1359, %v1527
        %v1529 = vpop.f32.mrf.mxu0
        %v1530 = vadd.f32 %v1361, %v1529
        %1531 = vmatmul.bf16.gmra.mxu0 %v487
        %v1532 = vpop.f32.mrf.mxu0
        %v1533 = vadd.f32 %v1364, %v1532
        %v1534 = vpop.f32.mrf.mxu0
        %v1535 = vadd.f32 %v1366, %v1534
        %1536 = vmatmul.bf16.gmra.mxu0 %v489
        %v1537 = vpop.f32.mrf.mxu0
        %v1538 = vadd.f32 %v1369, %v1537
        %v1539 = vpop.f32.mrf.mxu0
        %v1540 = vadd.f32 %v1371, %v1539
        %1541 = vmatmul.bf16.gmra.mxu0 %v491
        %v1542 = vpop.f32.mrf.mxu0
        %v1543 = vadd.f32 %v1374, %v1542
        %v1544 = vpop.f32.mrf.mxu0
        %v1545 = vadd.f32 %v1376, %v1544
        %1546 = vmatmul.bf16.gmra.mxu0 %v493
        %v1547 = vpop.f32.mrf.mxu0
        %v1548 = vadd.f32 %v1379, %v1547
        %v1549 = vpop.f32.mrf.mxu0
        %v1550 = vadd.f32 %v1381, %v1549
        %1551 = vmatmul.bf16.gmra.mxu0 %v495
        %v1552 = vpop.f32.mrf.mxu0
        %v1553 = vadd.f32 %v1384, %v1552
        %v1554 = vpop.f32.mrf.mxu0
        %v1555 = vadd.f32 %v1386, %v1554
        %1556 = vmatmul.bf16.gmra.mxu0 %v497
        %v1557 = vpop.f32.mrf.mxu0
        %v1558 = vadd.f32 %v1389, %v1557
        %v1559 = vpop.f32.mrf.mxu0
        %v1560 = vadd.f32 %v1391, %v1559
        %1561 = vmatmul.bf16.gmra.mxu0 %v499
        %v1562 = vpop.f32.mrf.mxu0
        %v1563 = vadd.f32 %v1394, %v1562
        %v1564 = vpop.f32.mrf.mxu0
        %v1565 = vadd.f32 %v1396, %v1564
        %1566 = vmatmul.bf16.gmra.mxu0 %v501
        %v1567 = vpop.f32.mrf.mxu0
        %v1568 = vadd.f32 %v1399, %v1567
        %v1569 = vpop.f32.mrf.mxu0
        %v1570 = vadd.f32 %v1401, %v1569
        %1571 = vdwg.mxu0
        %1572 = vmatpush.bf16.msra.mxu0 %v798
        %1573 = vmatpush.bf16.msra.mxu0 %v794
        %1574 = vmatpush.bf16.msra.mxu0 %v790
        %1575 = vmatpush.bf16.msra.mxu0 %v786
        %1576 = vmatpush.bf16.msra.mxu0 %v782
        %1577 = vmatpush.bf16.msra.mxu0 %v778
        %1578 = vmatpush.bf16.msra.mxu0 %v774
        %1579 = vmatpush.bf16.msra.mxu0 %v770
        %1580 = vmatmul.bf16.gmra.mxu0 %v438
        %v1581 = vpop.f32.mrf.mxu0
        %v1582 = vadd.f32 %v570, %v1581
        %v1583 = vpop.f32.mrf.mxu0
        %v1584 = vadd.f32 %v570, %v1583
        %1585 = vmatmul.bf16.gmra.mxu0 %v440
        %v1586 = vpop.f32.mrf.mxu0
        %v1587 = vadd.f32 %v570, %v1586
        %v1588 = vpop.f32.mrf.mxu0
        %v1589 = vadd.f32 %v570, %v1588
        %1590 = vmatmul.bf16.gmra.mxu0 %v442
        %v1591 = vpop.f32.mrf.mxu0
        %v1592 = vadd.f32 %v570, %v1591
        %v1593 = vpop.f32.mrf.mxu0
        %v1594 = vadd.f32 %v570, %v1593
        %1595 = vmatmul.bf16.gmra.mxu0 %v444
        %v1596 = vpop.f32.mrf.mxu0
        %v1597 = vadd.f32 %v570, %v1596
        %v1598 = vpop.f32.mrf.mxu0
        %v1599 = vadd.f32 %v570, %v1598
        %1600 = vmatmul.bf16.gmra.mxu0 %v446
        %v1601 = vpop.f32.mrf.mxu0
        %v1602 = vadd.f32 %v570, %v1601
        %v1603 = vpop.f32.mrf.mxu0
        %v1604 = vadd.f32 %v570, %v1603
        %1605 = vmatmul.bf16.gmra.mxu0 %v448
        %v1606 = vpop.f32.mrf.mxu0
        %v1607 = vadd.f32 %v570, %v1606
        %v1608 = vpop.f32.mrf.mxu0
        %v1609 = vadd.f32 %v570, %v1608
        %1610 = vmatmul.bf16.gmra.mxu0 %v450
        %v1611 = vpop.f32.mrf.mxu0
        %v1612 = vadd.f32 %v570, %v1611
        %v1613 = vpop.f32.mrf.mxu0
        %v1614 = vadd.f32 %v570, %v1613
        %1615 = vmatmul.bf16.gmra.mxu0 %v452
        %v1616 = vpop.f32.mrf.mxu0
        %v1617 = vadd.f32 %v570, %v1616
        %v1618 = vpop.f32.mrf.mxu0
        %v1619 = vadd.f32 %v570, %v1618
        %1620 = vmatmul.bf16.gmra.mxu0 %v454
        %v1621 = vpop.f32.mrf.mxu0
        %v1622 = vadd.f32 %v570, %v1621
        %v1623 = vpop.f32.mrf.mxu0
        %v1624 = vadd.f32 %v570, %v1623
        %1625 = vmatmul.bf16.gmra.mxu0 %v456
        %v1626 = vpop.f32.mrf.mxu0
        %v1627 = vadd.f32 %v570, %v1626
        %v1628 = vpop.f32.mrf.mxu0
        %v1629 = vadd.f32 %v570, %v1628
        %1630 = vmatmul.bf16.gmra.mxu0 %v458
        %v1631 = vpop.f32.mrf.mxu0
        %v1632 = vadd.f32 %v570, %v1631
        %v1633 = vpop.f32.mrf.mxu0
        %v1634 = vadd.f32 %v570, %v1633
        %1635 = vmatmul.bf16.gmra.mxu0 %v460
        %v1636 = vpop.f32.mrf.mxu0
        %v1637 = vadd.f32 %v570, %v1636
        %v1638 = vpop.f32.mrf.mxu0
        %v1639 = vadd.f32 %v570, %v1638
        %1640 = vmatmul.bf16.gmra.mxu0 %v462
        %v1641 = vpop.f32.mrf.mxu0
        %v1642 = vadd.f32 %v570, %v1641
        %v1643 = vpop.f32.mrf.mxu0
        %v1644 = vadd.f32 %v570, %v1643
        %1645 = vmatmul.bf16.gmra.mxu0 %v464
        %v1646 = vpop.f32.mrf.mxu0
        %v1647 = vadd.f32 %v570, %v1646
        %v1648 = vpop.f32.mrf.mxu0
        %v1649 = vadd.f32 %v570, %v1648
        %1650 = vmatmul.bf16.gmra.mxu0 %v466
        %v1651 = vpop.f32.mrf.mxu0
        %v1652 = vadd.f32 %v570, %v1651
        %v1653 = vpop.f32.mrf.mxu0
        %v1654 = vadd.f32 %v570, %v1653
        %1655 = vmatmul.bf16.gmra.mxu0 %v468
        %v1656 = vpop.f32.mrf.mxu0
        %v1657 = vadd.f32 %v570, %v1656
        %v1658 = vpop.f32.mrf.mxu0
        %v1659 = vadd.f32 %v570, %v1658
        %1660 = vmatmul.bf16.gmra.mxu0 %v470
        %v1661 = vpop.f32.mrf.mxu0
        %v1662 = vadd.f32 %v570, %v1661
        %v1663 = vpop.f32.mrf.mxu0
        %v1664 = vadd.f32 %v570, %v1663
        %1665 = vmatmul.bf16.gmra.mxu0 %v472
        %v1666 = vpop.f32.mrf.mxu0
        %v1667 = vadd.f32 %v570, %v1666
        %v1668 = vpop.f32.mrf.mxu0
        %v1669 = vadd.f32 %v570, %v1668
        %1670 = vmatmul.bf16.gmra.mxu0 %v474
        %v1671 = vpop.f32.mrf.mxu0
        %v1672 = vadd.f32 %v570, %v1671
        %v1673 = vpop.f32.mrf.mxu0
        %v1674 = vadd.f32 %v570, %v1673
        %1675 = vmatmul.bf16.gmra.mxu0 %v476
        %v1676 = vpop.f32.mrf.mxu0
        %v1677 = vadd.f32 %v570, %v1676
        %v1678 = vpop.f32.mrf.mxu0
        %v1679 = vadd.f32 %v570, %v1678
        %1680 = vmatmul.bf16.gmra.mxu0 %v478
        %v1681 = vpop.f32.mrf.mxu0
        %v1682 = vadd.f32 %v570, %v1681
        %v1683 = vpop.f32.mrf.mxu0
        %v1684 = vadd.f32 %v570, %v1683
        %1685 = vmatmul.bf16.gmra.mxu0 %v480
        %v1686 = vpop.f32.mrf.mxu0
        %v1687 = vadd.f32 %v570, %v1686
        %v1688 = vpop.f32.mrf.mxu0
        %v1689 = vadd.f32 %v570, %v1688
        %1690 = vmatmul.bf16.gmra.mxu0 %v482
        %v1691 = vpop.f32.mrf.mxu0
        %v1692 = vadd.f32 %v570, %v1691
        %v1693 = vpop.f32.mrf.mxu0
        %v1694 = vadd.f32 %v570, %v1693
        %1695 = vmatmul.bf16.gmra.mxu0 %v484
        %v1696 = vpop.f32.mrf.mxu0
        %v1697 = vadd.f32 %v570, %v1696
        %v1698 = vpop.f32.mrf.mxu0
        %v1699 = vadd.f32 %v570, %v1698
        %1700 = vmatmul.bf16.gmra.mxu0 %v486
        %v1701 = vpop.f32.mrf.mxu0
        %v1702 = vadd.f32 %v570, %v1701
        %v1703 = vpop.f32.mrf.mxu0
        %v1704 = vadd.f32 %v570, %v1703
        %1705 = vmatmul.bf16.gmra.mxu0 %v488
        %v1706 = vpop.f32.mrf.mxu0
        %v1707 = vadd.f32 %v570, %v1706
        %v1708 = vpop.f32.mrf.mxu0
        %v1709 = vadd.f32 %v570, %v1708
        %1710 = vmatmul.bf16.gmra.mxu0 %v490
        %v1711 = vpop.f32.mrf.mxu0
        %v1712 = vadd.f32 %v570, %v1711
        %v1713 = vpop.f32.mrf.mxu0
        %v1714 = vadd.f32 %v570, %v1713
        %1715 = vmatmul.bf16.gmra.mxu0 %v492
        %v1716 = vpop.f32.mrf.mxu0
        %v1717 = vadd.f32 %v570, %v1716
        %v1718 = vpop.f32.mrf.mxu0
        %v1719 = vadd.f32 %v570, %v1718
        %1720 = vmatmul.bf16.gmra.mxu0 %v494
        %v1721 = vpop.f32.mrf.mxu0
        %v1722 = vadd.f32 %v570, %v1721
        %v1723 = vpop.f32.mrf.mxu0
        %v1724 = vadd.f32 %v570, %v1723
        %1725 = vmatmul.bf16.gmra.mxu0 %v496
        %v1726 = vpop.f32.mrf.mxu0
        %v1727 = vadd.f32 %v570, %v1726
        %v1728 = vpop.f32.mrf.mxu0
        %v1729 = vadd.f32 %v570, %v1728
        %1730 = vmatmul.bf16.gmra.mxu0 %v498
        %v1731 = vpop.f32.mrf.mxu0
        %v1732 = vadd.f32 %v570, %v1731
        %v1733 = vpop.f32.mrf.mxu0
        %v1734 = vadd.f32 %v570, %v1733
        %1735 = vmatmul.bf16.gmra.mxu0 %v500
        %v1736 = vpop.f32.mrf.mxu0
        %v1737 = vadd.f32 %v570, %v1736
        %v1738 = vpop.f32.mrf.mxu0
        %v1739 = vadd.f32 %v570, %v1738
        %1740 = vdwg.mxu0
        %1741 = vmatpush.bf16.msra.mxu0 %v830
        %1742 = vmatpush.bf16.msra.mxu0 %v826
        %1743 = vmatpush.bf16.msra.mxu0 %v822
        %1744 = vmatpush.bf16.msra.mxu0 %v818
        %1745 = vmatpush.bf16.msra.mxu0 %v814
        %1746 = vmatpush.bf16.msra.mxu0 %v810
        %1747 = vmatpush.bf16.msra.mxu0 %v806
        %1748 = vmatpush.bf16.msra.mxu0 %v802
        %1749 = vmatmul.bf16.gmra.mxu0 %v439
        %v1750 = vpop.f32.mrf.mxu0
        %v1751 = vadd.f32 %v1582, %v1750
        %v1752 = vpop.f32.mrf.mxu0
        %v1753 = vadd.f32 %v1584, %v1752
        %1754 = vmatmul.bf16.gmra.mxu0 %v441
        %v1755 = vpop.f32.mrf.mxu0
        %v1756 = vadd.f32 %v1587, %v1755
        %v1757 = vpop.f32.mrf.mxu0
        %v1758 = vadd.f32 %v1589, %v1757
        %1759 = vmatmul.bf16.gmra.mxu0 %v443
        %v1760 = vpop.f32.mrf.mxu0
        %v1761 = vadd.f32 %v1592, %v1760
        %v1762 = vpop.f32.mrf.mxu0
        %v1763 = vadd.f32 %v1594, %v1762
        %1764 = vmatmul.bf16.gmra.mxu0 %v445
        %v1765 = vpop.f32.mrf.mxu0
        %v1766 = vadd.f32 %v1597, %v1765
        %v1767 = vpop.f32.mrf.mxu0
        %v1768 = vadd.f32 %v1599, %v1767
        %1769 = vmatmul.bf16.gmra.mxu0 %v447
        %v1770 = vpop.f32.mrf.mxu0
        %v1771 = vadd.f32 %v1602, %v1770
        %v1772 = vpop.f32.mrf.mxu0
        %v1773 = vadd.f32 %v1604, %v1772
        %1774 = vmatmul.bf16.gmra.mxu0 %v449
        %v1775 = vpop.f32.mrf.mxu0
        %v1776 = vadd.f32 %v1607, %v1775
        %v1777 = vpop.f32.mrf.mxu0
        %v1778 = vadd.f32 %v1609, %v1777
        %1779 = vmatmul.bf16.gmra.mxu0 %v451
        %v1780 = vpop.f32.mrf.mxu0
        %v1781 = vadd.f32 %v1612, %v1780
        %v1782 = vpop.f32.mrf.mxu0
        %v1783 = vadd.f32 %v1614, %v1782
        %1784 = vmatmul.bf16.gmra.mxu0 %v453
        %v1785 = vpop.f32.mrf.mxu0
        %v1786 = vadd.f32 %v1617, %v1785
        %v1787 = vpop.f32.mrf.mxu0
        %v1788 = vadd.f32 %v1619, %v1787
        %1789 = vmatmul.bf16.gmra.mxu0 %v455
        %v1790 = vpop.f32.mrf.mxu0
        %v1791 = vadd.f32 %v1622, %v1790
        %v1792 = vpop.f32.mrf.mxu0
        %v1793 = vadd.f32 %v1624, %v1792
        %1794 = vmatmul.bf16.gmra.mxu0 %v457
        %v1795 = vpop.f32.mrf.mxu0
        %v1796 = vadd.f32 %v1627, %v1795
        %v1797 = vpop.f32.mrf.mxu0
        %v1798 = vadd.f32 %v1629, %v1797
        %1799 = vmatmul.bf16.gmra.mxu0 %v459
        %v1800 = vpop.f32.mrf.mxu0
        %v1801 = vadd.f32 %v1632, %v1800
        %v1802 = vpop.f32.mrf.mxu0
        %v1803 = vadd.f32 %v1634, %v1802
        %1804 = vmatmul.bf16.gmra.mxu0 %v461
        %v1805 = vpop.f32.mrf.mxu0
        %v1806 = vadd.f32 %v1637, %v1805
        %v1807 = vpop.f32.mrf.mxu0
        %v1808 = vadd.f32 %v1639, %v1807
        %1809 = vmatmul.bf16.gmra.mxu0 %v463
        %v1810 = vpop.f32.mrf.mxu0
        %v1811 = vadd.f32 %v1642, %v1810
        %v1812 = vpop.f32.mrf.mxu0
        %v1813 = vadd.f32 %v1644, %v1812
        %1814 = vmatmul.bf16.gmra.mxu0 %v465
        %v1815 = vpop.f32.mrf.mxu0
        %v1816 = vadd.f32 %v1647, %v1815
        %v1817 = vpop.f32.mrf.mxu0
        %v1818 = vadd.f32 %v1649, %v1817
        %1819 = vmatmul.bf16.gmra.mxu0 %v467
        %v1820 = vpop.f32.mrf.mxu0
        %v1821 = vadd.f32 %v1652, %v1820
        %v1822 = vpop.f32.mrf.mxu0
        %v1823 = vadd.f32 %v1654, %v1822
        %1824 = vmatmul.bf16.gmra.mxu0 %v469
        %v1825 = vpop.f32.mrf.mxu0
        %v1826 = vadd.f32 %v1657, %v1825
        %v1827 = vpop.f32.mrf.mxu0
        %v1828 = vadd.f32 %v1659, %v1827
        %1829 = vmatmul.bf16.gmra.mxu0 %v471
        %v1830 = vpop.f32.mrf.mxu0
        %v1831 = vadd.f32 %v1662, %v1830
        %v1832 = vpop.f32.mrf.mxu0
        %v1833 = vadd.f32 %v1664, %v1832
        %1834 = vmatmul.bf16.gmra.mxu0 %v473
        %v1835 = vpop.f32.mrf.mxu0
        %v1836 = vadd.f32 %v1667, %v1835
        %v1837 = vpop.f32.mrf.mxu0
        %v1838 = vadd.f32 %v1669, %v1837
        %1839 = vmatmul.bf16.gmra.mxu0 %v475
        %v1840 = vpop.f32.mrf.mxu0
        %v1841 = vadd.f32 %v1672, %v1840
        %v1842 = vpop.f32.mrf.mxu0
        %v1843 = vadd.f32 %v1674, %v1842
        %1844 = vmatmul.bf16.gmra.mxu0 %v477
        %v1845 = vpop.f32.mrf.mxu0
        %v1846 = vadd.f32 %v1677, %v1845
        %v1847 = vpop.f32.mrf.mxu0
        %v1848 = vadd.f32 %v1679, %v1847
        %1849 = vmatmul.bf16.gmra.mxu0 %v479
        %v1850 = vpop.f32.mrf.mxu0
        %v1851 = vadd.f32 %v1682, %v1850
        %v1852 = vpop.f32.mrf.mxu0
        %v1853 = vadd.f32 %v1684, %v1852
        %1854 = vmatmul.bf16.gmra.mxu0 %v481
        %v1855 = vpop.f32.mrf.mxu0
        %v1856 = vadd.f32 %v1687, %v1855
        %v1857 = vpop.f32.mrf.mxu0
        %v1858 = vadd.f32 %v1689, %v1857
        %1859 = vmatmul.bf16.gmra.mxu0 %v483
        %v1860 = vpop.f32.mrf.mxu0
        %v1861 = vadd.f32 %v1692, %v1860
        %v1862 = vpop.f32.mrf.mxu0
        %v1863 = vadd.f32 %v1694, %v1862
        %1864 = vmatmul.bf16.gmra.mxu0 %v485
        %v1865 = vpop.f32.mrf.mxu0
        %v1866 = vadd.f32 %v1697, %v1865
        %v1867 = vpop.f32.mrf.mxu0
        %v1868 = vadd.f32 %v1699, %v1867
        %1869 = vmatmul.bf16.gmra.mxu0 %v487
        %v1870 = vpop.f32.mrf.mxu0
        %v1871 = vadd.f32 %v1702, %v1870
        %v1872 = vpop.f32.mrf.mxu0
        %v1873 = vadd.f32 %v1704, %v1872
        %1874 = vmatmul.bf16.gmra.mxu0 %v489
        %v1875 = vpop.f32.mrf.mxu0
        %v1876 = vadd.f32 %v1707, %v1875
        %v1877 = vpop.f32.mrf.mxu0
        %v1878 = vadd.f32 %v1709, %v1877
        %1879 = vmatmul.bf16.gmra.mxu0 %v491
        %v1880 = vpop.f32.mrf.mxu0
        %v1881 = vadd.f32 %v1712, %v1880
        %v1882 = vpop.f32.mrf.mxu0
        %v1883 = vadd.f32 %v1714, %v1882
        %1884 = vmatmul.bf16.gmra.mxu0 %v493
        %v1885 = vpop.f32.mrf.mxu0
        %v1886 = vadd.f32 %v1717, %v1885
        %v1887 = vpop.f32.mrf.mxu0
        %v1888 = vadd.f32 %v1719, %v1887
        %1889 = vmatmul.bf16.gmra.mxu0 %v495
        %v1890 = vpop.f32.mrf.mxu0
        %v1891 = vadd.f32 %v1722, %v1890
        %v1892 = vpop.f32.mrf.mxu0
        %v1893 = vadd.f32 %v1724, %v1892
        %1894 = vmatmul.bf16.gmra.mxu0 %v497
        %v1895 = vpop.f32.mrf.mxu0
        %v1896 = vadd.f32 %v1727, %v1895
        %v1897 = vpop.f32.mrf.mxu0
        %v1898 = vadd.f32 %v1729, %v1897
        %1899 = vmatmul.bf16.gmra.mxu0 %v499
        %v1900 = vpop.f32.mrf.mxu0
        %v1901 = vadd.f32 %v1732, %v1900
        %v1902 = vpop.f32.mrf.mxu0
        %v1903 = vadd.f32 %v1734, %v1902
        %1904 = vmatmul.bf16.gmra.mxu0 %v501
        %v1905 = vpop.f32.mrf.mxu0
        %v1906 = vadd.f32 %v1737, %v1905
        %v1907 = vpop.f32.mrf.mxu0
        %v1908 = vadd.f32 %v1739, %v1907
        %1909 = vdwg.mxu0
        %1910 = vmatpush.bf16.msra.mxu0 %v799
        %1911 = vmatpush.bf16.msra.mxu0 %v795
        %1912 = vmatpush.bf16.msra.mxu0 %v791
        %1913 = vmatpush.bf16.msra.mxu0 %v787
        %1914 = vmatpush.bf16.msra.mxu0 %v783
        %1915 = vmatpush.bf16.msra.mxu0 %v779
        %1916 = vmatpush.bf16.msra.mxu0 %v775
        %1917 = vmatpush.bf16.msra.mxu0 %v771
        %1918 = vmatmul.bf16.gmra.mxu0 %v438
        %v1919 = vpop.f32.mrf.mxu0
        %v1920 = vadd.f32 %v571, %v1919
        %v1921 = vpop.f32.mrf.mxu0
        %v1922 = vadd.f32 %v571, %v1921
        %1923 = vmatmul.bf16.gmra.mxu0 %v440
        %v1924 = vpop.f32.mrf.mxu0
        %v1925 = vadd.f32 %v571, %v1924
        %v1926 = vpop.f32.mrf.mxu0
        %v1927 = vadd.f32 %v571, %v1926
        %1928 = vmatmul.bf16.gmra.mxu0 %v442
        %v1929 = vpop.f32.mrf.mxu0
        %v1930 = vadd.f32 %v571, %v1929
        %v1931 = vpop.f32.mrf.mxu0
        %v1932 = vadd.f32 %v571, %v1931
        %1933 = vmatmul.bf16.gmra.mxu0 %v444
        %v1934 = vpop.f32.mrf.mxu0
        %v1935 = vadd.f32 %v571, %v1934
        %v1936 = vpop.f32.mrf.mxu0
        %v1937 = vadd.f32 %v571, %v1936
        %1938 = vmatmul.bf16.gmra.mxu0 %v446
        %v1939 = vpop.f32.mrf.mxu0
        %v1940 = vadd.f32 %v571, %v1939
        %v1941 = vpop.f32.mrf.mxu0
        %v1942 = vadd.f32 %v571, %v1941
        %1943 = vmatmul.bf16.gmra.mxu0 %v448
        %v1944 = vpop.f32.mrf.mxu0
        %v1945 = vadd.f32 %v571, %v1944
        %v1946 = vpop.f32.mrf.mxu0
        %v1947 = vadd.f32 %v571, %v1946
        %1948 = vmatmul.bf16.gmra.mxu0 %v450
        %v1949 = vpop.f32.mrf.mxu0
        %v1950 = vadd.f32 %v571, %v1949
        %v1951 = vpop.f32.mrf.mxu0
        %v1952 = vadd.f32 %v571, %v1951
        %1953 = vmatmul.bf16.gmra.mxu0 %v452
        %v1954 = vpop.f32.mrf.mxu0
        %v1955 = vadd.f32 %v571, %v1954
        %v1956 = vpop.f32.mrf.mxu0
        %v1957 = vadd.f32 %v571, %v1956
        %1958 = vmatmul.bf16.gmra.mxu0 %v454
        %v1959 = vpop.f32.mrf.mxu0
        %v1960 = vadd.f32 %v571, %v1959
        %v1961 = vpop.f32.mrf.mxu0
        %v1962 = vadd.f32 %v571, %v1961
        %1963 = vmatmul.bf16.gmra.mxu0 %v456
        %v1964 = vpop.f32.mrf.mxu0
        %v1965 = vadd.f32 %v571, %v1964
        %v1966 = vpop.f32.mrf.mxu0
        %v1967 = vadd.f32 %v571, %v1966
        %1968 = vmatmul.bf16.gmra.mxu0 %v458
        %v1969 = vpop.f32.mrf.mxu0
        %v1970 = vadd.f32 %v571, %v1969
        %v1971 = vpop.f32.mrf.mxu0
        %v1972 = vadd.f32 %v571, %v1971
        %1973 = vmatmul.bf16.gmra.mxu0 %v460
        %v1974 = vpop.f32.mrf.mxu0
        %v1975 = vadd.f32 %v571, %v1974
        %v1976 = vpop.f32.mrf.mxu0
        %v1977 = vadd.f32 %v571, %v1976
        %1978 = vmatmul.bf16.gmra.mxu0 %v462
        %v1979 = vpop.f32.mrf.mxu0
        %v1980 = vadd.f32 %v571, %v1979
        %v1981 = vpop.f32.mrf.mxu0
        %v1982 = vadd.f32 %v571, %v1981
        %1983 = vmatmul.bf16.gmra.mxu0 %v464
        %v1984 = vpop.f32.mrf.mxu0
        %v1985 = vadd.f32 %v571, %v1984
        %v1986 = vpop.f32.mrf.mxu0
        %v1987 = vadd.f32 %v571, %v1986
        %1988 = vmatmul.bf16.gmra.mxu0 %v466
        %v1989 = vpop.f32.mrf.mxu0
        %v1990 = vadd.f32 %v571, %v1989
        %v1991 = vpop.f32.mrf.mxu0
        %v1992 = vadd.f32 %v571, %v1991
        %1993 = vmatmul.bf16.gmra.mxu0 %v468
        %v1994 = vpop.f32.mrf.mxu0
        %v1995 = vadd.f32 %v571, %v1994
        %v1996 = vpop.f32.mrf.mxu0
        %v1997 = vadd.f32 %v571, %v1996
        %1998 = vmatmul.bf16.gmra.mxu0 %v470
        %v1999 = vpop.f32.mrf.mxu0
        %v2000 = vadd.f32 %v571, %v1999
        %v2001 = vpop.f32.mrf.mxu0
        %v2002 = vadd.f32 %v571, %v2001
        %2003 = vmatmul.bf16.gmra.mxu0 %v472
        %v2004 = vpop.f32.mrf.mxu0
        %v2005 = vadd.f32 %v571, %v2004
        %v2006 = vpop.f32.mrf.mxu0
        %v2007 = vadd.f32 %v571, %v2006
        %2008 = vmatmul.bf16.gmra.mxu0 %v474
        %v2009 = vpop.f32.mrf.mxu0
        %v2010 = vadd.f32 %v571, %v2009
        %v2011 = vpop.f32.mrf.mxu0
        %v2012 = vadd.f32 %v571, %v2011
        %2013 = vmatmul.bf16.gmra.mxu0 %v476
        %v2014 = vpop.f32.mrf.mxu0
        %v2015 = vadd.f32 %v571, %v2014
        %v2016 = vpop.f32.mrf.mxu0
        %v2017 = vadd.f32 %v571, %v2016
        %2018 = vmatmul.bf16.gmra.mxu0 %v478
        %v2019 = vpop.f32.mrf.mxu0
        %v2020 = vadd.f32 %v571, %v2019
        %v2021 = vpop.f32.mrf.mxu0
        %v2022 = vadd.f32 %v571, %v2021
        %2023 = vmatmul.bf16.gmra.mxu0 %v480
        %v2024 = vpop.f32.mrf.mxu0
        %v2025 = vadd.f32 %v571, %v2024
        %v2026 = vpop.f32.mrf.mxu0
        %v2027 = vadd.f32 %v571, %v2026
        %2028 = vmatmul.bf16.gmra.mxu0 %v482
        %v2029 = vpop.f32.mrf.mxu0
        %v2030 = vadd.f32 %v571, %v2029
        %v2031 = vpop.f32.mrf.mxu0
        %v2032 = vadd.f32 %v571, %v2031
        %2033 = vmatmul.bf16.gmra.mxu0 %v484
        %v2034 = vpop.f32.mrf.mxu0
        %v2035 = vadd.f32 %v571, %v2034
        %v2036 = vpop.f32.mrf.mxu0
        %v2037 = vadd.f32 %v571, %v2036
        %2038 = vmatmul.bf16.gmra.mxu0 %v486
        %v2039 = vpop.f32.mrf.mxu0
        %v2040 = vadd.f32 %v571, %v2039
        %v2041 = vpop.f32.mrf.mxu0
        %v2042 = vadd.f32 %v571, %v2041
        %2043 = vmatmul.bf16.gmra.mxu0 %v488
        %v2044 = vpop.f32.mrf.mxu0
        %v2045 = vadd.f32 %v571, %v2044
        %v2046 = vpop.f32.mrf.mxu0
        %v2047 = vadd.f32 %v571, %v2046
        %2048 = vmatmul.bf16.gmra.mxu0 %v490
        %v2049 = vpop.f32.mrf.mxu0
        %v2050 = vadd.f32 %v571, %v2049
        %v2051 = vpop.f32.mrf.mxu0
        %v2052 = vadd.f32 %v571, %v2051
        %2053 = vmatmul.bf16.gmra.mxu0 %v492
        %v2054 = vpop.f32.mrf.mxu0
        %v2055 = vadd.f32 %v571, %v2054
        %v2056 = vpop.f32.mrf.mxu0
        %v2057 = vadd.f32 %v571, %v2056
        %2058 = vmatmul.bf16.gmra.mxu0 %v494
        %v2059 = vpop.f32.mrf.mxu0
        %v2060 = vadd.f32 %v571, %v2059
        %v2061 = vpop.f32.mrf.mxu0
        %v2062 = vadd.f32 %v571, %v2061
        %2063 = vmatmul.bf16.gmra.mxu0 %v496
        %v2064 = vpop.f32.mrf.mxu0
        %v2065 = vadd.f32 %v571, %v2064
        %v2066 = vpop.f32.mrf.mxu0
        %v2067 = vadd.f32 %v571, %v2066
        %2068 = vmatmul.bf16.gmra.mxu0 %v498
        %v2069 = vpop.f32.mrf.mxu0
        %v2070 = vadd.f32 %v571, %v2069
        %v2071 = vpop.f32.mrf.mxu0
        %v2072 = vadd.f32 %v571, %v2071
        %2073 = vmatmul.bf16.gmra.mxu0 %v500
        %v2074 = vpop.f32.mrf.mxu0
        %v2075 = vadd.f32 %v571, %v2074
        %v2076 = vpop.f32.mrf.mxu0
        %v2077 = vadd.f32 %v571, %v2076
        %2078 = vdwg.mxu0
        %2079 = vmatpush.bf16.msra.mxu0 %v831
        %2080 = vmatpush.bf16.msra.mxu0 %v827
        %2081 = vmatpush.bf16.msra.mxu0 %v823
        %2082 = vmatpush.bf16.msra.mxu0 %v819
        %2083 = vmatpush.bf16.msra.mxu0 %v815
        %2084 = vmatpush.bf16.msra.mxu0 %v811
        %2085 = vmatpush.bf16.msra.mxu0 %v807
        %2086 = vmatpush.bf16.msra.mxu0 %v803
        %2087 = vmatmul.bf16.gmra.mxu0 %v439
        %v2088 = vpop.f32.mrf.mxu0
        %v2089 = vadd.f32 %v1920, %v2088
        %v2090 = vpop.f32.mrf.mxu0
        %v2091 = vadd.f32 %v1922, %v2090
        %2092 = vmatmul.bf16.gmra.mxu0 %v441
        %v2093 = vpop.f32.mrf.mxu0
        %v2094 = vadd.f32 %v1925, %v2093
        %v2095 = vpop.f32.mrf.mxu0
        %v2096 = vadd.f32 %v1927, %v2095
        %2097 = vmatmul.bf16.gmra.mxu0 %v443
        %v2098 = vpop.f32.mrf.mxu0
        %v2099 = vadd.f32 %v1930, %v2098
        %v2100 = vpop.f32.mrf.mxu0
        %v2101 = vadd.f32 %v1932, %v2100
        %2102 = vmatmul.bf16.gmra.mxu0 %v445
        %v2103 = vpop.f32.mrf.mxu0
        %v2104 = vadd.f32 %v1935, %v2103
        %v2105 = vpop.f32.mrf.mxu0
        %v2106 = vadd.f32 %v1937, %v2105
        %2107 = vmatmul.bf16.gmra.mxu0 %v447
        %v2108 = vpop.f32.mrf.mxu0
        %v2109 = vadd.f32 %v1940, %v2108
        %v2110 = vpop.f32.mrf.mxu0
        %v2111 = vadd.f32 %v1942, %v2110
        %2112 = vmatmul.bf16.gmra.mxu0 %v449
        %v2113 = vpop.f32.mrf.mxu0
        %v2114 = vadd.f32 %v1945, %v2113
        %v2115 = vpop.f32.mrf.mxu0
        %v2116 = vadd.f32 %v1947, %v2115
        %2117 = vmatmul.bf16.gmra.mxu0 %v451
        %v2118 = vpop.f32.mrf.mxu0
        %v2119 = vadd.f32 %v1950, %v2118
        %v2120 = vpop.f32.mrf.mxu0
        %v2121 = vadd.f32 %v1952, %v2120
        %2122 = vmatmul.bf16.gmra.mxu0 %v453
        %v2123 = vpop.f32.mrf.mxu0
        %v2124 = vadd.f32 %v1955, %v2123
        %v2125 = vpop.f32.mrf.mxu0
        %v2126 = vadd.f32 %v1957, %v2125
        %2127 = vmatmul.bf16.gmra.mxu0 %v455
        %v2128 = vpop.f32.mrf.mxu0
        %v2129 = vadd.f32 %v1960, %v2128
        %v2130 = vpop.f32.mrf.mxu0
        %v2131 = vadd.f32 %v1962, %v2130
        %2132 = vmatmul.bf16.gmra.mxu0 %v457
        %v2133 = vpop.f32.mrf.mxu0
        %v2134 = vadd.f32 %v1965, %v2133
        %v2135 = vpop.f32.mrf.mxu0
        %v2136 = vadd.f32 %v1967, %v2135
        %2137 = vmatmul.bf16.gmra.mxu0 %v459
        %v2138 = vpop.f32.mrf.mxu0
        %v2139 = vadd.f32 %v1970, %v2138
        %v2140 = vpop.f32.mrf.mxu0
        %v2141 = vadd.f32 %v1972, %v2140
        %2142 = vmatmul.bf16.gmra.mxu0 %v461
        %v2143 = vpop.f32.mrf.mxu0
        %v2144 = vadd.f32 %v1975, %v2143
        %v2145 = vpop.f32.mrf.mxu0
        %v2146 = vadd.f32 %v1977, %v2145
        %2147 = vmatmul.bf16.gmra.mxu0 %v463
        %v2148 = vpop.f32.mrf.mxu0
        %v2149 = vadd.f32 %v1980, %v2148
        %v2150 = vpop.f32.mrf.mxu0
        %v2151 = vadd.f32 %v1982, %v2150
        %2152 = vmatmul.bf16.gmra.mxu0 %v465
        %v2153 = vpop.f32.mrf.mxu0
        %v2154 = vadd.f32 %v1985, %v2153
        %v2155 = vpop.f32.mrf.mxu0
        %v2156 = vadd.f32 %v1987, %v2155
        %2157 = vmatmul.bf16.gmra.mxu0 %v467
        %v2158 = vpop.f32.mrf.mxu0
        %v2159 = vadd.f32 %v1990, %v2158
        %v2160 = vpop.f32.mrf.mxu0
        %v2161 = vadd.f32 %v1992, %v2160
        %2162 = vmatmul.bf16.gmra.mxu0 %v469
        %v2163 = vpop.f32.mrf.mxu0
        %v2164 = vadd.f32 %v1995, %v2163
        %v2165 = vpop.f32.mrf.mxu0
        %v2166 = vadd.f32 %v1997, %v2165
        %2167 = vmatmul.bf16.gmra.mxu0 %v471
        %v2168 = vpop.f32.mrf.mxu0
        %v2169 = vadd.f32 %v2000, %v2168
        %v2170 = vpop.f32.mrf.mxu0
        %v2171 = vadd.f32 %v2002, %v2170
        %2172 = vmatmul.bf16.gmra.mxu0 %v473
        %v2173 = vpop.f32.mrf.mxu0
        %v2174 = vadd.f32 %v2005, %v2173
        %v2175 = vpop.f32.mrf.mxu0
        %v2176 = vadd.f32 %v2007, %v2175
        %2177 = vmatmul.bf16.gmra.mxu0 %v475
        %v2178 = vpop.f32.mrf.mxu0
        %v2179 = vadd.f32 %v2010, %v2178
        %v2180 = vpop.f32.mrf.mxu0
        %v2181 = vadd.f32 %v2012, %v2180
        %2182 = vmatmul.bf16.gmra.mxu0 %v477
        %v2183 = vpop.f32.mrf.mxu0
        %v2184 = vadd.f32 %v2015, %v2183
        %v2185 = vpop.f32.mrf.mxu0
        %v2186 = vadd.f32 %v2017, %v2185
        %2187 = vmatmul.bf16.gmra.mxu0 %v479
        %v2188 = vpop.f32.mrf.mxu0
        %v2189 = vadd.f32 %v2020, %v2188
        %v2190 = vpop.f32.mrf.mxu0
        %v2191 = vadd.f32 %v2022, %v2190
        %2192 = vmatmul.bf16.gmra.mxu0 %v481
        %v2193 = vpop.f32.mrf.mxu0
        %v2194 = vadd.f32 %v2025, %v2193
        %v2195 = vpop.f32.mrf.mxu0
        %v2196 = vadd.f32 %v2027, %v2195
        %2197 = vmatmul.bf16.gmra.mxu0 %v483
        %v2198 = vpop.f32.mrf.mxu0
        %v2199 = vadd.f32 %v2030, %v2198
        %v2200 = vpop.f32.mrf.mxu0
        %v2201 = vadd.f32 %v2032, %v2200
        %2202 = vmatmul.bf16.gmra.mxu0 %v485
        %v2203 = vpop.f32.mrf.mxu0
        %v2204 = vadd.f32 %v2035, %v2203
        %v2205 = vpop.f32.mrf.mxu0
        %v2206 = vadd.f32 %v2037, %v2205
        %2207 = vmatmul.bf16.gmra.mxu0 %v487
        %v2208 = vpop.f32.mrf.mxu0
        %v2209 = vadd.f32 %v2040, %v2208
        %v2210 = vpop.f32.mrf.mxu0
        %v2211 = vadd.f32 %v2042, %v2210
        %2212 = vmatmul.bf16.gmra.mxu0 %v489
        %v2213 = vpop.f32.mrf.mxu0
        %v2214 = vadd.f32 %v2045, %v2213
        %v2215 = vpop.f32.mrf.mxu0
        %v2216 = vadd.f32 %v2047, %v2215
        %2217 = vmatmul.bf16.gmra.mxu0 %v491
        %v2218 = vpop.f32.mrf.mxu0
        %v2219 = vadd.f32 %v2050, %v2218
        %v2220 = vpop.f32.mrf.mxu0
        %v2221 = vadd.f32 %v2052, %v2220
        %2222 = vmatmul.bf16.gmra.mxu0 %v493
        %v2223 = vpop.f32.mrf.mxu0
        %v2224 = vadd.f32 %v2055, %v2223
        %v2225 = vpop.f32.mrf.mxu0
        %v2226 = vadd.f32 %v2057, %v2225
        %2227 = vmatmul.bf16.gmra.mxu0 %v495
        %v2228 = vpop.f32.mrf.mxu0
        %v2229 = vadd.f32 %v2060, %v2228
        %v2230 = vpop.f32.mrf.mxu0
        %v2231 = vadd.f32 %v2062, %v2230
        %2232 = vmatmul.bf16.gmra.mxu0 %v497
        %v2233 = vpop.f32.mrf.mxu0
        %v2234 = vadd.f32 %v2065, %v2233
        %v2235 = vpop.f32.mrf.mxu0
        %v2236 = vadd.f32 %v2067, %v2235
        %2237 = vmatmul.bf16.gmra.mxu0 %v499
        %v2238 = vpop.f32.mrf.mxu0
        %v2239 = vadd.f32 %v2070, %v2238
        %v2240 = vpop.f32.mrf.mxu0
        %v2241 = vadd.f32 %v2072, %v2240
        %2242 = vmatmul.bf16.gmra.mxu0 %v501
        %v2243 = vpop.f32.mrf.mxu0
        %v2244 = vadd.f32 %v2075, %v2243
        %v2245 = vpop.f32.mrf.mxu0
        %v2246 = vadd.f32 %v2077, %v2245
        %2247 = vdwg.mxu0
        %v2248 = vmax.f32 %v1075, 0.0
        %v2249 = vmax.f32 %v1413, 0.0
        %v2250 = vmax.f32 %v1751, 0.0
        %v2251 = vmax.f32 %v2089, 0.0
        %v2252 = vmax.f32 %v1077, 0.0
        %v2253 = vmax.f32 %v1415, 0.0
        %v2254 = vmax.f32 %v1753, 0.0
        %v2255 = vmax.f32 %v2091, 0.0
        %v2256 = vmax.f32 %v1080, 0.0
        %v2257 = vmax.f32 %v1418, 0.0
        %v2258 = vmax.f32 %v1756, 0.0
        %v2259 = vmax.f32 %v2094, 0.0
        %v2260 = vmax.f32 %v1082, 0.0
        %v2261 = vmax.f32 %v1420, 0.0
        %v2262 = vmax.f32 %v1758, 0.0
        %v2263 = vmax.f32 %v2096, 0.0
        %v2264 = vmax.f32 %v1085, 0.0
        %v2265 = vmax.f32 %v1423, 0.0
        %v2266 = vmax.f32 %v1761, 0.0
        %v2267 = vmax.f32 %v2099, 0.0
        %v2268 = vmax.f32 %v1087, 0.0
        %v2269 = vmax.f32 %v1425, 0.0
        %v2270 = vmax.f32 %v1763, 0.0
        %v2271 = vmax.f32 %v2101, 0.0
        %v2272 = vmax.f32 %v1090, 0.0
        %v2273 = vmax.f32 %v1428, 0.0
        %v2274 = vmax.f32 %v1766, 0.0
        %v2275 = vmax.f32 %v2104, 0.0
        %v2276 = vmax.f32 %v1092, 0.0
        %v2277 = vmax.f32 %v1430, 0.0
        %v2278 = vmax.f32 %v1768, 0.0
        %v2279 = vmax.f32 %v2106, 0.0
        %v2280 = vmax.f32 %v1095, 0.0
        %v2281 = vmax.f32 %v1433, 0.0
        %v2282 = vmax.f32 %v1771, 0.0
        %v2283 = vmax.f32 %v2109, 0.0
        %v2284 = vmax.f32 %v1097, 0.0
        %v2285 = vmax.f32 %v1435, 0.0
        %v2286 = vmax.f32 %v1773, 0.0
        %v2287 = vmax.f32 %v2111, 0.0
        %v2288 = vmax.f32 %v1100, 0.0
        %v2289 = vmax.f32 %v1438, 0.0
        %v2290 = vmax.f32 %v1776, 0.0
        %v2291 = vmax.f32 %v2114, 0.0
        %v2292 = vmax.f32 %v1102, 0.0
        %v2293 = vmax.f32 %v1440, 0.0
        %v2294 = vmax.f32 %v1778, 0.0
        %v2295 = vmax.f32 %v2116, 0.0
        %v2296 = vmax.f32 %v1105, 0.0
        %v2297 = vmax.f32 %v1443, 0.0
        %v2298 = vmax.f32 %v1781, 0.0
        %v2299 = vmax.f32 %v2119, 0.0
        %v2300 = vmax.f32 %v1107, 0.0
        %v2301 = vmax.f32 %v1445, 0.0
        %v2302 = vmax.f32 %v1783, 0.0
        %v2303 = vmax.f32 %v2121, 0.0
        %v2304 = vmax.f32 %v1110, 0.0
        %v2305 = vmax.f32 %v1448, 0.0
        %v2306 = vmax.f32 %v1786, 0.0
        %v2307 = vmax.f32 %v2124, 0.0
        %v2308 = vmax.f32 %v1112, 0.0
        %v2309 = vmax.f32 %v1450, 0.0
        %v2310 = vmax.f32 %v1788, 0.0
        %v2311 = vmax.f32 %v2126, 0.0
        %v2312 = vmax.f32 %v1115, 0.0
        %v2313 = vmax.f32 %v1453, 0.0
        %v2314 = vmax.f32 %v1791, 0.0
        %v2315 = vmax.f32 %v2129, 0.0
        %v2316 = vmax.f32 %v1117, 0.0
        %v2317 = vmax.f32 %v1455, 0.0
        %v2318 = vmax.f32 %v1793, 0.0
        %v2319 = vmax.f32 %v2131, 0.0
        %v2320 = vmax.f32 %v1120, 0.0
        %v2321 = vmax.f32 %v1458, 0.0
        %v2322 = vmax.f32 %v1796, 0.0
        %v2323 = vmax.f32 %v2134, 0.0
        %v2324 = vmax.f32 %v1122, 0.0
        %v2325 = vmax.f32 %v1460, 0.0
        %v2326 = vmax.f32 %v1798, 0.0
        %v2327 = vmax.f32 %v2136, 0.0
        %v2328 = vmax.f32 %v1125, 0.0
        %v2329 = vmax.f32 %v1463, 0.0
        %v2330 = vmax.f32 %v1801, 0.0
        %v2331 = vmax.f32 %v2139, 0.0
        %v2332 = vmax.f32 %v1127, 0.0
        %v2333 = vmax.f32 %v1465, 0.0
        %v2334 = vmax.f32 %v1803, 0.0
        %v2335 = vmax.f32 %v2141, 0.0
        %v2336 = vmax.f32 %v1130, 0.0
        %v2337 = vmax.f32 %v1468, 0.0
        %v2338 = vmax.f32 %v1806, 0.0
        %v2339 = vmax.f32 %v2144, 0.0
        %v2340 = vmax.f32 %v1132, 0.0
        %v2341 = vmax.f32 %v1470, 0.0
        %v2342 = vmax.f32 %v1808, 0.0
        %v2343 = vmax.f32 %v2146, 0.0
        %v2344 = vmax.f32 %v1135, 0.0
        %v2345 = vmax.f32 %v1473, 0.0
        %v2346 = vmax.f32 %v1811, 0.0
        %v2347 = vmax.f32 %v2149, 0.0
        %v2348 = vmax.f32 %v1137, 0.0
        %v2349 = vmax.f32 %v1475, 0.0
        %v2350 = vmax.f32 %v1813, 0.0
        %v2351 = vmax.f32 %v2151, 0.0
        %v2352 = vmax.f32 %v1140, 0.0
        %v2353 = vmax.f32 %v1478, 0.0
        %v2354 = vmax.f32 %v1816, 0.0
        %v2355 = vmax.f32 %v2154, 0.0
        %v2356 = vmax.f32 %v1142, 0.0
        %v2357 = vmax.f32 %v1480, 0.0
        %v2358 = vmax.f32 %v1818, 0.0
        %v2359 = vmax.f32 %v2156, 0.0
        %v2360 = vmax.f32 %v1145, 0.0
        %v2361 = vmax.f32 %v1483, 0.0
        %v2362 = vmax.f32 %v1821, 0.0
        %v2363 = vmax.f32 %v2159, 0.0
        %v2364 = vmax.f32 %v1147, 0.0
        %v2365 = vmax.f32 %v1485, 0.0
        %v2366 = vmax.f32 %v1823, 0.0
        %v2367 = vmax.f32 %v2161, 0.0
        %v2368 = vmax.f32 %v1150, 0.0
        %v2369 = vmax.f32 %v1488, 0.0
        %v2370 = vmax.f32 %v1826, 0.0
        %v2371 = vmax.f32 %v2164, 0.0
        %v2372 = vmax.f32 %v1152, 0.0
        %v2373 = vmax.f32 %v1490, 0.0
        %v2374 = vmax.f32 %v1828, 0.0
        %v2375 = vmax.f32 %v2166, 0.0
        %v2376 = vmax.f32 %v1155, 0.0
        %v2377 = vmax.f32 %v1493, 0.0
        %v2378 = vmax.f32 %v1831, 0.0
        %v2379 = vmax.f32 %v2169, 0.0
        %v2380 = vmax.f32 %v1157, 0.0
        %v2381 = vmax.f32 %v1495, 0.0
        %v2382 = vmax.f32 %v1833, 0.0
        %v2383 = vmax.f32 %v2171, 0.0
        %v2384 = vmax.f32 %v1160, 0.0
        %v2385 = vmax.f32 %v1498, 0.0
        %v2386 = vmax.f32 %v1836, 0.0
        %v2387 = vmax.f32 %v2174, 0.0
        %v2388 = vmax.f32 %v1162, 0.0
        %v2389 = vmax.f32 %v1500, 0.0
        %v2390 = vmax.f32 %v1838, 0.0
        %v2391 = vmax.f32 %v2176, 0.0
        %v2392 = vmax.f32 %v1165, 0.0
        %v2393 = vmax.f32 %v1503, 0.0
        %v2394 = vmax.f32 %v1841, 0.0
        %v2395 = vmax.f32 %v2179, 0.0
        %v2396 = vmax.f32 %v1167, 0.0
        %v2397 = vmax.f32 %v1505, 0.0
        %v2398 = vmax.f32 %v1843, 0.0
        %v2399 = vmax.f32 %v2181, 0.0
        %v2400 = vmax.f32 %v1170, 0.0
        %v2401 = vmax.f32 %v1508, 0.0
        %v2402 = vmax.f32 %v1846, 0.0
        %v2403 = vmax.f32 %v2184, 0.0
        %v2404 = vmax.f32 %v1172, 0.0
        %v2405 = vmax.f32 %v1510, 0.0
        %v2406 = vmax.f32 %v1848, 0.0
        %v2407 = vmax.f32 %v2186, 0.0
        %v2408 = vmax.f32 %v1175, 0.0
        %v2409 = vmax.f32 %v1513, 0.0
        %v2410 = vmax.f32 %v1851, 0.0
        %v2411 = vmax.f32 %v2189, 0.0
        %v2412 = vmax.f32 %v1177, 0.0
        %v2413 = vmax.f32 %v1515, 0.0
        %v2414 = vmax.f32 %v1853, 0.0
        %v2415 = vmax.f32 %v2191, 0.0
        %v2416 = vmax.f32 %v1180, 0.0
        %v2417 = vmax.f32 %v1518, 0.0
        %v2418 = vmax.f32 %v1856, 0.0
        %v2419 = vmax.f32 %v2194, 0.0
        %v2420 = vmax.f32 %v1182, 0.0
        %v2421 = vmax.f32 %v1520, 0.0
        %v2422 = vmax.f32 %v1858, 0.0
        %v2423 = vmax.f32 %v2196, 0.0
        %v2424 = vmax.f32 %v1185, 0.0
        %v2425 = vmax.f32 %v1523, 0.0
        %v2426 = vmax.f32 %v1861, 0.0
        %v2427 = vmax.f32 %v2199, 0.0
        %v2428 = vmax.f32 %v1187, 0.0
        %v2429 = vmax.f32 %v1525, 0.0
        %v2430 = vmax.f32 %v1863, 0.0
        %v2431 = vmax.f32 %v2201, 0.0
        %v2432 = vmax.f32 %v1190, 0.0
        %v2433 = vmax.f32 %v1528, 0.0
        %v2434 = vmax.f32 %v1866, 0.0
        %v2435 = vmax.f32 %v2204, 0.0
        %v2436 = vmax.f32 %v1192, 0.0
        %v2437 = vmax.f32 %v1530, 0.0
        %v2438 = vmax.f32 %v1868, 0.0
        %v2439 = vmax.f32 %v2206, 0.0
        %v2440 = vmax.f32 %v1195, 0.0
        %v2441 = vmax.f32 %v1533, 0.0
        %v2442 = vmax.f32 %v1871, 0.0
        %v2443 = vmax.f32 %v2209, 0.0
        %v2444 = vmax.f32 %v1197, 0.0
        %v2445 = vmax.f32 %v1535, 0.0
        %v2446 = vmax.f32 %v1873, 0.0
        %v2447 = vmax.f32 %v2211, 0.0
        %v2448 = vmax.f32 %v1200, 0.0
        %v2449 = vmax.f32 %v1538, 0.0
        %v2450 = vmax.f32 %v1876, 0.0
        %v2451 = vmax.f32 %v2214, 0.0
        %v2452 = vmax.f32 %v1202, 0.0
        %v2453 = vmax.f32 %v1540, 0.0
        %v2454 = vmax.f32 %v1878, 0.0
        %v2455 = vmax.f32 %v2216, 0.0
        %v2456 = vmax.f32 %v1205, 0.0
        %v2457 = vmax.f32 %v1543, 0.0
        %v2458 = vmax.f32 %v1881, 0.0
        %v2459 = vmax.f32 %v2219, 0.0
        %v2460 = vmax.f32 %v1207, 0.0
        %v2461 = vmax.f32 %v1545, 0.0
        %v2462 = vmax.f32 %v1883, 0.0
        %v2463 = vmax.f32 %v2221, 0.0
        %v2464 = vmax.f32 %v1210, 0.0
        %v2465 = vmax.f32 %v1548, 0.0
        %v2466 = vmax.f32 %v1886, 0.0
        %v2467 = vmax.f32 %v2224, 0.0
        %v2468 = vmax.f32 %v1212, 0.0
        %v2469 = vmax.f32 %v1550, 0.0
        %v2470 = vmax.f32 %v1888, 0.0
        %v2471 = vmax.f32 %v2226, 0.0
        %v2472 = vmax.f32 %v1215, 0.0
        %v2473 = vmax.f32 %v1553, 0.0
        %v2474 = vmax.f32 %v1891, 0.0
        %v2475 = vmax.f32 %v2229, 0.0
        %v2476 = vmax.f32 %v1217, 0.0
        %v2477 = vmax.f32 %v1555, 0.0
        %v2478 = vmax.f32 %v1893, 0.0
        %v2479 = vmax.f32 %v2231, 0.0
        %v2480 = vmax.f32 %v1220, 0.0
        %v2481 = vmax.f32 %v1558, 0.0
        %v2482 = vmax.f32 %v1896, 0.0
        %v2483 = vmax.f32 %v2234, 0.0
        %v2484 = vmax.f32 %v1222, 0.0
        %v2485 = vmax.f32 %v1560, 0.0
        %v2486 = vmax.f32 %v1898, 0.0
        %v2487 = vmax.f32 %v2236, 0.0
        %v2488 = vmax.f32 %v1225, 0.0
        %v2489 = vmax.f32 %v1563, 0.0
        %v2490 = vmax.f32 %v1901, 0.0
        %v2491 = vmax.f32 %v2239, 0.0
        %v2492 = vmax.f32 %v1227, 0.0
        %v2493 = vmax.f32 %v1565, 0.0
        %v2494 = vmax.f32 %v1903, 0.0
        %v2495 = vmax.f32 %v2241, 0.0
        %v2496 = vmax.f32 %v1230, 0.0
        %v2497 = vmax.f32 %v1568, 0.0
        %v2498 = vmax.f32 %v1906, 0.0
        %v2499 = vmax.f32 %v2244, 0.0
        %v2500 = vmax.f32 %v1232, 0.0
        %v2501 = vmax.f32 %v1570, 0.0
        %v2502 = vmax.f32 %v1908, 0.0
        %v2503 = vmax.f32 %v2246, 0.0
        %v2504 = vpack.c.bf16 %v2252, %v2248
        %v2505 = vpack.c.bf16 %v2253, %v2249
        %v2506 = vpack.c.bf16 %v2254, %v2250
        %v2507 = vpack.c.bf16 %v2255, %v2251
        %v2508 = vpack.c.bf16 %v2260, %v2256
        %v2509 = vpack.c.bf16 %v2261, %v2257
        %v2510 = vpack.c.bf16 %v2262, %v2258
        %v2511 = vpack.c.bf16 %v2263, %v2259
        %v2512 = vpack.c.bf16 %v2268, %v2264
        %v2513 = vpack.c.bf16 %v2269, %v2265
        %v2514 = vpack.c.bf16 %v2270, %v2266
        %v2515 = vpack.c.bf16 %v2271, %v2267
        %v2516 = vpack.c.bf16 %v2276, %v2272
        %v2517 = vpack.c.bf16 %v2277, %v2273
        %v2518 = vpack.c.bf16 %v2278, %v2274
        %v2519 = vpack.c.bf16 %v2279, %v2275
        %v2520 = vpack.c.bf16 %v2284, %v2280
        %v2521 = vpack.c.bf16 %v2285, %v2281
        %v2522 = vpack.c.bf16 %v2286, %v2282
        %v2523 = vpack.c.bf16 %v2287, %v2283
        %v2524 = vpack.c.bf16 %v2292, %v2288
        %v2525 = vpack.c.bf16 %v2293, %v2289
        %v2526 = vpack.c.bf16 %v2294, %v2290
        %v2527 = vpack.c.bf16 %v2295, %v2291
        %v2528 = vpack.c.bf16 %v2300, %v2296
        %v2529 = vpack.c.bf16 %v2301, %v2297
        %v2530 = vpack.c.bf16 %v2302, %v2298
        %v2531 = vpack.c.bf16 %v2303, %v2299
        %v2532 = vpack.c.bf16 %v2308, %v2304
        %v2533 = vpack.c.bf16 %v2309, %v2305
        %v2534 = vpack.c.bf16 %v2310, %v2306
        %v2535 = vpack.c.bf16 %v2311, %v2307
        %v2536 = vpack.c.bf16 %v2316, %v2312
        %v2537 = vpack.c.bf16 %v2317, %v2313
        %v2538 = vpack.c.bf16 %v2318, %v2314
        %v2539 = vpack.c.bf16 %v2319, %v2315
        %v2540 = vpack.c.bf16 %v2324, %v2320
        %v2541 = vpack.c.bf16 %v2325, %v2321
        %v2542 = vpack.c.bf16 %v2326, %v2322
        %v2543 = vpack.c.bf16 %v2327, %v2323
        %v2544 = vpack.c.bf16 %v2332, %v2328
        %v2545 = vpack.c.bf16 %v2333, %v2329
        %v2546 = vpack.c.bf16 %v2334, %v2330
        %v2547 = vpack.c.bf16 %v2335, %v2331
        %v2548 = vpack.c.bf16 %v2340, %v2336
        %v2549 = vpack.c.bf16 %v2341, %v2337
        %v2550 = vpack.c.bf16 %v2342, %v2338
        %v2551 = vpack.c.bf16 %v2343, %v2339
        %v2552 = vpack.c.bf16 %v2348, %v2344
        %v2553 = vpack.c.bf16 %v2349, %v2345
        %v2554 = vpack.c.bf16 %v2350, %v2346
        %v2555 = vpack.c.bf16 %v2351, %v2347
        %v2556 = vpack.c.bf16 %v2356, %v2352
        %v2557 = vpack.c.bf16 %v2357, %v2353
        %v2558 = vpack.c.bf16 %v2358, %v2354
        %v2559 = vpack.c.bf16 %v2359, %v2355
        %v2560 = vpack.c.bf16 %v2364, %v2360
        %v2561 = vpack.c.bf16 %v2365, %v2361
        %v2562 = vpack.c.bf16 %v2366, %v2362
        %v2563 = vpack.c.bf16 %v2367, %v2363
        %v2564 = vpack.c.bf16 %v2372, %v2368
        %v2565 = vpack.c.bf16 %v2373, %v2369
        %v2566 = vpack.c.bf16 %v2374, %v2370
        %v2567 = vpack.c.bf16 %v2375, %v2371
        %v2568 = vpack.c.bf16 %v2380, %v2376
        %v2569 = vpack.c.bf16 %v2381, %v2377
        %v2570 = vpack.c.bf16 %v2382, %v2378
        %v2571 = vpack.c.bf16 %v2383, %v2379
        %v2572 = vpack.c.bf16 %v2388, %v2384
        %v2573 = vpack.c.bf16 %v2389, %v2385
        %v2574 = vpack.c.bf16 %v2390, %v2386
        %v2575 = vpack.c.bf16 %v2391, %v2387
        %v2576 = vpack.c.bf16 %v2396, %v2392
        %v2577 = vpack.c.bf16 %v2397, %v2393
        %v2578 = vpack.c.bf16 %v2398, %v2394
        %v2579 = vpack.c.bf16 %v2399, %v2395
        %v2580 = vpack.c.bf16 %v2404, %v2400
        %v2581 = vpack.c.bf16 %v2405, %v2401
        %v2582 = vpack.c.bf16 %v2406, %v2402
        %v2583 = vpack.c.bf16 %v2407, %v2403
        %v2584 = vpack.c.bf16 %v2412, %v2408
        %v2585 = vpack.c.bf16 %v2413, %v2409
        %v2586 = vpack.c.bf16 %v2414, %v2410
        %v2587 = vpack.c.bf16 %v2415, %v2411
        %v2588 = vpack.c.bf16 %v2420, %v2416
        %v2589 = vpack.c.bf16 %v2421, %v2417
        %v2590 = vpack.c.bf16 %v2422, %v2418
        %v2591 = vpack.c.bf16 %v2423, %v2419
        %v2592 = vpack.c.bf16 %v2428, %v2424
        %v2593 = vpack.c.bf16 %v2429, %v2425
        %v2594 = vpack.c.bf16 %v2430, %v2426
        %v2595 = vpack.c.bf16 %v2431, %v2427
        %v2596 = vpack.c.bf16 %v2436, %v2432
        %v2597 = vpack.c.bf16 %v2437, %v2433
        %v2598 = vpack.c.bf16 %v2438, %v2434
        %v2599 = vpack.c.bf16 %v2439, %v2435
        %v2600 = vpack.c.bf16 %v2444, %v2440
        %v2601 = vpack.c.bf16 %v2445, %v2441
        %v2602 = vpack.c.bf16 %v2446, %v2442
        %v2603 = vpack.c.bf16 %v2447, %v2443
        %v2604 = vpack.c.bf16 %v2452, %v2448
        %v2605 = vpack.c.bf16 %v2453, %v2449
        %v2606 = vpack.c.bf16 %v2454, %v2450
        %v2607 = vpack.c.bf16 %v2455, %v2451
        %v2608 = vpack.c.bf16 %v2460, %v2456
        %v2609 = vpack.c.bf16 %v2461, %v2457
        %v2610 = vpack.c.bf16 %v2462, %v2458
        %v2611 = vpack.c.bf16 %v2463, %v2459
        %v2612 = vpack.c.bf16 %v2468, %v2464
        %v2613 = vpack.c.bf16 %v2469, %v2465
        %v2614 = vpack.c.bf16 %v2470, %v2466
        %v2615 = vpack.c.bf16 %v2471, %v2467
        %v2616 = vpack.c.bf16 %v2476, %v2472
        %v2617 = vpack.c.bf16 %v2477, %v2473
        %v2618 = vpack.c.bf16 %v2478, %v2474
        %v2619 = vpack.c.bf16 %v2479, %v2475
        %v2620 = vpack.c.bf16 %v2484, %v2480
        %v2621 = vpack.c.bf16 %v2485, %v2481
        %v2622 = vpack.c.bf16 %v2486, %v2482
        %v2623 = vpack.c.bf16 %v2487, %v2483
        %v2624 = vpack.c.bf16 %v2492, %v2488
        %v2625 = vpack.c.bf16 %v2493, %v2489
        %v2626 = vpack.c.bf16 %v2494, %v2490
        %v2627 = vpack.c.bf16 %v2495, %v2491
        %v2628 = vpack.c.bf16 %v2500, %v2496
        %v2629 = vpack.c.bf16 %v2501, %v2497
        %v2630 = vpack.c.bf16 %v2502, %v2498
        %v2631 = vpack.c.bf16 %v2503, %v2499
        %v2632 = vld [vmem:[#allocation8] sm:$0xf]
        %v2633 = vld [vmem:[#allocation8 + $0x4] sm:$0xf]
        %v2634 = vld [vmem:[#allocation8 + $0x8] sm:$0xf]
        %v2635 = vld [vmem:[#allocation8 + $0xc] sm:$0xf]
        %v2636 = vld [vmem:[#allocation8 + $0x10] sm:$0xf]
        %v2637 = vld [vmem:[#allocation8 + $0x14] sm:$0xf]
        %v2638 = vld [vmem:[#allocation8 + $0x18] sm:$0xf]
        %v2639 = vld [vmem:[#allocation8 + $0x1c] sm:$0xf]
        %v2640 = vld [vmem:[#allocation8 + $0x20] sm:$0xf]
        %v2641 = vld [vmem:[#allocation8 + $0x24] sm:$0xf]
        %v2642 = vld [vmem:[#allocation8 + $0x28] sm:$0xf]
        %v2643 = vld [vmem:[#allocation8 + $0x2c] sm:$0xf]
        %v2644 = vld [vmem:[#allocation8 + $0x30] sm:$0xf]
        %v2645 = vld [vmem:[#allocation8 + $0x34] sm:$0xf]
        %v2646 = vld [vmem:[#allocation8 + $0x38] sm:$0xf]
        %v2647 = vld [vmem:[#allocation8 + $0x3c] sm:$0xf]
        %v2648 = vld [vmem:[#allocation8 + $0x40] sm:$0xf]
        %v2649 = vld [vmem:[#allocation8 + $0x44] sm:$0xf]
        %v2650 = vld [vmem:[#allocation8 + $0x48] sm:$0xf]
        %v2651 = vld [vmem:[#allocation8 + $0x4c] sm:$0xf]
        %v2652 = vld [vmem:[#allocation8 + $0x50] sm:$0xf]
        %v2653 = vld [vmem:[#allocation8 + $0x54] sm:$0xf]
        %v2654 = vld [vmem:[#allocation8 + $0x58] sm:$0xf]
        %v2655 = vld [vmem:[#allocation8 + $0x5c] sm:$0xf]
        %v2656 = vld [vmem:[#allocation8 + $0x60] sm:$0xf]
        %v2657 = vld [vmem:[#allocation8 + $0x64] sm:$0xf]
        %v2658 = vld [vmem:[#allocation8 + $0x68] sm:$0xf]
        %v2659 = vld [vmem:[#allocation8 + $0x6c] sm:$0xf]
        %v2660 = vld [vmem:[#allocation8 + $0x70] sm:$0xf]
        %v2661 = vld [vmem:[#allocation8 + $0x74] sm:$0xf]
        %v2662 = vld [vmem:[#allocation8 + $0x78] sm:$0xf]
        %v2663 = vld [vmem:[#allocation8 + $0x7c] sm:$0xf]
        %v2664 = vld [vmem:[#allocation8 + $0x80] sm:$0xf]
        %v2665 = vld [vmem:[#allocation8 + $0x84] sm:$0xf]
        %v2666 = vld [vmem:[#allocation8 + $0x88] sm:$0xf]
        %v2667 = vld [vmem:[#allocation8 + $0x8c] sm:$0xf]
        %v2668 = vld [vmem:[#allocation8 + $0x90] sm:$0xf]
        %v2669 = vld [vmem:[#allocation8 + $0x94] sm:$0xf]
        %v2670 = vld [vmem:[#allocation8 + $0x98] sm:$0xf]
        %v2671 = vld [vmem:[#allocation8 + $0x9c] sm:$0xf]
        %v2672 = vld [vmem:[#allocation8 + $0xa0] sm:$0xf]
        %v2673 = vld [vmem:[#allocation8 + $0xa4] sm:$0xf]
        %v2674 = vld [vmem:[#allocation8 + $0xa8] sm:$0xf]
        %v2675 = vld [vmem:[#allocation8 + $0xac] sm:$0xf]
        %v2676 = vld [vmem:[#allocation8 + $0xb0] sm:$0xf]
        %v2677 = vld [vmem:[#allocation8 + $0xb4] sm:$0xf]
        %v2678 = vld [vmem:[#allocation8 + $0xb8] sm:$0xf]
        %v2679 = vld [vmem:[#allocation8 + $0xbc] sm:$0xf]
        %v2680 = vld [vmem:[#allocation8 + $0xc0] sm:$0xf]
        %v2681 = vld [vmem:[#allocation8 + $0xc4] sm:$0xf]
        %v2682 = vld [vmem:[#allocation8 + $0xc8] sm:$0xf]
        %v2683 = vld [vmem:[#allocation8 + $0xcc] sm:$0xf]
        %v2684 = vld [vmem:[#allocation8 + $0xd0] sm:$0xf]
        %v2685 = vld [vmem:[#allocation8 + $0xd4] sm:$0xf]
        %v2686 = vld [vmem:[#allocation8 + $0xd8] sm:$0xf]
        %v2687 = vld [vmem:[#allocation8 + $0xdc] sm:$0xf]
        %v2688 = vld [vmem:[#allocation8 + $0xe0] sm:$0xf]
        %v2689 = vld [vmem:[#allocation8 + $0xe4] sm:$0xf]
        %v2690 = vld [vmem:[#allocation8 + $0xe8] sm:$0xf]
        %v2691 = vld [vmem:[#allocation8 + $0xec] sm:$0xf]
        %v2692 = vld [vmem:[#allocation8 + $0xf0] sm:$0xf]
        %v2693 = vld [vmem:[#allocation8 + $0xf4] sm:$0xf]
        %v2694 = vld [vmem:[#allocation8 + $0xf8] sm:$0xf]
        %v2695 = vld [vmem:[#allocation8 + $0xfc] sm:$0xf]
        %v2696 = vld [vmem:[#allocation10] sm:$0x1]
        %v2698 = vperm.slane %v2696, 0
        %v2764 = vunpack.c.l.b16 %v2632
        %v2765 = vunpack.c.l.b16 %v2633
        %v2766 = vunpack.c.l.b16 %v2634
        %v2767 = vunpack.c.l.b16 %v2635
        %v2768 = vunpack.c.l.b16 %v2636
        %v2769 = vunpack.c.l.b16 %v2637
        %v2770 = vunpack.c.l.b16 %v2638
        %v2771 = vunpack.c.l.b16 %v2639
        %v2772 = vunpack.c.l.b16 %v2640
        %v2773 = vunpack.c.l.b16 %v2641
        %v2774 = vunpack.c.l.b16 %v2642
        %v2775 = vunpack.c.l.b16 %v2643
        %v2776 = vunpack.c.l.b16 %v2644
        %v2777 = vunpack.c.l.b16 %v2645
        %v2778 = vunpack.c.l.b16 %v2646
        %v2779 = vunpack.c.l.b16 %v2647
        %v2780 = vunpack.c.l.b16 %v2648
        %v2781 = vunpack.c.l.b16 %v2649
        %v2782 = vunpack.c.l.b16 %v2650
        %v2783 = vunpack.c.l.b16 %v2651
        %v2784 = vunpack.c.l.b16 %v2652
        %v2785 = vunpack.c.l.b16 %v2653
        %v2786 = vunpack.c.l.b16 %v2654
        %v2787 = vunpack.c.l.b16 %v2655
        %v2788 = vunpack.c.l.b16 %v2656
        %v2789 = vunpack.c.l.b16 %v2657
        %v2790 = vunpack.c.l.b16 %v2658
        %v2791 = vunpack.c.l.b16 %v2659
        %v2792 = vunpack.c.l.b16 %v2660
        %v2793 = vunpack.c.l.b16 %v2661
        %v2794 = vunpack.c.l.b16 %v2662
        %v2795 = vunpack.c.l.b16 %v2663
        %v2796 = vunpack.c.l.b16 %v2664
        %v2797 = vunpack.c.l.b16 %v2665
        %v2798 = vunpack.c.l.b16 %v2666
        %v2799 = vunpack.c.l.b16 %v2667
        %v2800 = vunpack.c.l.b16 %v2668
        %v2801 = vunpack.c.l.b16 %v2669
        %v2802 = vunpack.c.l.b16 %v2670
        %v2803 = vunpack.c.l.b16 %v2671
        %v2804 = vunpack.c.l.b16 %v2672
        %v2805 = vunpack.c.l.b16 %v2673
        %v2806 = vunpack.c.l.b16 %v2674
        %v2807 = vunpack.c.l.b16 %v2675
        %v2808 = vunpack.c.l.b16 %v2676
        %v2809 = vunpack.c.l.b16 %v2677
        %v2810 = vunpack.c.l.b16 %v2678
        %v2811 = vunpack.c.l.b16 %v2679
        %v2812 = vunpack.c.l.b16 %v2680
        %v2813 = vunpack.c.l.b16 %v2681
        %v2814 = vunpack.c.l.b16 %v2682
        %v2815 = vunpack.c.l.b16 %v2683
        %v2816 = vunpack.c.l.b16 %v2684
        %v2817 = vunpack.c.l.b16 %v2685
        %v2818 = vunpack.c.l.b16 %v2686
        %v2819 = vunpack.c.l.b16 %v2687
        %v2820 = vunpack.c.l.b16 %v2688
        %v2821 = vunpack.c.l.b16 %v2689
        %v2822 = vunpack.c.l.b16 %v2690
        %v2823 = vunpack.c.l.b16 %v2691
        %v2824 = vunpack.c.l.b16 %v2692
        %v2825 = vunpack.c.l.b16 %v2693
        %v2826 = vunpack.c.l.b16 %v2694
        %v2827 = vunpack.c.l.b16 %v2695
        %v2828 = vpack.c.b16 %v2765, %v2764
        %v2829 = vpack.c.b16 %v2767, %v2766
        %v2830 = vpack.c.b16 %v2769, %v2768
        %v2831 = vpack.c.b16 %v2771, %v2770
        %v2832 = vpack.c.b16 %v2773, %v2772
        %v2833 = vpack.c.b16 %v2775, %v2774
        %v2834 = vpack.c.b16 %v2777, %v2776
        %v2835 = vpack.c.b16 %v2779, %v2778
        %v2836 = vpack.c.b16 %v2781, %v2780
        %v2837 = vpack.c.b16 %v2783, %v2782
        %v2838 = vpack.c.b16 %v2785, %v2784
        %v2839 = vpack.c.b16 %v2787, %v2786
        %v2840 = vpack.c.b16 %v2789, %v2788
        %v2841 = vpack.c.b16 %v2791, %v2790
        %v2842 = vpack.c.b16 %v2793, %v2792
        %v2843 = vpack.c.b16 %v2795, %v2794
        %v2844 = vpack.c.b16 %v2797, %v2796
        %v2845 = vpack.c.b16 %v2799, %v2798
        %v2846 = vpack.c.b16 %v2801, %v2800
        %v2847 = vpack.c.b16 %v2803, %v2802
        %v2848 = vpack.c.b16 %v2805, %v2804
        %v2849 = vpack.c.b16 %v2807, %v2806
        %v2850 = vpack.c.b16 %v2809, %v2808
        %v2851 = vpack.c.b16 %v2811, %v2810
        %v2852 = vpack.c.b16 %v2813, %v2812
        %v2853 = vpack.c.b16 %v2815, %v2814
        %v2854 = vpack.c.b16 %v2817, %v2816
        %v2855 = vpack.c.b16 %v2819, %v2818
        %v2856 = vpack.c.b16 %v2821, %v2820
        %v2857 = vpack.c.b16 %v2823, %v2822
        %v2858 = vpack.c.b16 %v2825, %v2824
        %v2859 = vpack.c.b16 %v2827, %v2826
        %2892 = vmatpush.bf16.msra.mxu0 %v2835
        %2893 = vmatpush.bf16.msra.mxu0 %v2834
        %2894 = vmatpush.bf16.msra.mxu0 %v2833
        %2895 = vmatpush.bf16.msra.mxu0 %v2832
        %2896 = vmatpush.bf16.msra.mxu0 %v2831
        %2897 = vmatpush.bf16.msra.mxu0 %v2830
        %2898 = vmatpush.bf16.msra.mxu0 %v2829
        %2899 = vmatpush.bf16.msra.mxu0 %v2828
        %2900 = vmatmul.bf16.gmra.mxu0 %v2504
        %v2901 = vpop.f32.mrf.mxu0
        %v2902 = vadd.f32 %v2698, %v2901
        %v2903 = vpop.f32.mrf.mxu0
        %v2904 = vadd.f32 %v2698, %v2903
        %2905 = vmatmul.bf16.gmra.mxu0 %v2508
        %v2906 = vpop.f32.mrf.mxu0
        %v2907 = vadd.f32 %v2698, %v2906
        %v2908 = vpop.f32.mrf.mxu0
        %v2909 = vadd.f32 %v2698, %v2908
        %2910 = vmatmul.bf16.gmra.mxu0 %v2512
        %v2911 = vpop.f32.mrf.mxu0
        %v2912 = vadd.f32 %v2698, %v2911
        %v2913 = vpop.f32.mrf.mxu0
        %v2914 = vadd.f32 %v2698, %v2913
        %2915 = vmatmul.bf16.gmra.mxu0 %v2516
        %v2916 = vpop.f32.mrf.mxu0
        %v2917 = vadd.f32 %v2698, %v2916
        %v2918 = vpop.f32.mrf.mxu0
        %v2919 = vadd.f32 %v2698, %v2918
        %2920 = vmatmul.bf16.gmra.mxu0 %v2520
        %v2921 = vpop.f32.mrf.mxu0
        %v2922 = vadd.f32 %v2698, %v2921
        %v2923 = vpop.f32.mrf.mxu0
        %v2924 = vadd.f32 %v2698, %v2923
        %2925 = vmatmul.bf16.gmra.mxu0 %v2524
        %v2926 = vpop.f32.mrf.mxu0
        %v2927 = vadd.f32 %v2698, %v2926
        %v2928 = vpop.f32.mrf.mxu0
        %v2929 = vadd.f32 %v2698, %v2928
        %2930 = vmatmul.bf16.gmra.mxu0 %v2528
        %v2931 = vpop.f32.mrf.mxu0
        %v2932 = vadd.f32 %v2698, %v2931
        %v2933 = vpop.f32.mrf.mxu0
        %v2934 = vadd.f32 %v2698, %v2933
        %2935 = vmatmul.bf16.gmra.mxu0 %v2532
        %v2936 = vpop.f32.mrf.mxu0
        %v2937 = vadd.f32 %v2698, %v2936
        %v2938 = vpop.f32.mrf.mxu0
        %v2939 = vadd.f32 %v2698, %v2938
        %2940 = vmatmul.bf16.gmra.mxu0 %v2536
        %v2941 = vpop.f32.mrf.mxu0
        %v2942 = vadd.f32 %v2698, %v2941
        %v2943 = vpop.f32.mrf.mxu0
        %v2944 = vadd.f32 %v2698, %v2943
        %2945 = vmatmul.bf16.gmra.mxu0 %v2540
        %v2946 = vpop.f32.mrf.mxu0
        %v2947 = vadd.f32 %v2698, %v2946
        %v2948 = vpop.f32.mrf.mxu0
        %v2949 = vadd.f32 %v2698, %v2948
        %2950 = vmatmul.bf16.gmra.mxu0 %v2544
        %v2951 = vpop.f32.mrf.mxu0
        %v2952 = vadd.f32 %v2698, %v2951
        %v2953 = vpop.f32.mrf.mxu0
        %v2954 = vadd.f32 %v2698, %v2953
        %2955 = vmatmul.bf16.gmra.mxu0 %v2548
        %v2956 = vpop.f32.mrf.mxu0
        %v2957 = vadd.f32 %v2698, %v2956
        %v2958 = vpop.f32.mrf.mxu0
        %v2959 = vadd.f32 %v2698, %v2958
        %2960 = vmatmul.bf16.gmra.mxu0 %v2552
        %v2961 = vpop.f32.mrf.mxu0
        %v2962 = vadd.f32 %v2698, %v2961
        %v2963 = vpop.f32.mrf.mxu0
        %v2964 = vadd.f32 %v2698, %v2963
        %2965 = vmatmul.bf16.gmra.mxu0 %v2556
        %v2966 = vpop.f32.mrf.mxu0
        %v2967 = vadd.f32 %v2698, %v2966
        %v2968 = vpop.f32.mrf.mxu0
        %v2969 = vadd.f32 %v2698, %v2968
        %2970 = vmatmul.bf16.gmra.mxu0 %v2560
        %v2971 = vpop.f32.mrf.mxu0
        %v2972 = vadd.f32 %v2698, %v2971
        %v2973 = vpop.f32.mrf.mxu0
        %v2974 = vadd.f32 %v2698, %v2973
        %2975 = vmatmul.bf16.gmra.mxu0 %v2564
        %v2976 = vpop.f32.mrf.mxu0
        %v2977 = vadd.f32 %v2698, %v2976
        %v2978 = vpop.f32.mrf.mxu0
        %v2979 = vadd.f32 %v2698, %v2978
        %2980 = vmatmul.bf16.gmra.mxu0 %v2568
        %v2981 = vpop.f32.mrf.mxu0
        %v2982 = vadd.f32 %v2698, %v2981
        %v2983 = vpop.f32.mrf.mxu0
        %v2984 = vadd.f32 %v2698, %v2983
        %2985 = vmatmul.bf16.gmra.mxu0 %v2572
        %v2986 = vpop.f32.mrf.mxu0
        %v2987 = vadd.f32 %v2698, %v2986
        %v2988 = vpop.f32.mrf.mxu0
        %v2989 = vadd.f32 %v2698, %v2988
        %2990 = vmatmul.bf16.gmra.mxu0 %v2576
        %v2991 = vpop.f32.mrf.mxu0
        %v2992 = vadd.f32 %v2698, %v2991
        %v2993 = vpop.f32.mrf.mxu0
        %v2994 = vadd.f32 %v2698, %v2993
        %2995 = vmatmul.bf16.gmra.mxu0 %v2580
        %v2996 = vpop.f32.mrf.mxu0
        %v2997 = vadd.f32 %v2698, %v2996
        %v2998 = vpop.f32.mrf.mxu0
        %v2999 = vadd.f32 %v2698, %v2998
        %3000 = vmatmul.bf16.gmra.mxu0 %v2584
        %v3001 = vpop.f32.mrf.mxu0
        %v3002 = vadd.f32 %v2698, %v3001
        %v3003 = vpop.f32.mrf.mxu0
        %v3004 = vadd.f32 %v2698, %v3003
        %3005 = vmatmul.bf16.gmra.mxu0 %v2588
        %v3006 = vpop.f32.mrf.mxu0
        %v3007 = vadd.f32 %v2698, %v3006
        %v3008 = vpop.f32.mrf.mxu0
        %v3009 = vadd.f32 %v2698, %v3008
        %3010 = vmatmul.bf16.gmra.mxu0 %v2592
        %v3011 = vpop.f32.mrf.mxu0
        %v3012 = vadd.f32 %v2698, %v3011
        %v3013 = vpop.f32.mrf.mxu0
        %v3014 = vadd.f32 %v2698, %v3013
        %3015 = vmatmul.bf16.gmra.mxu0 %v2596
        %v3016 = vpop.f32.mrf.mxu0
        %v3017 = vadd.f32 %v2698, %v3016
        %v3018 = vpop.f32.mrf.mxu0
        %v3019 = vadd.f32 %v2698, %v3018
        %3020 = vmatmul.bf16.gmra.mxu0 %v2600
        %v3021 = vpop.f32.mrf.mxu0
        %v3022 = vadd.f32 %v2698, %v3021
        %v3023 = vpop.f32.mrf.mxu0
        %v3024 = vadd.f32 %v2698, %v3023
        %3025 = vmatmul.bf16.gmra.mxu0 %v2604
        %v3026 = vpop.f32.mrf.mxu0
        %v3027 = vadd.f32 %v2698, %v3026
        %v3028 = vpop.f32.mrf.mxu0
        %v3029 = vadd.f32 %v2698, %v3028
        %3030 = vmatmul.bf16.gmra.mxu0 %v2608
        %v3031 = vpop.f32.mrf.mxu0
        %v3032 = vadd.f32 %v2698, %v3031
        %v3033 = vpop.f32.mrf.mxu0
        %v3034 = vadd.f32 %v2698, %v3033
        %3035 = vmatmul.bf16.gmra.mxu0 %v2612
        %v3036 = vpop.f32.mrf.mxu0
        %v3037 = vadd.f32 %v2698, %v3036
        %v3038 = vpop.f32.mrf.mxu0
        %v3039 = vadd.f32 %v2698, %v3038
        %3040 = vmatmul.bf16.gmra.mxu0 %v2616
        %v3041 = vpop.f32.mrf.mxu0
        %v3042 = vadd.f32 %v2698, %v3041
        %v3043 = vpop.f32.mrf.mxu0
        %v3044 = vadd.f32 %v2698, %v3043
        %3045 = vmatmul.bf16.gmra.mxu0 %v2620
        %v3046 = vpop.f32.mrf.mxu0
        %v3047 = vadd.f32 %v2698, %v3046
        %v3048 = vpop.f32.mrf.mxu0
        %v3049 = vadd.f32 %v2698, %v3048
        %3050 = vmatmul.bf16.gmra.mxu0 %v2624
        %v3051 = vpop.f32.mrf.mxu0
        %v3052 = vadd.f32 %v2698, %v3051
        %v3053 = vpop.f32.mrf.mxu0
        %v3054 = vadd.f32 %v2698, %v3053
        %3055 = vmatmul.bf16.gmra.mxu0 %v2628
        %v3056 = vpop.f32.mrf.mxu0
        %v3057 = vadd.f32 %v2698, %v3056
        %v3058 = vpop.f32.mrf.mxu0
        %v3059 = vadd.f32 %v2698, %v3058
        %3060 = vdwg.mxu0
        %3061 = vmatpush.bf16.msra.mxu0 %v2843
        %3062 = vmatpush.bf16.msra.mxu0 %v2842
        %3063 = vmatpush.bf16.msra.mxu0 %v2841
        %3064 = vmatpush.bf16.msra.mxu0 %v2840
        %3065 = vmatpush.bf16.msra.mxu0 %v2839
        %3066 = vmatpush.bf16.msra.mxu0 %v2838
        %3067 = vmatpush.bf16.msra.mxu0 %v2837
        %3068 = vmatpush.bf16.msra.mxu0 %v2836
        %3069 = vmatmul.bf16.gmra.mxu0 %v2505
        %v3070 = vpop.f32.mrf.mxu0
        %v3071 = vadd.f32 %v2902, %v3070
        %v3072 = vpop.f32.mrf.mxu0
        %v3073 = vadd.f32 %v2904, %v3072
        %3074 = vmatmul.bf16.gmra.mxu0 %v2509
        %v3075 = vpop.f32.mrf.mxu0
        %v3076 = vadd.f32 %v2907, %v3075
        %v3077 = vpop.f32.mrf.mxu0
        %v3078 = vadd.f32 %v2909, %v3077
        %3079 = vmatmul.bf16.gmra.mxu0 %v2513
        %v3080 = vpop.f32.mrf.mxu0
        %v3081 = vadd.f32 %v2912, %v3080
        %v3082 = vpop.f32.mrf.mxu0
        %v3083 = vadd.f32 %v2914, %v3082
        %3084 = vmatmul.bf16.gmra.mxu0 %v2517
        %v3085 = vpop.f32.mrf.mxu0
        %v3086 = vadd.f32 %v2917, %v3085
        %v3087 = vpop.f32.mrf.mxu0
        %v3088 = vadd.f32 %v2919, %v3087
        %3089 = vmatmul.bf16.gmra.mxu0 %v2521
        %v3090 = vpop.f32.mrf.mxu0
        %v3091 = vadd.f32 %v2922, %v3090
        %v3092 = vpop.f32.mrf.mxu0
        %v3093 = vadd.f32 %v2924, %v3092
        %3094 = vmatmul.bf16.gmra.mxu0 %v2525
        %v3095 = vpop.f32.mrf.mxu0
        %v3096 = vadd.f32 %v2927, %v3095
        %v3097 = vpop.f32.mrf.mxu0
        %v3098 = vadd.f32 %v2929, %v3097
        %3099 = vmatmul.bf16.gmra.mxu0 %v2529
        %v3100 = vpop.f32.mrf.mxu0
        %v3101 = vadd.f32 %v2932, %v3100
        %v3102 = vpop.f32.mrf.mxu0
        %v3103 = vadd.f32 %v2934, %v3102
        %3104 = vmatmul.bf16.gmra.mxu0 %v2533
        %v3105 = vpop.f32.mrf.mxu0
        %v3106 = vadd.f32 %v2937, %v3105
        %v3107 = vpop.f32.mrf.mxu0
        %v3108 = vadd.f32 %v2939, %v3107
        %3109 = vmatmul.bf16.gmra.mxu0 %v2537
        %v3110 = vpop.f32.mrf.mxu0
        %v3111 = vadd.f32 %v2942, %v3110
        %v3112 = vpop.f32.mrf.mxu0
        %v3113 = vadd.f32 %v2944, %v3112
        %3114 = vmatmul.bf16.gmra.mxu0 %v2541
        %v3115 = vpop.f32.mrf.mxu0
        %v3116 = vadd.f32 %v2947, %v3115
        %v3117 = vpop.f32.mrf.mxu0
        %v3118 = vadd.f32 %v2949, %v3117
        %3119 = vmatmul.bf16.gmra.mxu0 %v2545
        %v3120 = vpop.f32.mrf.mxu0
        %v3121 = vadd.f32 %v2952, %v3120
        %v3122 = vpop.f32.mrf.mxu0
        %v3123 = vadd.f32 %v2954, %v3122
        %3124 = vmatmul.bf16.gmra.mxu0 %v2549
        %v3125 = vpop.f32.mrf.mxu0
        %v3126 = vadd.f32 %v2957, %v3125
        %v3127 = vpop.f32.mrf.mxu0
        %v3128 = vadd.f32 %v2959, %v3127
        %3129 = vmatmul.bf16.gmra.mxu0 %v2553
        %v3130 = vpop.f32.mrf.mxu0
        %v3131 = vadd.f32 %v2962, %v3130
        %v3132 = vpop.f32.mrf.mxu0
        %v3133 = vadd.f32 %v2964, %v3132
        %3134 = vmatmul.bf16.gmra.mxu0 %v2557
        %v3135 = vpop.f32.mrf.mxu0
        %v3136 = vadd.f32 %v2967, %v3135
        %v3137 = vpop.f32.mrf.mxu0
        %v3138 = vadd.f32 %v2969, %v3137
        %3139 = vmatmul.bf16.gmra.mxu0 %v2561
        %v3140 = vpop.f32.mrf.mxu0
        %v3141 = vadd.f32 %v2972, %v3140
        %v3142 = vpop.f32.mrf.mxu0
        %v3143 = vadd.f32 %v2974, %v3142
        %3144 = vmatmul.bf16.gmra.mxu0 %v2565
        %v3145 = vpop.f32.mrf.mxu0
        %v3146 = vadd.f32 %v2977, %v3145
        %v3147 = vpop.f32.mrf.mxu0
        %v3148 = vadd.f32 %v2979, %v3147
        %3149 = vmatmul.bf16.gmra.mxu0 %v2569
        %v3150 = vpop.f32.mrf.mxu0
        %v3151 = vadd.f32 %v2982, %v3150
        %v3152 = vpop.f32.mrf.mxu0
        %v3153 = vadd.f32 %v2984, %v3152
        %3154 = vmatmul.bf16.gmra.mxu0 %v2573
        %v3155 = vpop.f32.mrf.mxu0
        %v3156 = vadd.f32 %v2987, %v3155
        %v3157 = vpop.f32.mrf.mxu0
        %v3158 = vadd.f32 %v2989, %v3157
        %3159 = vmatmul.bf16.gmra.mxu0 %v2577
        %v3160 = vpop.f32.mrf.mxu0
        %v3161 = vadd.f32 %v2992, %v3160
        %v3162 = vpop.f32.mrf.mxu0
        %v3163 = vadd.f32 %v2994, %v3162
        %3164 = vmatmul.bf16.gmra.mxu0 %v2581
        %v3165 = vpop.f32.mrf.mxu0
        %v3166 = vadd.f32 %v2997, %v3165
        %v3167 = vpop.f32.mrf.mxu0
        %v3168 = vadd.f32 %v2999, %v3167
        %3169 = vmatmul.bf16.gmra.mxu0 %v2585
        %v3170 = vpop.f32.mrf.mxu0
        %v3171 = vadd.f32 %v3002, %v3170
        %v3172 = vpop.f32.mrf.mxu0
        %v3173 = vadd.f32 %v3004, %v3172
        %3174 = vmatmul.bf16.gmra.mxu0 %v2589
        %v3175 = vpop.f32.mrf.mxu0
        %v3176 = vadd.f32 %v3007, %v3175
        %v3177 = vpop.f32.mrf.mxu0
        %v3178 = vadd.f32 %v3009, %v3177
        %3179 = vmatmul.bf16.gmra.mxu0 %v2593
        %v3180 = vpop.f32.mrf.mxu0
        %v3181 = vadd.f32 %v3012, %v3180
        %v3182 = vpop.f32.mrf.mxu0
        %v3183 = vadd.f32 %v3014, %v3182
        %3184 = vmatmul.bf16.gmra.mxu0 %v2597
        %v3185 = vpop.f32.mrf.mxu0
        %v3186 = vadd.f32 %v3017, %v3185
        %v3187 = vpop.f32.mrf.mxu0
        %v3188 = vadd.f32 %v3019, %v3187
        %3189 = vmatmul.bf16.gmra.mxu0 %v2601
        %v3190 = vpop.f32.mrf.mxu0
        %v3191 = vadd.f32 %v3022, %v3190
        %v3192 = vpop.f32.mrf.mxu0
        %v3193 = vadd.f32 %v3024, %v3192
        %3194 = vmatmul.bf16.gmra.mxu0 %v2605
        %v3195 = vpop.f32.mrf.mxu0
        %v3196 = vadd.f32 %v3027, %v3195
        %v3197 = vpop.f32.mrf.mxu0
        %v3198 = vadd.f32 %v3029, %v3197
        %3199 = vmatmul.bf16.gmra.mxu0 %v2609
        %v3200 = vpop.f32.mrf.mxu0
        %v3201 = vadd.f32 %v3032, %v3200
        %v3202 = vpop.f32.mrf.mxu0
        %v3203 = vadd.f32 %v3034, %v3202
        %3204 = vmatmul.bf16.gmra.mxu0 %v2613
        %v3205 = vpop.f32.mrf.mxu0
        %v3206 = vadd.f32 %v3037, %v3205
        %v3207 = vpop.f32.mrf.mxu0
        %v3208 = vadd.f32 %v3039, %v3207
        %3209 = vmatmul.bf16.gmra.mxu0 %v2617
        %v3210 = vpop.f32.mrf.mxu0
        %v3211 = vadd.f32 %v3042, %v3210
        %v3212 = vpop.f32.mrf.mxu0
        %v3213 = vadd.f32 %v3044, %v3212
        %3214 = vmatmul.bf16.gmra.mxu0 %v2621
        %v3215 = vpop.f32.mrf.mxu0
        %v3216 = vadd.f32 %v3047, %v3215
        %v3217 = vpop.f32.mrf.mxu0
        %v3218 = vadd.f32 %v3049, %v3217
        %3219 = vmatmul.bf16.gmra.mxu0 %v2625
        %v3220 = vpop.f32.mrf.mxu0
        %v3221 = vadd.f32 %v3052, %v3220
        %v3222 = vpop.f32.mrf.mxu0
        %v3223 = vadd.f32 %v3054, %v3222
        %3224 = vmatmul.bf16.gmra.mxu0 %v2629
        %v3225 = vpop.f32.mrf.mxu0
        %v3226 = vadd.f32 %v3057, %v3225
        %v3227 = vpop.f32.mrf.mxu0
        %v3228 = vadd.f32 %v3059, %v3227
        %3229 = vdwg.mxu0
        %3230 = vmatpush.bf16.msra.mxu0 %v2851
        %3231 = vmatpush.bf16.msra.mxu0 %v2850
        %3232 = vmatpush.bf16.msra.mxu0 %v2849
        %3233 = vmatpush.bf16.msra.mxu0 %v2848
        %3234 = vmatpush.bf16.msra.mxu0 %v2847
        %3235 = vmatpush.bf16.msra.mxu0 %v2846
        %3236 = vmatpush.bf16.msra.mxu0 %v2845
        %3237 = vmatpush.bf16.msra.mxu0 %v2844
        %3238 = vmatmul.bf16.gmra.mxu0 %v2506
        %v3239 = vpop.f32.mrf.mxu0
        %v3240 = vadd.f32 %v3071, %v3239
        %v3241 = vpop.f32.mrf.mxu0
        %v3242 = vadd.f32 %v3073, %v3241
        %3243 = vmatmul.bf16.gmra.mxu0 %v2510
        %v3244 = vpop.f32.mrf.mxu0
        %v3245 = vadd.f32 %v3076, %v3244
        %v3246 = vpop.f32.mrf.mxu0
        %v3247 = vadd.f32 %v3078, %v3246
        %3248 = vmatmul.bf16.gmra.mxu0 %v2514
        %v3249 = vpop.f32.mrf.mxu0
        %v3250 = vadd.f32 %v3081, %v3249
        %v3251 = vpop.f32.mrf.mxu0
        %v3252 = vadd.f32 %v3083, %v3251
        %3253 = vmatmul.bf16.gmra.mxu0 %v2518
        %v3254 = vpop.f32.mrf.mxu0
        %v3255 = vadd.f32 %v3086, %v3254
        %v3256 = vpop.f32.mrf.mxu0
        %v3257 = vadd.f32 %v3088, %v3256
        %3258 = vmatmul.bf16.gmra.mxu0 %v2522
        %v3259 = vpop.f32.mrf.mxu0
        %v3260 = vadd.f32 %v3091, %v3259
        %v3261 = vpop.f32.mrf.mxu0
        %v3262 = vadd.f32 %v3093, %v3261
        %3263 = vmatmul.bf16.gmra.mxu0 %v2526
        %v3264 = vpop.f32.mrf.mxu0
        %v3265 = vadd.f32 %v3096, %v3264
        %v3266 = vpop.f32.mrf.mxu0
        %v3267 = vadd.f32 %v3098, %v3266
        %3268 = vmatmul.bf16.gmra.mxu0 %v2530
        %v3269 = vpop.f32.mrf.mxu0
        %v3270 = vadd.f32 %v3101, %v3269
        %v3271 = vpop.f32.mrf.mxu0
        %v3272 = vadd.f32 %v3103, %v3271
        %3273 = vmatmul.bf16.gmra.mxu0 %v2534
        %v3274 = vpop.f32.mrf.mxu0
        %v3275 = vadd.f32 %v3106, %v3274
        %v3276 = vpop.f32.mrf.mxu0
        %v3277 = vadd.f32 %v3108, %v3276
        %3278 = vmatmul.bf16.gmra.mxu0 %v2538
        %v3279 = vpop.f32.mrf.mxu0
        %v3280 = vadd.f32 %v3111, %v3279
        %v3281 = vpop.f32.mrf.mxu0
        %v3282 = vadd.f32 %v3113, %v3281
        %3283 = vmatmul.bf16.gmra.mxu0 %v2542
        %v3284 = vpop.f32.mrf.mxu0
        %v3285 = vadd.f32 %v3116, %v3284
        %v3286 = vpop.f32.mrf.mxu0
        %v3287 = vadd.f32 %v3118, %v3286
        %3288 = vmatmul.bf16.gmra.mxu0 %v2546
        %v3289 = vpop.f32.mrf.mxu0
        %v3290 = vadd.f32 %v3121, %v3289
        %v3291 = vpop.f32.mrf.mxu0
        %v3292 = vadd.f32 %v3123, %v3291
        %3293 = vmatmul.bf16.gmra.mxu0 %v2550
        %v3294 = vpop.f32.mrf.mxu0
        %v3295 = vadd.f32 %v3126, %v3294
        %v3296 = vpop.f32.mrf.mxu0
        %v3297 = vadd.f32 %v3128, %v3296
        %3298 = vmatmul.bf16.gmra.mxu0 %v2554
        %v3299 = vpop.f32.mrf.mxu0
        %v3300 = vadd.f32 %v3131, %v3299
        %v3301 = vpop.f32.mrf.mxu0
        %v3302 = vadd.f32 %v3133, %v3301
        %3303 = vmatmul.bf16.gmra.mxu0 %v2558
        %v3304 = vpop.f32.mrf.mxu0
        %v3305 = vadd.f32 %v3136, %v3304
        %v3306 = vpop.f32.mrf.mxu0
        %v3307 = vadd.f32 %v3138, %v3306
        %3308 = vmatmul.bf16.gmra.mxu0 %v2562
        %v3309 = vpop.f32.mrf.mxu0
        %v3310 = vadd.f32 %v3141, %v3309
        %v3311 = vpop.f32.mrf.mxu0
        %v3312 = vadd.f32 %v3143, %v3311
        %3313 = vmatmul.bf16.gmra.mxu0 %v2566
        %v3314 = vpop.f32.mrf.mxu0
        %v3315 = vadd.f32 %v3146, %v3314
        %v3316 = vpop.f32.mrf.mxu0
        %v3317 = vadd.f32 %v3148, %v3316
        %3318 = vmatmul.bf16.gmra.mxu0 %v2570
        %v3319 = vpop.f32.mrf.mxu0
        %v3320 = vadd.f32 %v3151, %v3319
        %v3321 = vpop.f32.mrf.mxu0
        %v3322 = vadd.f32 %v3153, %v3321
        %3323 = vmatmul.bf16.gmra.mxu0 %v2574
        %v3324 = vpop.f32.mrf.mxu0
        %v3325 = vadd.f32 %v3156, %v3324
        %v3326 = vpop.f32.mrf.mxu0
        %v3327 = vadd.f32 %v3158, %v3326
        %3328 = vmatmul.bf16.gmra.mxu0 %v2578
        %v3329 = vpop.f32.mrf.mxu0
        %v3330 = vadd.f32 %v3161, %v3329
        %v3331 = vpop.f32.mrf.mxu0
        %v3332 = vadd.f32 %v3163, %v3331
        %3333 = vmatmul.bf16.gmra.mxu0 %v2582
        %v3334 = vpop.f32.mrf.mxu0
        %v3335 = vadd.f32 %v3166, %v3334
        %v3336 = vpop.f32.mrf.mxu0
        %v3337 = vadd.f32 %v3168, %v3336
        %3338 = vmatmul.bf16.gmra.mxu0 %v2586
        %v3339 = vpop.f32.mrf.mxu0
        %v3340 = vadd.f32 %v3171, %v3339
        %v3341 = vpop.f32.mrf.mxu0
        %v3342 = vadd.f32 %v3173, %v3341
        %3343 = vmatmul.bf16.gmra.mxu0 %v2590
        %v3344 = vpop.f32.mrf.mxu0
        %v3345 = vadd.f32 %v3176, %v3344
        %v3346 = vpop.f32.mrf.mxu0
        %v3347 = vadd.f32 %v3178, %v3346
        %3348 = vmatmul.bf16.gmra.mxu0 %v2594
        %v3349 = vpop.f32.mrf.mxu0
        %v3350 = vadd.f32 %v3181, %v3349
        %v3351 = vpop.f32.mrf.mxu0
        %v3352 = vadd.f32 %v3183, %v3351
        %3353 = vmatmul.bf16.gmra.mxu0 %v2598
        %v3354 = vpop.f32.mrf.mxu0
        %v3355 = vadd.f32 %v3186, %v3354
        %v3356 = vpop.f32.mrf.mxu0
        %v3357 = vadd.f32 %v3188, %v3356
        %3358 = vmatmul.bf16.gmra.mxu0 %v2602
        %v3359 = vpop.f32.mrf.mxu0
        %v3360 = vadd.f32 %v3191, %v3359
        %v3361 = vpop.f32.mrf.mxu0
        %v3362 = vadd.f32 %v3193, %v3361
        %3363 = vmatmul.bf16.gmra.mxu0 %v2606
        %v3364 = vpop.f32.mrf.mxu0
        %v3365 = vadd.f32 %v3196, %v3364
        %v3366 = vpop.f32.mrf.mxu0
        %v3367 = vadd.f32 %v3198, %v3366
        %3368 = vmatmul.bf16.gmra.mxu0 %v2610
        %v3369 = vpop.f32.mrf.mxu0
        %v3370 = vadd.f32 %v3201, %v3369
        %v3371 = vpop.f32.mrf.mxu0
        %v3372 = vadd.f32 %v3203, %v3371
        %3373 = vmatmul.bf16.gmra.mxu0 %v2614
        %v3374 = vpop.f32.mrf.mxu0
        %v3375 = vadd.f32 %v3206, %v3374
        %v3376 = vpop.f32.mrf.mxu0
        %v3377 = vadd.f32 %v3208, %v3376
        %3378 = vmatmul.bf16.gmra.mxu0 %v2618
        %v3379 = vpop.f32.mrf.mxu0
        %v3380 = vadd.f32 %v3211, %v3379
        %v3381 = vpop.f32.mrf.mxu0
        %v3382 = vadd.f32 %v3213, %v3381
        %3383 = vmatmul.bf16.gmra.mxu0 %v2622
        %v3384 = vpop.f32.mrf.mxu0
        %v3385 = vadd.f32 %v3216, %v3384
        %v3386 = vpop.f32.mrf.mxu0
        %v3387 = vadd.f32 %v3218, %v3386
        %3388 = vmatmul.bf16.gmra.mxu0 %v2626
        %v3389 = vpop.f32.mrf.mxu0
        %v3390 = vadd.f32 %v3221, %v3389
        %v3391 = vpop.f32.mrf.mxu0
        %v3392 = vadd.f32 %v3223, %v3391
        %3393 = vmatmul.bf16.gmra.mxu0 %v2630
        %v3394 = vpop.f32.mrf.mxu0
        %v3395 = vadd.f32 %v3226, %v3394
        %v3396 = vpop.f32.mrf.mxu0
        %v3397 = vadd.f32 %v3228, %v3396
        %3398 = vdwg.mxu0
        %3399 = vmatpush.bf16.msra.mxu0 %v2859
        %3400 = vmatpush.bf16.msra.mxu0 %v2858
        %3401 = vmatpush.bf16.msra.mxu0 %v2857
        %3402 = vmatpush.bf16.msra.mxu0 %v2856
        %3403 = vmatpush.bf16.msra.mxu0 %v2855
        %3404 = vmatpush.bf16.msra.mxu0 %v2854
        %3405 = vmatpush.bf16.msra.mxu0 %v2853
        %3406 = vmatpush.bf16.msra.mxu0 %v2852
        %3407 = vmatmul.bf16.gmra.mxu0 %v2507
        %v3408 = vpop.f32.mrf.mxu0
        %v3409 = vadd.f32 %v3240, %v3408
        %v3410 = vpop.f32.mrf.mxu0
        %v3411 = vadd.f32 %v3242, %v3410
        %3412 = vmatmul.bf16.gmra.mxu0 %v2511
        %v3413 = vpop.f32.mrf.mxu0
        %v3414 = vadd.f32 %v3245, %v3413
        %v3415 = vpop.f32.mrf.mxu0
        %v3416 = vadd.f32 %v3247, %v3415
        %3417 = vmatmul.bf16.gmra.mxu0 %v2515
        %v3418 = vpop.f32.mrf.mxu0
        %v3419 = vadd.f32 %v3250, %v3418
        %v3420 = vpop.f32.mrf.mxu0
        %v3421 = vadd.f32 %v3252, %v3420
        %3422 = vmatmul.bf16.gmra.mxu0 %v2519
        %v3423 = vpop.f32.mrf.mxu0
        %v3424 = vadd.f32 %v3255, %v3423
        %v3425 = vpop.f32.mrf.mxu0
        %v3426 = vadd.f32 %v3257, %v3425
        %3427 = vmatmul.bf16.gmra.mxu0 %v2523
        %v3428 = vpop.f32.mrf.mxu0
        %v3429 = vadd.f32 %v3260, %v3428
        %v3430 = vpop.f32.mrf.mxu0
        %v3431 = vadd.f32 %v3262, %v3430
        %3432 = vmatmul.bf16.gmra.mxu0 %v2527
        %v3433 = vpop.f32.mrf.mxu0
        %v3434 = vadd.f32 %v3265, %v3433
        %v3435 = vpop.f32.mrf.mxu0
        %v3436 = vadd.f32 %v3267, %v3435
        %3437 = vmatmul.bf16.gmra.mxu0 %v2531
        %v3438 = vpop.f32.mrf.mxu0
        %v3439 = vadd.f32 %v3270, %v3438
        %v3440 = vpop.f32.mrf.mxu0
        %v3441 = vadd.f32 %v3272, %v3440
        %3442 = vmatmul.bf16.gmra.mxu0 %v2535
        %v3443 = vpop.f32.mrf.mxu0
        %v3444 = vadd.f32 %v3275, %v3443
        %v3445 = vpop.f32.mrf.mxu0
        %v3446 = vadd.f32 %v3277, %v3445
        %3447 = vmatmul.bf16.gmra.mxu0 %v2539
        %v3448 = vpop.f32.mrf.mxu0
        %v3449 = vadd.f32 %v3280, %v3448
        %v3450 = vpop.f32.mrf.mxu0
        %v3451 = vadd.f32 %v3282, %v3450
        %3452 = vmatmul.bf16.gmra.mxu0 %v2543
        %v3453 = vpop.f32.mrf.mxu0
        %v3454 = vadd.f32 %v3285, %v3453
        %v3455 = vpop.f32.mrf.mxu0
        %v3456 = vadd.f32 %v3287, %v3455
        %3457 = vmatmul.bf16.gmra.mxu0 %v2547
        %v3458 = vpop.f32.mrf.mxu0
        %v3459 = vadd.f32 %v3290, %v3458
        %v3460 = vpop.f32.mrf.mxu0
        %v3461 = vadd.f32 %v3292, %v3460
        %3462 = vmatmul.bf16.gmra.mxu0 %v2551
        %v3463 = vpop.f32.mrf.mxu0
        %v3464 = vadd.f32 %v3295, %v3463
        %v3465 = vpop.f32.mrf.mxu0
        %v3466 = vadd.f32 %v3297, %v3465
        %3467 = vmatmul.bf16.gmra.mxu0 %v2555
        %v3468 = vpop.f32.mrf.mxu0
        %v3469 = vadd.f32 %v3300, %v3468
        %v3470 = vpop.f32.mrf.mxu0
        %v3471 = vadd.f32 %v3302, %v3470
        %3472 = vmatmul.bf16.gmra.mxu0 %v2559
        %v3473 = vpop.f32.mrf.mxu0
        %v3474 = vadd.f32 %v3305, %v3473
        %v3475 = vpop.f32.mrf.mxu0
        %v3476 = vadd.f32 %v3307, %v3475
        %3477 = vmatmul.bf16.gmra.mxu0 %v2563
        %v3478 = vpop.f32.mrf.mxu0
        %v3479 = vadd.f32 %v3310, %v3478
        %v3480 = vpop.f32.mrf.mxu0
        %v3481 = vadd.f32 %v3312, %v3480
        %3482 = vmatmul.bf16.gmra.mxu0 %v2567
        %v3483 = vpop.f32.mrf.mxu0
        %v3484 = vadd.f32 %v3315, %v3483
        %v3485 = vpop.f32.mrf.mxu0
        %v3486 = vadd.f32 %v3317, %v3485
        %3487 = vmatmul.bf16.gmra.mxu0 %v2571
        %v3488 = vpop.f32.mrf.mxu0
        %v3489 = vadd.f32 %v3320, %v3488
        %v3490 = vpop.f32.mrf.mxu0
        %v3491 = vadd.f32 %v3322, %v3490
        %3492 = vmatmul.bf16.gmra.mxu0 %v2575
        %v3493 = vpop.f32.mrf.mxu0
        %v3494 = vadd.f32 %v3325, %v3493
        %v3495 = vpop.f32.mrf.mxu0
        %v3496 = vadd.f32 %v3327, %v3495
        %3497 = vmatmul.bf16.gmra.mxu0 %v2579
        %v3498 = vpop.f32.mrf.mxu0
        %v3499 = vadd.f32 %v3330, %v3498
        %v3500 = vpop.f32.mrf.mxu0
        %v3501 = vadd.f32 %v3332, %v3500
        %3502 = vmatmul.bf16.gmra.mxu0 %v2583
        %v3503 = vpop.f32.mrf.mxu0
        %v3504 = vadd.f32 %v3335, %v3503
        %v3505 = vpop.f32.mrf.mxu0
        %v3506 = vadd.f32 %v3337, %v3505
        %3507 = vmatmul.bf16.gmra.mxu0 %v2587
        %v3508 = vpop.f32.mrf.mxu0
        %v3509 = vadd.f32 %v3340, %v3508
        %v3510 = vpop.f32.mrf.mxu0
        %v3511 = vadd.f32 %v3342, %v3510
        %3512 = vmatmul.bf16.gmra.mxu0 %v2591
        %v3513 = vpop.f32.mrf.mxu0
        %v3514 = vadd.f32 %v3345, %v3513
        %v3515 = vpop.f32.mrf.mxu0
        %v3516 = vadd.f32 %v3347, %v3515
        %3517 = vmatmul.bf16.gmra.mxu0 %v2595
        %v3518 = vpop.f32.mrf.mxu0
        %v3519 = vadd.f32 %v3350, %v3518
        %v3520 = vpop.f32.mrf.mxu0
        %v3521 = vadd.f32 %v3352, %v3520
        %3522 = vmatmul.bf16.gmra.mxu0 %v2599
        %v3523 = vpop.f32.mrf.mxu0
        %v3524 = vadd.f32 %v3355, %v3523
        %v3525 = vpop.f32.mrf.mxu0
        %v3526 = vadd.f32 %v3357, %v3525
        %3527 = vmatmul.bf16.gmra.mxu0 %v2603
        %v3528 = vpop.f32.mrf.mxu0
        %v3529 = vadd.f32 %v3360, %v3528
        %v3530 = vpop.f32.mrf.mxu0
        %v3531 = vadd.f32 %v3362, %v3530
        %3532 = vmatmul.bf16.gmra.mxu0 %v2607
        %v3533 = vpop.f32.mrf.mxu0
        %v3534 = vadd.f32 %v3365, %v3533
        %v3535 = vpop.f32.mrf.mxu0
        %v3536 = vadd.f32 %v3367, %v3535
        %3537 = vmatmul.bf16.gmra.mxu0 %v2611
        %v3538 = vpop.f32.mrf.mxu0
        %v3539 = vadd.f32 %v3370, %v3538
        %v3540 = vpop.f32.mrf.mxu0
        %v3541 = vadd.f32 %v3372, %v3540
        %3542 = vmatmul.bf16.gmra.mxu0 %v2615
        %v3543 = vpop.f32.mrf.mxu0
        %v3544 = vadd.f32 %v3375, %v3543
        %v3545 = vpop.f32.mrf.mxu0
        %v3546 = vadd.f32 %v3377, %v3545
        %3547 = vmatmul.bf16.gmra.mxu0 %v2619
        %v3548 = vpop.f32.mrf.mxu0
        %v3549 = vadd.f32 %v3380, %v3548
        %v3550 = vpop.f32.mrf.mxu0
        %v3551 = vadd.f32 %v3382, %v3550
        %3552 = vmatmul.bf16.gmra.mxu0 %v2623
        %v3553 = vpop.f32.mrf.mxu0
        %v3554 = vadd.f32 %v3385, %v3553
        %v3555 = vpop.f32.mrf.mxu0
        %v3556 = vadd.f32 %v3387, %v3555
        %3557 = vmatmul.bf16.gmra.mxu0 %v2627
        %v3558 = vpop.f32.mrf.mxu0
        %v3559 = vadd.f32 %v3390, %v3558
        %v3560 = vpop.f32.mrf.mxu0
        %v3561 = vadd.f32 %v3392, %v3560
        %3562 = vmatmul.bf16.gmra.mxu0 %v2631
        %v3563 = vpop.f32.mrf.mxu0
        %v3564 = vadd.f32 %v3395, %v3563
        %v3565 = vpop.f32.mrf.mxu0
        %v3566 = vadd.f32 %v3397, %v3565
        %3567 = vdwg.mxu0
        %3568 = vst [vmem:[%s307] sm:$0xff] %v3409
        %3569 = vst [vmem:[%s307 + $0x8] sm:$0xff] %v3411
        %3570 = vst [vmem:[%s307 + $0x10] sm:$0xff] %v3414
        %3571 = vst [vmem:[%s307 + $0x18] sm:$0xff] %v3416
        %3572 = vst [vmem:[%s307 + $0x20] sm:$0xff] %v3419
        %3573 = vst [vmem:[%s307 + $0x28] sm:$0xff] %v3421
        %3574 = vst [vmem:[%s307 + $0x30] sm:$0xff] %v3424
        %3575 = vst [vmem:[%s307 + $0x38] sm:$0xff] %v3426
        %3576 = vst [vmem:[%s307 + $0x40] sm:$0xff] %v3429
        %3577 = vst [vmem:[%s307 + $0x48] sm:$0xff] %v3431
        %3578 = vst [vmem:[%s307 + $0x50] sm:$0xff] %v3434
        %3579 = vst [vmem:[%s307 + $0x58] sm:$0xff] %v3436
        %3580 = vst [vmem:[%s307 + $0x60] sm:$0xff] %v3439
        %3581 = vst [vmem:[%s307 + $0x68] sm:$0xff] %v3441
        %3582 = vst [vmem:[%s307 + $0x70] sm:$0xff] %v3444
        %3583 = vst [vmem:[%s307 + $0x78] sm:$0xff] %v3446
        %3584 = vst [vmem:[%s307 + $0x80] sm:$0xff] %v3449
        %3585 = vst [vmem:[%s307 + $0x88] sm:$0xff] %v3451
        %3586 = vst [vmem:[%s307 + $0x90] sm:$0xff] %v3454
        %3587 = vst [vmem:[%s307 + $0x98] sm:$0xff] %v3456
        %3588 = vst [vmem:[%s307 + $0xa0] sm:$0xff] %v3459
        %3589 = vst [vmem:[%s307 + $0xa8] sm:$0xff] %v3461
        %3590 = vst [vmem:[%s307 + $0xb0] sm:$0xff] %v3464
        %3591 = vst [vmem:[%s307 + $0xb8] sm:$0xff] %v3466
        %3592 = vst [vmem:[%s307 + $0xc0] sm:$0xff] %v3469
        %3593 = vst [vmem:[%s307 + $0xc8] sm:$0xff] %v3471
        %3594 = vst [vmem:[%s307 + $0xd0] sm:$0xff] %v3474
        %3595 = vst [vmem:[%s307 + $0xd8] sm:$0xff] %v3476
        %3596 = vst [vmem:[%s307 + $0xe0] sm:$0xff] %v3479
        %3597 = vst [vmem:[%s307 + $0xe8] sm:$0xff] %v3481
        %3598 = vst [vmem:[%s307 + $0xf0] sm:$0xff] %v3484
        %3599 = vst [vmem:[%s307 + $0xf8] sm:$0xff] %v3486
        %3600 = vst [vmem:[%s307 + $0x100] sm:$0xff] %v3489
        %3601 = vst [vmem:[%s307 + $0x108] sm:$0xff] %v3491
        %3602 = vst [vmem:[%s307 + $0x110] sm:$0xff] %v3494
        %3603 = vst [vmem:[%s307 + $0x118] sm:$0xff] %v3496
        %3604 = vst [vmem:[%s307 + $0x120] sm:$0xff] %v3499
        %3605 = vst [vmem:[%s307 + $0x128] sm:$0xff] %v3501
        %3606 = vst [vmem:[%s307 + $0x130] sm:$0xff] %v3504
        %3607 = vst [vmem:[%s307 + $0x138] sm:$0xff] %v3506
        %3608 = vst [vmem:[%s307 + $0x140] sm:$0xff] %v3509
        %3609 = vst [vmem:[%s307 + $0x148] sm:$0xff] %v3511
        %3610 = vst [vmem:[%s307 + $0x150] sm:$0xff] %v3514
        %3611 = vst [vmem:[%s307 + $0x158] sm:$0xff] %v3516
        %3612 = vst [vmem:[%s307 + $0x160] sm:$0xff] %v3519
        %3613 = vst [vmem:[%s307 + $0x168] sm:$0xff] %v3521
        %3614 = vst [vmem:[%s307 + $0x170] sm:$0xff] %v3524
        %3615 = vst [vmem:[%s307 + $0x178] sm:$0xff] %v3526
        %3616 = vst [vmem:[%s307 + $0x180] sm:$0xff] %v3529
        %3617 = vst [vmem:[%s307 + $0x188] sm:$0xff] %v3531
        %3618 = vst [vmem:[%s307 + $0x190] sm:$0xff] %v3534
        %3619 = vst [vmem:[%s307 + $0x198] sm:$0xff] %v3536
        %3620 = vst [vmem:[%s307 + $0x1a0] sm:$0xff] %v3539
        %3621 = vst [vmem:[%s307 + $0x1a8] sm:$0xff] %v3541
        %3622 = vst [vmem:[%s307 + $0x1b0] sm:$0xff] %v3544
        %3623 = vst [vmem:[%s307 + $0x1b8] sm:$0xff] %v3546
        %3624 = vst [vmem:[%s307 + $0x1c0] sm:$0xff] %v3549
        %3625 = vst [vmem:[%s307 + $0x1c8] sm:$0xff] %v3551
        %3626 = vst [vmem:[%s307 + $0x1d0] sm:$0xff] %v3554
        %3627 = vst [vmem:[%s307 + $0x1d8] sm:$0xff] %v3556
        %3628 = vst [vmem:[%s307 + $0x1e0] sm:$0xff] %v3559
        %3629 = vst [vmem:[%s307 + $0x1e8] sm:$0xff] %v3561
        %3630 = vst [vmem:[%s307 + $0x1f0] sm:$0xff] %v3564
        %3631 = vst [vmem:[%s307 + $0x1f8] sm:$0xff] %v3566
        %s3632 = sand.u32 %s142, 1
        %s3633 = scalar_lea.sflag [#allocation4], %s3632
        %s3634 = sand.u32 %s142, 1
        %s3635 = smul.addr %s3634, 512
        %s3636 = scalar_lea.vmem [#allocation11], %s3635
        // Predicated region
        $region61: #{tpu_custom_call.1} parent=39 // pred_check
          %p3637 = pneg %p152
        $region62: #{tpu_custom_call.1} parent=39 // pred_check_branch
          %3639 = sbr.rel (%p3637) target = $region64
        $region63: #{tpu_custom_call.1} parent=39 // pred_region
          %s3640 = smul.u32 64, %s24
          %3642 = vsyncadd %s3633, 0
          %s3643 = smul.addr %s3640, 8
          %s3644 = scalar_lea.hbm %s5, %s3643
          %s3645 = sshll.u32 %s3636, 4
          %s3646 = int_to_ptr.vmem [resolvable:$true] %s3645
          %s3647 = sshll.u32 %s3644, 4
          %s3648 = int_to_ptr.hbm [resolvable:$true] %s3647
          %3653 = dma.vmem_to_hbm [thread:$0]  %s3646, 8192, %s3648, %s3633, 128, 128, 8
        $region64: #{tpu_custom_call.1} parent=39 // pred_fallthru
          _
      $region40: #{tpu_custom_call.1} parent=5 // pred_fallthru
        _
      %p3654 = scmp.le.s32.totalorder 2, %s19
      // Predicated region
      $region65: #{tpu_custom_call.1} parent=5 // pred_check
        %p3655 = pneg %p3654
      $region66: #{tpu_custom_call.1} parent=5 // pred_check_branch
        %3657 = sbr.rel (%p3655) target = $region68
      $region67: #{tpu_custom_call.1} parent=5 // pred_region
        %s3658 = ssub.s32 %s19, 2
        // Predicated region
        $region69: #{tpu_custom_call.1} parent=67 // pred_check
          %p3659 = pneg %p158
        $region70: #{tpu_custom_call.1} parent=67 // pred_check_branch
          %3661 = sbr.rel (%p3659) target = $region72
        $region71: #{tpu_custom_call.1} parent=67 // pred_region
          %s3662 = sand.u32 %s143, 1
          %s3663 = scalar_lea.sflag [#allocation4], %s3662
          %s3664 = sand.u32 %s143, 1
          %s3665 = smul.addr %s3664, 512
          %s3666 = scalar_lea.vmem [#allocation11], %s3665
          %3668 = dma.done %s3663, 8192
        $region72: #{tpu_custom_call.1} parent=67 // pred_fallthru
          _
      $region68: #{tpu_custom_call.1} parent=5 // pred_fallthru
        _
    $region6: #{tpu_custom_call.1} parent=1 // loop_footer
      %s23 = sadd.s32 1, %s19
    $region7: #{tpu_custom_call.1} parent=1 // loop_footer_branch
      %18 = sbr.rel target = $region3
    $region8: #{tpu_custom_call.1} parent=1 // loop_exit
      _
    %3669 = vsyncpa [#allocation3], 1
    %s3670 = scalar_lea.sflag [#allocation3], 1
    %3671 = vsyncpa %s3670, 1
    %3672 = vsyncpa [#allocation6], 1
    %3673 = vsyncpa [#allocation9], 1
    %3674 = vsyncpa [#allocation4], 1
    %s3675 = scalar_lea.sflag [#allocation4], 1
    %3676 = vsyncpa %s3675, 1

</llo_original>
